<compile_context>
chip_gen: v7x
topology: tpu7x:2x2x1
jax: 0.10.0
libtpu: 0.0.40
codegen_flags: <defaults>
</compile_context>

<pallas_src>
import functools
import math

import numpy as np

import jax
import jax.numpy as jnp
from jax import lax
from jax.experimental import pallas as pl
from jax.experimental.pallas import tpu as pltpu


# ----------------------------------------------------------------------------
# In-kernel helpers
# ----------------------------------------------------------------------------
def _wdot(x, w_ref):
    """bf16 MXU matmul against a bf16 weight ref, f32 accumulation."""
    return jnp.dot(x.astype(jnp.bfloat16), w_ref[...],
                   preferred_element_type=jnp.float32)


def _sigmoid(x):
    # Divide goes to the EUP via approx reciprocal; the downstream clamp to
    # [0.01, 0.99] makes the ~1e-3 relative error irrelevant.
    return pl.reciprocal(1.0 + jnp.exp(-x), approx=True)


def _cos_sin_2pi(u):
    """cos(2*pi*u), sin(2*pi*u) for u in (0, 1).

    Quadrant range reduction + Taylor polynomials; uses only add/mul/compare/
    where so it lowers on every TPU generation."""
    t = 4.0 * u                                    # theta / (pi/2), in (0, 4)
    k = ((t >= 0.5).astype(jnp.float32) + (t >= 1.5).astype(jnp.float32)
         + (t >= 2.5).astype(jnp.float32) + (t >= 3.5).astype(jnp.float32))
    r = (t - k) * (math.pi / 2.0)                  # |r| <= pi/4
    r2 = r * r
    cr = 1.0 + r2 * (-0.5 + r2 * (1.0 / 24.0 + r2 * (-1.0 / 720.0
                                                     + r2 * (1.0 / 40320.0))))
    sr = r * (1.0 + r2 * (-1.0 / 6.0 + r2 * (1.0 / 120.0
                                             + r2 * (-1.0 / 5040.0
                                                     + r2 * (1.0 / 362880.0)))))
    q = jnp.where(k >= 3.5, k - 4.0, k)            # k mod 4 (k in {0..4})
    cos_v = jnp.where(q == 0.0, cr,
                      jnp.where(q == 1.0, -sr, jnp.where(q == 2.0, -cr, sr)))
    sin_v = jnp.where(q == 0.0, sr,
                      jnp.where(q == 1.0, cr, jnp.where(q == 2.0, -sr, -cr)))
    return cos_v, sin_v


def _bm_selectors(cols):
    """Even/odd column gather & scatter matrices (built once per col count)."""
    half = cols // 2
    ci = lax.broadcasted_iota(jnp.int32, (cols, half), 0)
    ki = lax.broadcasted_iota(jnp.int32, (cols, half), 1)
    sel_even = (ci == 2 * ki).astype(jnp.float32)
    sel_odd = (ci == 2 * ki + 1).astype(jnp.float32)
    cit = lax.broadcasted_iota(jnp.int32, (half, cols), 1)
    kit = lax.broadcasted_iota(jnp.int32, (half, cols), 0)
    sel_even_t = (cit == 2 * kit).astype(jnp.float32)
    sel_odd_t = (cit == 2 * kit + 1).astype(jnp.float32)
    return sel_even, sel_odd, sel_even_t, sel_odd_t


def _box_muller(u, sels):
    """Box-Muller over adjacent column pairs of u (rows independent).

    Gather/scatter of even/odd columns uses exact 0/1 f32 selection matmuls
    (tiny; keeps the random draws at f32 precision)."""
    sel_even, sel_odd, sel_even_t, sel_odd_t = sels
    u0 = jnp.dot(u, sel_even, preferred_element_type=jnp.float32)
    u1 = jnp.dot(u, sel_odd, preferred_element_type=jnp.float32)
    rad = jnp.sqrt(-2.0 * jnp.log(u0))
    cos_v, sin_v = _cos_sin_2pi(u1)
    return (jnp.dot(rad * cos_v, sel_even_t, preferred_element_type=jnp.float32)
            + jnp.dot(rad * sin_v, sel_odd_t, preferred_element_type=jnp.float32))


# ----------------------------------------------------------------------------
# The single fused kernel
# ----------------------------------------------------------------------------
def _make_fused_kernel(*, B, N, z_dim, f2_dim, stride, n_steps,
                       sigma1, sigma2, boffs):
    NB = N * B
    D = 2 * stride
    del f2_dim  # implied by weight shapes

    def kernel(past_ref, mask_ref, lastpos_ref, scene_ref,
               trep_ref, seld_ref, rsmall_ref, escat_ref, bias_ref,
               we0, we1,                      # encoder_past stand-in
               ws0, ws1, ws2,                 # sample_past
               wu0h, wu0z, wu1, wu2, wu3,     # update_decoder (concat split)
               wes0, wes1, wes2,              # encoder_space_state
               wed, wer, wee1, wee2,          # edge_potential_net (concat split)
               wp0, wp1, wp2,                 # sample_spacestate
               wd0f, wd0z, wd1, wd2, wd3,     # dynamics_decoder (concat split)
               pred_ref, dist_ref):

        def bias(name):
            off, dim = boffs[name]
            return bias_ref[:, off:off + dim]

        # Box-Muller selection constants: built once, reused every step.
        sels_past = _bm_selectors(N * z_dim)
        sels_step = _bm_selectors(z_dim)

        # ---- encoder_past stand-in: MLP + masked self-attention ------------
        x = past_ref[...]                                        # (B, T*2)
        h = jnp.maximum(_wdot(x, we0) + bias("e0"), 0.0)
        h = _wdot(h, we1) + bias("e1")                           # (B, 256)
        h_bf = h.astype(jnp.bfloat16)
        scale = 1.0 / math.sqrt(float(h.shape[-1]))
        scores = lax.dot_general(
            h_bf, h_bf, dimension_numbers=(((1,), (1,)), ((), ())),
            preferred_element_type=jnp.float32) * scale
        scores = jnp.where(mask_ref[...] > 0.0, scores, -1e9)
        scores = scores - jnp.max(scores, axis=-1, keepdims=True)
        p = jnp.exp(scores)
        p = p * pl.reciprocal(jnp.sum(p, axis=-1, keepdims=True), approx=True)
        hist = h + jnp.dot(p.astype(jnp.bfloat16), h_bf,
                           preferred_element_type=jnp.float32)   # (B, 256)
        hist_bf = hist.astype(jnp.bfloat16)

        # ---- sample_past -> sigmoid/clamp -> Box-Muller (deterministic, as
        #      in the torch noise branch) ------------------------------------
        sp = jnp.maximum(_wdot(hist_bf, ws0) + bias("s0"), 0.0)
        sp = jnp.maximum(_wdot(sp, ws1) + bias("s1"), 0.0)
        sp = _wdot(sp, ws2) + bias("s2")                         # (B, N*z)
        u = jnp.clip(_sigmoid(sp), 0.01, 0.99)
        samp_bm = _box_muller(u, sels_past)                      # (B, N*z)

        # Reorder to extended rows r = n*B + b (torch: reshape(B,N,z).permute)
        # via exact 0/1 placement matmuls built once here.
        row_ids = lax.broadcasted_iota(jnp.int32, (NB, B), 0)
        col_ids = lax.broadcasted_iota(jnp.int32, (NB, B), 1)
        samp_nb = jnp.zeros((NB, z_dim), jnp.float32)
        for n in range(N):
            place_n = (row_ids == n * B + col_ids).astype(jnp.float32)
            samp_nb = samp_nb + jnp.dot(
                place_n, samp_bm[:, n * z_dim:(n + 1) * z_dim],
                preferred_element_type=jnp.float32)              # (NB, z)
        dist_steps = [samp_nb]
        z1 = samp_nb * sigma1

        # ---- step 0: update_decoder([history_rep | z1]) ---------------------
        h_hist = _wdot(hist_bf, wu0h)                            # (B, 512)
        h_hist = jnp.dot(trep_ref[...], h_hist.astype(jnp.bfloat16),
                         preferred_element_type=jnp.float32)     # (NB, 512)
        hu = jnp.maximum(h_hist + _wdot(z1, wu0z) + bias("u0"), 0.0)
        hu = jnp.maximum(_wdot(hu, wu1) + bias("u1"), 0.0)
        hu = jnp.maximum(_wdot(hu, wu2) + bias("u2"), 0.0)
        xt1 = _wdot(hu, wu3) + bias("u3")                        # (NB, D)
        pred_steps = [xt1]

        lastpos = lastpos_ref[...]                               # (B, 2)
        seld = seld_ref[...]                                     # (B*B, B) f32
        scene = scene_ref[...]                                   # (B*B, 1)

        # ---- rollout steps 1 .. n_steps-1, fully unrolled in-kernel ---------
        for _ in range(n_steps - 1):
            # encoder_space_state
            xt1_bf = xt1.astype(jnp.bfloat16)
            feat = jnp.maximum(_wdot(xt1_bf, wes0) + bias("es0"), 0.0)
            feat = jnp.maximum(_wdot(feat, wes1) + bias("es1"), 0.0)
            feat = _wdot(feat, wes2) + bias("es2")               # (NB, f2)

            # Edge potentials over same-scene pairs of the FIRST replica only
            # (matches the torch graph: update_potential_edges iterates
            #  peds_stats, i.e. rows < B, and scatter indices are < B).
            coords = xt1[0:B, D - 2:D] + lastpos                 # (B, 2) abs
            diff = jnp.dot(seld, coords,
                           preferred_element_type=jnp.float32)   # (B*B, 2)
            dist = jnp.sqrt(jnp.sum(diff * diff, axis=1, keepdims=True))
            valid = (scene
                     * (dist <= 3.0).astype(jnp.float32)
                     * (dist > 1e-4).astype(jnp.float32))        # (B*B, 1)
            inv_d = pl.reciprocal(jnp.where(valid > 0.0, dist, 1.0), approx=True)
            e = jnp.maximum(_wdot(diff, wed) + inv_d * wer[...] + bias("eg0"),
                            0.0)
            e = jnp.maximum(_wdot(e, wee1) + bias("eg1"), 0.0)
            e = (_wdot(e, wee2) + bias("eg2")) * valid           # (B*B, f2)
            # reduce over neighbours j -> per-i contribution, then exact
            # placement into rows 0..B-1 of the extended batch.
            contrib = jnp.dot(rsmall_ref[...], e.astype(jnp.bfloat16),
                              preferred_element_type=jnp.float32)  # (B, f2)
            feat = feat + jnp.dot(escat_ref[...], contrib,
                                  preferred_element_type=jnp.float32)
            feat_bf = feat.astype(jnp.bfloat16)

            # sample_spacestate -> sigmoid/clamp -> Box-Muller -> z2
            sp2 = jnp.maximum(_wdot(feat_bf, wp0) + bias("p0"), 0.0)
            sp2 = jnp.maximum(_wdot(sp2, wp1) + bias("p1"), 0.0)
            sp2 = _wdot(sp2, wp2) + bias("p2")                   # (NB, z)
            samp2 = _box_muller(jnp.clip(_sigmoid(sp2), 0.01, 0.99), sels_step)
            dist_steps.append(samp2)
            z2 = samp2 * sigma2

            # dynamics_decoder([feat | z2]) -> delta, accumulate
            d = jnp.maximum(_wdot(feat_bf, wd0f) + _wdot(z2, wd0z) + bias("d0"),
                            0.0)
            d = jnp.maximum(_wdot(d, wd1) + bias("d1"), 0.0)
            d = jnp.maximum(_wdot(d, wd2) + bias("d2"), 0.0)
            delta = _wdot(d, wd3) + bias("d3")                   # (NB, D)
            xt1 = xt1 + delta
            pred_steps.append(xt1)

        # ---- single lane-dense writeback of all steps -----------------------
        pred_ref[...] = jnp.concatenate(pred_steps, axis=1)      # (NB, T*D)
        dist_ref[...] = jnp.concatenate(dist_steps, axis=1)      # (NB, T*z)

    return kernel


# ----------------------------------------------------------------------------
# Parameter construction (deterministic, synthetic)
# ----------------------------------------------------------------------------
def init_mlp(key, dims):
    params = []
    keys = jax.random.split(key, len(dims) - 1)
    for i in range(len(dims) - 1):
        kw, kb = jax.random.split(keys[i])
        w = jax.random.normal(kw, (dims[i], dims[i + 1]), jnp.float32) / \
            jnp.sqrt(jnp.float32(dims[i]))
        b = jax.random.normal(kb, (dims[i + 1],), jnp.float32) * 0.01
        params.append((w, b))
    return params


def build_params(key, *, t_past, z_dim, f2_dim, stride, n_samples):
    ks = jax.random.split(key, 8)
    p = {}
    p["enc_past"] = init_mlp(ks[0], [t_past * 2, 128, 256])
    p["update_decoder"] = init_mlp(ks[1], [256 + z_dim, 512, 512, 256, 2 * stride])
    p["enc_space"] = init_mlp(ks[2], [2 * stride, 32, 32, f2_dim])
    p["dyn_dec"] = init_mlp(ks[3], [f2_dim + z_dim, 128, 128, 64, 2 * stride])
    p["edge_net"] = init_mlp(ks[4], [3, 16, 32, f2_dim])
    p["sample_past"] = init_mlp(ks[5], [256, 128, 512, z_dim * n_samples])
    p["sample_space"] = init_mlp(ks[6], [f2_dim, 32, 64, z_dim])
    # encoder_future_eachstep: defined for completeness, unused (noise branch).
    p["enc_fut"] = init_mlp(ks[7], [2 * stride, 64, 256, 256, 2 * z_dim])
    return p


def _pack_biases(named, align=128):
    """Pack all (dim,) f32 biases into one lane-aligned (1, S) slab."""
    parts, boffs, cur = [], {}, 0
    for name, b in named:
        b = jnp.asarray(b, jnp.float32).reshape(-1)
        d = int(b.shape[0])
        boffs[name] = (cur, d)
        pad = (-d) % align
        if pad:
            b = jnp.concatenate([b, jnp.zeros((pad,), jnp.float32)])
        parts.append(b)
        cur += d + pad
    return jnp.concatenate(parts).reshape(1, -1), boffs


# ----------------------------------------------------------------------------
# Forward pass (noise=True branch)
# ----------------------------------------------------------------------------
def mrf_cvae_forward_noise(params, past_traj, fut_traj, traj_mask, scene_mask,
                           *, n_samples, z_dim, f2_dim, stride, fut_step,
                           sigma1=1.0, sigma2=1.0):
    B = past_traj.shape[0]
    N = n_samples
    NB = N * B
    D = 2 * stride
    assert fut_step % stride == 0, "fut_step must be a multiple of stride"
    assert z_dim % 2 == 0, "box_muller needs an even z_dim"
    n_steps = fut_step // stride
    del fut_traj  # shape only; not used on the noise path

    # ---- weights: bf16 (MXU) with the concatenated inputs split along K ----
    def w(layer):
        return jnp.asarray(layer[0], jnp.bfloat16)

    ep, spp = params["enc_past"], params["sample_past"]
    upd, esp = params["update_decoder"], params["enc_space"]
    edg, ssp, dyn = params["edge_net"], params["sample_space"], params["dyn_dec"]
    wu0_full, wd0_full, weg0_full = upd[0][0], dyn[0][0], edg[0][0]

    weights = [
        w(ep[0]), w(ep[1]),
        w(spp[0]), w(spp[1]), w(spp[2]),
        jnp.asarray(wu0_full[:256], jnp.bfloat16),
        jnp.asarray(wu0_full[256:], jnp.bfloat16),
        w(upd[1]), w(upd[2]), w(upd[3]),
        w(esp[0]), w(esp[1]), w(esp[2]),
        jnp.asarray(weg0_full[:2], jnp.bfloat16),
        jnp.asarray(weg0_full[2:3], jnp.float32),   # 1/dist row, elementwise
        w(edg[1]), w(edg[2]),
        w(ssp[0]), w(ssp[1]), w(ssp[2]),
        jnp.asarray(wd0_full[:f2_dim], jnp.bfloat16),
        jnp.asarray(wd0_full[f2_dim:], jnp.bfloat16),
        w(dyn[1]), w(dyn[2]), w(dyn[3]),
    ]

    bias_named = [
        ("e0", ep[0][1]), ("e1", ep[1][1]),
        ("s0", spp[0][1]), ("s1", spp[1][1]), ("s2", spp[2][1]),
        ("u0", upd[0][1]), ("u1", upd[1][1]), ("u2", upd[2][1]), ("u3", upd[3][1]),
        ("es0", esp[0][1]), ("es1", esp[1][1]), ("es2", esp[2][1]),
        ("eg0", edg[0][1]), ("eg1", edg[1][1]), ("eg2", edg[2][1]),
        ("p0", ssp[0][1]), ("p1", ssp[1][1]), ("p2", ssp[2][1]),
        ("d0", dyn[0][1]), ("d1", dyn[1][1]), ("d2", dyn[2][1]), ("d3", dyn[3][1]),
    ]
    bias_slab, boffs = _pack_biases(bias_named)

    # ---- structural 0/1 matrices (host-built, static) -----------------------
    t_rep = np.zeros((NB, B), np.float32)            # replicate B -> N*B rows
    t_rep[np.arange(NB), np.arange(NB) % B] = 1.0
    pair_i = np.arange(B * B) // B
    pair_j = np.arange(B * B) % B
    seld = np.zeros((B * B, B), np.float32)          # coords[j] - coords[i]
    seld[np.arange(B * B), pair_j] += 1.0
    seld[np.arange(B * B), pair_i] -= 1.0
    r_small = np.zeros((B, B * B), np.float32)       # sum over j -> row i
    r_small[pair_i, np.arange(B * B)] = 1.0
    e_scat = np.zeros((NB, B), np.float32)           # place into rows 0..B-1
    e_scat[np.arange(B), np.arange(B)] = 1.0

    past_flat = past_traj.reshape(B, -1).astype(jnp.float32)
    scene_flat = scene_mask.astype(jnp.float32).reshape(B * B, 1)
    last_pos = past_traj[:, -1, :2].astype(jnp.float32)          # (B, 2)

    data_inputs = [
        past_flat, traj_mask.astype(jnp.float32), last_pos, scene_flat,
        jnp.asarray(t_rep, jnp.bfloat16), jnp.asarray(seld, jnp.float32),
        jnp.asarray(r_small, jnp.bfloat16), jnp.asarray(e_scat, jnp.float32),
        bias_slab,
    ]
    all_inputs = data_inputs + weights

    kernel = _make_fused_kernel(B=B, N=N, z_dim=z_dim, f2_dim=f2_dim,
                                stride=stride, n_steps=n_steps,
                                sigma1=sigma1, sigma2=sigma2, boffs=boffs)

    vmem = pl.BlockSpec(memory_space=pltpu.MemorySpace.VMEM)
    pred, dist = pl.pallas_call(
        kernel,
        out_shape=(jax.ShapeDtypeStruct((NB, n_steps * D), jnp.float32),
                   jax.ShapeDtypeStruct((NB, n_steps * z_dim), jnp.float32)),
        in_specs=[vmem] * len(all_inputs),
        out_specs=(vmem, vmem),
        compiler_params=pltpu.CompilerParams(
            vmem_limit_bytes=32 * 1024 * 1024),
    )(*all_inputs)

    # Pure reshapes only (row order is sample-major: r = n*B + b).
    mrf_sample = pred.reshape(N, B, n_steps, stride, 2).reshape(N, B, fut_step, 2)
    dist_samples = [dist[:, s * z_dim:(s + 1) * z_dim].reshape(N, B, z_dim)
                    for s in range(n_steps)]
    return mrf_sample, dist_samples


# ----------------------------------------------------------------------------
# Example run
# ----------------------------------------------------------------------------
if __name__ == "__main__":
    key = jax.random.PRNGKey(0)
    k_param, k_past, k_fut = jax.random.split(key, 3)

    N = 4            # samples (constructor N == forward N for the noise path)
    peds_stats = [3, 3]
    B = sum(peds_stats)
    T_PAST = 8
    FUT_STEP = 20
    STRIDE = 5
    Z_DIM = 16
    F2_DIM = 32

    params = build_params(k_param, t_past=T_PAST, z_dim=Z_DIM, f2_dim=F2_DIM,
                          stride=STRIDE, n_samples=N)

    past_traj = jax.random.normal(k_past, (B, T_PAST, 2), jnp.float32) * 2.0
    fut_traj = jax.random.normal(k_fut, (B, FUT_STEP, 2), jnp.float32)

    # Block-diagonal same-scene masks from peds_stats.
    scene_ids = jnp.concatenate(
        [jnp.full((n,), i, jnp.int32) for i, n in enumerate(peds_stats)])
    scene_mask = scene_ids[:, None] == scene_ids[None, :]         # (B, B) bool
    traj_mask = scene_mask.astype(jnp.float32)

    fwd = jax.jit(functools.partial(
        mrf_cvae_forward_noise,
        n_samples=N, z_dim=Z_DIM, f2_dim=F2_DIM,
        stride=STRIDE, fut_step=FUT_STEP, sigma1=1.0, sigma2=1.0))

    mrf_sample, dist_samples = fwd(params, past_traj, fut_traj, traj_mask,
                                   scene_mask)
    jax.block_until_ready(mrf_sample)
    for d in dist_samples:
        jax.block_until_ready(d)

    assert mrf_sample.shape == (N, B, FUT_STEP, 2), mrf_sample.shape
    assert len(dist_samples) == FUT_STEP // STRIDE
    assert all(d.shape == (N, B, Z_DIM) for d in dist_samples)
    assert bool(jnp.all(jnp.isfinite(mrf_sample)))
    assert all(bool(jnp.all(jnp.isfinite(d))) for d in dist_samples)
    print("KERNEL_OK")
</pallas_src>

<mosaic_0001>
module attributes {stable_mosaic.version = 11 : i64} {
  func.func @kernel(%arg0: memref<6x16xf32, #tpu.memory_space<vmem>>, %arg1: memref<6x6xf32, #tpu.memory_space<vmem>>, %arg2: memref<6x2xf32, #tpu.memory_space<vmem>>, %arg3: memref<36x1xf32, #tpu.memory_space<vmem>>, %arg4: memref<24x6xbf16, #tpu.memory_space<vmem>>, %arg5: memref<36x6xf32, #tpu.memory_space<vmem>>, %arg6: memref<6x36xbf16, #tpu.memory_space<vmem>>, %arg7: memref<24x6xf32, #tpu.memory_space<vmem>>, %arg8: memref<1x4224xf32, #tpu.memory_space<vmem>>, %arg9: memref<16x128xbf16, #tpu.memory_space<vmem>>, %arg10: memref<128x256xbf16, #tpu.memory_space<vmem>>, %arg11: memref<256x128xbf16, #tpu.memory_space<vmem>>, %arg12: memref<128x512xbf16, #tpu.memory_space<vmem>>, %arg13: memref<512x64xbf16, #tpu.memory_space<vmem>>, %arg14: memref<256x512xbf16, #tpu.memory_space<vmem>>, %arg15: memref<16x512xbf16, #tpu.memory_space<vmem>>, %arg16: memref<512x512xbf16, #tpu.memory_space<vmem>>, %arg17: memref<512x256xbf16, #tpu.memory_space<vmem>>, %arg18: memref<256x10xbf16, #tpu.memory_space<vmem>>, %arg19: memref<10x32xbf16, #tpu.memory_space<vmem>>, %arg20: memref<32x32xbf16, #tpu.memory_space<vmem>>, %arg21: memref<32x32xbf16, #tpu.memory_space<vmem>>, %arg22: memref<2x16xbf16, #tpu.memory_space<vmem>>, %arg23: memref<1x16xf32, #tpu.memory_space<vmem>>, %arg24: memref<16x32xbf16, #tpu.memory_space<vmem>>, %arg25: memref<32x32xbf16, #tpu.memory_space<vmem>>, %arg26: memref<32x32xbf16, #tpu.memory_space<vmem>>, %arg27: memref<32x64xbf16, #tpu.memory_space<vmem>>, %arg28: memref<64x16xbf16, #tpu.memory_space<vmem>>, %arg29: memref<32x128xbf16, #tpu.memory_space<vmem>>, %arg30: memref<16x128xbf16, #tpu.memory_space<vmem>>, %arg31: memref<128x128xbf16, #tpu.memory_space<vmem>>, %arg32: memref<128x64xbf16, #tpu.memory_space<vmem>>, %arg33: memref<64x10xbf16, #tpu.memory_space<vmem>>, %arg34: memref<24x40xf32, #tpu.memory_space<vmem>>, %arg35: memref<24x64xf32, #tpu.memory_space<vmem>>) attributes {dimension_semantics = [], scalar_prefetch = 0 : i64, scratch_operands = 0 : i64, tpu.core_type = #tpu.core_type<tc>} {
    %0 = tpu.iota {dimensions = array<i32: 0>} : vector<64x32xi32>
    %1 = tpu.iota {dimensions = array<i32: 1>} : vector<64x32xi32>
    %c2_i32 = arith.constant 2 : i32
    %2 = vector.broadcast %c2_i32 : i32 to vector<64x32xi32>
    %3 = arith.muli %2, %1 : vector<64x32xi32>
    %4 = arith.cmpi eq, %0, %3 : vector<64x32xi32>
    %5 = arith.extui %4 : vector<64x32xi1> to vector<64x32xi32>
    %6 = arith.sitofp %5 : vector<64x32xi32> to vector<64x32xf32>
    %c2_i32_0 = arith.constant 2 : i32
    %7 = vector.broadcast %c2_i32_0 : i32 to vector<64x32xi32>
    %8 = arith.muli %7, %1 : vector<64x32xi32>
    %c1_i32 = arith.constant 1 : i32
    %9 = vector.broadcast %c1_i32 : i32 to vector<64x32xi32>
    %10 = arith.addi %8, %9 : vector<64x32xi32>
    %11 = arith.cmpi eq, %0, %10 : vector<64x32xi32>
    %12 = arith.extui %11 : vector<64x32xi1> to vector<64x32xi32>
    %13 = arith.sitofp %12 : vector<64x32xi32> to vector<64x32xf32>
    %14 = tpu.iota {dimensions = array<i32: 1>} : vector<32x64xi32>
    %15 = tpu.iota {dimensions = array<i32: 0>} : vector<32x64xi32>
    %c2_i32_1 = arith.constant 2 : i32
    %16 = vector.broadcast %c2_i32_1 : i32 to vector<32x64xi32>
    %17 = arith.muli %16, %15 : vector<32x64xi32>
    %18 = arith.cmpi eq, %14, %17 : vector<32x64xi32>
    %19 = arith.extui %18 : vector<32x64xi1> to vector<32x64xi32>
    %20 = arith.sitofp %19 : vector<32x64xi32> to vector<32x64xf32>
    %c2_i32_2 = arith.constant 2 : i32
    %21 = vector.broadcast %c2_i32_2 : i32 to vector<32x64xi32>
    %22 = arith.muli %21, %15 : vector<32x64xi32>
    %c1_i32_3 = arith.constant 1 : i32
    %23 = vector.broadcast %c1_i32_3 : i32 to vector<32x64xi32>
    %24 = arith.addi %22, %23 : vector<32x64xi32>
    %25 = arith.cmpi eq, %14, %24 : vector<32x64xi32>
    %26 = arith.extui %25 : vector<32x64xi1> to vector<32x64xi32>
    %27 = arith.sitofp %26 : vector<32x64xi32> to vector<32x64xf32>
    %28 = tpu.iota {dimensions = array<i32: 0>} : vector<16x8xi32>
    %29 = tpu.iota {dimensions = array<i32: 1>} : vector<16x8xi32>
    %c2_i32_4 = arith.constant 2 : i32
    %30 = vector.broadcast %c2_i32_4 : i32 to vector<16x8xi32>
    %31 = arith.muli %30, %29 : vector<16x8xi32>
    %32 = arith.cmpi eq, %28, %31 : vector<16x8xi32>
    %33 = arith.extui %32 : vector<16x8xi1> to vector<16x8xi32>
    %34 = arith.sitofp %33 : vector<16x8xi32> to vector<16x8xf32>
    %c2_i32_5 = arith.constant 2 : i32
    %35 = vector.broadcast %c2_i32_5 : i32 to vector<16x8xi32>
    %36 = arith.muli %35, %29 : vector<16x8xi32>
    %c1_i32_6 = arith.constant 1 : i32
    %37 = vector.broadcast %c1_i32_6 : i32 to vector<16x8xi32>
    %38 = arith.addi %36, %37 : vector<16x8xi32>
    %39 = arith.cmpi eq, %28, %38 : vector<16x8xi32>
    %40 = arith.extui %39 : vector<16x8xi1> to vector<16x8xi32>
    %41 = arith.sitofp %40 : vector<16x8xi32> to vector<16x8xf32>
    %42 = tpu.iota {dimensions = array<i32: 1>} : vector<8x16xi32>
    %43 = tpu.iota {dimensions = array<i32: 0>} : vector<8x16xi32>
    %c2_i32_7 = arith.constant 2 : i32
    %44 = vector.broadcast %c2_i32_7 : i32 to vector<8x16xi32>
    %45 = arith.muli %44, %43 : vector<8x16xi32>
    %46 = arith.cmpi eq, %42, %45 : vector<8x16xi32>
    %47 = arith.extui %46 : vector<8x16xi1> to vector<8x16xi32>
    %48 = arith.sitofp %47 : vector<8x16xi32> to vector<8x16xf32>
    %c2_i32_8 = arith.constant 2 : i32
    %49 = vector.broadcast %c2_i32_8 : i32 to vector<8x16xi32>
    %50 = arith.muli %49, %43 : vector<8x16xi32>
    %c1_i32_9 = arith.constant 1 : i32
    %51 = vector.broadcast %c1_i32_9 : i32 to vector<8x16xi32>
    %52 = arith.addi %50, %51 : vector<8x16xi32>
    %53 = arith.cmpi eq, %42, %52 : vector<8x16xi32>
    %54 = arith.extui %53 : vector<8x16xi1> to vector<8x16xi32>
    %55 = arith.sitofp %54 : vector<8x16xi32> to vector<8x16xf32>
    %c0 = arith.constant 0 : index
    %c0_10 = arith.constant 0 : index
    %56 = vector.load %arg0[%c0, %c0_10] : memref<6x16xf32, #tpu.memory_space<vmem>>, vector<6x16xf32>
    %57 = arith.truncf %56 : vector<6x16xf32> to vector<6x16xbf16>
    %c0_11 = arith.constant 0 : index
    %c0_12 = arith.constant 0 : index
    %58 = vector.load %arg9[%c0_11, %c0_12] : memref<16x128xbf16, #tpu.memory_space<vmem>>, vector<16x128xbf16>
    %cst = arith.constant dense<0.000000e+00> : vector<6x128xf32>
    %59 = tpu.matmul %57, %58, %cst {dimension_numbers = #tpu.dot_dimension_numbers<[1], [0], [0], [1], [0, 0, 1, 1], [], []>} : vector<6x16xbf16>, vector<16x128xbf16>, vector<6x128xf32> -> vector<6x128xf32>
    %c0_13 = arith.constant 0 : index
    %c0_14 = arith.constant 0 : index
    %60 = vector.load %arg8[%c0_13, %c0_14] : memref<1x4224xf32, #tpu.memory_space<vmem>>, vector<1x128xf32>
    %61 = vector.broadcast %60 : vector<1x128xf32> to vector<6x128xf32>
    %62 = arith.addf %59, %61 : vector<6x128xf32>
    %cst_15 = arith.constant 0.000000e+00 : f32
    %63 = vector.broadcast %cst_15 : f32 to vector<6x128xf32>
    %64 = arith.maximumf %62, %63 : vector<6x128xf32>
    %65 = arith.truncf %64 : vector<6x128xf32> to vector<6x128xbf16>
    %c0_16 = arith.constant 0 : index
    %c0_17 = arith.constant 0 : index
    %66 = vector.load %arg10[%c0_16, %c0_17] : memref<128x256xbf16, #tpu.memory_space<vmem>>, vector<128x256xbf16>
    %cst_18 = arith.constant dense<0.000000e+00> : vector<6x256xf32>
    %67 = tpu.matmul %65, %66, %cst_18 {dimension_numbers = #tpu.dot_dimension_numbers<[1], [0], [0], [1], [0, 0, 1, 1], [], []>} : vector<6x128xbf16>, vector<128x256xbf16>, vector<6x256xf32> -> vector<6x256xf32>
    %c0_19 = arith.constant 0 : index
    %c128 = arith.constant 128 : index
    %68 = vector.load %arg8[%c0_19, %c128] : memref<1x4224xf32, #tpu.memory_space<vmem>>, vector<1x256xf32>
    %69 = vector.broadcast %68 : vector<1x256xf32> to vector<6x256xf32>
    %70 = arith.addf %67, %69 : vector<6x256xf32>
    %71 = arith.truncf %70 : vector<6x256xf32> to vector<6x256xbf16>
    %cst_20 = arith.constant dense<0.000000e+00> : vector<6x6xf32>
    %72 = tpu.matmul %71, %71, %cst_20 {dimension_numbers = #tpu.dot_dimension_numbers<[1], [1], [0], [0], [0, 0, 1, 0], [], []>} : vector<6x256xbf16>, vector<6x256xbf16>, vector<6x6xf32> -> vector<6x6xf32>
    %cst_21 = arith.constant 6.250000e-02 : f32
    %73 = vector.broadcast %cst_21 : f32 to vector<6x6xf32>
    %74 = arith.mulf %72, %73 : vector<6x6xf32>
    %c0_22 = arith.constant 0 : index
    %c0_23 = arith.constant 0 : index
    %75 = vector.load %arg1[%c0_22, %c0_23] : memref<6x6xf32, #tpu.memory_space<vmem>>, vector<6x6xf32>
    %cst_24 = arith.constant 0.000000e+00 : f32
    %76 = vector.broadcast %cst_24 : f32 to vector<6x6xf32>
    %77 = arith.cmpf ogt, %75, %76 : vector<6x6xf32>
    %cst_25 = arith.constant -1.000000e+09 : f32
    %78 = vector.broadcast %cst_25 : f32 to vector<6x6xf32>
    %79 = arith.select %77, %74, %78 : vector<6x6xi1>, vector<6x6xf32>
    %cst_26 = arith.constant dense<0xFF800000> : vector<6xf32>
    %80 = vector.multi_reduction <maximumf>, %79, %cst_26 [1] : vector<6x6xf32> to vector<6xf32>
    %81 = vector.shape_cast %80 : vector<6xf32> to vector<6x1xf32>
    %82 = vector.broadcast %81 : vector<6x1xf32> to vector<6x6xf32>
    %83 = arith.subf %79, %82 : vector<6x6xf32>
    %84 = math.exp %83 : vector<6x6xf32>
    %cst_27 = arith.constant dense<0.000000e+00> : vector<6xf32>
    %85 = vector.multi_reduction <add>, %84, %cst_27 [1] : vector<6x6xf32> to vector<6xf32>
    %86 = vector.shape_cast %85 : vector<6xf32> to vector<6x1xf32>
    %87 = tpu.reciprocal %86 {approx = true} : vector<6x1xf32> -> vector<6x1xf32>
    %88 = vector.broadcast %87 : vector<6x1xf32> to vector<6x6xf32>
    %89 = arith.mulf %84, %88 : vector<6x6xf32>
    %90 = arith.truncf %89 : vector<6x6xf32> to vector<6x6xbf16>
    %cst_28 = arith.constant dense<0.000000e+00> : vector<6x256xf32>
    %91 = tpu.matmul %90, %71, %cst_28 {dimension_numbers = #tpu.dot_dimension_numbers<[1], [0], [0], [1], [0, 0, 1, 1], [], []>} : vector<6x6xbf16>, vector<6x256xbf16>, vector<6x256xf32> -> vector<6x256xf32>
    %92 = arith.addf %70, %91 : vector<6x256xf32>
    %93 = arith.truncf %92 : vector<6x256xf32> to vector<6x256xbf16>
    %c0_29 = arith.constant 0 : index
    %c0_30 = arith.constant 0 : index
    %94 = vector.load %arg11[%c0_29, %c0_30] : memref<256x128xbf16, #tpu.memory_space<vmem>>, vector<256x128xbf16>
    %cst_31 = arith.constant dense<0.000000e+00> : vector<6x128xf32>
    %95 = tpu.matmul %93, %94, %cst_31 {dimension_numbers = #tpu.dot_dimension_numbers<[1], [0], [0], [1], [0, 0, 1, 1], [], []>} : vector<6x256xbf16>, vector<256x128xbf16>, vector<6x128xf32> -> vector<6x128xf32>
    %c0_32 = arith.constant 0 : index
    %c384 = arith.constant 384 : index
    %96 = vector.load %arg8[%c0_32, %c384] : memref<1x4224xf32, #tpu.memory_space<vmem>>, vector<1x128xf32>
    %97 = vector.broadcast %96 : vector<1x128xf32> to vector<6x128xf32>
    %98 = arith.addf %95, %97 : vector<6x128xf32>
    %cst_33 = arith.constant 0.000000e+00 : f32
    %99 = vector.broadcast %cst_33 : f32 to vector<6x128xf32>
    %100 = arith.maximumf %98, %99 : vector<6x128xf32>
    %101 = arith.truncf %100 : vector<6x128xf32> to vector<6x128xbf16>
    %c0_34 = arith.constant 0 : index
    %c0_35 = arith.constant 0 : index
    %102 = vector.load %arg12[%c0_34, %c0_35] : memref<128x512xbf16, #tpu.memory_space<vmem>>, vector<128x512xbf16>
    %cst_36 = arith.constant dense<0.000000e+00> : vector<6x512xf32>
    %103 = tpu.matmul %101, %102, %cst_36 {dimension_numbers = #tpu.dot_dimension_numbers<[1], [0], [0], [1], [0, 0, 1, 1], [], []>} : vector<6x128xbf16>, vector<128x512xbf16>, vector<6x512xf32> -> vector<6x512xf32>
    %c0_37 = arith.constant 0 : index
    %c512 = arith.constant 512 : index
    %104 = vector.load %arg8[%c0_37, %c512] : memref<1x4224xf32, #tpu.memory_space<vmem>>, vector<1x512xf32>
    %105 = vector.broadcast %104 : vector<1x512xf32> to vector<6x512xf32>
    %106 = arith.addf %103, %105 : vector<6x512xf32>
    %cst_38 = arith.constant 0.000000e+00 : f32
    %107 = vector.broadcast %cst_38 : f32 to vector<6x512xf32>
    %108 = arith.maximumf %106, %107 : vector<6x512xf32>
    %109 = arith.truncf %108 : vector<6x512xf32> to vector<6x512xbf16>
    %c0_39 = arith.constant 0 : index
    %c0_40 = arith.constant 0 : index
    %110 = vector.load %arg13[%c0_39, %c0_40] : memref<512x64xbf16, #tpu.memory_space<vmem>>, vector<512x64xbf16>
    %cst_41 = arith.constant dense<0.000000e+00> : vector<6x64xf32>
    %111 = tpu.matmul %109, %110, %cst_41 {dimension_numbers = #tpu.dot_dimension_numbers<[1], [0], [0], [1], [0, 0, 1, 1], [], []>} : vector<6x512xbf16>, vector<512x64xbf16>, vector<6x64xf32> -> vector<6x64xf32>
    %c0_42 = arith.constant 0 : index
    %c1024 = arith.constant 1024 : index
    %112 = vector.load %arg8[%c0_42, %c1024] : memref<1x4224xf32, #tpu.memory_space<vmem>>, vector<1x64xf32>
    %113 = vector.broadcast %112 : vector<1x64xf32> to vector<6x64xf32>
    %114 = arith.addf %111, %113 : vector<6x64xf32>
    %cst_43 = arith.constant 0.000000e+00 : f32
    %115 = vector.broadcast %cst_43 : f32 to vector<6x64xf32>
    %116 = arith.subf %115, %114 : vector<6x64xf32>
    %117 = math.exp %116 : vector<6x64xf32>
    %cst_44 = arith.constant 1.000000e+00 : f32
    %118 = vector.broadcast %cst_44 : f32 to vector<6x64xf32>
    %119 = arith.addf %118, %117 : vector<6x64xf32>
    %120 = tpu.reciprocal %119 {approx = true} : vector<6x64xf32> -> vector<6x64xf32>
    %cst_45 = arith.constant 0.00999999977 : f32
    %cst_46 = arith.constant 9.900000e-01 : f32
    %121 = vector.broadcast %cst_45 : f32 to vector<6x64xf32>
    %122 = arith.maximumf %121, %120 : vector<6x64xf32>
    %123 = vector.broadcast %cst_46 : f32 to vector<6x64xf32>
    %124 = arith.minimumf %123, %122 : vector<6x64xf32>
    %cst_47 = arith.constant dense<0.000000e+00> : vector<6x32xf32>
    %125 = tpu.matmul %124, %6, %cst_47 {dimension_numbers = #tpu.dot_dimension_numbers<[1], [0], [0], [1], [0, 0, 1, 1], [], []>} : vector<6x64xf32>, vector<64x32xf32>, vector<6x32xf32> -> vector<6x32xf32>
    %cst_48 = arith.constant dense<0.000000e+00> : vector<6x32xf32>
    %126 = tpu.matmul %124, %13, %cst_48 {dimension_numbers = #tpu.dot_dimension_numbers<[1], [0], [0], [1], [0, 0, 1, 1], [], []>} : vector<6x64xf32>, vector<64x32xf32>, vector<6x32xf32> -> vector<6x32xf32>
    %127 = math.log %125 : vector<6x32xf32>
    %cst_49 = arith.constant -2.000000e+00 : f32
    %128 = vector.broadcast %cst_49 : f32 to vector<6x32xf32>
    %129 = arith.mulf %128, %127 : vector<6x32xf32>
    %130 = math.sqrt %129 : vector<6x32xf32>
    %cst_50 = arith.constant 4.000000e+00 : f32
    %131 = vector.broadcast %cst_50 : f32 to vector<6x32xf32>
    %132 = arith.mulf %131, %126 : vector<6x32xf32>
    %cst_51 = arith.constant 5.000000e-01 : f32
    %133 = vector.broadcast %cst_51 : f32 to vector<6x32xf32>
    %134 = arith.cmpf oge, %132, %133 : vector<6x32xf32>
    %135 = arith.extui %134 : vector<6x32xi1> to vector<6x32xi32>
    %136 = arith.sitofp %135 : vector<6x32xi32> to vector<6x32xf32>
    %cst_52 = arith.constant 1.500000e+00 : f32
    %137 = vector.broadcast %cst_52 : f32 to vector<6x32xf32>
    %138 = arith.cmpf oge, %132, %137 : vector<6x32xf32>
    %139 = arith.extui %138 : vector<6x32xi1> to vector<6x32xi32>
    %140 = arith.sitofp %139 : vector<6x32xi32> to vector<6x32xf32>
    %141 = arith.addf %136, %140 : vector<6x32xf32>
    %cst_53 = arith.constant 2.500000e+00 : f32
    %142 = vector.broadcast %cst_53 : f32 to vector<6x32xf32>
    %143 = arith.cmpf oge, %132, %142 : vector<6x32xf32>
    %144 = arith.extui %143 : vector<6x32xi1> to vector<6x32xi32>
    %145 = arith.sitofp %144 : vector<6x32xi32> to vector<6x32xf32>
    %146 = arith.addf %141, %145 : vector<6x32xf32>
    %cst_54 = arith.constant 3.500000e+00 : f32
    %147 = vector.broadcast %cst_54 : f32 to vector<6x32xf32>
    %148 = arith.cmpf oge, %132, %147 : vector<6x32xf32>
    %149 = arith.extui %148 : vector<6x32xi1> to vector<6x32xi32>
    %150 = arith.sitofp %149 : vector<6x32xi32> to vector<6x32xf32>
    %151 = arith.addf %146, %150 : vector<6x32xf32>
    %152 = arith.subf %132, %151 : vector<6x32xf32>
    %cst_55 = arith.constant 1.57079637 : f32
    %153 = vector.broadcast %cst_55 : f32 to vector<6x32xf32>
    %154 = arith.mulf %152, %153 : vector<6x32xf32>
    %155 = arith.mulf %154, %154 : vector<6x32xf32>
    %cst_56 = arith.constant 2.48015876E-5 : f32
    %156 = vector.broadcast %cst_56 : f32 to vector<6x32xf32>
    %157 = arith.mulf %155, %156 : vector<6x32xf32>
    %cst_57 = arith.constant -0.00138888892 : f32
    %158 = vector.broadcast %cst_57 : f32 to vector<6x32xf32>
    %159 = arith.addf %158, %157 : vector<6x32xf32>
    %160 = arith.mulf %155, %159 : vector<6x32xf32>
    %cst_58 = arith.constant 0.0416666679 : f32
    %161 = vector.broadcast %cst_58 : f32 to vector<6x32xf32>
    %162 = arith.addf %161, %160 : vector<6x32xf32>
    %163 = arith.mulf %155, %162 : vector<6x32xf32>
    %cst_59 = arith.constant -5.000000e-01 : f32
    %164 = vector.broadcast %cst_59 : f32 to vector<6x32xf32>
    %165 = arith.addf %164, %163 : vector<6x32xf32>
    %166 = arith.mulf %155, %165 : vector<6x32xf32>
    %cst_60 = arith.constant 1.000000e+00 : f32
    %167 = vector.broadcast %cst_60 : f32 to vector<6x32xf32>
    %168 = arith.addf %167, %166 : vector<6x32xf32>
    %cst_61 = arith.constant 2.75573188E-6 : f32
    %169 = vector.broadcast %cst_61 : f32 to vector<6x32xf32>
    %170 = arith.mulf %155, %169 : vector<6x32xf32>
    %cst_62 = arith.constant -1.98412701E-4 : f32
    %171 = vector.broadcast %cst_62 : f32 to vector<6x32xf32>
    %172 = arith.addf %171, %170 : vector<6x32xf32>
    %173 = arith.mulf %155, %172 : vector<6x32xf32>
    %cst_63 = arith.constant 0.00833333377 : f32
    %174 = vector.broadcast %cst_63 : f32 to vector<6x32xf32>
    %175 = arith.addf %174, %173 : vector<6x32xf32>
    %176 = arith.mulf %155, %175 : vector<6x32xf32>
    %cst_64 = arith.constant -0.166666672 : f32
    %177 = vector.broadcast %cst_64 : f32 to vector<6x32xf32>
    %178 = arith.addf %177, %176 : vector<6x32xf32>
    %179 = arith.mulf %155, %178 : vector<6x32xf32>
    %cst_65 = arith.constant 1.000000e+00 : f32
    %180 = vector.broadcast %cst_65 : f32 to vector<6x32xf32>
    %181 = arith.addf %180, %179 : vector<6x32xf32>
    %182 = arith.mulf %154, %181 : vector<6x32xf32>
    %cst_66 = arith.constant 3.500000e+00 : f32
    %183 = vector.broadcast %cst_66 : f32 to vector<6x32xf32>
    %184 = arith.cmpf oge, %151, %183 : vector<6x32xf32>
    %cst_67 = arith.constant 4.000000e+00 : f32
    %185 = vector.broadcast %cst_67 : f32 to vector<6x32xf32>
    %186 = arith.subf %151, %185 : vector<6x32xf32>
    %187 = arith.select %184, %186, %151 : vector<6x32xi1>, vector<6x32xf32>
    %cst_68 = arith.constant 0.000000e+00 : f32
    %188 = vector.broadcast %cst_68 : f32 to vector<6x32xf32>
    %189 = arith.cmpf oeq, %187, %188 : vector<6x32xf32>
    %cst_69 = arith.constant 1.000000e+00 : f32
    %190 = vector.broadcast %cst_69 : f32 to vector<6x32xf32>
    %191 = arith.cmpf oeq, %187, %190 : vector<6x32xf32>
    %cst_70 = arith.constant 0.000000e+00 : f32
    %192 = vector.broadcast %cst_70 : f32 to vector<6x32xf32>
    %193 = arith.subf %192, %182 : vector<6x32xf32>
    %cst_71 = arith.constant 2.000000e+00 : f32
    %194 = vector.broadcast %cst_71 : f32 to vector<6x32xf32>
    %195 = arith.cmpf oeq, %187, %194 : vector<6x32xf32>
    %cst_72 = arith.constant 0.000000e+00 : f32
    %196 = vector.broadcast %cst_72 : f32 to vector<6x32xf32>
    %197 = arith.subf %196, %168 : vector<6x32xf32>
    %198 = arith.select %195, %197, %182 : vector<6x32xi1>, vector<6x32xf32>
    %199 = arith.select %191, %193, %198 : vector<6x32xi1>, vector<6x32xf32>
    %200 = arith.select %189, %168, %199 : vector<6x32xi1>, vector<6x32xf32>
    %cst_73 = arith.constant 0.000000e+00 : f32
    %201 = vector.broadcast %cst_73 : f32 to vector<6x32xf32>
    %202 = arith.cmpf oeq, %187, %201 : vector<6x32xf32>
    %cst_74 = arith.constant 1.000000e+00 : f32
    %203 = vector.broadcast %cst_74 : f32 to vector<6x32xf32>
    %204 = arith.cmpf oeq, %187, %203 : vector<6x32xf32>
    %cst_75 = arith.constant 2.000000e+00 : f32
    %205 = vector.broadcast %cst_75 : f32 to vector<6x32xf32>
    %206 = arith.cmpf oeq, %187, %205 : vector<6x32xf32>
    %cst_76 = arith.constant 0.000000e+00 : f32
    %207 = vector.broadcast %cst_76 : f32 to vector<6x32xf32>
    %208 = arith.subf %207, %182 : vector<6x32xf32>
    %cst_77 = arith.constant 0.000000e+00 : f32
    %209 = vector.broadcast %cst_77 : f32 to vector<6x32xf32>
    %210 = arith.subf %209, %168 : vector<6x32xf32>
    %211 = arith.select %206, %208, %210 : vector<6x32xi1>, vector<6x32xf32>
    %212 = arith.select %204, %168, %211 : vector<6x32xi1>, vector<6x32xf32>
    %213 = arith.select %202, %182, %212 : vector<6x32xi1>, vector<6x32xf32>
    %214 = arith.mulf %130, %200 : vector<6x32xf32>
    %cst_78 = arith.constant dense<0.000000e+00> : vector<6x64xf32>
    %215 = tpu.matmul %214, %20, %cst_78 {dimension_numbers = #tpu.dot_dimension_numbers<[1], [0], [0], [1], [0, 0, 1, 1], [], []>} : vector<6x32xf32>, vector<32x64xf32>, vector<6x64xf32> -> vector<6x64xf32>
    %216 = arith.mulf %130, %213 : vector<6x32xf32>
    %cst_79 = arith.constant dense<0.000000e+00> : vector<6x64xf32>
    %217 = tpu.matmul %216, %27, %cst_79 {dimension_numbers = #tpu.dot_dimension_numbers<[1], [0], [0], [1], [0, 0, 1, 1], [], []>} : vector<6x32xf32>, vector<32x64xf32>, vector<6x64xf32> -> vector<6x64xf32>
    %218 = arith.addf %215, %217 : vector<6x64xf32>
    %219 = tpu.iota {dimensions = array<i32: 0>} : vector<24x6xi32>
    %220 = tpu.iota {dimensions = array<i32: 1>} : vector<24x6xi32>
    %cst_80 = arith.constant 0.000000e+00 : f32
    %221 = vector.broadcast %cst_80 : f32 to vector<24x16xf32>
    %c0_i32 = arith.constant 0 : i32
    %222 = vector.broadcast %c0_i32 : i32 to vector<24x6xi32>
    %223 = arith.addi %222, %220 : vector<24x6xi32>
    %224 = arith.cmpi eq, %219, %223 : vector<24x6xi32>
    %225 = arith.extui %224 : vector<24x6xi1> to vector<24x6xi32>
    %226 = arith.sitofp %225 : vector<24x6xi32> to vector<24x6xf32>
    %227 = vector.extract_strided_slice %218 {offsets = [0, 0], sizes = [6, 16], strides = [1, 1]} : vector<6x64xf32> to vector<6x16xf32>
    %cst_81 = arith.constant dense<0.000000e+00> : vector<24x16xf32>
    %228 = tpu.matmul %226, %227, %cst_81 {dimension_numbers = #tpu.dot_dimension_numbers<[1], [0], [0], [1], [0, 0, 1, 1], [], []>} : vector<24x6xf32>, vector<6x16xf32>, vector<24x16xf32> -> vector<24x16xf32>
    %229 = arith.addf %221, %228 : vector<24x16xf32>
    %c6_i32 = arith.constant 6 : i32
    %230 = vector.broadcast %c6_i32 : i32 to vector<24x6xi32>
    %231 = arith.addi %230, %220 : vector<24x6xi32>
    %232 = arith.cmpi eq, %219, %231 : vector<24x6xi32>
    %233 = arith.extui %232 : vector<24x6xi1> to vector<24x6xi32>
    %234 = arith.sitofp %233 : vector<24x6xi32> to vector<24x6xf32>
    %235 = vector.extract_strided_slice %218 {offsets = [0, 16], sizes = [6, 16], strides = [1, 1]} : vector<6x64xf32> to vector<6x16xf32>
    %cst_82 = arith.constant dense<0.000000e+00> : vector<24x16xf32>
    %236 = tpu.matmul %234, %235, %cst_82 {dimension_numbers = #tpu.dot_dimension_numbers<[1], [0], [0], [1], [0, 0, 1, 1], [], []>} : vector<24x6xf32>, vector<6x16xf32>, vector<24x16xf32> -> vector<24x16xf32>
    %237 = arith.addf %229, %236 : vector<24x16xf32>
    %c12_i32 = arith.constant 12 : i32
    %238 = vector.broadcast %c12_i32 : i32 to vector<24x6xi32>
    %239 = arith.addi %238, %220 : vector<24x6xi32>
    %240 = arith.cmpi eq, %219, %239 : vector<24x6xi32>
    %241 = arith.extui %240 : vector<24x6xi1> to vector<24x6xi32>
    %242 = arith.sitofp %241 : vector<24x6xi32> to vector<24x6xf32>
    %243 = vector.extract_strided_slice %218 {offsets = [0, 32], sizes = [6, 16], strides = [1, 1]} : vector<6x64xf32> to vector<6x16xf32>
    %cst_83 = arith.constant dense<0.000000e+00> : vector<24x16xf32>
    %244 = tpu.matmul %242, %243, %cst_83 {dimension_numbers = #tpu.dot_dimension_numbers<[1], [0], [0], [1], [0, 0, 1, 1], [], []>} : vector<24x6xf32>, vector<6x16xf32>, vector<24x16xf32> -> vector<24x16xf32>
    %245 = arith.addf %237, %244 : vector<24x16xf32>
    %c18_i32 = arith.constant 18 : i32
    %246 = vector.broadcast %c18_i32 : i32 to vector<24x6xi32>
    %247 = arith.addi %246, %220 : vector<24x6xi32>
    %248 = arith.cmpi eq, %219, %247 : vector<24x6xi32>
    %249 = arith.extui %248 : vector<24x6xi1> to vector<24x6xi32>
    %250 = arith.sitofp %249 : vector<24x6xi32> to vector<24x6xf32>
    %251 = vector.extract_strided_slice %218 {offsets = [0, 48], sizes = [6, 16], strides = [1, 1]} : vector<6x64xf32> to vector<6x16xf32>
    %cst_84 = arith.constant dense<0.000000e+00> : vector<24x16xf32>
    %252 = tpu.matmul %250, %251, %cst_84 {dimension_numbers = #tpu.dot_dimension_numbers<[1], [0], [0], [1], [0, 0, 1, 1], [], []>} : vector<24x6xf32>, vector<6x16xf32>, vector<24x16xf32> -> vector<24x16xf32>
    %253 = arith.addf %245, %252 : vector<24x16xf32>
    %cst_85 = arith.constant 1.000000e+00 : f32
    %254 = vector.broadcast %cst_85 : f32 to vector<24x16xf32>
    %255 = arith.mulf %253, %254 : vector<24x16xf32>
    %c0_86 = arith.constant 0 : index
    %c0_87 = arith.constant 0 : index
    %256 = vector.load %arg14[%c0_86, %c0_87] : memref<256x512xbf16, #tpu.memory_space<vmem>>, vector<256x512xbf16>
    %cst_88 = arith.constant dense<0.000000e+00> : vector<6x512xf32>
    %257 = tpu.matmul %93, %256, %cst_88 {dimension_numbers = #tpu.dot_dimension_numbers<[1], [0], [0], [1], [0, 0, 1, 1], [], []>} : vector<6x256xbf16>, vector<256x512xbf16>, vector<6x512xf32> -> vector<6x512xf32>
    %c0_89 = arith.constant 0 : index
    %c0_90 = arith.constant 0 : index
    %258 = vector.load %arg4[%c0_89, %c0_90] : memref<24x6xbf16, #tpu.memory_space<vmem>>, vector<24x6xbf16>
    %259 = arith.truncf %257 : vector<6x512xf32> to vector<6x512xbf16>
    %cst_91 = arith.constant dense<0.000000e+00> : vector<24x512xf32>
    %260 = tpu.matmul %258, %259, %cst_91 {dimension_numbers = #tpu.dot_dimension_numbers<[1], [0], [0], [1], [0, 0, 1, 1], [], []>} : vector<24x6xbf16>, vector<6x512xbf16>, vector<24x512xf32> -> vector<24x512xf32>
    %261 = arith.truncf %255 : vector<24x16xf32> to vector<24x16xbf16>
    %c0_92 = arith.constant 0 : index
    %c0_93 = arith.constant 0 : index
    %262 = vector.load %arg15[%c0_92, %c0_93] : memref<16x512xbf16, #tpu.memory_space<vmem>>, vector<16x512xbf16>
    %cst_94 = arith.constant dense<0.000000e+00> : vector<24x512xf32>
    %263 = tpu.matmul %261, %262, %cst_94 {dimension_numbers = #tpu.dot_dimension_numbers<[1], [0], [0], [1], [0, 0, 1, 1], [], []>} : vector<24x16xbf16>, vector<16x512xbf16>, vector<24x512xf32> -> vector<24x512xf32>
    %264 = arith.addf %260, %263 : vector<24x512xf32>
    %c0_95 = arith.constant 0 : index
    %c1152 = arith.constant 1152 : index
    %265 = vector.load %arg8[%c0_95, %c1152] : memref<1x4224xf32, #tpu.memory_space<vmem>>, vector<1x512xf32>
    %266 = vector.broadcast %265 : vector<1x512xf32> to vector<24x512xf32>
    %267 = arith.addf %264, %266 : vector<24x512xf32>
    %cst_96 = arith.constant 0.000000e+00 : f32
    %268 = vector.broadcast %cst_96 : f32 to vector<24x512xf32>
    %269 = arith.maximumf %267, %268 : vector<24x512xf32>
    %270 = arith.truncf %269 : vector<24x512xf32> to vector<24x512xbf16>
    %c0_97 = arith.constant 0 : index
    %c0_98 = arith.constant 0 : index
    %271 = vector.load %arg16[%c0_97, %c0_98] : memref<512x512xbf16, #tpu.memory_space<vmem>>, vector<512x512xbf16>
    %cst_99 = arith.constant dense<0.000000e+00> : vector<24x512xf32>
    %272 = tpu.matmul %270, %271, %cst_99 {dimension_numbers = #tpu.dot_dimension_numbers<[1], [0], [0], [1], [0, 0, 1, 1], [], []>} : vector<24x512xbf16>, vector<512x512xbf16>, vector<24x512xf32> -> vector<24x512xf32>
    %c0_100 = arith.constant 0 : index
    %c1664 = arith.constant 1664 : index
    %273 = vector.load %arg8[%c0_100, %c1664] : memref<1x4224xf32, #tpu.memory_space<vmem>>, vector<1x512xf32>
    %274 = vector.broadcast %273 : vector<1x512xf32> to vector<24x512xf32>
    %275 = arith.addf %272, %274 : vector<24x512xf32>
    %cst_101 = arith.constant 0.000000e+00 : f32
    %276 = vector.broadcast %cst_101 : f32 to vector<24x512xf32>
    %277 = arith.maximumf %275, %276 : vector<24x512xf32>
    %278 = arith.truncf %277 : vector<24x512xf32> to vector<24x512xbf16>
    %c0_102 = arith.constant 0 : index
    %c0_103 = arith.constant 0 : index
    %279 = vector.load %arg17[%c0_102, %c0_103] : memref<512x256xbf16, #tpu.memory_space<vmem>>, vector<512x256xbf16>
    %cst_104 = arith.constant dense<0.000000e+00> : vector<24x256xf32>
    %280 = tpu.matmul %278, %279, %cst_104 {dimension_numbers = #tpu.dot_dimension_numbers<[1], [0], [0], [1], [0, 0, 1, 1], [], []>} : vector<24x512xbf16>, vector<512x256xbf16>, vector<24x256xf32> -> vector<24x256xf32>
    %c0_105 = arith.constant 0 : index
    %c2176 = arith.constant 2176 : index
    %281 = vector.load %arg8[%c0_105, %c2176] : memref<1x4224xf32, #tpu.memory_space<vmem>>, vector<1x256xf32>
    %282 = vector.broadcast %281 : vector<1x256xf32> to vector<24x256xf32>
    %283 = arith.addf %280, %282 : vector<24x256xf32>
    %cst_106 = arith.constant 0.000000e+00 : f32
    %284 = vector.broadcast %cst_106 : f32 to vector<24x256xf32>
    %285 = arith.maximumf %283, %284 : vector<24x256xf32>
    %286 = arith.truncf %285 : vector<24x256xf32> to vector<24x256xbf16>
    %c0_107 = arith.constant 0 : index
    %c0_108 = arith.constant 0 : index
    %287 = vector.load %arg18[%c0_107, %c0_108] : memref<256x10xbf16, #tpu.memory_space<vmem>>, vector<256x10xbf16>
    %cst_109 = arith.constant dense<0.000000e+00> : vector<24x10xf32>
    %288 = tpu.matmul %286, %287, %cst_109 {dimension_numbers = #tpu.dot_dimension_numbers<[1], [0], [0], [1], [0, 0, 1, 1], [], []>} : vector<24x256xbf16>, vector<256x10xbf16>, vector<24x10xf32> -> vector<24x10xf32>
    %c0_110 = arith.constant 0 : index
    %c2432 = arith.constant 2432 : index
    %289 = vector.load %arg8[%c0_110, %c2432] : memref<1x4224xf32, #tpu.memory_space<vmem>>, vector<1x10xf32>
    %290 = vector.broadcast %289 : vector<1x10xf32> to vector<24x10xf32>
    %291 = arith.addf %288, %290 : vector<24x10xf32>
    %c0_111 = arith.constant 0 : index
    %c0_112 = arith.constant 0 : index
    %292 = vector.load %arg2[%c0_111, %c0_112] : memref<6x2xf32, #tpu.memory_space<vmem>>, vector<6x2xf32>
    %c0_113 = arith.constant 0 : index
    %c0_114 = arith.constant 0 : index
    %293 = vector.load %arg5[%c0_113, %c0_114] : memref<36x6xf32, #tpu.memory_space<vmem>>, vector<36x6xf32>
    %c0_115 = arith.constant 0 : index
    %c0_116 = arith.constant 0 : index
    %294 = vector.load %arg3[%c0_115, %c0_116] : memref<36x1xf32, #tpu.memory_space<vmem>>, vector<36x1xf32>
    %295 = arith.truncf %291 : vector<24x10xf32> to vector<24x10xbf16>
    %c0_117 = arith.constant 0 : index
    %c0_118 = arith.constant 0 : index
    %296 = vector.load %arg19[%c0_117, %c0_118] : memref<10x32xbf16, #tpu.memory_space<vmem>>, vector<10x32xbf16>
    %cst_119 = arith.constant dense<0.000000e+00> : vector<24x32xf32>
    %297 = tpu.matmul %295, %296, %cst_119 {dimension_numbers = #tpu.dot_dimension_numbers<[1], [0], [0], [1], [0, 0, 1, 1], [], []>} : vector<24x10xbf16>, vector<10x32xbf16>, vector<24x32xf32> -> vector<24x32xf32>
    %c0_120 = arith.constant 0 : index
    %c2560 = arith.constant 2560 : index
    %298 = vector.load %arg8[%c0_120, %c2560] : memref<1x4224xf32, #tpu.memory_space<vmem>>, vector<1x32xf32>
    %299 = vector.broadcast %298 : vector<1x32xf32> to vector<24x32xf32>
    %300 = arith.addf %297, %299 : vector<24x32xf32>
    %cst_121 = arith.constant 0.000000e+00 : f32
    %301 = vector.broadcast %cst_121 : f32 to vector<24x32xf32>
    %302 = arith.maximumf %300, %301 : vector<24x32xf32>
    %303 = arith.truncf %302 : vector<24x32xf32> to vector<24x32xbf16>
    %c0_122 = arith.constant 0 : index
    %c0_123 = arith.constant 0 : index
    %304 = vector.load %arg20[%c0_122, %c0_123] : memref<32x32xbf16, #tpu.memory_space<vmem>>, vector<32x32xbf16>
    %cst_124 = arith.constant dense<0.000000e+00> : vector<24x32xf32>
    %305 = tpu.matmul %303, %304, %cst_124 {dimension_numbers = #tpu.dot_dimension_numbers<[1], [0], [0], [1], [0, 0, 1, 1], [], []>} : vector<24x32xbf16>, vector<32x32xbf16>, vector<24x32xf32> -> vector<24x32xf32>
    %c0_125 = arith.constant 0 : index
    %c2688 = arith.constant 2688 : index
    %306 = vector.load %arg8[%c0_125, %c2688] : memref<1x4224xf32, #tpu.memory_space<vmem>>, vector<1x32xf32>
    %307 = vector.broadcast %306 : vector<1x32xf32> to vector<24x32xf32>
    %308 = arith.addf %305, %307 : vector<24x32xf32>
    %cst_126 = arith.constant 0.000000e+00 : f32
    %309 = vector.broadcast %cst_126 : f32 to vector<24x32xf32>
    %310 = arith.maximumf %308, %309 : vector<24x32xf32>
    %311 = arith.truncf %310 : vector<24x32xf32> to vector<24x32xbf16>
    %c0_127 = arith.constant 0 : index
    %c0_128 = arith.constant 0 : index
    %312 = vector.load %arg21[%c0_127, %c0_128] : memref<32x32xbf16, #tpu.memory_space<vmem>>, vector<32x32xbf16>
    %cst_129 = arith.constant dense<0.000000e+00> : vector<24x32xf32>
    %313 = tpu.matmul %311, %312, %cst_129 {dimension_numbers = #tpu.dot_dimension_numbers<[1], [0], [0], [1], [0, 0, 1, 1], [], []>} : vector<24x32xbf16>, vector<32x32xbf16>, vector<24x32xf32> -> vector<24x32xf32>
    %c0_130 = arith.constant 0 : index
    %c2816 = arith.constant 2816 : index
    %314 = vector.load %arg8[%c0_130, %c2816] : memref<1x4224xf32, #tpu.memory_space<vmem>>, vector<1x32xf32>
    %315 = vector.broadcast %314 : vector<1x32xf32> to vector<24x32xf32>
    %316 = arith.addf %313, %315 : vector<24x32xf32>
    %317 = vector.extract_strided_slice %291 {offsets = [0, 8], sizes = [6, 2], strides = [1, 1]} : vector<24x10xf32> to vector<6x2xf32>
    %318 = arith.addf %317, %292 : vector<6x2xf32>
    %cst_131 = arith.constant dense<0.000000e+00> : vector<36x2xf32>
    %319 = tpu.matmul %293, %318, %cst_131 {dimension_numbers = #tpu.dot_dimension_numbers<[1], [0], [0], [1], [0, 0, 1, 1], [], []>} : vector<36x6xf32>, vector<6x2xf32>, vector<36x2xf32> -> vector<36x2xf32>
    %320 = arith.mulf %319, %319 : vector<36x2xf32>
    %cst_132 = arith.constant dense<0.000000e+00> : vector<36xf32>
    %321 = vector.multi_reduction <add>, %320, %cst_132 [1] : vector<36x2xf32> to vector<36xf32>
    %322 = vector.shape_cast %321 : vector<36xf32> to vector<36x1xf32>
    %323 = math.sqrt %322 : vector<36x1xf32>
    %cst_133 = arith.constant 3.000000e+00 : f32
    %324 = vector.broadcast %cst_133 : f32 to vector<36x1xf32>
    %325 = arith.cmpf ole, %323, %324 : vector<36x1xf32>
    %326 = arith.extui %325 : vector<36x1xi1> to vector<36x1xi32>
    %327 = arith.sitofp %326 : vector<36x1xi32> to vector<36x1xf32>
    %328 = arith.mulf %294, %327 : vector<36x1xf32>
    %cst_134 = arith.constant 9.99999974E-5 : f32
    %329 = vector.broadcast %cst_134 : f32 to vector<36x1xf32>
    %330 = arith.cmpf ogt, %323, %329 : vector<36x1xf32>
    %331 = arith.extui %330 : vector<36x1xi1> to vector<36x1xi32>
    %332 = arith.sitofp %331 : vector<36x1xi32> to vector<36x1xf32>
    %333 = arith.mulf %328, %332 : vector<36x1xf32>
    %cst_135 = arith.constant 0.000000e+00 : f32
    %334 = vector.broadcast %cst_135 : f32 to vector<36x1xf32>
    %335 = arith.cmpf ogt, %333, %334 : vector<36x1xf32>
    %cst_136 = arith.constant 1.000000e+00 : f32
    %336 = vector.broadcast %cst_136 : f32 to vector<36x1xf32>
    %337 = arith.select %335, %323, %336 : vector<36x1xi1>, vector<36x1xf32>
    %338 = tpu.reciprocal %337 {approx = true} : vector<36x1xf32> -> vector<36x1xf32>
    %339 = arith.truncf %319 : vector<36x2xf32> to vector<36x2xbf16>
    %c0_137 = arith.constant 0 : index
    %c0_138 = arith.constant 0 : index
    %340 = vector.load %arg22[%c0_137, %c0_138] : memref<2x16xbf16, #tpu.memory_space<vmem>>, vector<2x16xbf16>
    %cst_139 = arith.constant dense<0.000000e+00> : vector<36x16xf32>
    %341 = tpu.matmul %339, %340, %cst_139 {dimension_numbers = #tpu.dot_dimension_numbers<[1], [0], [0], [1], [0, 0, 1, 1], [], []>} : vector<36x2xbf16>, vector<2x16xbf16>, vector<36x16xf32> -> vector<36x16xf32>
    %c0_140 = arith.constant 0 : index
    %c0_141 = arith.constant 0 : index
    %342 = vector.load %arg23[%c0_140, %c0_141] : memref<1x16xf32, #tpu.memory_space<vmem>>, vector<1x16xf32>
    %343 = vector.broadcast %338 : vector<36x1xf32> to vector<36x16xf32>
    %344 = vector.broadcast %342 : vector<1x16xf32> to vector<36x16xf32>
    %345 = arith.mulf %343, %344 : vector<36x16xf32>
    %346 = arith.addf %341, %345 : vector<36x16xf32>
    %c0_142 = arith.constant 0 : index
    %c2944 = arith.constant 2944 : index
    %347 = vector.load %arg8[%c0_142, %c2944] : memref<1x4224xf32, #tpu.memory_space<vmem>>, vector<1x16xf32>
    %348 = vector.broadcast %347 : vector<1x16xf32> to vector<36x16xf32>
    %349 = arith.addf %346, %348 : vector<36x16xf32>
    %cst_143 = arith.constant 0.000000e+00 : f32
    %350 = vector.broadcast %cst_143 : f32 to vector<36x16xf32>
    %351 = arith.maximumf %349, %350 : vector<36x16xf32>
    %352 = arith.truncf %351 : vector<36x16xf32> to vector<36x16xbf16>
    %c0_144 = arith.constant 0 : index
    %c0_145 = arith.constant 0 : index
    %353 = vector.load %arg24[%c0_144, %c0_145] : memref<16x32xbf16, #tpu.memory_space<vmem>>, vector<16x32xbf16>
    %cst_146 = arith.constant dense<0.000000e+00> : vector<36x32xf32>
    %354 = tpu.matmul %352, %353, %cst_146 {dimension_numbers = #tpu.dot_dimension_numbers<[1], [0], [0], [1], [0, 0, 1, 1], [], []>} : vector<36x16xbf16>, vector<16x32xbf16>, vector<36x32xf32> -> vector<36x32xf32>
    %c0_147 = arith.constant 0 : index
    %c3072 = arith.constant 3072 : index
    %355 = vector.load %arg8[%c0_147, %c3072] : memref<1x4224xf32, #tpu.memory_space<vmem>>, vector<1x32xf32>
    %356 = vector.broadcast %355 : vector<1x32xf32> to vector<36x32xf32>
    %357 = arith.addf %354, %356 : vector<36x32xf32>
    %cst_148 = arith.constant 0.000000e+00 : f32
    %358 = vector.broadcast %cst_148 : f32 to vector<36x32xf32>
    %359 = arith.maximumf %357, %358 : vector<36x32xf32>
    %360 = arith.truncf %359 : vector<36x32xf32> to vector<36x32xbf16>
    %c0_149 = arith.constant 0 : index
    %c0_150 = arith.constant 0 : index
    %361 = vector.load %arg25[%c0_149, %c0_150] : memref<32x32xbf16, #tpu.memory_space<vmem>>, vector<32x32xbf16>
    %cst_151 = arith.constant dense<0.000000e+00> : vector<36x32xf32>
    %362 = tpu.matmul %360, %361, %cst_151 {dimension_numbers = #tpu.dot_dimension_numbers<[1], [0], [0], [1], [0, 0, 1, 1], [], []>} : vector<36x32xbf16>, vector<32x32xbf16>, vector<36x32xf32> -> vector<36x32xf32>
    %c0_152 = arith.constant 0 : index
    %c3200 = arith.constant 3200 : index
    %363 = vector.load %arg8[%c0_152, %c3200] : memref<1x4224xf32, #tpu.memory_space<vmem>>, vector<1x32xf32>
    %364 = vector.broadcast %363 : vector<1x32xf32> to vector<36x32xf32>
    %365 = arith.addf %362, %364 : vector<36x32xf32>
    %366 = vector.broadcast %333 : vector<36x1xf32> to vector<36x32xf32>
    %367 = arith.mulf %365, %366 : vector<36x32xf32>
    %c0_153 = arith.constant 0 : index
    %c0_154 = arith.constant 0 : index
    %368 = vector.load %arg6[%c0_153, %c0_154] : memref<6x36xbf16, #tpu.memory_space<vmem>>, vector<6x36xbf16>
    %369 = arith.truncf %367 : vector<36x32xf32> to vector<36x32xbf16>
    %cst_155 = arith.constant dense<0.000000e+00> : vector<6x32xf32>
    %370 = tpu.matmul %368, %369, %cst_155 {dimension_numbers = #tpu.dot_dimension_numbers<[1], [0], [0], [1], [0, 0, 1, 1], [], []>} : vector<6x36xbf16>, vector<36x32xbf16>, vector<6x32xf32> -> vector<6x32xf32>
    %c0_156 = arith.constant 0 : index
    %c0_157 = arith.constant 0 : index
    %371 = vector.load %arg7[%c0_156, %c0_157] : memref<24x6xf32, #tpu.memory_space<vmem>>, vector<24x6xf32>
    %cst_158 = arith.constant dense<0.000000e+00> : vector<24x32xf32>
    %372 = tpu.matmul %371, %370, %cst_158 {dimension_numbers = #tpu.dot_dimension_numbers<[1], [0], [0], [1], [0, 0, 1, 1], [], []>} : vector<24x6xf32>, vector<6x32xf32>, vector<24x32xf32> -> vector<24x32xf32>
    %373 = arith.addf %316, %372 : vector<24x32xf32>
    %374 = arith.truncf %373 : vector<24x32xf32> to vector<24x32xbf16>
    %c0_159 = arith.constant 0 : index
    %c0_160 = arith.constant 0 : index
    %375 = vector.load %arg26[%c0_159, %c0_160] : memref<32x32xbf16, #tpu.memory_space<vmem>>, vector<32x32xbf16>
    %cst_161 = arith.constant dense<0.000000e+00> : vector<24x32xf32>
    %376 = tpu.matmul %374, %375, %cst_161 {dimension_numbers = #tpu.dot_dimension_numbers<[1], [0], [0], [1], [0, 0, 1, 1], [], []>} : vector<24x32xbf16>, vector<32x32xbf16>, vector<24x32xf32> -> vector<24x32xf32>
    %c0_162 = arith.constant 0 : index
    %c3328 = arith.constant 3328 : index
    %377 = vector.load %arg8[%c0_162, %c3328] : memref<1x4224xf32, #tpu.memory_space<vmem>>, vector<1x32xf32>
    %378 = vector.broadcast %377 : vector<1x32xf32> to vector<24x32xf32>
    %379 = arith.addf %376, %378 : vector<24x32xf32>
    %cst_163 = arith.constant 0.000000e+00 : f32
    %380 = vector.broadcast %cst_163 : f32 to vector<24x32xf32>
    %381 = arith.maximumf %379, %380 : vector<24x32xf32>
    %382 = arith.truncf %381 : vector<24x32xf32> to vector<24x32xbf16>
    %c0_164 = arith.constant 0 : index
    %c0_165 = arith.constant 0 : index
    %383 = vector.load %arg27[%c0_164, %c0_165] : memref<32x64xbf16, #tpu.memory_space<vmem>>, vector<32x64xbf16>
    %cst_166 = arith.constant dense<0.000000e+00> : vector<24x64xf32>
    %384 = tpu.matmul %382, %383, %cst_166 {dimension_numbers = #tpu.dot_dimension_numbers<[1], [0], [0], [1], [0, 0, 1, 1], [], []>} : vector<24x32xbf16>, vector<32x64xbf16>, vector<24x64xf32> -> vector<24x64xf32>
    %c0_167 = arith.constant 0 : index
    %c3456 = arith.constant 3456 : index
    %385 = vector.load %arg8[%c0_167, %c3456] : memref<1x4224xf32, #tpu.memory_space<vmem>>, vector<1x64xf32>
    %386 = vector.broadcast %385 : vector<1x64xf32> to vector<24x64xf32>
    %387 = arith.addf %384, %386 : vector<24x64xf32>
    %cst_168 = arith.constant 0.000000e+00 : f32
    %388 = vector.broadcast %cst_168 : f32 to vector<24x64xf32>
    %389 = arith.maximumf %387, %388 : vector<24x64xf32>
    %390 = arith.truncf %389 : vector<24x64xf32> to vector<24x64xbf16>
    %c0_169 = arith.constant 0 : index
    %c0_170 = arith.constant 0 : index
    %391 = vector.load %arg28[%c0_169, %c0_170] : memref<64x16xbf16, #tpu.memory_space<vmem>>, vector<64x16xbf16>
    %cst_171 = arith.constant dense<0.000000e+00> : vector<24x16xf32>
    %392 = tpu.matmul %390, %391, %cst_171 {dimension_numbers = #tpu.dot_dimension_numbers<[1], [0], [0], [1], [0, 0, 1, 1], [], []>} : vector<24x64xbf16>, vector<64x16xbf16>, vector<24x16xf32> -> vector<24x16xf32>
    %c0_172 = arith.constant 0 : index
    %c3584 = arith.constant 3584 : index
    %393 = vector.load %arg8[%c0_172, %c3584] : memref<1x4224xf32, #tpu.memory_space<vmem>>, vector<1x16xf32>
    %394 = vector.broadcast %393 : vector<1x16xf32> to vector<24x16xf32>
    %395 = arith.addf %392, %394 : vector<24x16xf32>
    %cst_173 = arith.constant 0.000000e+00 : f32
    %396 = vector.broadcast %cst_173 : f32 to vector<24x16xf32>
    %397 = arith.subf %396, %395 : vector<24x16xf32>
    %398 = math.exp %397 : vector<24x16xf32>
    %cst_174 = arith.constant 1.000000e+00 : f32
    %399 = vector.broadcast %cst_174 : f32 to vector<24x16xf32>
    %400 = arith.addf %399, %398 : vector<24x16xf32>
    %401 = tpu.reciprocal %400 {approx = true} : vector<24x16xf32> -> vector<24x16xf32>
    %cst_175 = arith.constant 0.00999999977 : f32
    %cst_176 = arith.constant 9.900000e-01 : f32
    %402 = vector.broadcast %cst_175 : f32 to vector<24x16xf32>
    %403 = arith.maximumf %402, %401 : vector<24x16xf32>
    %404 = vector.broadcast %cst_176 : f32 to vector<24x16xf32>
    %405 = arith.minimumf %404, %403 : vector<24x16xf32>
    %cst_177 = arith.constant dense<0.000000e+00> : vector<24x8xf32>
    %406 = tpu.matmul %405, %34, %cst_177 {dimension_numbers = #tpu.dot_dimension_numbers<[1], [0], [0], [1], [0, 0, 1, 1], [], []>} : vector<24x16xf32>, vector<16x8xf32>, vector<24x8xf32> -> vector<24x8xf32>
    %cst_178 = arith.constant dense<0.000000e+00> : vector<24x8xf32>
    %407 = tpu.matmul %405, %41, %cst_178 {dimension_numbers = #tpu.dot_dimension_numbers<[1], [0], [0], [1], [0, 0, 1, 1], [], []>} : vector<24x16xf32>, vector<16x8xf32>, vector<24x8xf32> -> vector<24x8xf32>
    %408 = math.log %406 : vector<24x8xf32>
    %cst_179 = arith.constant -2.000000e+00 : f32
    %409 = vector.broadcast %cst_179 : f32 to vector<24x8xf32>
    %410 = arith.mulf %409, %408 : vector<24x8xf32>
    %411 = math.sqrt %410 : vector<24x8xf32>
    %cst_180 = arith.constant 4.000000e+00 : f32
    %412 = vector.broadcast %cst_180 : f32 to vector<24x8xf32>
    %413 = arith.mulf %412, %407 : vector<24x8xf32>
    %cst_181 = arith.constant 5.000000e-01 : f32
    %414 = vector.broadcast %cst_181 : f32 to vector<24x8xf32>
    %415 = arith.cmpf oge, %413, %414 : vector<24x8xf32>
    %416 = arith.extui %415 : vector<24x8xi1> to vector<24x8xi32>
    %417 = arith.sitofp %416 : vector<24x8xi32> to vector<24x8xf32>
    %cst_182 = arith.constant 1.500000e+00 : f32
    %418 = vector.broadcast %cst_182 : f32 to vector<24x8xf32>
    %419 = arith.cmpf oge, %413, %418 : vector<24x8xf32>
    %420 = arith.extui %419 : vector<24x8xi1> to vector<24x8xi32>
    %421 = arith.sitofp %420 : vector<24x8xi32> to vector<24x8xf32>
    %422 = arith.addf %417, %421 : vector<24x8xf32>
    %cst_183 = arith.constant 2.500000e+00 : f32
    %423 = vector.broadcast %cst_183 : f32 to vector<24x8xf32>
    %424 = arith.cmpf oge, %413, %423 : vector<24x8xf32>
    %425 = arith.extui %424 : vector<24x8xi1> to vector<24x8xi32>
    %426 = arith.sitofp %425 : vector<24x8xi32> to vector<24x8xf32>
    %427 = arith.addf %422, %426 : vector<24x8xf32>
    %cst_184 = arith.constant 3.500000e+00 : f32
    %428 = vector.broadcast %cst_184 : f32 to vector<24x8xf32>
    %429 = arith.cmpf oge, %413, %428 : vector<24x8xf32>
    %430 = arith.extui %429 : vector<24x8xi1> to vector<24x8xi32>
    %431 = arith.sitofp %430 : vector<24x8xi32> to vector<24x8xf32>
    %432 = arith.addf %427, %431 : vector<24x8xf32>
    %433 = arith.subf %413, %432 : vector<24x8xf32>
    %cst_185 = arith.constant 1.57079637 : f32
    %434 = vector.broadcast %cst_185 : f32 to vector<24x8xf32>
    %435 = arith.mulf %433, %434 : vector<24x8xf32>
    %436 = arith.mulf %435, %435 : vector<24x8xf32>
    %cst_186 = arith.constant 2.48015876E-5 : f32
    %437 = vector.broadcast %cst_186 : f32 to vector<24x8xf32>
    %438 = arith.mulf %436, %437 : vector<24x8xf32>
    %cst_187 = arith.constant -0.00138888892 : f32
    %439 = vector.broadcast %cst_187 : f32 to vector<24x8xf32>
    %440 = arith.addf %439, %438 : vector<24x8xf32>
    %441 = arith.mulf %436, %440 : vector<24x8xf32>
    %cst_188 = arith.constant 0.0416666679 : f32
    %442 = vector.broadcast %cst_188 : f32 to vector<24x8xf32>
    %443 = arith.addf %442, %441 : vector<24x8xf32>
    %444 = arith.mulf %436, %443 : vector<24x8xf32>
    %cst_189 = arith.constant -5.000000e-01 : f32
    %445 = vector.broadcast %cst_189 : f32 to vector<24x8xf32>
    %446 = arith.addf %445, %444 : vector<24x8xf32>
    %447 = arith.mulf %436, %446 : vector<24x8xf32>
    %cst_190 = arith.constant 1.000000e+00 : f32
    %448 = vector.broadcast %cst_190 : f32 to vector<24x8xf32>
    %449 = arith.addf %448, %447 : vector<24x8xf32>
    %cst_191 = arith.constant 2.75573188E-6 : f32
    %450 = vector.broadcast %cst_191 : f32 to vector<24x8xf32>
    %451 = arith.mulf %436, %450 : vector<24x8xf32>
    %cst_192 = arith.constant -1.98412701E-4 : f32
    %452 = vector.broadcast %cst_192 : f32 to vector<24x8xf32>
    %453 = arith.addf %452, %451 : vector<24x8xf32>
    %454 = arith.mulf %436, %453 : vector<24x8xf32>
    %cst_193 = arith.constant 0.00833333377 : f32
    %455 = vector.broadcast %cst_193 : f32 to vector<24x8xf32>
    %456 = arith.addf %455, %454 : vector<24x8xf32>
    %457 = arith.mulf %436, %456 : vector<24x8xf32>
    %cst_194 = arith.constant -0.166666672 : f32
    %458 = vector.broadcast %cst_194 : f32 to vector<24x8xf32>
    %459 = arith.addf %458, %457 : vector<24x8xf32>
    %460 = arith.mulf %436, %459 : vector<24x8xf32>
    %cst_195 = arith.constant 1.000000e+00 : f32
    %461 = vector.broadcast %cst_195 : f32 to vector<24x8xf32>
    %462 = arith.addf %461, %460 : vector<24x8xf32>
    %463 = arith.mulf %435, %462 : vector<24x8xf32>
    %cst_196 = arith.constant 3.500000e+00 : f32
    %464 = vector.broadcast %cst_196 : f32 to vector<24x8xf32>
    %465 = arith.cmpf oge, %432, %464 : vector<24x8xf32>
    %cst_197 = arith.constant 4.000000e+00 : f32
    %466 = vector.broadcast %cst_197 : f32 to vector<24x8xf32>
    %467 = arith.subf %432, %466 : vector<24x8xf32>
    %468 = arith.select %465, %467, %432 : vector<24x8xi1>, vector<24x8xf32>
    %cst_198 = arith.constant 0.000000e+00 : f32
    %469 = vector.broadcast %cst_198 : f32 to vector<24x8xf32>
    %470 = arith.cmpf oeq, %468, %469 : vector<24x8xf32>
    %cst_199 = arith.constant 1.000000e+00 : f32
    %471 = vector.broadcast %cst_199 : f32 to vector<24x8xf32>
    %472 = arith.cmpf oeq, %468, %471 : vector<24x8xf32>
    %cst_200 = arith.constant 0.000000e+00 : f32
    %473 = vector.broadcast %cst_200 : f32 to vector<24x8xf32>
    %474 = arith.subf %473, %463 : vector<24x8xf32>
    %cst_201 = arith.constant 2.000000e+00 : f32
    %475 = vector.broadcast %cst_201 : f32 to vector<24x8xf32>
    %476 = arith.cmpf oeq, %468, %475 : vector<24x8xf32>
    %cst_202 = arith.constant 0.000000e+00 : f32
    %477 = vector.broadcast %cst_202 : f32 to vector<24x8xf32>
    %478 = arith.subf %477, %449 : vector<24x8xf32>
    %479 = arith.select %476, %478, %463 : vector<24x8xi1>, vector<24x8xf32>
    %480 = arith.select %472, %474, %479 : vector<24x8xi1>, vector<24x8xf32>
    %481 = arith.select %470, %449, %480 : vector<24x8xi1>, vector<24x8xf32>
    %cst_203 = arith.constant 0.000000e+00 : f32
    %482 = vector.broadcast %cst_203 : f32 to vector<24x8xf32>
    %483 = arith.cmpf oeq, %468, %482 : vector<24x8xf32>
    %cst_204 = arith.constant 1.000000e+00 : f32
    %484 = vector.broadcast %cst_204 : f32 to vector<24x8xf32>
    %485 = arith.cmpf oeq, %468, %484 : vector<24x8xf32>
    %cst_205 = arith.constant 2.000000e+00 : f32
    %486 = vector.broadcast %cst_205 : f32 to vector<24x8xf32>
    %487 = arith.cmpf oeq, %468, %486 : vector<24x8xf32>
    %cst_206 = arith.constant 0.000000e+00 : f32
    %488 = vector.broadcast %cst_206 : f32 to vector<24x8xf32>
    %489 = arith.subf %488, %463 : vector<24x8xf32>
    %cst_207 = arith.constant 0.000000e+00 : f32
    %490 = vector.broadcast %cst_207 : f32 to vector<24x8xf32>
    %491 = arith.subf %490, %449 : vector<24x8xf32>
    %492 = arith.select %487, %489, %491 : vector<24x8xi1>, vector<24x8xf32>
    %493 = arith.select %485, %449, %492 : vector<24x8xi1>, vector<24x8xf32>
    %494 = arith.select %483, %463, %493 : vector<24x8xi1>, vector<24x8xf32>
    %495 = arith.mulf %411, %481 : vector<24x8xf32>
    %cst_208 = arith.constant dense<0.000000e+00> : vector<24x16xf32>
    %496 = tpu.matmul %495, %48, %cst_208 {dimension_numbers = #tpu.dot_dimension_numbers<[1], [0], [0], [1], [0, 0, 1, 1], [], []>} : vector<24x8xf32>, vector<8x16xf32>, vector<24x16xf32> -> vector<24x16xf32>
    %497 = arith.mulf %411, %494 : vector<24x8xf32>
    %cst_209 = arith.constant dense<0.000000e+00> : vector<24x16xf32>
    %498 = tpu.matmul %497, %55, %cst_209 {dimension_numbers = #tpu.dot_dimension_numbers<[1], [0], [0], [1], [0, 0, 1, 1], [], []>} : vector<24x8xf32>, vector<8x16xf32>, vector<24x16xf32> -> vector<24x16xf32>
    %499 = arith.addf %496, %498 : vector<24x16xf32>
    %cst_210 = arith.constant 1.000000e+00 : f32
    %500 = vector.broadcast %cst_210 : f32 to vector<24x16xf32>
    %501 = arith.mulf %499, %500 : vector<24x16xf32>
    %c0_211 = arith.constant 0 : index
    %c0_212 = arith.constant 0 : index
    %502 = vector.load %arg29[%c0_211, %c0_212] : memref<32x128xbf16, #tpu.memory_space<vmem>>, vector<32x128xbf16>
    %cst_213 = arith.constant dense<0.000000e+00> : vector<24x128xf32>
    %503 = tpu.matmul %374, %502, %cst_213 {dimension_numbers = #tpu.dot_dimension_numbers<[1], [0], [0], [1], [0, 0, 1, 1], [], []>} : vector<24x32xbf16>, vector<32x128xbf16>, vector<24x128xf32> -> vector<24x128xf32>
    %504 = arith.truncf %501 : vector<24x16xf32> to vector<24x16xbf16>
    %c0_214 = arith.constant 0 : index
    %c0_215 = arith.constant 0 : index
    %505 = vector.load %arg30[%c0_214, %c0_215] : memref<16x128xbf16, #tpu.memory_space<vmem>>, vector<16x128xbf16>
    %cst_216 = arith.constant dense<0.000000e+00> : vector<24x128xf32>
    %506 = tpu.matmul %504, %505, %cst_216 {dimension_numbers = #tpu.dot_dimension_numbers<[1], [0], [0], [1], [0, 0, 1, 1], [], []>} : vector<24x16xbf16>, vector<16x128xbf16>, vector<24x128xf32> -> vector<24x128xf32>
    %507 = arith.addf %503, %506 : vector<24x128xf32>
    %c0_217 = arith.constant 0 : index
    %c3712 = arith.constant 3712 : index
    %508 = vector.load %arg8[%c0_217, %c3712] : memref<1x4224xf32, #tpu.memory_space<vmem>>, vector<1x128xf32>
    %509 = vector.broadcast %508 : vector<1x128xf32> to vector<24x128xf32>
    %510 = arith.addf %507, %509 : vector<24x128xf32>
    %cst_218 = arith.constant 0.000000e+00 : f32
    %511 = vector.broadcast %cst_218 : f32 to vector<24x128xf32>
    %512 = arith.maximumf %510, %511 : vector<24x128xf32>
    %513 = arith.truncf %512 : vector<24x128xf32> to vector<24x128xbf16>
    %c0_219 = arith.constant 0 : index
    %c0_220 = arith.constant 0 : index
    %514 = vector.load %arg31[%c0_219, %c0_220] : memref<128x128xbf16, #tpu.memory_space<vmem>>, vector<128x128xbf16>
    %cst_221 = arith.constant dense<0.000000e+00> : vector<24x128xf32>
    %515 = tpu.matmul %513, %514, %cst_221 {dimension_numbers = #tpu.dot_dimension_numbers<[1], [0], [0], [1], [0, 0, 1, 1], [], []>} : vector<24x128xbf16>, vector<128x128xbf16>, vector<24x128xf32> -> vector<24x128xf32>
    %c0_222 = arith.constant 0 : index
    %c3840 = arith.constant 3840 : index
    %516 = vector.load %arg8[%c0_222, %c3840] : memref<1x4224xf32, #tpu.memory_space<vmem>>, vector<1x128xf32>
    %517 = vector.broadcast %516 : vector<1x128xf32> to vector<24x128xf32>
    %518 = arith.addf %515, %517 : vector<24x128xf32>
    %cst_223 = arith.constant 0.000000e+00 : f32
    %519 = vector.broadcast %cst_223 : f32 to vector<24x128xf32>
    %520 = arith.maximumf %518, %519 : vector<24x128xf32>
    %521 = arith.truncf %520 : vector<24x128xf32> to vector<24x128xbf16>
    %c0_224 = arith.constant 0 : index
    %c0_225 = arith.constant 0 : index
    %522 = vector.load %arg32[%c0_224, %c0_225] : memref<128x64xbf16, #tpu.memory_space<vmem>>, vector<128x64xbf16>
    %cst_226 = arith.constant dense<0.000000e+00> : vector<24x64xf32>
    %523 = tpu.matmul %521, %522, %cst_226 {dimension_numbers = #tpu.dot_dimension_numbers<[1], [0], [0], [1], [0, 0, 1, 1], [], []>} : vector<24x128xbf16>, vector<128x64xbf16>, vector<24x64xf32> -> vector<24x64xf32>
    %c0_227 = arith.constant 0 : index
    %c3968 = arith.constant 3968 : index
    %524 = vector.load %arg8[%c0_227, %c3968] : memref<1x4224xf32, #tpu.memory_space<vmem>>, vector<1x64xf32>
    %525 = vector.broadcast %524 : vector<1x64xf32> to vector<24x64xf32>
    %526 = arith.addf %523, %525 : vector<24x64xf32>
    %cst_228 = arith.constant 0.000000e+00 : f32
    %527 = vector.broadcast %cst_228 : f32 to vector<24x64xf32>
    %528 = arith.maximumf %526, %527 : vector<24x64xf32>
    %529 = arith.truncf %528 : vector<24x64xf32> to vector<24x64xbf16>
    %c0_229 = arith.constant 0 : index
    %c0_230 = arith.constant 0 : index
    %530 = vector.load %arg33[%c0_229, %c0_230] : memref<64x10xbf16, #tpu.memory_space<vmem>>, vector<64x10xbf16>
    %cst_231 = arith.constant dense<0.000000e+00> : vector<24x10xf32>
    %531 = tpu.matmul %529, %530, %cst_231 {dimension_numbers = #tpu.dot_dimension_numbers<[1], [0], [0], [1], [0, 0, 1, 1], [], []>} : vector<24x64xbf16>, vector<64x10xbf16>, vector<24x10xf32> -> vector<24x10xf32>
    %c0_232 = arith.constant 0 : index
    %c4096 = arith.constant 4096 : index
    %532 = vector.load %arg8[%c0_232, %c4096] : memref<1x4224xf32, #tpu.memory_space<vmem>>, vector<1x10xf32>
    %533 = vector.broadcast %532 : vector<1x10xf32> to vector<24x10xf32>
    %534 = arith.addf %531, %533 : vector<24x10xf32>
    %535 = arith.addf %291, %534 : vector<24x10xf32>
    %536 = arith.truncf %535 : vector<24x10xf32> to vector<24x10xbf16>
    %c0_233 = arith.constant 0 : index
    %c0_234 = arith.constant 0 : index
    %537 = vector.load %arg19[%c0_233, %c0_234] : memref<10x32xbf16, #tpu.memory_space<vmem>>, vector<10x32xbf16>
    %cst_235 = arith.constant dense<0.000000e+00> : vector<24x32xf32>
    %538 = tpu.matmul %536, %537, %cst_235 {dimension_numbers = #tpu.dot_dimension_numbers<[1], [0], [0], [1], [0, 0, 1, 1], [], []>} : vector<24x10xbf16>, vector<10x32xbf16>, vector<24x32xf32> -> vector<24x32xf32>
    %c0_236 = arith.constant 0 : index
    %c2560_237 = arith.constant 2560 : index
    %539 = vector.load %arg8[%c0_236, %c2560_237] : memref<1x4224xf32, #tpu.memory_space<vmem>>, vector<1x32xf32>
    %540 = vector.broadcast %539 : vector<1x32xf32> to vector<24x32xf32>
    %541 = arith.addf %538, %540 : vector<24x32xf32>
    %cst_238 = arith.constant 0.000000e+00 : f32
    %542 = vector.broadcast %cst_238 : f32 to vector<24x32xf32>
    %543 = arith.maximumf %541, %542 : vector<24x32xf32>
    %544 = arith.truncf %543 : vector<24x32xf32> to vector<24x32xbf16>
    %c0_239 = arith.constant 0 : index
    %c0_240 = arith.constant 0 : index
    %545 = vector.load %arg20[%c0_239, %c0_240] : memref<32x32xbf16, #tpu.memory_space<vmem>>, vector<32x32xbf16>
    %cst_241 = arith.constant dense<0.000000e+00> : vector<24x32xf32>
    %546 = tpu.matmul %544, %545, %cst_241 {dimension_numbers = #tpu.dot_dimension_numbers<[1], [0], [0], [1], [0, 0, 1, 1], [], []>} : vector<24x32xbf16>, vector<32x32xbf16>, vector<24x32xf32> -> vector<24x32xf32>
    %c0_242 = arith.constant 0 : index
    %c2688_243 = arith.constant 2688 : index
    %547 = vector.load %arg8[%c0_242, %c2688_243] : memref<1x4224xf32, #tpu.memory_space<vmem>>, vector<1x32xf32>
    %548 = vector.broadcast %547 : vector<1x32xf32> to vector<24x32xf32>
    %549 = arith.addf %546, %548 : vector<24x32xf32>
    %cst_244 = arith.constant 0.000000e+00 : f32
    %550 = vector.broadcast %cst_244 : f32 to vector<24x32xf32>
    %551 = arith.maximumf %549, %550 : vector<24x32xf32>
    %552 = arith.truncf %551 : vector<24x32xf32> to vector<24x32xbf16>
    %c0_245 = arith.constant 0 : index
    %c0_246 = arith.constant 0 : index
    %553 = vector.load %arg21[%c0_245, %c0_246] : memref<32x32xbf16, #tpu.memory_space<vmem>>, vector<32x32xbf16>
    %cst_247 = arith.constant dense<0.000000e+00> : vector<24x32xf32>
    %554 = tpu.matmul %552, %553, %cst_247 {dimension_numbers = #tpu.dot_dimension_numbers<[1], [0], [0], [1], [0, 0, 1, 1], [], []>} : vector<24x32xbf16>, vector<32x32xbf16>, vector<24x32xf32> -> vector<24x32xf32>
    %c0_248 = arith.constant 0 : index
    %c2816_249 = arith.constant 2816 : index
    %555 = vector.load %arg8[%c0_248, %c2816_249] : memref<1x4224xf32, #tpu.memory_space<vmem>>, vector<1x32xf32>
    %556 = vector.broadcast %555 : vector<1x32xf32> to vector<24x32xf32>
    %557 = arith.addf %554, %556 : vector<24x32xf32>
    %558 = vector.extract_strided_slice %535 {offsets = [0, 8], sizes = [6, 2], strides = [1, 1]} : vector<24x10xf32> to vector<6x2xf32>
    %559 = arith.addf %558, %292 : vector<6x2xf32>
    %cst_250 = arith.constant dense<0.000000e+00> : vector<36x2xf32>
    %560 = tpu.matmul %293, %559, %cst_250 {dimension_numbers = #tpu.dot_dimension_numbers<[1], [0], [0], [1], [0, 0, 1, 1], [], []>} : vector<36x6xf32>, vector<6x2xf32>, vector<36x2xf32> -> vector<36x2xf32>
    %561 = arith.mulf %560, %560 : vector<36x2xf32>
    %cst_251 = arith.constant dense<0.000000e+00> : vector<36xf32>
    %562 = vector.multi_reduction <add>, %561, %cst_251 [1] : vector<36x2xf32> to vector<36xf32>
    %563 = vector.shape_cast %562 : vector<36xf32> to vector<36x1xf32>
    %564 = math.sqrt %563 : vector<36x1xf32>
    %cst_252 = arith.constant 3.000000e+00 : f32
    %565 = vector.broadcast %cst_252 : f32 to vector<36x1xf32>
    %566 = arith.cmpf ole, %564, %565 : vector<36x1xf32>
    %567 = arith.extui %566 : vector<36x1xi1> to vector<36x1xi32>
    %568 = arith.sitofp %567 : vector<36x1xi32> to vector<36x1xf32>
    %569 = arith.mulf %294, %568 : vector<36x1xf32>
    %cst_253 = arith.constant 9.99999974E-5 : f32
    %570 = vector.broadcast %cst_253 : f32 to vector<36x1xf32>
    %571 = arith.cmpf ogt, %564, %570 : vector<36x1xf32>
    %572 = arith.extui %571 : vector<36x1xi1> to vector<36x1xi32>
    %573 = arith.sitofp %572 : vector<36x1xi32> to vector<36x1xf32>
    %574 = arith.mulf %569, %573 : vector<36x1xf32>
    %cst_254 = arith.constant 0.000000e+00 : f32
    %575 = vector.broadcast %cst_254 : f32 to vector<36x1xf32>
    %576 = arith.cmpf ogt, %574, %575 : vector<36x1xf32>
    %cst_255 = arith.constant 1.000000e+00 : f32
    %577 = vector.broadcast %cst_255 : f32 to vector<36x1xf32>
    %578 = arith.select %576, %564, %577 : vector<36x1xi1>, vector<36x1xf32>
    %579 = tpu.reciprocal %578 {approx = true} : vector<36x1xf32> -> vector<36x1xf32>
    %580 = arith.truncf %560 : vector<36x2xf32> to vector<36x2xbf16>
    %c0_256 = arith.constant 0 : index
    %c0_257 = arith.constant 0 : index
    %581 = vector.load %arg22[%c0_256, %c0_257] : memref<2x16xbf16, #tpu.memory_space<vmem>>, vector<2x16xbf16>
    %cst_258 = arith.constant dense<0.000000e+00> : vector<36x16xf32>
    %582 = tpu.matmul %580, %581, %cst_258 {dimension_numbers = #tpu.dot_dimension_numbers<[1], [0], [0], [1], [0, 0, 1, 1], [], []>} : vector<36x2xbf16>, vector<2x16xbf16>, vector<36x16xf32> -> vector<36x16xf32>
    %c0_259 = arith.constant 0 : index
    %c0_260 = arith.constant 0 : index
    %583 = vector.load %arg23[%c0_259, %c0_260] : memref<1x16xf32, #tpu.memory_space<vmem>>, vector<1x16xf32>
    %584 = vector.broadcast %579 : vector<36x1xf32> to vector<36x16xf32>
    %585 = vector.broadcast %583 : vector<1x16xf32> to vector<36x16xf32>
    %586 = arith.mulf %584, %585 : vector<36x16xf32>
    %587 = arith.addf %582, %586 : vector<36x16xf32>
    %c0_261 = arith.constant 0 : index
    %c2944_262 = arith.constant 2944 : index
    %588 = vector.load %arg8[%c0_261, %c2944_262] : memref<1x4224xf32, #tpu.memory_space<vmem>>, vector<1x16xf32>
    %589 = vector.broadcast %588 : vector<1x16xf32> to vector<36x16xf32>
    %590 = arith.addf %587, %589 : vector<36x16xf32>
    %cst_263 = arith.constant 0.000000e+00 : f32
    %591 = vector.broadcast %cst_263 : f32 to vector<36x16xf32>
    %592 = arith.maximumf %590, %591 : vector<36x16xf32>
    %593 = arith.truncf %592 : vector<36x16xf32> to vector<36x16xbf16>
    %c0_264 = arith.constant 0 : index
    %c0_265 = arith.constant 0 : index
    %594 = vector.load %arg24[%c0_264, %c0_265] : memref<16x32xbf16, #tpu.memory_space<vmem>>, vector<16x32xbf16>
    %cst_266 = arith.constant dense<0.000000e+00> : vector<36x32xf32>
    %595 = tpu.matmul %593, %594, %cst_266 {dimension_numbers = #tpu.dot_dimension_numbers<[1], [0], [0], [1], [0, 0, 1, 1], [], []>} : vector<36x16xbf16>, vector<16x32xbf16>, vector<36x32xf32> -> vector<36x32xf32>
    %c0_267 = arith.constant 0 : index
    %c3072_268 = arith.constant 3072 : index
    %596 = vector.load %arg8[%c0_267, %c3072_268] : memref<1x4224xf32, #tpu.memory_space<vmem>>, vector<1x32xf32>
    %597 = vector.broadcast %596 : vector<1x32xf32> to vector<36x32xf32>
    %598 = arith.addf %595, %597 : vector<36x32xf32>
    %cst_269 = arith.constant 0.000000e+00 : f32
    %599 = vector.broadcast %cst_269 : f32 to vector<36x32xf32>
    %600 = arith.maximumf %598, %599 : vector<36x32xf32>
    %601 = arith.truncf %600 : vector<36x32xf32> to vector<36x32xbf16>
    %c0_270 = arith.constant 0 : index
    %c0_271 = arith.constant 0 : index
    %602 = vector.load %arg25[%c0_270, %c0_271] : memref<32x32xbf16, #tpu.memory_space<vmem>>, vector<32x32xbf16>
    %cst_272 = arith.constant dense<0.000000e+00> : vector<36x32xf32>
    %603 = tpu.matmul %601, %602, %cst_272 {dimension_numbers = #tpu.dot_dimension_numbers<[1], [0], [0], [1], [0, 0, 1, 1], [], []>} : vector<36x32xbf16>, vector<32x32xbf16>, vector<36x32xf32> -> vector<36x32xf32>
    %c0_273 = arith.constant 0 : index
    %c3200_274 = arith.constant 3200 : index
    %604 = vector.load %arg8[%c0_273, %c3200_274] : memref<1x4224xf32, #tpu.memory_space<vmem>>, vector<1x32xf32>
    %605 = vector.broadcast %604 : vector<1x32xf32> to vector<36x32xf32>
    %606 = arith.addf %603, %605 : vector<36x32xf32>
    %607 = vector.broadcast %574 : vector<36x1xf32> to vector<36x32xf32>
    %608 = arith.mulf %606, %607 : vector<36x32xf32>
    %c0_275 = arith.constant 0 : index
    %c0_276 = arith.constant 0 : index
    %609 = vector.load %arg6[%c0_275, %c0_276] : memref<6x36xbf16, #tpu.memory_space<vmem>>, vector<6x36xbf16>
    %610 = arith.truncf %608 : vector<36x32xf32> to vector<36x32xbf16>
    %cst_277 = arith.constant dense<0.000000e+00> : vector<6x32xf32>
    %611 = tpu.matmul %609, %610, %cst_277 {dimension_numbers = #tpu.dot_dimension_numbers<[1], [0], [0], [1], [0, 0, 1, 1], [], []>} : vector<6x36xbf16>, vector<36x32xbf16>, vector<6x32xf32> -> vector<6x32xf32>
    %c0_278 = arith.constant 0 : index
    %c0_279 = arith.constant 0 : index
    %612 = vector.load %arg7[%c0_278, %c0_279] : memref<24x6xf32, #tpu.memory_space<vmem>>, vector<24x6xf32>
    %cst_280 = arith.constant dense<0.000000e+00> : vector<24x32xf32>
    %613 = tpu.matmul %612, %611, %cst_280 {dimension_numbers = #tpu.dot_dimension_numbers<[1], [0], [0], [1], [0, 0, 1, 1], [], []>} : vector<24x6xf32>, vector<6x32xf32>, vector<24x32xf32> -> vector<24x32xf32>
    %614 = arith.addf %557, %613 : vector<24x32xf32>
    %615 = arith.truncf %614 : vector<24x32xf32> to vector<24x32xbf16>
    %c0_281 = arith.constant 0 : index
    %c0_282 = arith.constant 0 : index
    %616 = vector.load %arg26[%c0_281, %c0_282] : memref<32x32xbf16, #tpu.memory_space<vmem>>, vector<32x32xbf16>
    %cst_283 = arith.constant dense<0.000000e+00> : vector<24x32xf32>
    %617 = tpu.matmul %615, %616, %cst_283 {dimension_numbers = #tpu.dot_dimension_numbers<[1], [0], [0], [1], [0, 0, 1, 1], [], []>} : vector<24x32xbf16>, vector<32x32xbf16>, vector<24x32xf32> -> vector<24x32xf32>
    %c0_284 = arith.constant 0 : index
    %c3328_285 = arith.constant 3328 : index
    %618 = vector.load %arg8[%c0_284, %c3328_285] : memref<1x4224xf32, #tpu.memory_space<vmem>>, vector<1x32xf32>
    %619 = vector.broadcast %618 : vector<1x32xf32> to vector<24x32xf32>
    %620 = arith.addf %617, %619 : vector<24x32xf32>
    %cst_286 = arith.constant 0.000000e+00 : f32
    %621 = vector.broadcast %cst_286 : f32 to vector<24x32xf32>
    %622 = arith.maximumf %620, %621 : vector<24x32xf32>
    %623 = arith.truncf %622 : vector<24x32xf32> to vector<24x32xbf16>
    %c0_287 = arith.constant 0 : index
    %c0_288 = arith.constant 0 : index
    %624 = vector.load %arg27[%c0_287, %c0_288] : memref<32x64xbf16, #tpu.memory_space<vmem>>, vector<32x64xbf16>
    %cst_289 = arith.constant dense<0.000000e+00> : vector<24x64xf32>
    %625 = tpu.matmul %623, %624, %cst_289 {dimension_numbers = #tpu.dot_dimension_numbers<[1], [0], [0], [1], [0, 0, 1, 1], [], []>} : vector<24x32xbf16>, vector<32x64xbf16>, vector<24x64xf32> -> vector<24x64xf32>
    %c0_290 = arith.constant 0 : index
    %c3456_291 = arith.constant 3456 : index
    %626 = vector.load %arg8[%c0_290, %c3456_291] : memref<1x4224xf32, #tpu.memory_space<vmem>>, vector<1x64xf32>
    %627 = vector.broadcast %626 : vector<1x64xf32> to vector<24x64xf32>
    %628 = arith.addf %625, %627 : vector<24x64xf32>
    %cst_292 = arith.constant 0.000000e+00 : f32
    %629 = vector.broadcast %cst_292 : f32 to vector<24x64xf32>
    %630 = arith.maximumf %628, %629 : vector<24x64xf32>
    %631 = arith.truncf %630 : vector<24x64xf32> to vector<24x64xbf16>
    %c0_293 = arith.constant 0 : index
    %c0_294 = arith.constant 0 : index
    %632 = vector.load %arg28[%c0_293, %c0_294] : memref<64x16xbf16, #tpu.memory_space<vmem>>, vector<64x16xbf16>
    %cst_295 = arith.constant dense<0.000000e+00> : vector<24x16xf32>
    %633 = tpu.matmul %631, %632, %cst_295 {dimension_numbers = #tpu.dot_dimension_numbers<[1], [0], [0], [1], [0, 0, 1, 1], [], []>} : vector<24x64xbf16>, vector<64x16xbf16>, vector<24x16xf32> -> vector<24x16xf32>
    %c0_296 = arith.constant 0 : index
    %c3584_297 = arith.constant 3584 : index
    %634 = vector.load %arg8[%c0_296, %c3584_297] : memref<1x4224xf32, #tpu.memory_space<vmem>>, vector<1x16xf32>
    %635 = vector.broadcast %634 : vector<1x16xf32> to vector<24x16xf32>
    %636 = arith.addf %633, %635 : vector<24x16xf32>
    %cst_298 = arith.constant 0.000000e+00 : f32
    %637 = vector.broadcast %cst_298 : f32 to vector<24x16xf32>
    %638 = arith.subf %637, %636 : vector<24x16xf32>
    %639 = math.exp %638 : vector<24x16xf32>
    %cst_299 = arith.constant 1.000000e+00 : f32
    %640 = vector.broadcast %cst_299 : f32 to vector<24x16xf32>
    %641 = arith.addf %640, %639 : vector<24x16xf32>
    %642 = tpu.reciprocal %641 {approx = true} : vector<24x16xf32> -> vector<24x16xf32>
    %cst_300 = arith.constant 0.00999999977 : f32
    %cst_301 = arith.constant 9.900000e-01 : f32
    %643 = vector.broadcast %cst_300 : f32 to vector<24x16xf32>
    %644 = arith.maximumf %643, %642 : vector<24x16xf32>
    %645 = vector.broadcast %cst_301 : f32 to vector<24x16xf32>
    %646 = arith.minimumf %645, %644 : vector<24x16xf32>
    %cst_302 = arith.constant dense<0.000000e+00> : vector<24x8xf32>
    %647 = tpu.matmul %646, %34, %cst_302 {dimension_numbers = #tpu.dot_dimension_numbers<[1], [0], [0], [1], [0, 0, 1, 1], [], []>} : vector<24x16xf32>, vector<16x8xf32>, vector<24x8xf32> -> vector<24x8xf32>
    %cst_303 = arith.constant dense<0.000000e+00> : vector<24x8xf32>
    %648 = tpu.matmul %646, %41, %cst_303 {dimension_numbers = #tpu.dot_dimension_numbers<[1], [0], [0], [1], [0, 0, 1, 1], [], []>} : vector<24x16xf32>, vector<16x8xf32>, vector<24x8xf32> -> vector<24x8xf32>
    %649 = math.log %647 : vector<24x8xf32>
    %cst_304 = arith.constant -2.000000e+00 : f32
    %650 = vector.broadcast %cst_304 : f32 to vector<24x8xf32>
    %651 = arith.mulf %650, %649 : vector<24x8xf32>
    %652 = math.sqrt %651 : vector<24x8xf32>
    %cst_305 = arith.constant 4.000000e+00 : f32
    %653 = vector.broadcast %cst_305 : f32 to vector<24x8xf32>
    %654 = arith.mulf %653, %648 : vector<24x8xf32>
    %cst_306 = arith.constant 5.000000e-01 : f32
    %655 = vector.broadcast %cst_306 : f32 to vector<24x8xf32>
    %656 = arith.cmpf oge, %654, %655 : vector<24x8xf32>
    %657 = arith.extui %656 : vector<24x8xi1> to vector<24x8xi32>
    %658 = arith.sitofp %657 : vector<24x8xi32> to vector<24x8xf32>
    %cst_307 = arith.constant 1.500000e+00 : f32
    %659 = vector.broadcast %cst_307 : f32 to vector<24x8xf32>
    %660 = arith.cmpf oge, %654, %659 : vector<24x8xf32>
    %661 = arith.extui %660 : vector<24x8xi1> to vector<24x8xi32>
    %662 = arith.sitofp %661 : vector<24x8xi32> to vector<24x8xf32>
    %663 = arith.addf %658, %662 : vector<24x8xf32>
    %cst_308 = arith.constant 2.500000e+00 : f32
    %664 = vector.broadcast %cst_308 : f32 to vector<24x8xf32>
    %665 = arith.cmpf oge, %654, %664 : vector<24x8xf32>
    %666 = arith.extui %665 : vector<24x8xi1> to vector<24x8xi32>
    %667 = arith.sitofp %666 : vector<24x8xi32> to vector<24x8xf32>
    %668 = arith.addf %663, %667 : vector<24x8xf32>
    %cst_309 = arith.constant 3.500000e+00 : f32
    %669 = vector.broadcast %cst_309 : f32 to vector<24x8xf32>
    %670 = arith.cmpf oge, %654, %669 : vector<24x8xf32>
    %671 = arith.extui %670 : vector<24x8xi1> to vector<24x8xi32>
    %672 = arith.sitofp %671 : vector<24x8xi32> to vector<24x8xf32>
    %673 = arith.addf %668, %672 : vector<24x8xf32>
    %674 = arith.subf %654, %673 : vector<24x8xf32>
    %cst_310 = arith.constant 1.57079637 : f32
    %675 = vector.broadcast %cst_310 : f32 to vector<24x8xf32>
    %676 = arith.mulf %674, %675 : vector<24x8xf32>
    %677 = arith.mulf %676, %676 : vector<24x8xf32>
    %cst_311 = arith.constant 2.48015876E-5 : f32
    %678 = vector.broadcast %cst_311 : f32 to vector<24x8xf32>
    %679 = arith.mulf %677, %678 : vector<24x8xf32>
    %cst_312 = arith.constant -0.00138888892 : f32
    %680 = vector.broadcast %cst_312 : f32 to vector<24x8xf32>
    %681 = arith.addf %680, %679 : vector<24x8xf32>
    %682 = arith.mulf %677, %681 : vector<24x8xf32>
    %cst_313 = arith.constant 0.0416666679 : f32
    %683 = vector.broadcast %cst_313 : f32 to vector<24x8xf32>
    %684 = arith.addf %683, %682 : vector<24x8xf32>
    %685 = arith.mulf %677, %684 : vector<24x8xf32>
    %cst_314 = arith.constant -5.000000e-01 : f32
    %686 = vector.broadcast %cst_314 : f32 to vector<24x8xf32>
    %687 = arith.addf %686, %685 : vector<24x8xf32>
    %688 = arith.mulf %677, %687 : vector<24x8xf32>
    %cst_315 = arith.constant 1.000000e+00 : f32
    %689 = vector.broadcast %cst_315 : f32 to vector<24x8xf32>
    %690 = arith.addf %689, %688 : vector<24x8xf32>
    %cst_316 = arith.constant 2.75573188E-6 : f32
    %691 = vector.broadcast %cst_316 : f32 to vector<24x8xf32>
    %692 = arith.mulf %677, %691 : vector<24x8xf32>
    %cst_317 = arith.constant -1.98412701E-4 : f32
    %693 = vector.broadcast %cst_317 : f32 to vector<24x8xf32>
    %694 = arith.addf %693, %692 : vector<24x8xf32>
    %695 = arith.mulf %677, %694 : vector<24x8xf32>
    %cst_318 = arith.constant 0.00833333377 : f32
    %696 = vector.broadcast %cst_318 : f32 to vector<24x8xf32>
    %697 = arith.addf %696, %695 : vector<24x8xf32>
    %698 = arith.mulf %677, %697 : vector<24x8xf32>
    %cst_319 = arith.constant -0.166666672 : f32
    %699 = vector.broadcast %cst_319 : f32 to vector<24x8xf32>
    %700 = arith.addf %699, %698 : vector<24x8xf32>
    %701 = arith.mulf %677, %700 : vector<24x8xf32>
    %cst_320 = arith.constant 1.000000e+00 : f32
    %702 = vector.broadcast %cst_320 : f32 to vector<24x8xf32>
    %703 = arith.addf %702, %701 : vector<24x8xf32>
    %704 = arith.mulf %676, %703 : vector<24x8xf32>
    %cst_321 = arith.constant 3.500000e+00 : f32
    %705 = vector.broadcast %cst_321 : f32 to vector<24x8xf32>
    %706 = arith.cmpf oge, %673, %705 : vector<24x8xf32>
    %cst_322 = arith.constant 4.000000e+00 : f32
    %707 = vector.broadcast %cst_322 : f32 to vector<24x8xf32>
    %708 = arith.subf %673, %707 : vector<24x8xf32>
    %709 = arith.select %706, %708, %673 : vector<24x8xi1>, vector<24x8xf32>
    %cst_323 = arith.constant 0.000000e+00 : f32
    %710 = vector.broadcast %cst_323 : f32 to vector<24x8xf32>
    %711 = arith.cmpf oeq, %709, %710 : vector<24x8xf32>
    %cst_324 = arith.constant 1.000000e+00 : f32
    %712 = vector.broadcast %cst_324 : f32 to vector<24x8xf32>
    %713 = arith.cmpf oeq, %709, %712 : vector<24x8xf32>
    %cst_325 = arith.constant 0.000000e+00 : f32
    %714 = vector.broadcast %cst_325 : f32 to vector<24x8xf32>
    %715 = arith.subf %714, %704 : vector<24x8xf32>
    %cst_326 = arith.constant 2.000000e+00 : f32
    %716 = vector.broadcast %cst_326 : f32 to vector<24x8xf32>
    %717 = arith.cmpf oeq, %709, %716 : vector<24x8xf32>
    %cst_327 = arith.constant 0.000000e+00 : f32
    %718 = vector.broadcast %cst_327 : f32 to vector<24x8xf32>
    %719 = arith.subf %718, %690 : vector<24x8xf32>
    %720 = arith.select %717, %719, %704 : vector<24x8xi1>, vector<24x8xf32>
    %721 = arith.select %713, %715, %720 : vector<24x8xi1>, vector<24x8xf32>
    %722 = arith.select %711, %690, %721 : vector<24x8xi1>, vector<24x8xf32>
    %cst_328 = arith.constant 0.000000e+00 : f32
    %723 = vector.broadcast %cst_328 : f32 to vector<24x8xf32>
    %724 = arith.cmpf oeq, %709, %723 : vector<24x8xf32>
    %cst_329 = arith.constant 1.000000e+00 : f32
    %725 = vector.broadcast %cst_329 : f32 to vector<24x8xf32>
    %726 = arith.cmpf oeq, %709, %725 : vector<24x8xf32>
    %cst_330 = arith.constant 2.000000e+00 : f32
    %727 = vector.broadcast %cst_330 : f32 to vector<24x8xf32>
    %728 = arith.cmpf oeq, %709, %727 : vector<24x8xf32>
    %cst_331 = arith.constant 0.000000e+00 : f32
    %729 = vector.broadcast %cst_331 : f32 to vector<24x8xf32>
    %730 = arith.subf %729, %704 : vector<24x8xf32>
    %cst_332 = arith.constant 0.000000e+00 : f32
    %731 = vector.broadcast %cst_332 : f32 to vector<24x8xf32>
    %732 = arith.subf %731, %690 : vector<24x8xf32>
    %733 = arith.select %728, %730, %732 : vector<24x8xi1>, vector<24x8xf32>
    %734 = arith.select %726, %690, %733 : vector<24x8xi1>, vector<24x8xf32>
    %735 = arith.select %724, %704, %734 : vector<24x8xi1>, vector<24x8xf32>
    %736 = arith.mulf %652, %722 : vector<24x8xf32>
    %cst_333 = arith.constant dense<0.000000e+00> : vector<24x16xf32>
    %737 = tpu.matmul %736, %48, %cst_333 {dimension_numbers = #tpu.dot_dimension_numbers<[1], [0], [0], [1], [0, 0, 1, 1], [], []>} : vector<24x8xf32>, vector<8x16xf32>, vector<24x16xf32> -> vector<24x16xf32>
    %738 = arith.mulf %652, %735 : vector<24x8xf32>
    %cst_334 = arith.constant dense<0.000000e+00> : vector<24x16xf32>
    %739 = tpu.matmul %738, %55, %cst_334 {dimension_numbers = #tpu.dot_dimension_numbers<[1], [0], [0], [1], [0, 0, 1, 1], [], []>} : vector<24x8xf32>, vector<8x16xf32>, vector<24x16xf32> -> vector<24x16xf32>
    %740 = arith.addf %737, %739 : vector<24x16xf32>
    %cst_335 = arith.constant 1.000000e+00 : f32
    %741 = vector.broadcast %cst_335 : f32 to vector<24x16xf32>
    %742 = arith.mulf %740, %741 : vector<24x16xf32>
    %c0_336 = arith.constant 0 : index
    %c0_337 = arith.constant 0 : index
    %743 = vector.load %arg29[%c0_336, %c0_337] : memref<32x128xbf16, #tpu.memory_space<vmem>>, vector<32x128xbf16>
    %cst_338 = arith.constant dense<0.000000e+00> : vector<24x128xf32>
    %744 = tpu.matmul %615, %743, %cst_338 {dimension_numbers = #tpu.dot_dimension_numbers<[1], [0], [0], [1], [0, 0, 1, 1], [], []>} : vector<24x32xbf16>, vector<32x128xbf16>, vector<24x128xf32> -> vector<24x128xf32>
    %745 = arith.truncf %742 : vector<24x16xf32> to vector<24x16xbf16>
    %c0_339 = arith.constant 0 : index
    %c0_340 = arith.constant 0 : index
    %746 = vector.load %arg30[%c0_339, %c0_340] : memref<16x128xbf16, #tpu.memory_space<vmem>>, vector<16x128xbf16>
    %cst_341 = arith.constant dense<0.000000e+00> : vector<24x128xf32>
    %747 = tpu.matmul %745, %746, %cst_341 {dimension_numbers = #tpu.dot_dimension_numbers<[1], [0], [0], [1], [0, 0, 1, 1], [], []>} : vector<24x16xbf16>, vector<16x128xbf16>, vector<24x128xf32> -> vector<24x128xf32>
    %748 = arith.addf %744, %747 : vector<24x128xf32>
    %c0_342 = arith.constant 0 : index
    %c3712_343 = arith.constant 3712 : index
    %749 = vector.load %arg8[%c0_342, %c3712_343] : memref<1x4224xf32, #tpu.memory_space<vmem>>, vector<1x128xf32>
    %750 = vector.broadcast %749 : vector<1x128xf32> to vector<24x128xf32>
    %751 = arith.addf %748, %750 : vector<24x128xf32>
    %cst_344 = arith.constant 0.000000e+00 : f32
    %752 = vector.broadcast %cst_344 : f32 to vector<24x128xf32>
    %753 = arith.maximumf %751, %752 : vector<24x128xf32>
    %754 = arith.truncf %753 : vector<24x128xf32> to vector<24x128xbf16>
    %c0_345 = arith.constant 0 : index
    %c0_346 = arith.constant 0 : index
    %755 = vector.load %arg31[%c0_345, %c0_346] : memref<128x128xbf16, #tpu.memory_space<vmem>>, vector<128x128xbf16>
    %cst_347 = arith.constant dense<0.000000e+00> : vector<24x128xf32>
    %756 = tpu.matmul %754, %755, %cst_347 {dimension_numbers = #tpu.dot_dimension_numbers<[1], [0], [0], [1], [0, 0, 1, 1], [], []>} : vector<24x128xbf16>, vector<128x128xbf16>, vector<24x128xf32> -> vector<24x128xf32>
    %c0_348 = arith.constant 0 : index
    %c3840_349 = arith.constant 3840 : index
    %757 = vector.load %arg8[%c0_348, %c3840_349] : memref<1x4224xf32, #tpu.memory_space<vmem>>, vector<1x128xf32>
    %758 = vector.broadcast %757 : vector<1x128xf32> to vector<24x128xf32>
    %759 = arith.addf %756, %758 : vector<24x128xf32>
    %cst_350 = arith.constant 0.000000e+00 : f32
    %760 = vector.broadcast %cst_350 : f32 to vector<24x128xf32>
    %761 = arith.maximumf %759, %760 : vector<24x128xf32>
    %762 = arith.truncf %761 : vector<24x128xf32> to vector<24x128xbf16>
    %c0_351 = arith.constant 0 : index
    %c0_352 = arith.constant 0 : index
    %763 = vector.load %arg32[%c0_351, %c0_352] : memref<128x64xbf16, #tpu.memory_space<vmem>>, vector<128x64xbf16>
    %cst_353 = arith.constant dense<0.000000e+00> : vector<24x64xf32>
    %764 = tpu.matmul %762, %763, %cst_353 {dimension_numbers = #tpu.dot_dimension_numbers<[1], [0], [0], [1], [0, 0, 1, 1], [], []>} : vector<24x128xbf16>, vector<128x64xbf16>, vector<24x64xf32> -> vector<24x64xf32>
    %c0_354 = arith.constant 0 : index
    %c3968_355 = arith.constant 3968 : index
    %765 = vector.load %arg8[%c0_354, %c3968_355] : memref<1x4224xf32, #tpu.memory_space<vmem>>, vector<1x64xf32>
    %766 = vector.broadcast %765 : vector<1x64xf32> to vector<24x64xf32>
    %767 = arith.addf %764, %766 : vector<24x64xf32>
    %cst_356 = arith.constant 0.000000e+00 : f32
    %768 = vector.broadcast %cst_356 : f32 to vector<24x64xf32>
    %769 = arith.maximumf %767, %768 : vector<24x64xf32>
    %770 = arith.truncf %769 : vector<24x64xf32> to vector<24x64xbf16>
    %c0_357 = arith.constant 0 : index
    %c0_358 = arith.constant 0 : index
    %771 = vector.load %arg33[%c0_357, %c0_358] : memref<64x10xbf16, #tpu.memory_space<vmem>>, vector<64x10xbf16>
    %cst_359 = arith.constant dense<0.000000e+00> : vector<24x10xf32>
    %772 = tpu.matmul %770, %771, %cst_359 {dimension_numbers = #tpu.dot_dimension_numbers<[1], [0], [0], [1], [0, 0, 1, 1], [], []>} : vector<24x64xbf16>, vector<64x10xbf16>, vector<24x10xf32> -> vector<24x10xf32>
    %c0_360 = arith.constant 0 : index
    %c4096_361 = arith.constant 4096 : index
    %773 = vector.load %arg8[%c0_360, %c4096_361] : memref<1x4224xf32, #tpu.memory_space<vmem>>, vector<1x10xf32>
    %774 = vector.broadcast %773 : vector<1x10xf32> to vector<24x10xf32>
    %775 = arith.addf %772, %774 : vector<24x10xf32>
    %776 = arith.addf %535, %775 : vector<24x10xf32>
    %777 = arith.truncf %776 : vector<24x10xf32> to vector<24x10xbf16>
    %c0_362 = arith.constant 0 : index
    %c0_363 = arith.constant 0 : index
    %778 = vector.load %arg19[%c0_362, %c0_363] : memref<10x32xbf16, #tpu.memory_space<vmem>>, vector<10x32xbf16>
    %cst_364 = arith.constant dense<0.000000e+00> : vector<24x32xf32>
    %779 = tpu.matmul %777, %778, %cst_364 {dimension_numbers = #tpu.dot_dimension_numbers<[1], [0], [0], [1], [0, 0, 1, 1], [], []>} : vector<24x10xbf16>, vector<10x32xbf16>, vector<24x32xf32> -> vector<24x32xf32>
    %c0_365 = arith.constant 0 : index
    %c2560_366 = arith.constant 2560 : index
    %780 = vector.load %arg8[%c0_365, %c2560_366] : memref<1x4224xf32, #tpu.memory_space<vmem>>, vector<1x32xf32>
    %781 = vector.broadcast %780 : vector<1x32xf32> to vector<24x32xf32>
    %782 = arith.addf %779, %781 : vector<24x32xf32>
    %cst_367 = arith.constant 0.000000e+00 : f32
    %783 = vector.broadcast %cst_367 : f32 to vector<24x32xf32>
    %784 = arith.maximumf %782, %783 : vector<24x32xf32>
    %785 = arith.truncf %784 : vector<24x32xf32> to vector<24x32xbf16>
    %c0_368 = arith.constant 0 : index
    %c0_369 = arith.constant 0 : index
    %786 = vector.load %arg20[%c0_368, %c0_369] : memref<32x32xbf16, #tpu.memory_space<vmem>>, vector<32x32xbf16>
    %cst_370 = arith.constant dense<0.000000e+00> : vector<24x32xf32>
    %787 = tpu.matmul %785, %786, %cst_370 {dimension_numbers = #tpu.dot_dimension_numbers<[1], [0], [0], [1], [0, 0, 1, 1], [], []>} : vector<24x32xbf16>, vector<32x32xbf16>, vector<24x32xf32> -> vector<24x32xf32>
    %c0_371 = arith.constant 0 : index
    %c2688_372 = arith.constant 2688 : index
    %788 = vector.load %arg8[%c0_371, %c2688_372] : memref<1x4224xf32, #tpu.memory_space<vmem>>, vector<1x32xf32>
    %789 = vector.broadcast %788 : vector<1x32xf32> to vector<24x32xf32>
    %790 = arith.addf %787, %789 : vector<24x32xf32>
    %cst_373 = arith.constant 0.000000e+00 : f32
    %791 = vector.broadcast %cst_373 : f32 to vector<24x32xf32>
    %792 = arith.maximumf %790, %791 : vector<24x32xf32>
    %793 = arith.truncf %792 : vector<24x32xf32> to vector<24x32xbf16>
    %c0_374 = arith.constant 0 : index
    %c0_375 = arith.constant 0 : index
    %794 = vector.load %arg21[%c0_374, %c0_375] : memref<32x32xbf16, #tpu.memory_space<vmem>>, vector<32x32xbf16>
    %cst_376 = arith.constant dense<0.000000e+00> : vector<24x32xf32>
    %795 = tpu.matmul %793, %794, %cst_376 {dimension_numbers = #tpu.dot_dimension_numbers<[1], [0], [0], [1], [0, 0, 1, 1], [], []>} : vector<24x32xbf16>, vector<32x32xbf16>, vector<24x32xf32> -> vector<24x32xf32>
    %c0_377 = arith.constant 0 : index
    %c2816_378 = arith.constant 2816 : index
    %796 = vector.load %arg8[%c0_377, %c2816_378] : memref<1x4224xf32, #tpu.memory_space<vmem>>, vector<1x32xf32>
    %797 = vector.broadcast %796 : vector<1x32xf32> to vector<24x32xf32>
    %798 = arith.addf %795, %797 : vector<24x32xf32>
    %799 = vector.extract_strided_slice %776 {offsets = [0, 8], sizes = [6, 2], strides = [1, 1]} : vector<24x10xf32> to vector<6x2xf32>
    %800 = arith.addf %799, %292 : vector<6x2xf32>
    %cst_379 = arith.constant dense<0.000000e+00> : vector<36x2xf32>
    %801 = tpu.matmul %293, %800, %cst_379 {dimension_numbers = #tpu.dot_dimension_numbers<[1], [0], [0], [1], [0, 0, 1, 1], [], []>} : vector<36x6xf32>, vector<6x2xf32>, vector<36x2xf32> -> vector<36x2xf32>
    %802 = arith.mulf %801, %801 : vector<36x2xf32>
    %cst_380 = arith.constant dense<0.000000e+00> : vector<36xf32>
    %803 = vector.multi_reduction <add>, %802, %cst_380 [1] : vector<36x2xf32> to vector<36xf32>
    %804 = vector.shape_cast %803 : vector<36xf32> to vector<36x1xf32>
    %805 = math.sqrt %804 : vector<36x1xf32>
    %cst_381 = arith.constant 3.000000e+00 : f32
    %806 = vector.broadcast %cst_381 : f32 to vector<36x1xf32>
    %807 = arith.cmpf ole, %805, %806 : vector<36x1xf32>
    %808 = arith.extui %807 : vector<36x1xi1> to vector<36x1xi32>
    %809 = arith.sitofp %808 : vector<36x1xi32> to vector<36x1xf32>
    %810 = arith.mulf %294, %809 : vector<36x1xf32>
    %cst_382 = arith.constant 9.99999974E-5 : f32
    %811 = vector.broadcast %cst_382 : f32 to vector<36x1xf32>
    %812 = arith.cmpf ogt, %805, %811 : vector<36x1xf32>
    %813 = arith.extui %812 : vector<36x1xi1> to vector<36x1xi32>
    %814 = arith.sitofp %813 : vector<36x1xi32> to vector<36x1xf32>
    %815 = arith.mulf %810, %814 : vector<36x1xf32>
    %cst_383 = arith.constant 0.000000e+00 : f32
    %816 = vector.broadcast %cst_383 : f32 to vector<36x1xf32>
    %817 = arith.cmpf ogt, %815, %816 : vector<36x1xf32>
    %cst_384 = arith.constant 1.000000e+00 : f32
    %818 = vector.broadcast %cst_384 : f32 to vector<36x1xf32>
    %819 = arith.select %817, %805, %818 : vector<36x1xi1>, vector<36x1xf32>
    %820 = tpu.reciprocal %819 {approx = true} : vector<36x1xf32> -> vector<36x1xf32>
    %821 = arith.truncf %801 : vector<36x2xf32> to vector<36x2xbf16>
    %c0_385 = arith.constant 0 : index
    %c0_386 = arith.constant 0 : index
    %822 = vector.load %arg22[%c0_385, %c0_386] : memref<2x16xbf16, #tpu.memory_space<vmem>>, vector<2x16xbf16>
    %cst_387 = arith.constant dense<0.000000e+00> : vector<36x16xf32>
    %823 = tpu.matmul %821, %822, %cst_387 {dimension_numbers = #tpu.dot_dimension_numbers<[1], [0], [0], [1], [0, 0, 1, 1], [], []>} : vector<36x2xbf16>, vector<2x16xbf16>, vector<36x16xf32> -> vector<36x16xf32>
    %c0_388 = arith.constant 0 : index
    %c0_389 = arith.constant 0 : index
    %824 = vector.load %arg23[%c0_388, %c0_389] : memref<1x16xf32, #tpu.memory_space<vmem>>, vector<1x16xf32>
    %825 = vector.broadcast %820 : vector<36x1xf32> to vector<36x16xf32>
    %826 = vector.broadcast %824 : vector<1x16xf32> to vector<36x16xf32>
    %827 = arith.mulf %825, %826 : vector<36x16xf32>
    %828 = arith.addf %823, %827 : vector<36x16xf32>
    %c0_390 = arith.constant 0 : index
    %c2944_391 = arith.constant 2944 : index
    %829 = vector.load %arg8[%c0_390, %c2944_391] : memref<1x4224xf32, #tpu.memory_space<vmem>>, vector<1x16xf32>
    %830 = vector.broadcast %829 : vector<1x16xf32> to vector<36x16xf32>
    %831 = arith.addf %828, %830 : vector<36x16xf32>
    %cst_392 = arith.constant 0.000000e+00 : f32
    %832 = vector.broadcast %cst_392 : f32 to vector<36x16xf32>
    %833 = arith.maximumf %831, %832 : vector<36x16xf32>
    %834 = arith.truncf %833 : vector<36x16xf32> to vector<36x16xbf16>
    %c0_393 = arith.constant 0 : index
    %c0_394 = arith.constant 0 : index
    %835 = vector.load %arg24[%c0_393, %c0_394] : memref<16x32xbf16, #tpu.memory_space<vmem>>, vector<16x32xbf16>
    %cst_395 = arith.constant dense<0.000000e+00> : vector<36x32xf32>
    %836 = tpu.matmul %834, %835, %cst_395 {dimension_numbers = #tpu.dot_dimension_numbers<[1], [0], [0], [1], [0, 0, 1, 1], [], []>} : vector<36x16xbf16>, vector<16x32xbf16>, vector<36x32xf32> -> vector<36x32xf32>
    %c0_396 = arith.constant 0 : index
    %c3072_397 = arith.constant 3072 : index
    %837 = vector.load %arg8[%c0_396, %c3072_397] : memref<1x4224xf32, #tpu.memory_space<vmem>>, vector<1x32xf32>
    %838 = vector.broadcast %837 : vector<1x32xf32> to vector<36x32xf32>
    %839 = arith.addf %836, %838 : vector<36x32xf32>
    %cst_398 = arith.constant 0.000000e+00 : f32
    %840 = vector.broadcast %cst_398 : f32 to vector<36x32xf32>
    %841 = arith.maximumf %839, %840 : vector<36x32xf32>
    %842 = arith.truncf %841 : vector<36x32xf32> to vector<36x32xbf16>
    %c0_399 = arith.constant 0 : index
    %c0_400 = arith.constant 0 : index
    %843 = vector.load %arg25[%c0_399, %c0_400] : memref<32x32xbf16, #tpu.memory_space<vmem>>, vector<32x32xbf16>
    %cst_401 = arith.constant dense<0.000000e+00> : vector<36x32xf32>
    %844 = tpu.matmul %842, %843, %cst_401 {dimension_numbers = #tpu.dot_dimension_numbers<[1], [0], [0], [1], [0, 0, 1, 1], [], []>} : vector<36x32xbf16>, vector<32x32xbf16>, vector<36x32xf32> -> vector<36x32xf32>
    %c0_402 = arith.constant 0 : index
    %c3200_403 = arith.constant 3200 : index
    %845 = vector.load %arg8[%c0_402, %c3200_403] : memref<1x4224xf32, #tpu.memory_space<vmem>>, vector<1x32xf32>
    %846 = vector.broadcast %845 : vector<1x32xf32> to vector<36x32xf32>
    %847 = arith.addf %844, %846 : vector<36x32xf32>
    %848 = vector.broadcast %815 : vector<36x1xf32> to vector<36x32xf32>
    %849 = arith.mulf %847, %848 : vector<36x32xf32>
    %c0_404 = arith.constant 0 : index
    %c0_405 = arith.constant 0 : index
    %850 = vector.load %arg6[%c0_404, %c0_405] : memref<6x36xbf16, #tpu.memory_space<vmem>>, vector<6x36xbf16>
    %851 = arith.truncf %849 : vector<36x32xf32> to vector<36x32xbf16>
    %cst_406 = arith.constant dense<0.000000e+00> : vector<6x32xf32>
    %852 = tpu.matmul %850, %851, %cst_406 {dimension_numbers = #tpu.dot_dimension_numbers<[1], [0], [0], [1], [0, 0, 1, 1], [], []>} : vector<6x36xbf16>, vector<36x32xbf16>, vector<6x32xf32> -> vector<6x32xf32>
    %c0_407 = arith.constant 0 : index
    %c0_408 = arith.constant 0 : index
    %853 = vector.load %arg7[%c0_407, %c0_408] : memref<24x6xf32, #tpu.memory_space<vmem>>, vector<24x6xf32>
    %cst_409 = arith.constant dense<0.000000e+00> : vector<24x32xf32>
    %854 = tpu.matmul %853, %852, %cst_409 {dimension_numbers = #tpu.dot_dimension_numbers<[1], [0], [0], [1], [0, 0, 1, 1], [], []>} : vector<24x6xf32>, vector<6x32xf32>, vector<24x32xf32> -> vector<24x32xf32>
    %855 = arith.addf %798, %854 : vector<24x32xf32>
    %856 = arith.truncf %855 : vector<24x32xf32> to vector<24x32xbf16>
    %c0_410 = arith.constant 0 : index
    %c0_411 = arith.constant 0 : index
    %857 = vector.load %arg26[%c0_410, %c0_411] : memref<32x32xbf16, #tpu.memory_space<vmem>>, vector<32x32xbf16>
    %cst_412 = arith.constant dense<0.000000e+00> : vector<24x32xf32>
    %858 = tpu.matmul %856, %857, %cst_412 {dimension_numbers = #tpu.dot_dimension_numbers<[1], [0], [0], [1], [0, 0, 1, 1], [], []>} : vector<24x32xbf16>, vector<32x32xbf16>, vector<24x32xf32> -> vector<24x32xf32>
    %c0_413 = arith.constant 0 : index
    %c3328_414 = arith.constant 3328 : index
    %859 = vector.load %arg8[%c0_413, %c3328_414] : memref<1x4224xf32, #tpu.memory_space<vmem>>, vector<1x32xf32>
    %860 = vector.broadcast %859 : vector<1x32xf32> to vector<24x32xf32>
    %861 = arith.addf %858, %860 : vector<24x32xf32>
    %cst_415 = arith.constant 0.000000e+00 : f32
    %862 = vector.broadcast %cst_415 : f32 to vector<24x32xf32>
    %863 = arith.maximumf %861, %862 : vector<24x32xf32>
    %864 = arith.truncf %863 : vector<24x32xf32> to vector<24x32xbf16>
    %c0_416 = arith.constant 0 : index
    %c0_417 = arith.constant 0 : index
    %865 = vector.load %arg27[%c0_416, %c0_417] : memref<32x64xbf16, #tpu.memory_space<vmem>>, vector<32x64xbf16>
    %cst_418 = arith.constant dense<0.000000e+00> : vector<24x64xf32>
    %866 = tpu.matmul %864, %865, %cst_418 {dimension_numbers = #tpu.dot_dimension_numbers<[1], [0], [0], [1], [0, 0, 1, 1], [], []>} : vector<24x32xbf16>, vector<32x64xbf16>, vector<24x64xf32> -> vector<24x64xf32>
    %c0_419 = arith.constant 0 : index
    %c3456_420 = arith.constant 3456 : index
    %867 = vector.load %arg8[%c0_419, %c3456_420] : memref<1x4224xf32, #tpu.memory_space<vmem>>, vector<1x64xf32>
    %868 = vector.broadcast %867 : vector<1x64xf32> to vector<24x64xf32>
    %869 = arith.addf %866, %868 : vector<24x64xf32>
    %cst_421 = arith.constant 0.000000e+00 : f32
    %870 = vector.broadcast %cst_421 : f32 to vector<24x64xf32>
    %871 = arith.maximumf %869, %870 : vector<24x64xf32>
    %872 = arith.truncf %871 : vector<24x64xf32> to vector<24x64xbf16>
    %c0_422 = arith.constant 0 : index
    %c0_423 = arith.constant 0 : index
    %873 = vector.load %arg28[%c0_422, %c0_423] : memref<64x16xbf16, #tpu.memory_space<vmem>>, vector<64x16xbf16>
    %cst_424 = arith.constant dense<0.000000e+00> : vector<24x16xf32>
    %874 = tpu.matmul %872, %873, %cst_424 {dimension_numbers = #tpu.dot_dimension_numbers<[1], [0], [0], [1], [0, 0, 1, 1], [], []>} : vector<24x64xbf16>, vector<64x16xbf16>, vector<24x16xf32> -> vector<24x16xf32>
    %c0_425 = arith.constant 0 : index
    %c3584_426 = arith.constant 3584 : index
    %875 = vector.load %arg8[%c0_425, %c3584_426] : memref<1x4224xf32, #tpu.memory_space<vmem>>, vector<1x16xf32>
    %876 = vector.broadcast %875 : vector<1x16xf32> to vector<24x16xf32>
    %877 = arith.addf %874, %876 : vector<24x16xf32>
    %cst_427 = arith.constant 0.000000e+00 : f32
    %878 = vector.broadcast %cst_427 : f32 to vector<24x16xf32>
    %879 = arith.subf %878, %877 : vector<24x16xf32>
    %880 = math.exp %879 : vector<24x16xf32>
    %cst_428 = arith.constant 1.000000e+00 : f32
    %881 = vector.broadcast %cst_428 : f32 to vector<24x16xf32>
    %882 = arith.addf %881, %880 : vector<24x16xf32>
    %883 = tpu.reciprocal %882 {approx = true} : vector<24x16xf32> -> vector<24x16xf32>
    %cst_429 = arith.constant 0.00999999977 : f32
    %cst_430 = arith.constant 9.900000e-01 : f32
    %884 = vector.broadcast %cst_429 : f32 to vector<24x16xf32>
    %885 = arith.maximumf %884, %883 : vector<24x16xf32>
    %886 = vector.broadcast %cst_430 : f32 to vector<24x16xf32>
    %887 = arith.minimumf %886, %885 : vector<24x16xf32>
    %cst_431 = arith.constant dense<0.000000e+00> : vector<24x8xf32>
    %888 = tpu.matmul %887, %34, %cst_431 {dimension_numbers = #tpu.dot_dimension_numbers<[1], [0], [0], [1], [0, 0, 1, 1], [], []>} : vector<24x16xf32>, vector<16x8xf32>, vector<24x8xf32> -> vector<24x8xf32>
    %cst_432 = arith.constant dense<0.000000e+00> : vector<24x8xf32>
    %889 = tpu.matmul %887, %41, %cst_432 {dimension_numbers = #tpu.dot_dimension_numbers<[1], [0], [0], [1], [0, 0, 1, 1], [], []>} : vector<24x16xf32>, vector<16x8xf32>, vector<24x8xf32> -> vector<24x8xf32>
    %890 = math.log %888 : vector<24x8xf32>
    %cst_433 = arith.constant -2.000000e+00 : f32
    %891 = vector.broadcast %cst_433 : f32 to vector<24x8xf32>
    %892 = arith.mulf %891, %890 : vector<24x8xf32>
    %893 = math.sqrt %892 : vector<24x8xf32>
    %cst_434 = arith.constant 4.000000e+00 : f32
    %894 = vector.broadcast %cst_434 : f32 to vector<24x8xf32>
    %895 = arith.mulf %894, %889 : vector<24x8xf32>
    %cst_435 = arith.constant 5.000000e-01 : f32
    %896 = vector.broadcast %cst_435 : f32 to vector<24x8xf32>
    %897 = arith.cmpf oge, %895, %896 : vector<24x8xf32>
    %898 = arith.extui %897 : vector<24x8xi1> to vector<24x8xi32>
    %899 = arith.sitofp %898 : vector<24x8xi32> to vector<24x8xf32>
    %cst_436 = arith.constant 1.500000e+00 : f32
    %900 = vector.broadcast %cst_436 : f32 to vector<24x8xf32>
    %901 = arith.cmpf oge, %895, %900 : vector<24x8xf32>
    %902 = arith.extui %901 : vector<24x8xi1> to vector<24x8xi32>
    %903 = arith.sitofp %902 : vector<24x8xi32> to vector<24x8xf32>
    %904 = arith.addf %899, %903 : vector<24x8xf32>
    %cst_437 = arith.constant 2.500000e+00 : f32
    %905 = vector.broadcast %cst_437 : f32 to vector<24x8xf32>
    %906 = arith.cmpf oge, %895, %905 : vector<24x8xf32>
    %907 = arith.extui %906 : vector<24x8xi1> to vector<24x8xi32>
    %908 = arith.sitofp %907 : vector<24x8xi32> to vector<24x8xf32>
    %909 = arith.addf %904, %908 : vector<24x8xf32>
    %cst_438 = arith.constant 3.500000e+00 : f32
    %910 = vector.broadcast %cst_438 : f32 to vector<24x8xf32>
    %911 = arith.cmpf oge, %895, %910 : vector<24x8xf32>
    %912 = arith.extui %911 : vector<24x8xi1> to vector<24x8xi32>
    %913 = arith.sitofp %912 : vector<24x8xi32> to vector<24x8xf32>
    %914 = arith.addf %909, %913 : vector<24x8xf32>
    %915 = arith.subf %895, %914 : vector<24x8xf32>
    %cst_439 = arith.constant 1.57079637 : f32
    %916 = vector.broadcast %cst_439 : f32 to vector<24x8xf32>
    %917 = arith.mulf %915, %916 : vector<24x8xf32>
    %918 = arith.mulf %917, %917 : vector<24x8xf32>
    %cst_440 = arith.constant 2.48015876E-5 : f32
    %919 = vector.broadcast %cst_440 : f32 to vector<24x8xf32>
    %920 = arith.mulf %918, %919 : vector<24x8xf32>
    %cst_441 = arith.constant -0.00138888892 : f32
    %921 = vector.broadcast %cst_441 : f32 to vector<24x8xf32>
    %922 = arith.addf %921, %920 : vector<24x8xf32>
    %923 = arith.mulf %918, %922 : vector<24x8xf32>
    %cst_442 = arith.constant 0.0416666679 : f32
    %924 = vector.broadcast %cst_442 : f32 to vector<24x8xf32>
    %925 = arith.addf %924, %923 : vector<24x8xf32>
    %926 = arith.mulf %918, %925 : vector<24x8xf32>
    %cst_443 = arith.constant -5.000000e-01 : f32
    %927 = vector.broadcast %cst_443 : f32 to vector<24x8xf32>
    %928 = arith.addf %927, %926 : vector<24x8xf32>
    %929 = arith.mulf %918, %928 : vector<24x8xf32>
    %cst_444 = arith.constant 1.000000e+00 : f32
    %930 = vector.broadcast %cst_444 : f32 to vector<24x8xf32>
    %931 = arith.addf %930, %929 : vector<24x8xf32>
    %cst_445 = arith.constant 2.75573188E-6 : f32
    %932 = vector.broadcast %cst_445 : f32 to vector<24x8xf32>
    %933 = arith.mulf %918, %932 : vector<24x8xf32>
    %cst_446 = arith.constant -1.98412701E-4 : f32
    %934 = vector.broadcast %cst_446 : f32 to vector<24x8xf32>
    %935 = arith.addf %934, %933 : vector<24x8xf32>
    %936 = arith.mulf %918, %935 : vector<24x8xf32>
    %cst_447 = arith.constant 0.00833333377 : f32
    %937 = vector.broadcast %cst_447 : f32 to vector<24x8xf32>
    %938 = arith.addf %937, %936 : vector<24x8xf32>
    %939 = arith.mulf %918, %938 : vector<24x8xf32>
    %cst_448 = arith.constant -0.166666672 : f32
    %940 = vector.broadcast %cst_448 : f32 to vector<24x8xf32>
    %941 = arith.addf %940, %939 : vector<24x8xf32>
    %942 = arith.mulf %918, %941 : vector<24x8xf32>
    %cst_449 = arith.constant 1.000000e+00 : f32
    %943 = vector.broadcast %cst_449 : f32 to vector<24x8xf32>
    %944 = arith.addf %943, %942 : vector<24x8xf32>
    %945 = arith.mulf %917, %944 : vector<24x8xf32>
    %cst_450 = arith.constant 3.500000e+00 : f32
    %946 = vector.broadcast %cst_450 : f32 to vector<24x8xf32>
    %947 = arith.cmpf oge, %914, %946 : vector<24x8xf32>
    %cst_451 = arith.constant 4.000000e+00 : f32
    %948 = vector.broadcast %cst_451 : f32 to vector<24x8xf32>
    %949 = arith.subf %914, %948 : vector<24x8xf32>
    %950 = arith.select %947, %949, %914 : vector<24x8xi1>, vector<24x8xf32>
    %cst_452 = arith.constant 0.000000e+00 : f32
    %951 = vector.broadcast %cst_452 : f32 to vector<24x8xf32>
    %952 = arith.cmpf oeq, %950, %951 : vector<24x8xf32>
    %cst_453 = arith.constant 1.000000e+00 : f32
    %953 = vector.broadcast %cst_453 : f32 to vector<24x8xf32>
    %954 = arith.cmpf oeq, %950, %953 : vector<24x8xf32>
    %cst_454 = arith.constant 0.000000e+00 : f32
    %955 = vector.broadcast %cst_454 : f32 to vector<24x8xf32>
    %956 = arith.subf %955, %945 : vector<24x8xf32>
    %cst_455 = arith.constant 2.000000e+00 : f32
    %957 = vector.broadcast %cst_455 : f32 to vector<24x8xf32>
    %958 = arith.cmpf oeq, %950, %957 : vector<24x8xf32>
    %cst_456 = arith.constant 0.000000e+00 : f32
    %959 = vector.broadcast %cst_456 : f32 to vector<24x8xf32>
    %960 = arith.subf %959, %931 : vector<24x8xf32>
    %961 = arith.select %958, %960, %945 : vector<24x8xi1>, vector<24x8xf32>
    %962 = arith.select %954, %956, %961 : vector<24x8xi1>, vector<24x8xf32>
    %963 = arith.select %952, %931, %962 : vector<24x8xi1>, vector<24x8xf32>
    %cst_457 = arith.constant 0.000000e+00 : f32
    %964 = vector.broadcast %cst_457 : f32 to vector<24x8xf32>
    %965 = arith.cmpf oeq, %950, %964 : vector<24x8xf32>
    %cst_458 = arith.constant 1.000000e+00 : f32
    %966 = vector.broadcast %cst_458 : f32 to vector<24x8xf32>
    %967 = arith.cmpf oeq, %950, %966 : vector<24x8xf32>
    %cst_459 = arith.constant 2.000000e+00 : f32
    %968 = vector.broadcast %cst_459 : f32 to vector<24x8xf32>
    %969 = arith.cmpf oeq, %950, %968 : vector<24x8xf32>
    %cst_460 = arith.constant 0.000000e+00 : f32
    %970 = vector.broadcast %cst_460 : f32 to vector<24x8xf32>
    %971 = arith.subf %970, %945 : vector<24x8xf32>
    %cst_461 = arith.constant 0.000000e+00 : f32
    %972 = vector.broadcast %cst_461 : f32 to vector<24x8xf32>
    %973 = arith.subf %972, %931 : vector<24x8xf32>
    %974 = arith.select %969, %971, %973 : vector<24x8xi1>, vector<24x8xf32>
    %975 = arith.select %967, %931, %974 : vector<24x8xi1>, vector<24x8xf32>
    %976 = arith.select %965, %945, %975 : vector<24x8xi1>, vector<24x8xf32>
    %977 = arith.mulf %893, %963 : vector<24x8xf32>
    %cst_462 = arith.constant dense<0.000000e+00> : vector<24x16xf32>
    %978 = tpu.matmul %977, %48, %cst_462 {dimension_numbers = #tpu.dot_dimension_numbers<[1], [0], [0], [1], [0, 0, 1, 1], [], []>} : vector<24x8xf32>, vector<8x16xf32>, vector<24x16xf32> -> vector<24x16xf32>
    %979 = arith.mulf %893, %976 : vector<24x8xf32>
    %cst_463 = arith.constant dense<0.000000e+00> : vector<24x16xf32>
    %980 = tpu.matmul %979, %55, %cst_463 {dimension_numbers = #tpu.dot_dimension_numbers<[1], [0], [0], [1], [0, 0, 1, 1], [], []>} : vector<24x8xf32>, vector<8x16xf32>, vector<24x16xf32> -> vector<24x16xf32>
    %981 = arith.addf %978, %980 : vector<24x16xf32>
    %cst_464 = arith.constant 1.000000e+00 : f32
    %982 = vector.broadcast %cst_464 : f32 to vector<24x16xf32>
    %983 = arith.mulf %981, %982 : vector<24x16xf32>
    %c0_465 = arith.constant 0 : index
    %c0_466 = arith.constant 0 : index
    %984 = vector.load %arg29[%c0_465, %c0_466] : memref<32x128xbf16, #tpu.memory_space<vmem>>, vector<32x128xbf16>
    %cst_467 = arith.constant dense<0.000000e+00> : vector<24x128xf32>
    %985 = tpu.matmul %856, %984, %cst_467 {dimension_numbers = #tpu.dot_dimension_numbers<[1], [0], [0], [1], [0, 0, 1, 1], [], []>} : vector<24x32xbf16>, vector<32x128xbf16>, vector<24x128xf32> -> vector<24x128xf32>
    %986 = arith.truncf %983 : vector<24x16xf32> to vector<24x16xbf16>
    %c0_468 = arith.constant 0 : index
    %c0_469 = arith.constant 0 : index
    %987 = vector.load %arg30[%c0_468, %c0_469] : memref<16x128xbf16, #tpu.memory_space<vmem>>, vector<16x128xbf16>
    %cst_470 = arith.constant dense<0.000000e+00> : vector<24x128xf32>
    %988 = tpu.matmul %986, %987, %cst_470 {dimension_numbers = #tpu.dot_dimension_numbers<[1], [0], [0], [1], [0, 0, 1, 1], [], []>} : vector<24x16xbf16>, vector<16x128xbf16>, vector<24x128xf32> -> vector<24x128xf32>
    %989 = arith.addf %985, %988 : vector<24x128xf32>
    %c0_471 = arith.constant 0 : index
    %c3712_472 = arith.constant 3712 : index
    %990 = vector.load %arg8[%c0_471, %c3712_472] : memref<1x4224xf32, #tpu.memory_space<vmem>>, vector<1x128xf32>
    %991 = vector.broadcast %990 : vector<1x128xf32> to vector<24x128xf32>
    %992 = arith.addf %989, %991 : vector<24x128xf32>
    %cst_473 = arith.constant 0.000000e+00 : f32
    %993 = vector.broadcast %cst_473 : f32 to vector<24x128xf32>
    %994 = arith.maximumf %992, %993 : vector<24x128xf32>
    %995 = arith.truncf %994 : vector<24x128xf32> to vector<24x128xbf16>
    %c0_474 = arith.constant 0 : index
    %c0_475 = arith.constant 0 : index
    %996 = vector.load %arg31[%c0_474, %c0_475] : memref<128x128xbf16, #tpu.memory_space<vmem>>, vector<128x128xbf16>
    %cst_476 = arith.constant dense<0.000000e+00> : vector<24x128xf32>
    %997 = tpu.matmul %995, %996, %cst_476 {dimension_numbers = #tpu.dot_dimension_numbers<[1], [0], [0], [1], [0, 0, 1, 1], [], []>} : vector<24x128xbf16>, vector<128x128xbf16>, vector<24x128xf32> -> vector<24x128xf32>
    %c0_477 = arith.constant 0 : index
    %c3840_478 = arith.constant 3840 : index
    %998 = vector.load %arg8[%c0_477, %c3840_478] : memref<1x4224xf32, #tpu.memory_space<vmem>>, vector<1x128xf32>
    %999 = vector.broadcast %998 : vector<1x128xf32> to vector<24x128xf32>
    %1000 = arith.addf %997, %999 : vector<24x128xf32>
    %cst_479 = arith.constant 0.000000e+00 : f32
    %1001 = vector.broadcast %cst_479 : f32 to vector<24x128xf32>
    %1002 = arith.maximumf %1000, %1001 : vector<24x128xf32>
    %1003 = arith.truncf %1002 : vector<24x128xf32> to vector<24x128xbf16>
    %c0_480 = arith.constant 0 : index
    %c0_481 = arith.constant 0 : index
    %1004 = vector.load %arg32[%c0_480, %c0_481] : memref<128x64xbf16, #tpu.memory_space<vmem>>, vector<128x64xbf16>
    %cst_482 = arith.constant dense<0.000000e+00> : vector<24x64xf32>
    %1005 = tpu.matmul %1003, %1004, %cst_482 {dimension_numbers = #tpu.dot_dimension_numbers<[1], [0], [0], [1], [0, 0, 1, 1], [], []>} : vector<24x128xbf16>, vector<128x64xbf16>, vector<24x64xf32> -> vector<24x64xf32>
    %c0_483 = arith.constant 0 : index
    %c3968_484 = arith.constant 3968 : index
    %1006 = vector.load %arg8[%c0_483, %c3968_484] : memref<1x4224xf32, #tpu.memory_space<vmem>>, vector<1x64xf32>
    %1007 = vector.broadcast %1006 : vector<1x64xf32> to vector<24x64xf32>
    %1008 = arith.addf %1005, %1007 : vector<24x64xf32>
    %cst_485 = arith.constant 0.000000e+00 : f32
    %1009 = vector.broadcast %cst_485 : f32 to vector<24x64xf32>
    %1010 = arith.maximumf %1008, %1009 : vector<24x64xf32>
    %1011 = arith.truncf %1010 : vector<24x64xf32> to vector<24x64xbf16>
    %c0_486 = arith.constant 0 : index
    %c0_487 = arith.constant 0 : index
    %1012 = vector.load %arg33[%c0_486, %c0_487] : memref<64x10xbf16, #tpu.memory_space<vmem>>, vector<64x10xbf16>
    %cst_488 = arith.constant dense<0.000000e+00> : vector<24x10xf32>
    %1013 = tpu.matmul %1011, %1012, %cst_488 {dimension_numbers = #tpu.dot_dimension_numbers<[1], [0], [0], [1], [0, 0, 1, 1], [], []>} : vector<24x64xbf16>, vector<64x10xbf16>, vector<24x10xf32> -> vector<24x10xf32>
    %c0_489 = arith.constant 0 : index
    %c4096_490 = arith.constant 4096 : index
    %1014 = vector.load %arg8[%c0_489, %c4096_490] : memref<1x4224xf32, #tpu.memory_space<vmem>>, vector<1x10xf32>
    %1015 = vector.broadcast %1014 : vector<1x10xf32> to vector<24x10xf32>
    %1016 = arith.addf %1013, %1015 : vector<24x10xf32>
    %1017 = arith.addf %776, %1016 : vector<24x10xf32>
    %1018 = tpu.concatenate %291, %535, %776, %1017 in 1 : vector<24x10xf32>, vector<24x10xf32>, vector<24x10xf32>, vector<24x10xf32> -> vector<24x40xf32>
    %c0_491 = arith.constant 0 : index
    %c0_492 = arith.constant 0 : index
    %1019 = vector.load %arg34[%c0_491, %c0_492] : memref<24x40xf32, #tpu.memory_space<vmem>>, vector<24x40xf32>
    tpu.vector_store %arg34[%c0_491, %c0_492], %1018 {strides = array<i32>} : memref<24x40xf32, #tpu.memory_space<vmem>>, vector<24x40xf32>,
    %1020 = tpu.concatenate %253, %499, %740, %981 in 1 : vector<24x16xf32>, vector<24x16xf32>, vector<24x16xf32>, vector<24x16xf32> -> vector<24x64xf32>
    %c0_493 = arith.constant 0 : index
    %c0_494 = arith.constant 0 : index
    %1021 = vector.load %arg35[%c0_493, %c0_494] : memref<24x64xf32, #tpu.memory_space<vmem>>, vector<24x64xf32>
    tpu.vector_store %arg35[%c0_493, %c0_494], %1020 {strides = array<i32>} : memref<24x64xf32, #tpu.memory_space<vmem>>, vector<24x64xf32>,
    return
  }
}

</mosaic_0001>

<llo_original>
// kernel: mrf_cvae_forward_noise.1
$region0: #{mrf_cvae_forward_noise.1}
  #allocation0 [shape = 'u32[]', space=smem, size = 0x4, offset = 0x4, fixed_abs, tag = 'smem constant byte address 0x4 - core index']
  #allocation1 [shape = 'u32[144,128]{1,0:T(1,128)}', space=vmem, size = 0x12000, scoped, tag = 'internal scratch']
  %s0 = inlined_call_operand.smem [shape: u32[36], index: -1, kind: input, shape index: {}]
  %s1 = sld [smem:[%s0]]
  %s2 = scalar_lea.smem %s0, 1
  %s3 = sld [smem:[%s2]]
  %s4 = scalar_lea.smem %s0, 2
  %s5 = sld [smem:[%s4]]
  %s6 = scalar_lea.smem %s0, 3
  %s7 = sld [smem:[%s6]]
  %s8 = scalar_lea.smem %s0, 4
  %s9 = sld [smem:[%s8]]
  %s10 = scalar_lea.smem %s0, 5
  %s11 = sld [smem:[%s10]]
  %s12 = scalar_lea.smem %s0, 6
  %s13 = sld [smem:[%s12]]
  %s14 = scalar_lea.smem %s0, 7
  %s15 = sld [smem:[%s14]]
  %s16 = scalar_lea.smem %s0, 8
  %s17 = sld [smem:[%s16]]
  %s18 = scalar_lea.smem %s0, 9
  %s19 = sld [smem:[%s18]]
  %s20 = scalar_lea.smem %s0, 10
  %s21 = sld [smem:[%s20]]
  %s22 = scalar_lea.smem %s0, 11
  %s23 = sld [smem:[%s22]]
  %s24 = scalar_lea.smem %s0, 12
  %s25 = sld [smem:[%s24]]
  %s26 = scalar_lea.smem %s0, 13
  %s27 = sld [smem:[%s26]]
  %s28 = scalar_lea.smem %s0, 14
  %s29 = sld [smem:[%s28]]
  %s30 = scalar_lea.smem %s0, 15
  %s31 = sld [smem:[%s30]]
  %s32 = scalar_lea.smem %s0, 16
  %s33 = sld [smem:[%s32]]
  %s34 = scalar_lea.smem %s0, 17
  %s35 = sld [smem:[%s34]]
  %s36 = scalar_lea.smem %s0, 18
  %s37 = sld [smem:[%s36]]
  %s38 = scalar_lea.smem %s0, 19
  %s39 = sld [smem:[%s38]]
  %s40 = scalar_lea.smem %s0, 20
  %s41 = sld [smem:[%s40]]
  %s42 = scalar_lea.smem %s0, 21
  %s43 = sld [smem:[%s42]]
  %s44 = scalar_lea.smem %s0, 22
  %s45 = sld [smem:[%s44]]
  %s46 = scalar_lea.smem %s0, 23
  %s47 = sld [smem:[%s46]]
  %s48 = scalar_lea.smem %s0, 24
  %s49 = sld [smem:[%s48]]
  %s50 = scalar_lea.smem %s0, 25
  %s51 = sld [smem:[%s50]]
  %s52 = scalar_lea.smem %s0, 26
  %s53 = sld [smem:[%s52]]
  %s54 = scalar_lea.smem %s0, 27
  %s55 = sld [smem:[%s54]]
  %s56 = scalar_lea.smem %s0, 28
  %s57 = sld [smem:[%s56]]
  %s58 = scalar_lea.smem %s0, 29
  %s59 = sld [smem:[%s58]]
  %s60 = scalar_lea.smem %s0, 30
  %s61 = sld [smem:[%s60]]
  %s62 = scalar_lea.smem %s0, 31
  %s63 = sld [smem:[%s62]]
  %s64 = scalar_lea.smem %s0, 32
  %s65 = sld [smem:[%s64]]
  %s66 = scalar_lea.smem %s0, 33
  %s67 = sld [smem:[%s66]]
  %s68 = scalar_lea.smem %s0, 34
  %s69 = sld [smem:[%s68]]
  %s70 = scalar_lea.smem %s0, 35
  %s71 = sld [smem:[%s70]]
  %72 = xla_tuple %s69, %s71
  %s73 = sld [smem:[#allocation0]]
  $region154: #{mrf_cvae_forward_noise.1} parent=0
    _
  %s75 = ssub.s32 1, %s73
  %s76 = scalar_select 0, %s75, %s73
  // Predicated region
  $region2: #{mrf_cvae_forward_noise.1} parent=0 // pred_check
    _
  $region3: #{mrf_cvae_forward_noise.1} parent=0 // pred_check_branch
    %78 = sbr.rel (0) target = $region5
  $region4: #{mrf_cvae_forward_noise.1} parent=0 // pred_region
    _
  $region5: #{mrf_cvae_forward_noise.1} parent=0 // pred_fallthru
    _
  // Predicated region
  $region6: #{mrf_cvae_forward_noise.1} parent=0 // pred_check
    _
  $region7: #{mrf_cvae_forward_noise.1} parent=0 // pred_check_branch
    %80 = sbr.rel (0) target = $region9
  $region8: #{mrf_cvae_forward_noise.1} parent=0 // pred_region
    _
  $region9: #{mrf_cvae_forward_noise.1} parent=0 // pred_fallthru
    _
  // Predicated region
  $region10: #{mrf_cvae_forward_noise.1} parent=0 // pred_check
    _
  $region11: #{mrf_cvae_forward_noise.1} parent=0 // pred_check_branch
    %82 = sbr.rel (0) target = $region13
  $region12: #{mrf_cvae_forward_noise.1} parent=0 // pred_region
    _
  $region13: #{mrf_cvae_forward_noise.1} parent=0 // pred_fallthru
    _
  // Predicated region
  $region14: #{mrf_cvae_forward_noise.1} parent=0 // pred_check
    _
  $region15: #{mrf_cvae_forward_noise.1} parent=0 // pred_check_branch
    %84 = sbr.rel (0) target = $region17
  $region16: #{mrf_cvae_forward_noise.1} parent=0 // pred_region
    _
  $region17: #{mrf_cvae_forward_noise.1} parent=0 // pred_fallthru
    _
  // Predicated region
  $region18: #{mrf_cvae_forward_noise.1} parent=0 // pred_check
    _
  $region19: #{mrf_cvae_forward_noise.1} parent=0 // pred_check_branch
    %86 = sbr.rel (0) target = $region21
  $region20: #{mrf_cvae_forward_noise.1} parent=0 // pred_region
    _
  $region21: #{mrf_cvae_forward_noise.1} parent=0 // pred_fallthru
    _
  // Predicated region
  $region22: #{mrf_cvae_forward_noise.1} parent=0 // pred_check
    _
  $region23: #{mrf_cvae_forward_noise.1} parent=0 // pred_check_branch
    %88 = sbr.rel (0) target = $region25
  $region24: #{mrf_cvae_forward_noise.1} parent=0 // pred_region
    _
  $region25: #{mrf_cvae_forward_noise.1} parent=0 // pred_fallthru
    _
  // Predicated region
  $region26: #{mrf_cvae_forward_noise.1} parent=0 // pred_check
    _
  $region27: #{mrf_cvae_forward_noise.1} parent=0 // pred_check_branch
    %90 = sbr.rel (0) target = $region29
  $region28: #{mrf_cvae_forward_noise.1} parent=0 // pred_region
    _
  $region29: #{mrf_cvae_forward_noise.1} parent=0 // pred_fallthru
    _
  // Predicated region
  $region30: #{mrf_cvae_forward_noise.1} parent=0 // pred_check
    _
  $region31: #{mrf_cvae_forward_noise.1} parent=0 // pred_check_branch
    %92 = sbr.rel (0) target = $region33
  $region32: #{mrf_cvae_forward_noise.1} parent=0 // pred_region
    _
  $region33: #{mrf_cvae_forward_noise.1} parent=0 // pred_fallthru
    _
  // Predicated region
  $region34: #{mrf_cvae_forward_noise.1} parent=0 // pred_check
    _
  $region35: #{mrf_cvae_forward_noise.1} parent=0 // pred_check_branch
    %94 = sbr.rel (0) target = $region37
  $region36: #{mrf_cvae_forward_noise.1} parent=0 // pred_region
    _
  $region37: #{mrf_cvae_forward_noise.1} parent=0 // pred_fallthru
    _
  // Predicated region
  $region38: #{mrf_cvae_forward_noise.1} parent=0 // pred_check
    _
  $region39: #{mrf_cvae_forward_noise.1} parent=0 // pred_check_branch
    %96 = sbr.rel (0) target = $region41
  $region40: #{mrf_cvae_forward_noise.1} parent=0 // pred_region
    _
  $region41: #{mrf_cvae_forward_noise.1} parent=0 // pred_fallthru
    _
  // Predicated region
  $region42: #{mrf_cvae_forward_noise.1} parent=0 // pred_check
    _
  $region43: #{mrf_cvae_forward_noise.1} parent=0 // pred_check_branch
    %98 = sbr.rel (0) target = $region45
  $region44: #{mrf_cvae_forward_noise.1} parent=0 // pred_region
    _
  $region45: #{mrf_cvae_forward_noise.1} parent=0 // pred_fallthru
    _
  // Predicated region
  $region46: #{mrf_cvae_forward_noise.1} parent=0 // pred_check
    _
  $region47: #{mrf_cvae_forward_noise.1} parent=0 // pred_check_branch
    %100 = sbr.rel (0) target = $region49
  $region48: #{mrf_cvae_forward_noise.1} parent=0 // pred_region
    _
  $region49: #{mrf_cvae_forward_noise.1} parent=0 // pred_fallthru
    _
  // Predicated region
  $region50: #{mrf_cvae_forward_noise.1} parent=0 // pred_check
    _
  $region51: #{mrf_cvae_forward_noise.1} parent=0 // pred_check_branch
    %102 = sbr.rel (0) target = $region53
  $region52: #{mrf_cvae_forward_noise.1} parent=0 // pred_region
    _
  $region53: #{mrf_cvae_forward_noise.1} parent=0 // pred_fallthru
    _
  // Predicated region
  $region54: #{mrf_cvae_forward_noise.1} parent=0 // pred_check
    _
  $region55: #{mrf_cvae_forward_noise.1} parent=0 // pred_check_branch
    %104 = sbr.rel (0) target = $region57
  $region56: #{mrf_cvae_forward_noise.1} parent=0 // pred_region
    _
  $region57: #{mrf_cvae_forward_noise.1} parent=0 // pred_fallthru
    _
  // Predicated region
  $region58: #{mrf_cvae_forward_noise.1} parent=0 // pred_check
    _
  $region59: #{mrf_cvae_forward_noise.1} parent=0 // pred_check_branch
    %106 = sbr.rel (0) target = $region61
  $region60: #{mrf_cvae_forward_noise.1} parent=0 // pred_region
    _
  $region61: #{mrf_cvae_forward_noise.1} parent=0 // pred_fallthru
    _
  // Predicated region
  $region62: #{mrf_cvae_forward_noise.1} parent=0 // pred_check
    _
  $region63: #{mrf_cvae_forward_noise.1} parent=0 // pred_check_branch
    %108 = sbr.rel (0) target = $region65
  $region64: #{mrf_cvae_forward_noise.1} parent=0 // pred_region
    _
  $region65: #{mrf_cvae_forward_noise.1} parent=0 // pred_fallthru
    _
  // Predicated region
  $region66: #{mrf_cvae_forward_noise.1} parent=0 // pred_check
    _
  $region67: #{mrf_cvae_forward_noise.1} parent=0 // pred_check_branch
    %110 = sbr.rel (0) target = $region69
  $region68: #{mrf_cvae_forward_noise.1} parent=0 // pred_region
    _
  $region69: #{mrf_cvae_forward_noise.1} parent=0 // pred_fallthru
    _
  // Predicated region
  $region70: #{mrf_cvae_forward_noise.1} parent=0 // pred_check
    _
  $region71: #{mrf_cvae_forward_noise.1} parent=0 // pred_check_branch
    %112 = sbr.rel (0) target = $region73
  $region72: #{mrf_cvae_forward_noise.1} parent=0 // pred_region
    _
  $region73: #{mrf_cvae_forward_noise.1} parent=0 // pred_fallthru
    _
  // Predicated region
  $region74: #{mrf_cvae_forward_noise.1} parent=0 // pred_check
    _
  $region75: #{mrf_cvae_forward_noise.1} parent=0 // pred_check_branch
    %114 = sbr.rel (0) target = $region77
  $region76: #{mrf_cvae_forward_noise.1} parent=0 // pred_region
    _
  $region77: #{mrf_cvae_forward_noise.1} parent=0 // pred_fallthru
    _
  // Predicated region
  $region78: #{mrf_cvae_forward_noise.1} parent=0 // pred_check
    _
  $region79: #{mrf_cvae_forward_noise.1} parent=0 // pred_check_branch
    %116 = sbr.rel (0) target = $region81
  $region80: #{mrf_cvae_forward_noise.1} parent=0 // pred_region
    _
  $region81: #{mrf_cvae_forward_noise.1} parent=0 // pred_fallthru
    _
  // Predicated region
  $region82: #{mrf_cvae_forward_noise.1} parent=0 // pred_check
    _
  $region83: #{mrf_cvae_forward_noise.1} parent=0 // pred_check_branch
    %118 = sbr.rel (0) target = $region85
  $region84: #{mrf_cvae_forward_noise.1} parent=0 // pred_region
    _
  $region85: #{mrf_cvae_forward_noise.1} parent=0 // pred_fallthru
    _
  // Predicated region
  $region86: #{mrf_cvae_forward_noise.1} parent=0 // pred_check
    _
  $region87: #{mrf_cvae_forward_noise.1} parent=0 // pred_check_branch
    %120 = sbr.rel (0) target = $region89
  $region88: #{mrf_cvae_forward_noise.1} parent=0 // pred_region
    _
  $region89: #{mrf_cvae_forward_noise.1} parent=0 // pred_fallthru
    _
  // Predicated region
  $region90: #{mrf_cvae_forward_noise.1} parent=0 // pred_check
    _
  $region91: #{mrf_cvae_forward_noise.1} parent=0 // pred_check_branch
    %122 = sbr.rel (0) target = $region93
  $region92: #{mrf_cvae_forward_noise.1} parent=0 // pred_region
    _
  $region93: #{mrf_cvae_forward_noise.1} parent=0 // pred_fallthru
    _
  // Predicated region
  $region94: #{mrf_cvae_forward_noise.1} parent=0 // pred_check
    _
  $region95: #{mrf_cvae_forward_noise.1} parent=0 // pred_check_branch
    %124 = sbr.rel (0) target = $region97
  $region96: #{mrf_cvae_forward_noise.1} parent=0 // pred_region
    _
  $region97: #{mrf_cvae_forward_noise.1} parent=0 // pred_fallthru
    _
  // Predicated region
  $region98: #{mrf_cvae_forward_noise.1} parent=0 // pred_check
    _
  $region99: #{mrf_cvae_forward_noise.1} parent=0 // pred_check_branch
    %126 = sbr.rel (0) target = $region101
  $region100: #{mrf_cvae_forward_noise.1} parent=0 // pred_region
    _
  $region101: #{mrf_cvae_forward_noise.1} parent=0 // pred_fallthru
    _
  // Predicated region
  $region102: #{mrf_cvae_forward_noise.1} parent=0 // pred_check
    _
  $region103: #{mrf_cvae_forward_noise.1} parent=0 // pred_check_branch
    %128 = sbr.rel (0) target = $region105
  $region104: #{mrf_cvae_forward_noise.1} parent=0 // pred_region
    _
  $region105: #{mrf_cvae_forward_noise.1} parent=0 // pred_fallthru
    _
  // Predicated region
  $region106: #{mrf_cvae_forward_noise.1} parent=0 // pred_check
    _
  $region107: #{mrf_cvae_forward_noise.1} parent=0 // pred_check_branch
    %130 = sbr.rel (0) target = $region109
  $region108: #{mrf_cvae_forward_noise.1} parent=0 // pred_region
    _
  $region109: #{mrf_cvae_forward_noise.1} parent=0 // pred_fallthru
    _
  // Predicated region
  $region110: #{mrf_cvae_forward_noise.1} parent=0 // pred_check
    _
  $region111: #{mrf_cvae_forward_noise.1} parent=0 // pred_check_branch
    %132 = sbr.rel (0) target = $region113
  $region112: #{mrf_cvae_forward_noise.1} parent=0 // pred_region
    _
  $region113: #{mrf_cvae_forward_noise.1} parent=0 // pred_fallthru
    _
  // Predicated region
  $region114: #{mrf_cvae_forward_noise.1} parent=0 // pred_check
    _
  $region115: #{mrf_cvae_forward_noise.1} parent=0 // pred_check_branch
    %134 = sbr.rel (0) target = $region117
  $region116: #{mrf_cvae_forward_noise.1} parent=0 // pred_region
    _
  $region117: #{mrf_cvae_forward_noise.1} parent=0 // pred_fallthru
    _
  // Predicated region
  $region118: #{mrf_cvae_forward_noise.1} parent=0 // pred_check
    _
  $region119: #{mrf_cvae_forward_noise.1} parent=0 // pred_check_branch
    %136 = sbr.rel (0) target = $region121
  $region120: #{mrf_cvae_forward_noise.1} parent=0 // pred_region
    _
  $region121: #{mrf_cvae_forward_noise.1} parent=0 // pred_fallthru
    _
  // Predicated region
  $region122: #{mrf_cvae_forward_noise.1} parent=0 // pred_check
    _
  $region123: #{mrf_cvae_forward_noise.1} parent=0 // pred_check_branch
    %138 = sbr.rel (0) target = $region125
  $region124: #{mrf_cvae_forward_noise.1} parent=0 // pred_region
    _
  $region125: #{mrf_cvae_forward_noise.1} parent=0 // pred_fallthru
    _
  // Predicated region
  $region126: #{mrf_cvae_forward_noise.1} parent=0 // pred_check
    _
  $region127: #{mrf_cvae_forward_noise.1} parent=0 // pred_check_branch
    %140 = sbr.rel (0) target = $region129
  $region128: #{mrf_cvae_forward_noise.1} parent=0 // pred_region
    _
  $region129: #{mrf_cvae_forward_noise.1} parent=0 // pred_fallthru
    _
  // Predicated region
  $region130: #{mrf_cvae_forward_noise.1} parent=0 // pred_check
    _
  $region131: #{mrf_cvae_forward_noise.1} parent=0 // pred_check_branch
    %142 = sbr.rel (0) target = $region133
  $region132: #{mrf_cvae_forward_noise.1} parent=0 // pred_region
    _
  $region133: #{mrf_cvae_forward_noise.1} parent=0 // pred_fallthru
    _
  // Predicated region
  $region134: #{mrf_cvae_forward_noise.1} parent=0 // pred_check
    _
  $region135: #{mrf_cvae_forward_noise.1} parent=0 // pred_check_branch
    %144 = sbr.rel (0) target = $region137
  $region136: #{mrf_cvae_forward_noise.1} parent=0 // pred_region
    _
  $region137: #{mrf_cvae_forward_noise.1} parent=0 // pred_fallthru
    _
  %v146 = vlaneseq
  %v147 = vshrl.u32 %v146, 7
  %v148 = vadd.s32 %v147, 8
  %v149 = vadd.s32 %v147, 16
  %v150 = vadd.s32 %v147, 24
  %v151 = vadd.s32 %v147, 32
  %v152 = vadd.s32 %v147, 40
  %v153 = vadd.s32 %v147, 48
  %v154 = vadd.s32 %v147, 56
  %v155 = vlaneseq
  %v156 = vand.u32 %v155, 127
  %v157 = vmul.u32 %v156, 2
  %vm158 = vcmp.eq.s32.totalorder %v147, %v157
  %vm159 = vcmp.eq.s32.totalorder %v148, %v157
  %vm160 = vcmp.eq.s32.totalorder %v149, %v157
  %vm161 = vcmp.eq.s32.totalorder %v150, %v157
  %vm162 = vcmp.eq.s32.totalorder %v151, %v157
  %vm163 = vcmp.eq.s32.totalorder %v152, %v157
  %vm164 = vcmp.eq.s32.totalorder %v153, %v157
  %vm165 = vcmp.eq.s32.totalorder %v154, %v157
  %v166 = vsel %vm158, 1, 0
  %v167 = vsel %vm159, 1, 0
  %v168 = vsel %vm160, 1, 0
  %v169 = vsel %vm161, 1, 0
  %v170 = vsel %vm162, 1, 0
  %v171 = vsel %vm163, 1, 0
  %v172 = vsel %vm164, 1, 0
  %v173 = vsel %vm165, 1, 0
  %v174 = vcvt.s32.f32 %v166
  %v175 = vcvt.s32.f32 %v167
  %v176 = vcvt.s32.f32 %v168
  %v177 = vcvt.s32.f32 %v169
  %v178 = vcvt.s32.f32 %v170
  %v179 = vcvt.s32.f32 %v171
  %v180 = vcvt.s32.f32 %v172
  %v181 = vcvt.s32.f32 %v173
  %v182 = vadd.s32 %v157, 1
  %vm183 = vcmp.eq.s32.totalorder %v147, %v182
  %vm184 = vcmp.eq.s32.totalorder %v148, %v182
  %vm185 = vcmp.eq.s32.totalorder %v149, %v182
  %vm186 = vcmp.eq.s32.totalorder %v150, %v182
  %vm187 = vcmp.eq.s32.totalorder %v151, %v182
  %vm188 = vcmp.eq.s32.totalorder %v152, %v182
  %vm189 = vcmp.eq.s32.totalorder %v153, %v182
  %vm190 = vcmp.eq.s32.totalorder %v154, %v182
  %v191 = vsel %vm183, 1, 0
  %v192 = vsel %vm184, 1, 0
  %v193 = vsel %vm185, 1, 0
  %v194 = vsel %vm186, 1, 0
  %v195 = vsel %vm187, 1, 0
  %v196 = vsel %vm188, 1, 0
  %v197 = vsel %vm189, 1, 0
  %v198 = vsel %vm190, 1, 0
  %v199 = vcvt.s32.f32 %v191
  %v200 = vcvt.s32.f32 %v192
  %v201 = vcvt.s32.f32 %v193
  %v202 = vcvt.s32.f32 %v194
  %v203 = vcvt.s32.f32 %v195
  %v204 = vcvt.s32.f32 %v196
  %v205 = vcvt.s32.f32 %v197
  %v206 = vcvt.s32.f32 %v198
  %v207 = vmul.u32 %v147, 2
  %v208 = vmul.u32 %v148, 2
  %v209 = vmul.u32 %v149, 2
  %v210 = vmul.u32 %v150, 2
  %vm211 = vcmp.eq.s32.totalorder %v156, %v207
  %vm212 = vcmp.eq.s32.totalorder %v156, %v208
  %vm213 = vcmp.eq.s32.totalorder %v156, %v209
  %vm214 = vcmp.eq.s32.totalorder %v156, %v210
  %v215 = vsel %vm211, 1, 0
  %v216 = vsel %vm212, 1, 0
  %v217 = vsel %vm213, 1, 0
  %v218 = vsel %vm214, 1, 0
  %v219 = vcvt.s32.f32 %v215
  %v220 = vcvt.s32.f32 %v216
  %v221 = vcvt.s32.f32 %v217
  %v222 = vcvt.s32.f32 %v218
  %v223 = vadd.s32 %v207, 1
  %v224 = vadd.s32 %v208, 1
  %v225 = vadd.s32 %v209, 1
  %v226 = vadd.s32 %v210, 1
  %vm227 = vcmp.eq.s32.totalorder %v156, %v223
  %vm228 = vcmp.eq.s32.totalorder %v156, %v224
  %vm229 = vcmp.eq.s32.totalorder %v156, %v225
  %vm230 = vcmp.eq.s32.totalorder %v156, %v226
  %v231 = vsel %vm227, 1, 0
  %v232 = vsel %vm228, 1, 0
  %v233 = vsel %vm229, 1, 0
  %v234 = vsel %vm230, 1, 0
  %v235 = vcvt.s32.f32 %v231
  %v236 = vcvt.s32.f32 %v232
  %v237 = vcvt.s32.f32 %v233
  %v238 = vcvt.s32.f32 %v234
  %v239 = vld [vmem:[%s1] sm:$0x3f]
  %v240 = vpack.c.bf16 %v239, %v239
  %v241 = vld [vmem:[%s19] sm:$0xf]
  %v242 = vld [vmem:[%s19 + $0x4] sm:$0xf]
  %v243 = vld [vmem:[%s17] sm:$0x1]
  %v245 = vlaneseq
  %v246 = vshrl.u32 %v245, 7
  %v247 = vsub.s32 0, %v246
  %v248 = vrot.slane %v243, %v247
  %v252 = vunpack.c.l.b16 %v241
  %v253 = vunpack.c.l.b16 %v242
  %v254 = vpack.c.b16 %v253, %v252
  %vm256 = vcmask 130048
  %v258 = vsel %vm256, %v240, 0
  %260 = vmatprep.subr.bf16.mxu0 0
  %261 = vmatpush1.bf16.msra.mxu0 %v254
  %262 = vmatprep.subr.bf16.mxu0 0
  %263 = vmatpush1.bf16.msra.mxu0 0
  %264 = vmatprep.subr.bf16.mxu0 0
  %265 = vmatpush1.bf16.msra.mxu0 0
  %266 = vmatprep.subr.bf16.mxu0 0
  %267 = vmatpush1.bf16.msra.mxu0 0
  %268 = vmatprep.subr.bf16.mxu0 0
  %269 = vmatpush1.bf16.msra.mxu0 0
  %270 = vmatprep.subr.bf16.mxu0 0
  %271 = vmatpush1.bf16.msra.mxu0 0
  %272 = vmatprep.subr.bf16.mxu0 0
  %273 = vmatpush1.bf16.msra.mxu0 0
  %274 = vmatprep.subr.bf16.mxu0 0
  %275 = vmatpush1.bf16.msra.mxu0 0
  %276 = vmatprep.subr.bf16.mxu0 0
  %277 = vmatpush1.bf16.msra.mxu0 0
  %278 = vmatprep.subr.bf16.mxu0 0
  %279 = vmatpush1.bf16.msra.mxu0 0
  %280 = vmatprep.subr.bf16.mxu0 0
  %281 = vmatpush1.bf16.msra.mxu0 0
  %282 = vmatprep.subr.bf16.mxu0 0
  %283 = vmatpush1.bf16.msra.mxu0 0
  %284 = vmatprep.subr.bf16.mxu0 0
  %285 = vmatpush1.bf16.msra.mxu0 0
  %286 = vmatprep.subr.bf16.mxu0 0
  %287 = vmatpush1.bf16.msra.mxu0 0
  %288 = vmatprep.subr.bf16.mxu0 0
  %289 = vmatpush1.bf16.msra.mxu0 0
  %290 = vmatprep.subr.bf16.mxu0 0
  %291 = vmatpush1.bf16.msra.mxu0 0
  %292 = vmatprep.mubr.bf16.mxu0 0
  %293 = vmatmul.mubr.bf16.gmra.mrb[0].mxu0 %v258
  %v294 = vpop.f32.mrb[0].mxu0
  %v295 = vadd.f32 %v248, %v294
  %v296 = vpop.f32.mrb[0].mxu0
  %v297 = vpop.f32.mrb[0].mxu0
  %v298 = vpop.f32.mrb[0].mxu0
  %299 = vdwg.mxu0
  %v300 = vmax.f32 %v295, 0.0
  %v301 = vpack.c.bf16 %v300, %v300
  %v302 = vld [vmem:[%s21] sm:$0xff]
  %v303 = vld [vmem:[%s21 + $0x8] sm:$0xff]
  %v304 = vld [vmem:[%s21 + $0x10] sm:$0xff]
  %v305 = vld [vmem:[%s21 + $0x18] sm:$0xff]
  %v306 = vld [vmem:[%s21 + $0x20] sm:$0xff]
  %v307 = vld [vmem:[%s21 + $0x28] sm:$0xff]
  %v308 = vld [vmem:[%s21 + $0x30] sm:$0xff]
  %v309 = vld [vmem:[%s21 + $0x38] sm:$0xff]
  %v310 = vld [vmem:[%s21 + $0x40] sm:$0xff]
  %v311 = vld [vmem:[%s21 + $0x48] sm:$0xff]
  %v312 = vld [vmem:[%s21 + $0x50] sm:$0xff]
  %v313 = vld [vmem:[%s21 + $0x58] sm:$0xff]
  %v314 = vld [vmem:[%s21 + $0x60] sm:$0xff]
  %v315 = vld [vmem:[%s21 + $0x68] sm:$0xff]
  %v316 = vld [vmem:[%s21 + $0x70] sm:$0xff]
  %v317 = vld [vmem:[%s21 + $0x78] sm:$0xff]
  %v318 = vld [vmem:[%s17 + $0x1] sm:$0x3]
  %v320 = vlaneseq
  %v321 = vshrl.u32 %v320, 7
  %v322 = vsub.s32 0, %v321
  %v323 = vrot.slane %v318, %v322
  %v324 = vlaneseq
  %v325 = vshrl.u32 %v324, 7
  %v326 = vsub.s32 1, %v325
  %v327 = vrot.slane %v318, %v326
  %v346 = vunpack.c.l.b16 %v302
  %v347 = vunpack.c.h.b16 %v302
  %v348 = vunpack.c.l.b16 %v303
  %v349 = vunpack.c.h.b16 %v303
  %v350 = vunpack.c.l.b16 %v304
  %v351 = vunpack.c.h.b16 %v304
  %v352 = vunpack.c.l.b16 %v305
  %v353 = vunpack.c.h.b16 %v305
  %v354 = vunpack.c.l.b16 %v306
  %v355 = vunpack.c.h.b16 %v306
  %v356 = vunpack.c.l.b16 %v307
  %v357 = vunpack.c.h.b16 %v307
  %v358 = vunpack.c.l.b16 %v308
  %v359 = vunpack.c.h.b16 %v308
  %v360 = vunpack.c.l.b16 %v309
  %v361 = vunpack.c.h.b16 %v309
  %v362 = vunpack.c.l.b16 %v310
  %v363 = vunpack.c.h.b16 %v310
  %v364 = vunpack.c.l.b16 %v311
  %v365 = vunpack.c.h.b16 %v311
  %v366 = vunpack.c.l.b16 %v312
  %v367 = vunpack.c.h.b16 %v312
  %v368 = vunpack.c.l.b16 %v313
  %v369 = vunpack.c.h.b16 %v313
  %v370 = vunpack.c.l.b16 %v314
  %v371 = vunpack.c.h.b16 %v314
  %v372 = vunpack.c.l.b16 %v315
  %v373 = vunpack.c.h.b16 %v315
  %v374 = vunpack.c.l.b16 %v316
  %v375 = vunpack.c.h.b16 %v316
  %v376 = vunpack.c.l.b16 %v317
  %v377 = vunpack.c.h.b16 %v317
  %v378 = vpack.c.b16 %v348, %v346
  %v379 = vpack.c.b16 %v349, %v347
  %v380 = vpack.c.b16 %v352, %v350
  %v381 = vpack.c.b16 %v353, %v351
  %v382 = vpack.c.b16 %v356, %v354
  %v383 = vpack.c.b16 %v357, %v355
  %v384 = vpack.c.b16 %v360, %v358
  %v385 = vpack.c.b16 %v361, %v359
  %v386 = vpack.c.b16 %v364, %v362
  %v387 = vpack.c.b16 %v365, %v363
  %v388 = vpack.c.b16 %v368, %v366
  %v389 = vpack.c.b16 %v369, %v367
  %v390 = vpack.c.b16 %v372, %v370
  %v391 = vpack.c.b16 %v373, %v371
  %v392 = vpack.c.b16 %v376, %v374
  %v393 = vpack.c.b16 %v377, %v375
  %410 = vmatprep.subr.bf16.mxu0 %v379
  %411 = vmatpush1.bf16.msra.mxu0 %v378
  %412 = vmatprep.subr.bf16.mxu0 %v381
  %413 = vmatpush1.bf16.msra.mxu0 %v380
  %414 = vmatprep.subr.bf16.mxu0 %v383
  %415 = vmatpush1.bf16.msra.mxu0 %v382
  %416 = vmatprep.subr.bf16.mxu0 %v385
  %417 = vmatpush1.bf16.msra.mxu0 %v384
  %418 = vmatprep.subr.bf16.mxu0 %v387
  %419 = vmatpush1.bf16.msra.mxu0 %v386
  %420 = vmatprep.subr.bf16.mxu0 %v389
  %421 = vmatpush1.bf16.msra.mxu0 %v388
  %422 = vmatprep.subr.bf16.mxu0 %v391
  %423 = vmatpush1.bf16.msra.mxu0 %v390
  %424 = vmatprep.subr.bf16.mxu0 %v393
  %425 = vmatpush1.bf16.msra.mxu0 %v392
  %426 = vmatprep.subr.bf16.mxu0 0
  %427 = vmatpush1.bf16.msra.mxu0 0
  %428 = vmatprep.subr.bf16.mxu0 0
  %429 = vmatpush1.bf16.msra.mxu0 0
  %430 = vmatprep.subr.bf16.mxu0 0
  %431 = vmatpush1.bf16.msra.mxu0 0
  %432 = vmatprep.subr.bf16.mxu0 0
  %433 = vmatpush1.bf16.msra.mxu0 0
  %434 = vmatprep.subr.bf16.mxu0 0
  %435 = vmatpush1.bf16.msra.mxu0 0
  %436 = vmatprep.subr.bf16.mxu0 0
  %437 = vmatpush1.bf16.msra.mxu0 0
  %438 = vmatprep.subr.bf16.mxu0 0
  %439 = vmatpush1.bf16.msra.mxu0 0
  %440 = vmatprep.subr.bf16.mxu0 0
  %441 = vmatpush1.bf16.msra.mxu0 0
  %442 = vmatprep.mubr.bf16.mxu0 0
  %443 = vmatmul.mubr.bf16.gmra.mrb[0].mxu0 %v301
  %v444 = vpop.f32.mrb[0].mxu0
  %v445 = vadd.f32 %v323, %v444
  %v446 = vpop.f32.mrb[0].mxu0
  %v447 = vadd.f32 %v327, %v446
  %v448 = vpop.f32.mrb[0].mxu0
  %v449 = vpop.f32.mrb[0].mxu0
  %450 = vdwg.mxu0
  %v451 = vpack.c.bf16 %v445, %v445
  %v452 = vpack.c.bf16 %v447, %v447
  %453 = vmatprep.subr.bf16.mxu0 %v452
  %454 = vmatpush1.bf16.xpose.msra.mxu0 %v451
  %455 = vmatprep.subr.bf16.mxu0 0
  %456 = vmatpush1.bf16.xpose.msra.mxu0 0
  %457 = vmatprep.subr.bf16.mxu0 0
  %458 = vmatpush1.bf16.xpose.msra.mxu0 0
  %459 = vmatprep.subr.bf16.mxu0 0
  %460 = vmatpush1.bf16.xpose.msra.mxu0 0
  %461 = vmatprep.subr.bf16.mxu0 0
  %462 = vmatpush1.bf16.xpose.msra.mxu0 0
  %463 = vmatprep.subr.bf16.mxu0 0
  %464 = vmatpush1.bf16.xpose.msra.mxu0 0
  %465 = vmatprep.subr.bf16.mxu0 0
  %466 = vmatpush1.bf16.xpose.msra.mxu0 0
  %467 = vmatprep.subr.bf16.mxu0 0
  %468 = vmatpush1.bf16.xpose.msra.mxu0 0
  %469 = vmatprep.subr.bf16.mxu0 0
  %470 = vmatpush1.bf16.xpose.msra.mxu0 0
  %471 = vmatprep.subr.bf16.mxu0 0
  %472 = vmatpush1.bf16.xpose.msra.mxu0 0
  %473 = vmatprep.subr.bf16.mxu0 0
  %474 = vmatpush1.bf16.xpose.msra.mxu0 0
  %475 = vmatprep.subr.bf16.mxu0 0
  %476 = vmatpush1.bf16.xpose.msra.mxu0 0
  %477 = vmatprep.subr.bf16.mxu0 0
  %478 = vmatpush1.bf16.xpose.msra.mxu0 0
  %479 = vmatprep.subr.bf16.mxu0 0
  %480 = vmatpush1.bf16.xpose.msra.mxu0 0
  %481 = vmatprep.subr.bf16.mxu0 0
  %482 = vmatpush1.bf16.xpose.msra.mxu0 0
  %483 = vmatprep.subr.bf16.mxu0 0
  %484 = vmatpush1.bf16.xpose.msra.mxu0 0
  %485 = vmatprep.mubr.bf16.mxu0 %v452
  %486 = vmatmul.mubr.bf16.gmra.mrb[0].mxu0 %v451
  %v487 = vpop.f32.mrb[0].mxu0
  %v488 = vadd.f32 0.0, %v487
  %v489 = vpop.f32.mrb[0].mxu0
  %v490 = vpop.f32.mrb[0].mxu0
  %v491 = vpop.f32.mrb[0].mxu0
  %492 = vdwg.mxu0
  %v493 = vmul.f32 %v488, 0.0625
  %v494 = vld [vmem:[%s3] sm:$0x3f]
  %vm495 = vcmp.gt.f32.partialorder %v494, 0.0
  %v496 = vsel %vm495, %v493, -1e+09
  %vm497 = vcmask 46080
  %v498 = vsel %vm497, %v496, -inf
  %499 = vmax.xlane.f32.xlu0 %v498
  %v500 = vpop.xlane.xlu0 %499
  %v501 = vsub.f32 %v496, %v500
  %v502 = vmul.f32 %v501, 1.442695
  %v503 = vpow.pop %v502
  %v504 = vsel %vm497, %v503, 0.0
  %505 = vadd.xlane.f32.xlu0 %v504
  %v506 = vpop.xlane.xlu0 %505
  %v507 = vrcp.pop %v506
  %v508 = vmul.f32 %v503, %v507
  %v509 = vpack.c.bf16 %v508, %v508
  %vm510 = vcmask 48128
  %v512 = vsel %vm510, %v509, 0
  %vm514 = vcmask 1042432
  %v516 = vsel %vm514, %v451, 0
  %v519 = vsel %vm514, %v452, 0
  %521 = vmatprep.subr.bf16.mxu0 %v519
  %522 = vmatpush1.bf16.msra.mxu0 %v516
  %523 = vmatprep.subr.bf16.mxu0 0
  %524 = vmatpush1.bf16.msra.mxu0 0
  %525 = vmatprep.subr.bf16.mxu0 0
  %526 = vmatpush1.bf16.msra.mxu0 0
  %527 = vmatprep.subr.bf16.mxu0 0
  %528 = vmatpush1.bf16.msra.mxu0 0
  %529 = vmatprep.subr.bf16.mxu0 0
  %530 = vmatpush1.bf16.msra.mxu0 0
  %531 = vmatprep.subr.bf16.mxu0 0
  %532 = vmatpush1.bf16.msra.mxu0 0
  %533 = vmatprep.subr.bf16.mxu0 0
  %534 = vmatpush1.bf16.msra.mxu0 0
  %535 = vmatprep.subr.bf16.mxu0 0
  %536 = vmatpush1.bf16.msra.mxu0 0
  %537 = vmatprep.subr.bf16.mxu0 0
  %538 = vmatpush1.bf16.msra.mxu0 0
  %539 = vmatprep.subr.bf16.mxu0 0
  %540 = vmatpush1.bf16.msra.mxu0 0
  %541 = vmatprep.subr.bf16.mxu0 0
  %542 = vmatpush1.bf16.msra.mxu0 0
  %543 = vmatprep.subr.bf16.mxu0 0
  %544 = vmatpush1.bf16.msra.mxu0 0
  %545 = vmatprep.subr.bf16.mxu0 0
  %546 = vmatpush1.bf16.msra.mxu0 0
  %547 = vmatprep.subr.bf16.mxu0 0
  %548 = vmatpush1.bf16.msra.mxu0 0
  %549 = vmatprep.subr.bf16.mxu0 0
  %550 = vmatpush1.bf16.msra.mxu0 0
  %551 = vmatprep.subr.bf16.mxu0 0
  %552 = vmatpush1.bf16.msra.mxu0 0
  %553 = vmatprep.mubr.bf16.mxu0 0
  %554 = vmatmul.mubr.bf16.gmra.mrb[0].mxu0 %v512
  %v555 = vpop.f32.mrb[0].mxu0
  %v556 = vadd.f32 0.0, %v555
  %v557 = vpop.f32.mrb[0].mxu0
  %v558 = vadd.f32 0.0, %v557
  %v559 = vpop.f32.mrb[0].mxu0
  %v560 = vpop.f32.mrb[0].mxu0
  %561 = vdwg.mxu0
  %v562 = vadd.f32 %v445, %v556
  %v563 = vadd.f32 %v447, %v558
  %v564 = vpack.c.bf16 %v562, %v562
  %v565 = vpack.c.bf16 %v563, %v563
  %v566 = vld [vmem:[%s23] sm:$0xf]
  %v567 = vld [vmem:[%s23 + $0x4] sm:$0xf]
  %v568 = vld [vmem:[%s23 + $0x8] sm:$0xf]
  %v569 = vld [vmem:[%s23 + $0xc] sm:$0xf]
  %v570 = vld [vmem:[%s23 + $0x10] sm:$0xf]
  %v571 = vld [vmem:[%s23 + $0x14] sm:$0xf]
  %v572 = vld [vmem:[%s23 + $0x18] sm:$0xf]
  %v573 = vld [vmem:[%s23 + $0x1c] sm:$0xf]
  %v574 = vld [vmem:[%s23 + $0x20] sm:$0xf]
  %v575 = vld [vmem:[%s23 + $0x24] sm:$0xf]
  %v576 = vld [vmem:[%s23 + $0x28] sm:$0xf]
  %v577 = vld [vmem:[%s23 + $0x2c] sm:$0xf]
  %v578 = vld [vmem:[%s23 + $0x30] sm:$0xf]
  %v579 = vld [vmem:[%s23 + $0x34] sm:$0xf]
  %v580 = vld [vmem:[%s23 + $0x38] sm:$0xf]
  %v581 = vld [vmem:[%s23 + $0x3c] sm:$0xf]
  %v582 = vld [vmem:[%s23 + $0x40] sm:$0xf]
  %v583 = vld [vmem:[%s23 + $0x44] sm:$0xf]
  %v584 = vld [vmem:[%s23 + $0x48] sm:$0xf]
  %v585 = vld [vmem:[%s23 + $0x4c] sm:$0xf]
  %v586 = vld [vmem:[%s23 + $0x50] sm:$0xf]
  %v587 = vld [vmem:[%s23 + $0x54] sm:$0xf]
  %v588 = vld [vmem:[%s23 + $0x58] sm:$0xf]
  %v589 = vld [vmem:[%s23 + $0x5c] sm:$0xf]
  %v590 = vld [vmem:[%s23 + $0x60] sm:$0xf]
  %v591 = vld [vmem:[%s23 + $0x64] sm:$0xf]
  %v592 = vld [vmem:[%s23 + $0x68] sm:$0xf]
  %v593 = vld [vmem:[%s23 + $0x6c] sm:$0xf]
  %v594 = vld [vmem:[%s23 + $0x70] sm:$0xf]
  %v595 = vld [vmem:[%s23 + $0x74] sm:$0xf]
  %v596 = vld [vmem:[%s23 + $0x78] sm:$0xf]
  %v597 = vld [vmem:[%s23 + $0x7c] sm:$0xf]
  %v598 = vld [vmem:[%s17 + $0x3] sm:$0x1]
  %v600 = vlaneseq
  %v601 = vshrl.u32 %v600, 7
  %v602 = vsub.s32 0, %v601
  %v603 = vrot.slane %v598, %v602
  %v637 = vunpack.c.l.b16 %v566
  %v638 = vunpack.c.l.b16 %v567
  %v639 = vunpack.c.l.b16 %v568
  %v640 = vunpack.c.l.b16 %v569
  %v641 = vunpack.c.l.b16 %v570
  %v642 = vunpack.c.l.b16 %v571
  %v643 = vunpack.c.l.b16 %v572
  %v644 = vunpack.c.l.b16 %v573
  %v645 = vunpack.c.l.b16 %v574
  %v646 = vunpack.c.l.b16 %v575
  %v647 = vunpack.c.l.b16 %v576
  %v648 = vunpack.c.l.b16 %v577
  %v649 = vunpack.c.l.b16 %v578
  %v650 = vunpack.c.l.b16 %v579
  %v651 = vunpack.c.l.b16 %v580
  %v652 = vunpack.c.l.b16 %v581
  %v653 = vunpack.c.l.b16 %v582
  %v654 = vunpack.c.l.b16 %v583
  %v655 = vunpack.c.l.b16 %v584
  %v656 = vunpack.c.l.b16 %v585
  %v657 = vunpack.c.l.b16 %v586
  %v658 = vunpack.c.l.b16 %v587
  %v659 = vunpack.c.l.b16 %v588
  %v660 = vunpack.c.l.b16 %v589
  %v661 = vunpack.c.l.b16 %v590
  %v662 = vunpack.c.l.b16 %v591
  %v663 = vunpack.c.l.b16 %v592
  %v664 = vunpack.c.l.b16 %v593
  %v665 = vunpack.c.l.b16 %v594
  %v666 = vunpack.c.l.b16 %v595
  %v667 = vunpack.c.l.b16 %v596
  %v668 = vunpack.c.l.b16 %v597
  %v669 = vpack.c.b16 %v638, %v637
  %v670 = vpack.c.b16 %v640, %v639
  %v671 = vpack.c.b16 %v642, %v641
  %v672 = vpack.c.b16 %v644, %v643
  %v673 = vpack.c.b16 %v646, %v645
  %v674 = vpack.c.b16 %v648, %v647
  %v675 = vpack.c.b16 %v650, %v649
  %v676 = vpack.c.b16 %v652, %v651
  %v677 = vpack.c.b16 %v654, %v653
  %v678 = vpack.c.b16 %v656, %v655
  %v679 = vpack.c.b16 %v658, %v657
  %v680 = vpack.c.b16 %v660, %v659
  %v681 = vpack.c.b16 %v662, %v661
  %v682 = vpack.c.b16 %v664, %v663
  %v683 = vpack.c.b16 %v666, %v665
  %v684 = vpack.c.b16 %v668, %v667
  %701 = vmatprep.subr.bf16.mxu0 0
  %702 = vmatpush1.bf16.msra.mxu0 %v669
  %703 = vmatprep.subr.bf16.mxu0 0
  %704 = vmatpush1.bf16.msra.mxu0 %v670
  %705 = vmatprep.subr.bf16.mxu0 0
  %706 = vmatpush1.bf16.msra.mxu0 %v671
  %707 = vmatprep.subr.bf16.mxu0 0
  %708 = vmatpush1.bf16.msra.mxu0 %v672
  %709 = vmatprep.subr.bf16.mxu0 0
  %710 = vmatpush1.bf16.msra.mxu0 %v673
  %711 = vmatprep.subr.bf16.mxu0 0
  %712 = vmatpush1.bf16.msra.mxu0 %v674
  %713 = vmatprep.subr.bf16.mxu0 0
  %714 = vmatpush1.bf16.msra.mxu0 %v675
  %715 = vmatprep.subr.bf16.mxu0 0
  %716 = vmatpush1.bf16.msra.mxu0 %v676
  %717 = vmatprep.subr.bf16.mxu0 0
  %718 = vmatpush1.bf16.msra.mxu0 %v677
  %719 = vmatprep.subr.bf16.mxu0 0
  %720 = vmatpush1.bf16.msra.mxu0 %v678
  %721 = vmatprep.subr.bf16.mxu0 0
  %722 = vmatpush1.bf16.msra.mxu0 %v679
  %723 = vmatprep.subr.bf16.mxu0 0
  %724 = vmatpush1.bf16.msra.mxu0 %v680
  %725 = vmatprep.subr.bf16.mxu0 0
  %726 = vmatpush1.bf16.msra.mxu0 %v681
  %727 = vmatprep.subr.bf16.mxu0 0
  %728 = vmatpush1.bf16.msra.mxu0 %v682
  %729 = vmatprep.subr.bf16.mxu0 0
  %730 = vmatpush1.bf16.msra.mxu0 %v683
  %731 = vmatprep.subr.bf16.mxu0 0
  %732 = vmatpush1.bf16.msra.mxu0 %v684
  %733 = vmatprep.mubr.bf16.mxu0 %v565
  %734 = vmatmul.mubr.bf16.gmra.mrb[0].mxu0 %v564
  %v735 = vpop.f32.mrb[0].mxu0
  %v736 = vadd.f32 %v603, %v735
  %v737 = vpop.f32.mrb[0].mxu0
  %v738 = vpop.f32.mrb[0].mxu0
  %v739 = vpop.f32.mrb[0].mxu0
  %740 = vdwg.mxu0
  %v741 = vmax.f32 %v736, 0.0
  %v742 = vpack.c.bf16 %v741, %v741
  %v743 = vld [vmem:[%s25] sm:$0xff]
  %v744 = vld [vmem:[%s25 + $0x8] sm:$0xff]
  %v745 = vld [vmem:[%s25 + $0x10] sm:$0xff]
  %v746 = vld [vmem:[%s25 + $0x18] sm:$0xff]
  %v747 = vld [vmem:[%s25 + $0x20] sm:$0xff]
  %v748 = vld [vmem:[%s25 + $0x28] sm:$0xff]
  %v749 = vld [vmem:[%s25 + $0x30] sm:$0xff]
  %v750 = vld [vmem:[%s25 + $0x38] sm:$0xff]
  %v751 = vld [vmem:[%s25 + $0x40] sm:$0xff]
  %v752 = vld [vmem:[%s25 + $0x48] sm:$0xff]
  %v753 = vld [vmem:[%s25 + $0x50] sm:$0xff]
  %v754 = vld [vmem:[%s25 + $0x58] sm:$0xff]
  %v755 = vld [vmem:[%s25 + $0x60] sm:$0xff]
  %v756 = vld [vmem:[%s25 + $0x68] sm:$0xff]
  %v757 = vld [vmem:[%s25 + $0x70] sm:$0xff]
  %v758 = vld [vmem:[%s25 + $0x78] sm:$0xff]
  %v759 = vld [vmem:[%s25 + $0x80] sm:$0xff]
  %v760 = vld [vmem:[%s25 + $0x88] sm:$0xff]
  %v761 = vld [vmem:[%s25 + $0x90] sm:$0xff]
  %v762 = vld [vmem:[%s25 + $0x98] sm:$0xff]
  %v763 = vld [vmem:[%s25 + $0xa0] sm:$0xff]
  %v764 = vld [vmem:[%s25 + $0xa8] sm:$0xff]
  %v765 = vld [vmem:[%s25 + $0xb0] sm:$0xff]
  %v766 = vld [vmem:[%s25 + $0xb8] sm:$0xff]
  %v767 = vld [vmem:[%s25 + $0xc0] sm:$0xff]
  %v768 = vld [vmem:[%s25 + $0xc8] sm:$0xff]
  %v769 = vld [vmem:[%s25 + $0xd0] sm:$0xff]
  %v770 = vld [vmem:[%s25 + $0xd8] sm:$0xff]
  %v771 = vld [vmem:[%s25 + $0xe0] sm:$0xff]
  %v772 = vld [vmem:[%s25 + $0xe8] sm:$0xff]
  %v773 = vld [vmem:[%s25 + $0xf0] sm:$0xff]
  %v774 = vld [vmem:[%s25 + $0xf8] sm:$0xff]
  %v775 = vld [vmem:[%s17 + $0x4] sm:$0xf]
  %v777 = vlaneseq
  %v778 = vshrl.u32 %v777, 7
  %v779 = vsub.s32 0, %v778
  %v780 = vrot.slane %v775, %v779
  %v781 = vlaneseq
  %v782 = vshrl.u32 %v781, 7
  %v783 = vsub.s32 1, %v782
  %v784 = vrot.slane %v775, %v783
  %v785 = vlaneseq
  %v786 = vshrl.u32 %v785, 7
  %v787 = vsub.s32 2, %v786
  %v788 = vrot.slane %v775, %v787
  %v789 = vlaneseq
  %v790 = vshrl.u32 %v789, 7
  %v791 = vsub.s32 3, %v790
  %v792 = vrot.slane %v775, %v791
  %v829 = vunpack.c.l.b16 %v743
  %v830 = vunpack.c.h.b16 %v743
  %v831 = vunpack.c.l.b16 %v744
  %v832 = vunpack.c.h.b16 %v744
  %v833 = vunpack.c.l.b16 %v745
  %v834 = vunpack.c.h.b16 %v745
  %v835 = vunpack.c.l.b16 %v746
  %v836 = vunpack.c.h.b16 %v746
  %v837 = vunpack.c.l.b16 %v747
  %v838 = vunpack.c.h.b16 %v747
  %v839 = vunpack.c.l.b16 %v748
  %v840 = vunpack.c.h.b16 %v748
  %v841 = vunpack.c.l.b16 %v749
  %v842 = vunpack.c.h.b16 %v749
  %v843 = vunpack.c.l.b16 %v750
  %v844 = vunpack.c.h.b16 %v750
  %v845 = vunpack.c.l.b16 %v751
  %v846 = vunpack.c.h.b16 %v751
  %v847 = vunpack.c.l.b16 %v752
  %v848 = vunpack.c.h.b16 %v752
  %v849 = vunpack.c.l.b16 %v753
  %v850 = vunpack.c.h.b16 %v753
  %v851 = vunpack.c.l.b16 %v754
  %v852 = vunpack.c.h.b16 %v754
  %v853 = vunpack.c.l.b16 %v755
  %v854 = vunpack.c.h.b16 %v755
  %v855 = vunpack.c.l.b16 %v756
  %v856 = vunpack.c.h.b16 %v756
  %v857 = vunpack.c.l.b16 %v757
  %v858 = vunpack.c.h.b16 %v757
  %v859 = vunpack.c.l.b16 %v758
  %v860 = vunpack.c.h.b16 %v758
  %v861 = vunpack.c.l.b16 %v759
  %v862 = vunpack.c.h.b16 %v759
  %v863 = vunpack.c.l.b16 %v760
  %v864 = vunpack.c.h.b16 %v760
  %v865 = vunpack.c.l.b16 %v761
  %v866 = vunpack.c.h.b16 %v761
  %v867 = vunpack.c.l.b16 %v762
  %v868 = vunpack.c.h.b16 %v762
  %v869 = vunpack.c.l.b16 %v763
  %v870 = vunpack.c.h.b16 %v763
  %v871 = vunpack.c.l.b16 %v764
  %v872 = vunpack.c.h.b16 %v764
  %v873 = vunpack.c.l.b16 %v765
  %v874 = vunpack.c.h.b16 %v765
  %v875 = vunpack.c.l.b16 %v766
  %v876 = vunpack.c.h.b16 %v766
  %v877 = vunpack.c.l.b16 %v767
  %v878 = vunpack.c.h.b16 %v767
  %v879 = vunpack.c.l.b16 %v768
  %v880 = vunpack.c.h.b16 %v768
  %v881 = vunpack.c.l.b16 %v769
  %v882 = vunpack.c.h.b16 %v769
  %v883 = vunpack.c.l.b16 %v770
  %v884 = vunpack.c.h.b16 %v770
  %v885 = vunpack.c.l.b16 %v771
  %v886 = vunpack.c.h.b16 %v771
  %v887 = vunpack.c.l.b16 %v772
  %v888 = vunpack.c.h.b16 %v772
  %v889 = vunpack.c.l.b16 %v773
  %v890 = vunpack.c.h.b16 %v773
  %v891 = vunpack.c.l.b16 %v774
  %v892 = vunpack.c.h.b16 %v774
  %v893 = vpack.c.b16 %v833, %v829
  %v894 = vpack.c.b16 %v834, %v830
  %v895 = vpack.c.b16 %v835, %v831
  %v896 = vpack.c.b16 %v836, %v832
  %v897 = vpack.c.b16 %v841, %v837
  %v898 = vpack.c.b16 %v842, %v838
  %v899 = vpack.c.b16 %v843, %v839
  %v900 = vpack.c.b16 %v844, %v840
  %v901 = vpack.c.b16 %v849, %v845
  %v902 = vpack.c.b16 %v850, %v846
  %v903 = vpack.c.b16 %v851, %v847
  %v904 = vpack.c.b16 %v852, %v848
  %v905 = vpack.c.b16 %v857, %v853
  %v906 = vpack.c.b16 %v858, %v854
  %v907 = vpack.c.b16 %v859, %v855
  %v908 = vpack.c.b16 %v860, %v856
  %v909 = vpack.c.b16 %v865, %v861
  %v910 = vpack.c.b16 %v866, %v862
  %v911 = vpack.c.b16 %v867, %v863
  %v912 = vpack.c.b16 %v868, %v864
  %v913 = vpack.c.b16 %v873, %v869
  %v914 = vpack.c.b16 %v874, %v870
  %v915 = vpack.c.b16 %v875, %v871
  %v916 = vpack.c.b16 %v876, %v872
  %v917 = vpack.c.b16 %v881, %v877
  %v918 = vpack.c.b16 %v882, %v878
  %v919 = vpack.c.b16 %v883, %v879
  %v920 = vpack.c.b16 %v884, %v880
  %v921 = vpack.c.b16 %v889, %v885
  %v922 = vpack.c.b16 %v890, %v886
  %v923 = vpack.c.b16 %v891, %v887
  %v924 = vpack.c.b16 %v892, %v888
  %957 = vmatprep.subr.bf16.mxu0 %v894
  %958 = vmatpush1.bf16.msra.mxu0 %v893
  %959 = vmatprep.subr.bf16.mxu0 %v898
  %960 = vmatpush1.bf16.msra.mxu0 %v897
  %961 = vmatprep.subr.bf16.mxu0 %v902
  %962 = vmatpush1.bf16.msra.mxu0 %v901
  %963 = vmatprep.subr.bf16.mxu0 %v906
  %964 = vmatpush1.bf16.msra.mxu0 %v905
  %965 = vmatprep.subr.bf16.mxu0 %v910
  %966 = vmatpush1.bf16.msra.mxu0 %v909
  %967 = vmatprep.subr.bf16.mxu0 %v914
  %968 = vmatpush1.bf16.msra.mxu0 %v913
  %969 = vmatprep.subr.bf16.mxu0 %v918
  %970 = vmatpush1.bf16.msra.mxu0 %v917
  %971 = vmatprep.subr.bf16.mxu0 %v922
  %972 = vmatpush1.bf16.msra.mxu0 %v921
  %973 = vmatprep.subr.bf16.mxu0 0
  %974 = vmatpush1.bf16.msra.mxu0 0
  %975 = vmatprep.subr.bf16.mxu0 0
  %976 = vmatpush1.bf16.msra.mxu0 0
  %977 = vmatprep.subr.bf16.mxu0 0
  %978 = vmatpush1.bf16.msra.mxu0 0
  %979 = vmatprep.subr.bf16.mxu0 0
  %980 = vmatpush1.bf16.msra.mxu0 0
  %981 = vmatprep.subr.bf16.mxu0 0
  %982 = vmatpush1.bf16.msra.mxu0 0
  %983 = vmatprep.subr.bf16.mxu0 0
  %984 = vmatpush1.bf16.msra.mxu0 0
  %985 = vmatprep.subr.bf16.mxu0 0
  %986 = vmatpush1.bf16.msra.mxu0 0
  %987 = vmatprep.subr.bf16.mxu0 0
  %988 = vmatpush1.bf16.msra.mxu0 0
  %989 = vmatprep.mubr.bf16.mxu0 0
  %990 = vmatmul.mubr.bf16.gmra.mrb[0].mxu0 %v742
  %v991 = vpop.f32.mrb[0].mxu0
  %v992 = vadd.f32 %v780, %v991
  %v993 = vpop.f32.mrb[0].mxu0
  %v994 = vadd.f32 %v784, %v993
  %v995 = vpop.f32.mrb[0].mxu0
  %v996 = vpop.f32.mrb[0].mxu0
  %997 = vdwg.mxu0
  %998 = vmatprep.subr.bf16.mxu0 %v896
  %999 = vmatpush1.bf16.msra.mxu0 %v895
  %1000 = vmatprep.subr.bf16.mxu0 %v900
  %1001 = vmatpush1.bf16.msra.mxu0 %v899
  %1002 = vmatprep.subr.bf16.mxu0 %v904
  %1003 = vmatpush1.bf16.msra.mxu0 %v903
  %1004 = vmatprep.subr.bf16.mxu0 %v908
  %1005 = vmatpush1.bf16.msra.mxu0 %v907
  %1006 = vmatprep.subr.bf16.mxu0 %v912
  %1007 = vmatpush1.bf16.msra.mxu0 %v911
  %1008 = vmatprep.subr.bf16.mxu0 %v916
  %1009 = vmatpush1.bf16.msra.mxu0 %v915
  %1010 = vmatprep.subr.bf16.mxu0 %v920
  %1011 = vmatpush1.bf16.msra.mxu0 %v919
  %1012 = vmatprep.subr.bf16.mxu0 %v924
  %1013 = vmatpush1.bf16.msra.mxu0 %v923
  %1014 = vmatprep.subr.bf16.mxu0 0
  %1015 = vmatpush1.bf16.msra.mxu0 0
  %1016 = vmatprep.subr.bf16.mxu0 0
  %1017 = vmatpush1.bf16.msra.mxu0 0
  %1018 = vmatprep.subr.bf16.mxu0 0
  %1019 = vmatpush1.bf16.msra.mxu0 0
  %1020 = vmatprep.subr.bf16.mxu0 0
  %1021 = vmatpush1.bf16.msra.mxu0 0
  %1022 = vmatprep.subr.bf16.mxu0 0
  %1023 = vmatpush1.bf16.msra.mxu0 0
  %1024 = vmatprep.subr.bf16.mxu0 0
  %1025 = vmatpush1.bf16.msra.mxu0 0
  %1026 = vmatprep.subr.bf16.mxu0 0
  %1027 = vmatpush1.bf16.msra.mxu0 0
  %1028 = vmatprep.subr.bf16.mxu0 0
  %1029 = vmatpush1.bf16.msra.mxu0 0
  %1030 = vmatprep.mubr.bf16.mxu0 0
  %1031 = vmatmul.mubr.bf16.gmra.mrb[0].mxu0 %v742
  %v1032 = vpop.f32.mrb[0].mxu0
  %v1033 = vadd.f32 %v788, %v1032
  %v1034 = vpop.f32.mrb[0].mxu0
  %v1035 = vadd.f32 %v792, %v1034
  %v1036 = vpop.f32.mrb[0].mxu0
  %v1037 = vpop.f32.mrb[0].mxu0
  %1038 = vdwg.mxu0
  %v1039 = vmax.f32 %v992, 0.0
  %v1040 = vmax.f32 %v994, 0.0
  %v1041 = vmax.f32 %v1033, 0.0
  %v1042 = vmax.f32 %v1035, 0.0
  %v1043 = vpack.c.bf16 %v1039, %v1039
  %v1044 = vpack.c.bf16 %v1040, %v1040
  %v1045 = vpack.c.bf16 %v1041, %v1041
  %v1046 = vpack.c.bf16 %v1042, %v1042
  %v1047 = vld [vmem:[%s27] sm:$0xf]
  %v1048 = vld [vmem:[%s27 + $0x4] sm:$0xf]
  %v1049 = vld [vmem:[%s27 + $0x8] sm:$0xf]
  %v1050 = vld [vmem:[%s27 + $0xc] sm:$0xf]
  %v1051 = vld [vmem:[%s27 + $0x10] sm:$0xf]
  %v1052 = vld [vmem:[%s27 + $0x14] sm:$0xf]
  %v1053 = vld [vmem:[%s27 + $0x18] sm:$0xf]
  %v1054 = vld [vmem:[%s27 + $0x1c] sm:$0xf]
  %v1055 = vld [vmem:[%s27 + $0x20] sm:$0xf]
  %v1056 = vld [vmem:[%s27 + $0x24] sm:$0xf]
  %v1057 = vld [vmem:[%s27 + $0x28] sm:$0xf]
  %v1058 = vld [vmem:[%s27 + $0x2c] sm:$0xf]
  %v1059 = vld [vmem:[%s27 + $0x30] sm:$0xf]
  %v1060 = vld [vmem:[%s27 + $0x34] sm:$0xf]
  %v1061 = vld [vmem:[%s27 + $0x38] sm:$0xf]
  %v1062 = vld [vmem:[%s27 + $0x3c] sm:$0xf]
  %v1063 = vld [vmem:[%s27 + $0x40] sm:$0xf]
  %v1064 = vld [vmem:[%s27 + $0x44] sm:$0xf]
  %v1065 = vld [vmem:[%s27 + $0x48] sm:$0xf]
  %v1066 = vld [vmem:[%s27 + $0x4c] sm:$0xf]
  %v1067 = vld [vmem:[%s27 + $0x50] sm:$0xf]
  %v1068 = vld [vmem:[%s27 + $0x54] sm:$0xf]
  %v1069 = vld [vmem:[%s27 + $0x58] sm:$0xf]
  %v1070 = vld [vmem:[%s27 + $0x5c] sm:$0xf]
  %v1071 = vld [vmem:[%s27 + $0x60] sm:$0xf]
  %v1072 = vld [vmem:[%s27 + $0x64] sm:$0xf]
  %v1073 = vld [vmem:[%s27 + $0x68] sm:$0xf]
  %v1074 = vld [vmem:[%s27 + $0x6c] sm:$0xf]
  %v1075 = vld [vmem:[%s27 + $0x70] sm:$0xf]
  %v1076 = vld [vmem:[%s27 + $0x74] sm:$0xf]
  %v1077 = vld [vmem:[%s27 + $0x78] sm:$0xf]
  %v1078 = vld [vmem:[%s27 + $0x7c] sm:$0xf]
  %v1079 = vld [vmem:[%s27 + $0x80] sm:$0xf]
  %v1080 = vld [vmem:[%s27 + $0x84] sm:$0xf]
  %v1081 = vld [vmem:[%s27 + $0x88] sm:$0xf]
  %v1082 = vld [vmem:[%s27 + $0x8c] sm:$0xf]
  %v1083 = vld [vmem:[%s27 + $0x90] sm:$0xf]
  %v1084 = vld [vmem:[%s27 + $0x94] sm:$0xf]
  %v1085 = vld [vmem:[%s27 + $0x98] sm:$0xf]
  %v1086 = vld [vmem:[%s27 + $0x9c] sm:$0xf]
  %v1087 = vld [vmem:[%s27 + $0xa0] sm:$0xf]
  %v1088 = vld [vmem:[%s27 + $0xa4] sm:$0xf]
  %v1089 = vld [vmem:[%s27 + $0xa8] sm:$0xf]
  %v1090 = vld [vmem:[%s27 + $0xac] sm:$0xf]
  %v1091 = vld [vmem:[%s27 + $0xb0] sm:$0xf]
  %v1092 = vld [vmem:[%s27 + $0xb4] sm:$0xf]
  %v1093 = vld [vmem:[%s27 + $0xb8] sm:$0xf]
  %v1094 = vld [vmem:[%s27 + $0xbc] sm:$0xf]
  %v1095 = vld [vmem:[%s27 + $0xc0] sm:$0xf]
  %v1096 = vld [vmem:[%s27 + $0xc4] sm:$0xf]
  %v1097 = vld [vmem:[%s27 + $0xc8] sm:$0xf]
  %v1098 = vld [vmem:[%s27 + $0xcc] sm:$0xf]
  %v1099 = vld [vmem:[%s27 + $0xd0] sm:$0xf]
  %v1100 = vld [vmem:[%s27 + $0xd4] sm:$0xf]
  %v1101 = vld [vmem:[%s27 + $0xd8] sm:$0xf]
  %v1102 = vld [vmem:[%s27 + $0xdc] sm:$0xf]
  %v1103 = vld [vmem:[%s27 + $0xe0] sm:$0xf]
  %v1104 = vld [vmem:[%s27 + $0xe4] sm:$0xf]
  %v1105 = vld [vmem:[%s27 + $0xe8] sm:$0xf]
  %v1106 = vld [vmem:[%s27 + $0xec] sm:$0xf]
  %v1107 = vld [vmem:[%s27 + $0xf0] sm:$0xf]
  %v1108 = vld [vmem:[%s27 + $0xf4] sm:$0xf]
  %v1109 = vld [vmem:[%s27 + $0xf8] sm:$0xf]
  %v1110 = vld [vmem:[%s27 + $0xfc] sm:$0xf]
  %v1111 = vld [vmem:[%s17 + $0x8] sm:$0x1]
  %v1113 = vlaneseq
  %v1114 = vshrl.u32 %v1113, 7
  %v1115 = vsub.s32 0, %v1114
  %v1116 = vrot.slane %v1111, %v1115
  %v1182 = vunpack.c.l.b16 %v1047
  %v1183 = vunpack.c.l.b16 %v1048
  %v1184 = vunpack.c.l.b16 %v1049
  %v1185 = vunpack.c.l.b16 %v1050
  %v1186 = vunpack.c.l.b16 %v1051
  %v1187 = vunpack.c.l.b16 %v1052
  %v1188 = vunpack.c.l.b16 %v1053
  %v1189 = vunpack.c.l.b16 %v1054
  %v1190 = vunpack.c.l.b16 %v1055
  %v1191 = vunpack.c.l.b16 %v1056
  %v1192 = vunpack.c.l.b16 %v1057
  %v1193 = vunpack.c.l.b16 %v1058
  %v1194 = vunpack.c.l.b16 %v1059
  %v1195 = vunpack.c.l.b16 %v1060
  %v1196 = vunpack.c.l.b16 %v1061
  %v1197 = vunpack.c.l.b16 %v1062
  %v1198 = vunpack.c.l.b16 %v1063
  %v1199 = vunpack.c.l.b16 %v1064
  %v1200 = vunpack.c.l.b16 %v1065
  %v1201 = vunpack.c.l.b16 %v1066
  %v1202 = vunpack.c.l.b16 %v1067
  %v1203 = vunpack.c.l.b16 %v1068
  %v1204 = vunpack.c.l.b16 %v1069
  %v1205 = vunpack.c.l.b16 %v1070
  %v1206 = vunpack.c.l.b16 %v1071
  %v1207 = vunpack.c.l.b16 %v1072
  %v1208 = vunpack.c.l.b16 %v1073
  %v1209 = vunpack.c.l.b16 %v1074
  %v1210 = vunpack.c.l.b16 %v1075
  %v1211 = vunpack.c.l.b16 %v1076
  %v1212 = vunpack.c.l.b16 %v1077
  %v1213 = vunpack.c.l.b16 %v1078
  %v1214 = vunpack.c.l.b16 %v1079
  %v1215 = vunpack.c.l.b16 %v1080
  %v1216 = vunpack.c.l.b16 %v1081
  %v1217 = vunpack.c.l.b16 %v1082
  %v1218 = vunpack.c.l.b16 %v1083
  %v1219 = vunpack.c.l.b16 %v1084
  %v1220 = vunpack.c.l.b16 %v1085
  %v1221 = vunpack.c.l.b16 %v1086
  %v1222 = vunpack.c.l.b16 %v1087
  %v1223 = vunpack.c.l.b16 %v1088
  %v1224 = vunpack.c.l.b16 %v1089
  %v1225 = vunpack.c.l.b16 %v1090
  %v1226 = vunpack.c.l.b16 %v1091
  %v1227 = vunpack.c.l.b16 %v1092
  %v1228 = vunpack.c.l.b16 %v1093
  %v1229 = vunpack.c.l.b16 %v1094
  %v1230 = vunpack.c.l.b16 %v1095
  %v1231 = vunpack.c.l.b16 %v1096
  %v1232 = vunpack.c.l.b16 %v1097
  %v1233 = vunpack.c.l.b16 %v1098
  %v1234 = vunpack.c.l.b16 %v1099
  %v1235 = vunpack.c.l.b16 %v1100
  %v1236 = vunpack.c.l.b16 %v1101
  %v1237 = vunpack.c.l.b16 %v1102
  %v1238 = vunpack.c.l.b16 %v1103
  %v1239 = vunpack.c.l.b16 %v1104
  %v1240 = vunpack.c.l.b16 %v1105
  %v1241 = vunpack.c.l.b16 %v1106
  %v1242 = vunpack.c.l.b16 %v1107
  %v1243 = vunpack.c.l.b16 %v1108
  %v1244 = vunpack.c.l.b16 %v1109
  %v1245 = vunpack.c.l.b16 %v1110
  %v1246 = vpack.c.b16 %v1183, %v1182
  %v1247 = vpack.c.b16 %v1185, %v1184
  %v1248 = vpack.c.b16 %v1187, %v1186
  %v1249 = vpack.c.b16 %v1189, %v1188
  %v1250 = vpack.c.b16 %v1191, %v1190
  %v1251 = vpack.c.b16 %v1193, %v1192
  %v1252 = vpack.c.b16 %v1195, %v1194
  %v1253 = vpack.c.b16 %v1197, %v1196
  %v1254 = vpack.c.b16 %v1199, %v1198
  %v1255 = vpack.c.b16 %v1201, %v1200
  %v1256 = vpack.c.b16 %v1203, %v1202
  %v1257 = vpack.c.b16 %v1205, %v1204
  %v1258 = vpack.c.b16 %v1207, %v1206
  %v1259 = vpack.c.b16 %v1209, %v1208
  %v1260 = vpack.c.b16 %v1211, %v1210
  %v1261 = vpack.c.b16 %v1213, %v1212
  %v1262 = vpack.c.b16 %v1215, %v1214
  %v1263 = vpack.c.b16 %v1217, %v1216
  %v1264 = vpack.c.b16 %v1219, %v1218
  %v1265 = vpack.c.b16 %v1221, %v1220
  %v1266 = vpack.c.b16 %v1223, %v1222
  %v1267 = vpack.c.b16 %v1225, %v1224
  %v1268 = vpack.c.b16 %v1227, %v1226
  %v1269 = vpack.c.b16 %v1229, %v1228
  %v1270 = vpack.c.b16 %v1231, %v1230
  %v1271 = vpack.c.b16 %v1233, %v1232
  %v1272 = vpack.c.b16 %v1235, %v1234
  %v1273 = vpack.c.b16 %v1237, %v1236
  %v1274 = vpack.c.b16 %v1239, %v1238
  %v1275 = vpack.c.b16 %v1241, %v1240
  %v1276 = vpack.c.b16 %v1243, %v1242
  %v1277 = vpack.c.b16 %v1245, %v1244
  %1310 = vmatprep.subr.bf16.mxu0 0
  %1311 = vmatpush1.bf16.msra.mxu0 %v1246
  %1312 = vmatprep.subr.bf16.mxu0 0
  %1313 = vmatpush1.bf16.msra.mxu0 %v1247
  %1314 = vmatprep.subr.bf16.mxu0 0
  %1315 = vmatpush1.bf16.msra.mxu0 %v1248
  %1316 = vmatprep.subr.bf16.mxu0 0
  %1317 = vmatpush1.bf16.msra.mxu0 %v1249
  %1318 = vmatprep.subr.bf16.mxu0 0
  %1319 = vmatpush1.bf16.msra.mxu0 %v1250
  %1320 = vmatprep.subr.bf16.mxu0 0
  %1321 = vmatpush1.bf16.msra.mxu0 %v1251
  %1322 = vmatprep.subr.bf16.mxu0 0
  %1323 = vmatpush1.bf16.msra.mxu0 %v1252
  %1324 = vmatprep.subr.bf16.mxu0 0
  %1325 = vmatpush1.bf16.msra.mxu0 %v1253
  %1326 = vmatprep.subr.bf16.mxu0 0
  %1327 = vmatpush1.bf16.msra.mxu0 %v1254
  %1328 = vmatprep.subr.bf16.mxu0 0
  %1329 = vmatpush1.bf16.msra.mxu0 %v1255
  %1330 = vmatprep.subr.bf16.mxu0 0
  %1331 = vmatpush1.bf16.msra.mxu0 %v1256
  %1332 = vmatprep.subr.bf16.mxu0 0
  %1333 = vmatpush1.bf16.msra.mxu0 %v1257
  %1334 = vmatprep.subr.bf16.mxu0 0
  %1335 = vmatpush1.bf16.msra.mxu0 %v1258
  %1336 = vmatprep.subr.bf16.mxu0 0
  %1337 = vmatpush1.bf16.msra.mxu0 %v1259
  %1338 = vmatprep.subr.bf16.mxu0 0
  %1339 = vmatpush1.bf16.msra.mxu0 %v1260
  %1340 = vmatprep.subr.bf16.mxu0 0
  %1341 = vmatpush1.bf16.msra.mxu0 %v1261
  %1342 = vmatprep.mubr.bf16.mxu0 %v1044
  %1343 = vmatmul.mubr.bf16.gmra.mrb[0].mxu0 %v1043
  %v1344 = vpop.f32.mrb[0].mxu0
  %v1345 = vadd.f32 %v1116, %v1344
  %v1346 = vpop.f32.mrb[0].mxu0
  %v1347 = vpop.f32.mrb[0].mxu0
  %v1348 = vpop.f32.mrb[0].mxu0
  %1349 = vdwg.mxu0
  %1350 = vmatprep.subr.bf16.mxu0 0
  %1351 = vmatpush1.bf16.msra.mxu0 %v1262
  %1352 = vmatprep.subr.bf16.mxu0 0
  %1353 = vmatpush1.bf16.msra.mxu0 %v1263
  %1354 = vmatprep.subr.bf16.mxu0 0
  %1355 = vmatpush1.bf16.msra.mxu0 %v1264
  %1356 = vmatprep.subr.bf16.mxu0 0
  %1357 = vmatpush1.bf16.msra.mxu0 %v1265
  %1358 = vmatprep.subr.bf16.mxu0 0
  %1359 = vmatpush1.bf16.msra.mxu0 %v1266
  %1360 = vmatprep.subr.bf16.mxu0 0
  %1361 = vmatpush1.bf16.msra.mxu0 %v1267
  %1362 = vmatprep.subr.bf16.mxu0 0
  %1363 = vmatpush1.bf16.msra.mxu0 %v1268
  %1364 = vmatprep.subr.bf16.mxu0 0
  %1365 = vmatpush1.bf16.msra.mxu0 %v1269
  %1366 = vmatprep.subr.bf16.mxu0 0
  %1367 = vmatpush1.bf16.msra.mxu0 %v1270
  %1368 = vmatprep.subr.bf16.mxu0 0
  %1369 = vmatpush1.bf16.msra.mxu0 %v1271
  %1370 = vmatprep.subr.bf16.mxu0 0
  %1371 = vmatpush1.bf16.msra.mxu0 %v1272
  %1372 = vmatprep.subr.bf16.mxu0 0
  %1373 = vmatpush1.bf16.msra.mxu0 %v1273
  %1374 = vmatprep.subr.bf16.mxu0 0
  %1375 = vmatpush1.bf16.msra.mxu0 %v1274
  %1376 = vmatprep.subr.bf16.mxu0 0
  %1377 = vmatpush1.bf16.msra.mxu0 %v1275
  %1378 = vmatprep.subr.bf16.mxu0 0
  %1379 = vmatpush1.bf16.msra.mxu0 %v1276
  %1380 = vmatprep.subr.bf16.mxu0 0
  %1381 = vmatpush1.bf16.msra.mxu0 %v1277
  %1382 = vmatprep.mubr.bf16.mxu0 %v1046
  %1383 = vmatmul.mubr.bf16.gmra.mrb[0].mxu0 %v1045
  %v1384 = vpop.f32.mrb[0].mxu0
  %v1385 = vadd.f32 %v1345, %v1384
  %v1386 = vpop.f32.mrb[0].mxu0
  %v1387 = vpop.f32.mrb[0].mxu0
  %v1388 = vpop.f32.mrb[0].mxu0
  %1389 = vdwg.mxu0
  %v1390 = vsub.f32 0.0, %v1385
  %v1391 = vmul.f32 %v1390, 1.442695
  %v1392 = vpow.pop %v1391
  %v1393 = vadd.f32 %v1392, 1.0
  %v1394 = vrcp.pop %v1393
  %v1395 = vmax.f32 %v1394, 0.01
  %v1396 = vmin.f32 %v1395, 0.99
  %vm1397 = vcmask 523264
  %v1399 = vsel %vm1397, %v1396, 0
  %1401 = vmatprep.subr.mxu0 0.0
  %1402 = vmatpush1.msra.mxu0 %v174
  %1403 = vmatprep.subr.mxu0 0.0
  %1404 = vmatpush1.msra.mxu0 %v175
  %1405 = vmatprep.subr.mxu0 0.0
  %1406 = vmatpush1.msra.mxu0 %v176
  %1407 = vmatprep.subr.mxu0 0.0
  %1408 = vmatpush1.msra.mxu0 %v177
  %1409 = vmatprep.subr.mxu0 0.0
  %1410 = vmatpush1.msra.mxu0 %v178
  %1411 = vmatprep.subr.mxu0 0.0
  %1412 = vmatpush1.msra.mxu0 %v179
  %1413 = vmatprep.subr.mxu0 0.0
  %1414 = vmatpush1.msra.mxu0 %v180
  %1415 = vmatprep.subr.mxu0 0.0
  %1416 = vmatpush1.msra.mxu0 %v181
  %1417 = vmatprep.subr.mxu0 0.0
  %1418 = vmatpush1.msra.mxu0 0.0
  %1419 = vmatprep.subr.mxu0 0.0
  %1420 = vmatpush1.msra.mxu0 0.0
  %1421 = vmatprep.subr.mxu0 0.0
  %1422 = vmatpush1.msra.mxu0 0.0
  %1423 = vmatprep.subr.mxu0 0.0
  %1424 = vmatpush1.msra.mxu0 0.0
  %1425 = vmatprep.subr.mxu0 0.0
  %1426 = vmatpush1.msra.mxu0 0.0
  %1427 = vmatprep.subr.mxu0 0.0
  %1428 = vmatpush1.msra.mxu0 0.0
  %1429 = vmatprep.subr.mxu0 0.0
  %1430 = vmatpush1.msra.mxu0 0.0
  %1431 = vmatprep.subr.mxu0 0.0
  %1432 = vmatpush1.msra.mxu0 0.0
  %1433 = vmatprep.subr.mxu0 0.0
  %1434 = vmatpush1.msra.mxu0 0.0
  %1435 = vmatprep.subr.mxu0 0.0
  %1436 = vmatpush1.msra.mxu0 0.0
  %1437 = vmatprep.subr.mxu0 0.0
  %1438 = vmatpush1.msra.mxu0 0.0
  %1439 = vmatprep.subr.mxu0 0.0
  %1440 = vmatpush1.msra.mxu0 0.0
  %1441 = vmatprep.subr.mxu0 0.0
  %1442 = vmatpush1.msra.mxu0 0.0
  %1443 = vmatprep.subr.mxu0 0.0
  %1444 = vmatpush1.msra.mxu0 0.0
  %1445 = vmatprep.subr.mxu0 0.0
  %1446 = vmatpush1.msra.mxu0 0.0
  %1447 = vmatprep.subr.mxu0 0.0
  %1448 = vmatpush1.msra.mxu0 0.0
  %1449 = vmatprep.subr.mxu0 0.0
  %1450 = vmatpush1.msra.mxu0 0.0
  %1451 = vmatprep.subr.mxu0 0.0
  %1452 = vmatpush1.msra.mxu0 0.0
  %1453 = vmatprep.subr.mxu0 0.0
  %1454 = vmatpush1.msra.mxu0 0.0
  %1455 = vmatprep.subr.mxu0 0.0
  %1456 = vmatpush1.msra.mxu0 0.0
  %1457 = vmatprep.subr.mxu0 0.0
  %1458 = vmatpush1.msra.mxu0 0.0
  %1459 = vmatprep.subr.mxu0 0.0
  %1460 = vmatpush1.msra.mxu0 0.0
  %1461 = vmatprep.subr.mxu0 0.0
  %1462 = vmatpush1.msra.mxu0 0.0
  %1463 = vmatprep.subr.mxu0 0.0
  %1464 = vmatpush1.msra.mxu0 0.0
  %1465 = vmatprep.mubr.f32.mxu0 0.0
  %1466 = vmatmul.mubr.f32.gmra.mrb[0].mxu0 %v1399
  %v1467 = vpop.f32.mrb[0].mxu0
  %v1468 = vadd.f32 0.0, %v1467
  %v1469 = vpop.f32.mrb[0].mxu0
  %1470 = vdwg.mxu0
  %1471 = vmatprep.subr.mxu0 0.0
  %1472 = vmatpush1.msra.mxu0 %v199
  %1473 = vmatprep.subr.mxu0 0.0
  %1474 = vmatpush1.msra.mxu0 %v200
  %1475 = vmatprep.subr.mxu0 0.0
  %1476 = vmatpush1.msra.mxu0 %v201
  %1477 = vmatprep.subr.mxu0 0.0
  %1478 = vmatpush1.msra.mxu0 %v202
  %1479 = vmatprep.subr.mxu0 0.0
  %1480 = vmatpush1.msra.mxu0 %v203
  %1481 = vmatprep.subr.mxu0 0.0
  %1482 = vmatpush1.msra.mxu0 %v204
  %1483 = vmatprep.subr.mxu0 0.0
  %1484 = vmatpush1.msra.mxu0 %v205
  %1485 = vmatprep.subr.mxu0 0.0
  %1486 = vmatpush1.msra.mxu0 %v206
  %1487 = vmatprep.subr.mxu0 0.0
  %1488 = vmatpush1.msra.mxu0 0.0
  %1489 = vmatprep.subr.mxu0 0.0
  %1490 = vmatpush1.msra.mxu0 0.0
  %1491 = vmatprep.subr.mxu0 0.0
  %1492 = vmatpush1.msra.mxu0 0.0
  %1493 = vmatprep.subr.mxu0 0.0
  %1494 = vmatpush1.msra.mxu0 0.0
  %1495 = vmatprep.subr.mxu0 0.0
  %1496 = vmatpush1.msra.mxu0 0.0
  %1497 = vmatprep.subr.mxu0 0.0
  %1498 = vmatpush1.msra.mxu0 0.0
  %1499 = vmatprep.subr.mxu0 0.0
  %1500 = vmatpush1.msra.mxu0 0.0
  %1501 = vmatprep.subr.mxu0 0.0
  %1502 = vmatpush1.msra.mxu0 0.0
  %1503 = vmatprep.subr.mxu0 0.0
  %1504 = vmatpush1.msra.mxu0 0.0
  %1505 = vmatprep.subr.mxu0 0.0
  %1506 = vmatpush1.msra.mxu0 0.0
  %1507 = vmatprep.subr.mxu0 0.0
  %1508 = vmatpush1.msra.mxu0 0.0
  %1509 = vmatprep.subr.mxu0 0.0
  %1510 = vmatpush1.msra.mxu0 0.0
  %1511 = vmatprep.subr.mxu0 0.0
  %1512 = vmatpush1.msra.mxu0 0.0
  %1513 = vmatprep.subr.mxu0 0.0
  %1514 = vmatpush1.msra.mxu0 0.0
  %1515 = vmatprep.subr.mxu0 0.0
  %1516 = vmatpush1.msra.mxu0 0.0
  %1517 = vmatprep.subr.mxu0 0.0
  %1518 = vmatpush1.msra.mxu0 0.0
  %1519 = vmatprep.subr.mxu0 0.0
  %1520 = vmatpush1.msra.mxu0 0.0
  %1521 = vmatprep.subr.mxu0 0.0
  %1522 = vmatpush1.msra.mxu0 0.0
  %1523 = vmatprep.subr.mxu0 0.0
  %1524 = vmatpush1.msra.mxu0 0.0
  %1525 = vmatprep.subr.mxu0 0.0
  %1526 = vmatpush1.msra.mxu0 0.0
  %1527 = vmatprep.subr.mxu0 0.0
  %1528 = vmatpush1.msra.mxu0 0.0
  %1529 = vmatprep.subr.mxu0 0.0
  %1530 = vmatpush1.msra.mxu0 0.0
  %1531 = vmatprep.subr.mxu0 0.0
  %1532 = vmatpush1.msra.mxu0 0.0
  %1533 = vmatprep.subr.mxu0 0.0
  %1534 = vmatpush1.msra.mxu0 0.0
  %1535 = vmatprep.mubr.f32.mxu0 0.0
  %1536 = vmatmul.mubr.f32.gmra.mrb[0].mxu0 %v1399
  %v1537 = vpop.f32.mrb[0].mxu0
  %v1538 = vadd.f32 0.0, %v1537
  %v1539 = vpop.f32.mrb[0].mxu0
  %1540 = vdwg.mxu0
  %v1541 = vlog2.pop %v1468
  %v1542 = vmul.f32 %v1541, 0.6931472
  %v1543 = vmul.f32 %v1542, -2.0
  %v1544 = vrsqrt.pop %v1543
  %v1545 = vmul.f32 %v1543, %v1544
  %vm1546 = vcmp.eq.f32.partialorder %v1543, inf
  %v1547 = vsel %vm1546, %v1543, %v1545
  %vm1548 = vcmp.eq.f32.partialorder %v1543, 0.0
  %v1549 = vand.u32 %v1543, 2147483648
  %v1550 = vsel %vm1548, %v1549, %v1547
  %v1551 = vmul.f32 %v1538, 4.0
  %vm1552 = vcmp.ge.f32.partialorder %v1551, 0.5
  %v1553 = vsel %vm1552, 1, 0
  %v1554 = vcvt.s32.f32 %v1553
  %vm1555 = vcmp.ge.f32.partialorder %v1551, 1.5
  %v1556 = vsel %vm1555, 1, 0
  %v1557 = vcvt.s32.f32 %v1556
  %v1558 = vadd.f32 %v1554, %v1557
  %vm1559 = vcmp.ge.f32.partialorder %v1551, 2.5
  %v1560 = vsel %vm1559, 1, 0
  %v1561 = vcvt.s32.f32 %v1560
  %v1562 = vadd.f32 %v1558, %v1561
  %vm1563 = vcmp.ge.f32.partialorder %v1551, 3.5
  %v1564 = vsel %vm1563, 1, 0
  %v1565 = vcvt.s32.f32 %v1564
  %v1566 = vadd.f32 %v1562, %v1565
  %v1567 = vsub.f32 %v1551, %v1566
  %v1568 = vmul.f32 %v1567, 1.5707964
  %v1569 = vmul.f32 %v1568, %v1568
  %v1570 = vmul.f32 %v1569, 2.4801588e-05
  %v1571 = vadd.f32 %v1570, -0.0013888889
  %v1572 = vmul.f32 %v1569, %v1571
  %v1573 = vadd.f32 %v1572, 0.041666668
  %v1574 = vmul.f32 %v1569, %v1573
  %v1575 = vadd.f32 %v1574, -0.5
  %v1576 = vmul.f32 %v1569, %v1575
  %v1577 = vadd.f32 %v1576, 1.0
  %v1578 = vmul.f32 %v1569, 2.7557319e-06
  %v1579 = vadd.f32 %v1578, -0.0001984127
  %v1580 = vmul.f32 %v1569, %v1579
  %v1581 = vadd.f32 %v1580, 0.008333334
  %v1582 = vmul.f32 %v1569, %v1581
  %v1583 = vadd.f32 %v1582, -0.16666667
  %v1584 = vmul.f32 %v1569, %v1583
  %v1585 = vadd.f32 %v1584, 1.0
  %v1586 = vmul.f32 %v1568, %v1585
  %vm1587 = vcmp.ge.f32.partialorder %v1566, 3.5
  %v1588 = vsub.f32 %v1566, 4.0
  %v1589 = vsel %vm1587, %v1588, %v1566
  %vm1590 = vcmp.eq.f32.partialorder %v1589, 0.0
  %vm1591 = vcmp.eq.f32.partialorder %v1589, 1.0
  %v1592 = vsub.f32 0.0, %v1586
  %vm1593 = vcmp.eq.f32.partialorder %v1589, 2.0
  %v1594 = vsub.f32 0.0, %v1577
  %v1595 = vsel %vm1593, %v1594, %v1586
  %v1596 = vsel %vm1591, %v1592, %v1595
  %v1597 = vsel %vm1590, %v1577, %v1596
  %v1598 = vsel %vm1593, %v1592, %v1594
  %v1599 = vsel %vm1591, %v1577, %v1598
  %v1600 = vsel %vm1590, %v1586, %v1599
  %v1601 = vmul.f32 %v1550, %v1597
  %v1602 = vmul.f32 %v1550, %v1600
  %vm1603 = vcmask 261120
  %v1605 = vsel %vm1603, %v1602, 0
  %1607 = vmatprep.subr.mxu0 0.0
  %1608 = vmatpush1.msra.mxu0 %v235
  %1609 = vmatprep.subr.mxu0 0.0
  %1610 = vmatpush1.msra.mxu0 %v236
  %1611 = vmatprep.subr.mxu0 0.0
  %1612 = vmatpush1.msra.mxu0 %v237
  %1613 = vmatprep.subr.mxu0 0.0
  %1614 = vmatpush1.msra.mxu0 %v238
  %1615 = vmatprep.subr.mxu0 0.0
  %1616 = vmatpush1.msra.mxu0 0.0
  %1617 = vmatprep.subr.mxu0 0.0
  %1618 = vmatpush1.msra.mxu0 0.0
  %1619 = vmatprep.subr.mxu0 0.0
  %1620 = vmatpush1.msra.mxu0 0.0
  %1621 = vmatprep.subr.mxu0 0.0
  %1622 = vmatpush1.msra.mxu0 0.0
  %1623 = vmatprep.subr.mxu0 0.0
  %1624 = vmatpush1.msra.mxu0 0.0
  %1625 = vmatprep.subr.mxu0 0.0
  %1626 = vmatpush1.msra.mxu0 0.0
  %1627 = vmatprep.subr.mxu0 0.0
  %1628 = vmatpush1.msra.mxu0 0.0
  %1629 = vmatprep.subr.mxu0 0.0
  %1630 = vmatpush1.msra.mxu0 0.0
  %1631 = vmatprep.subr.mxu0 0.0
  %1632 = vmatpush1.msra.mxu0 0.0
  %1633 = vmatprep.subr.mxu0 0.0
  %1634 = vmatpush1.msra.mxu0 0.0
  %1635 = vmatprep.subr.mxu0 0.0
  %1636 = vmatpush1.msra.mxu0 0.0
  %1637 = vmatprep.subr.mxu0 0.0
  %1638 = vmatpush1.msra.mxu0 0.0
  %1639 = vmatprep.subr.mxu0 0.0
  %1640 = vmatpush1.msra.mxu0 0.0
  %1641 = vmatprep.subr.mxu0 0.0
  %1642 = vmatpush1.msra.mxu0 0.0
  %1643 = vmatprep.subr.mxu0 0.0
  %1644 = vmatpush1.msra.mxu0 0.0
  %1645 = vmatprep.subr.mxu0 0.0
  %1646 = vmatpush1.msra.mxu0 0.0
  %1647 = vmatprep.subr.mxu0 0.0
  %1648 = vmatpush1.msra.mxu0 0.0
  %1649 = vmatprep.subr.mxu0 0.0
  %1650 = vmatpush1.msra.mxu0 0.0
  %1651 = vmatprep.subr.mxu0 0.0
  %1652 = vmatpush1.msra.mxu0 0.0
  %1653 = vmatprep.subr.mxu0 0.0
  %1654 = vmatpush1.msra.mxu0 0.0
  %1655 = vmatprep.subr.mxu0 0.0
  %1656 = vmatpush1.msra.mxu0 0.0
  %1657 = vmatprep.subr.mxu0 0.0
  %1658 = vmatpush1.msra.mxu0 0.0
  %1659 = vmatprep.subr.mxu0 0.0
  %1660 = vmatpush1.msra.mxu0 0.0
  %1661 = vmatprep.subr.mxu0 0.0
  %1662 = vmatpush1.msra.mxu0 0.0
  %1663 = vmatprep.subr.mxu0 0.0
  %1664 = vmatpush1.msra.mxu0 0.0
  %1665 = vmatprep.subr.mxu0 0.0
  %1666 = vmatpush1.msra.mxu0 0.0
  %1667 = vmatprep.subr.mxu0 0.0
  %1668 = vmatpush1.msra.mxu0 0.0
  %1669 = vmatprep.subr.mxu0 0.0
  %1670 = vmatpush1.msra.mxu0 0.0
  %1671 = vmatprep.mubr.f32.mxu0 0.0
  %1672 = vmatmul.mubr.f32.gmra.mrb[0].mxu0 %v1605
  %v1673 = vpop.f32.mrb[0].mxu0
  %v1674 = vadd.f32 0.0, %v1673
  %v1675 = vpop.f32.mrb[0].mxu0
  %1676 = vdwg.mxu0
  %v1678 = vsel %vm1603, %v1601, 0
  %1680 = vmatprep.subr.mxu0 0.0
  %1681 = vmatpush1.msra.mxu0 %v219
  %1682 = vmatprep.subr.mxu0 0.0
  %1683 = vmatpush1.msra.mxu0 %v220
  %1684 = vmatprep.subr.mxu0 0.0
  %1685 = vmatpush1.msra.mxu0 %v221
  %1686 = vmatprep.subr.mxu0 0.0
  %1687 = vmatpush1.msra.mxu0 %v222
  %1688 = vmatprep.subr.mxu0 0.0
  %1689 = vmatpush1.msra.mxu0 0.0
  %1690 = vmatprep.subr.mxu0 0.0
  %1691 = vmatpush1.msra.mxu0 0.0
  %1692 = vmatprep.subr.mxu0 0.0
  %1693 = vmatpush1.msra.mxu0 0.0
  %1694 = vmatprep.subr.mxu0 0.0
  %1695 = vmatpush1.msra.mxu0 0.0
  %1696 = vmatprep.subr.mxu0 0.0
  %1697 = vmatpush1.msra.mxu0 0.0
  %1698 = vmatprep.subr.mxu0 0.0
  %1699 = vmatpush1.msra.mxu0 0.0
  %1700 = vmatprep.subr.mxu0 0.0
  %1701 = vmatpush1.msra.mxu0 0.0
  %1702 = vmatprep.subr.mxu0 0.0
  %1703 = vmatpush1.msra.mxu0 0.0
  %1704 = vmatprep.subr.mxu0 0.0
  %1705 = vmatpush1.msra.mxu0 0.0
  %1706 = vmatprep.subr.mxu0 0.0
  %1707 = vmatpush1.msra.mxu0 0.0
  %1708 = vmatprep.subr.mxu0 0.0
  %1709 = vmatpush1.msra.mxu0 0.0
  %1710 = vmatprep.subr.mxu0 0.0
  %1711 = vmatpush1.msra.mxu0 0.0
  %1712 = vmatprep.subr.mxu0 0.0
  %1713 = vmatpush1.msra.mxu0 0.0
  %1714 = vmatprep.subr.mxu0 0.0
  %1715 = vmatpush1.msra.mxu0 0.0
  %1716 = vmatprep.subr.mxu0 0.0
  %1717 = vmatpush1.msra.mxu0 0.0
  %1718 = vmatprep.subr.mxu0 0.0
  %1719 = vmatpush1.msra.mxu0 0.0
  %1720 = vmatprep.subr.mxu0 0.0
  %1721 = vmatpush1.msra.mxu0 0.0
  %1722 = vmatprep.subr.mxu0 0.0
  %1723 = vmatpush1.msra.mxu0 0.0
  %1724 = vmatprep.subr.mxu0 0.0
  %1725 = vmatpush1.msra.mxu0 0.0
  %1726 = vmatprep.subr.mxu0 0.0
  %1727 = vmatpush1.msra.mxu0 0.0
  %1728 = vmatprep.subr.mxu0 0.0
  %1729 = vmatpush1.msra.mxu0 0.0
  %1730 = vmatprep.subr.mxu0 0.0
  %1731 = vmatpush1.msra.mxu0 0.0
  %1732 = vmatprep.subr.mxu0 0.0
  %1733 = vmatpush1.msra.mxu0 0.0
  %1734 = vmatprep.subr.mxu0 0.0
  %1735 = vmatpush1.msra.mxu0 0.0
  %1736 = vmatprep.subr.mxu0 0.0
  %1737 = vmatpush1.msra.mxu0 0.0
  %1738 = vmatprep.subr.mxu0 0.0
  %1739 = vmatpush1.msra.mxu0 0.0
  %1740 = vmatprep.subr.mxu0 0.0
  %1741 = vmatpush1.msra.mxu0 0.0
  %1742 = vmatprep.subr.mxu0 0.0
  %1743 = vmatpush1.msra.mxu0 0.0
  %1744 = vmatprep.mubr.f32.mxu0 0.0
  %1745 = vmatmul.mubr.f32.gmra.mrb[0].mxu0 %v1678
  %v1746 = vpop.f32.mrb[0].mxu0
  %v1747 = vadd.f32 %v1674, %v1746
  %v1748 = vpop.f32.mrb[0].mxu0
  %1749 = vdwg.mxu0
  %vm1750 = vcmp.eq.s32.totalorder %v147, %v156
  %vm1751 = vcmp.eq.s32.totalorder %v148, %v156
  %vm1752 = vcmp.eq.s32.totalorder %v149, %v156
  %v1753 = vsel %vm1750, 1, 0
  %v1754 = vsel %vm1751, 1, 0
  %v1755 = vsel %vm1752, 1, 0
  %v1756 = vcvt.s32.f32 %v1753
  %v1757 = vcvt.s32.f32 %v1754
  %v1758 = vcvt.s32.f32 %v1755
  %v1759 = vadd.s32 %v156, 6
  %vm1760 = vcmp.eq.s32.totalorder %v147, %v1759
  %vm1761 = vcmp.eq.s32.totalorder %v148, %v1759
  %vm1762 = vcmp.eq.s32.totalorder %v149, %v1759
  %v1763 = vsel %vm1760, 1, 0
  %v1764 = vsel %vm1761, 1, 0
  %v1765 = vsel %vm1762, 1, 0
  %v1766 = vcvt.s32.f32 %v1763
  %v1767 = vcvt.s32.f32 %v1764
  %v1768 = vcvt.s32.f32 %v1765
  %1770 = vrot.lane.b32.xlu0 %v1747, 112
  %v1771 = vpop.permute.xlu0 %1770
  %v1773 = vsel %vm510, %v1766, 0
  %v1776 = vsel %vm510, %v1767, 0
  %v1779 = vsel %vm510, %v1768, 0
  %vm1781 = vcmask 1045504
  %v1782 = vsel %vm1781, %v1771, 0
  %1784 = vmatprep.subr.mxu0 0.0
  %1785 = vmatpush1.msra.mxu0 %v1782
  %1786 = vmatprep.subr.mxu0 0.0
  %1787 = vmatpush1.msra.mxu0 0.0
  %1788 = vmatprep.subr.mxu0 0.0
  %1789 = vmatpush1.msra.mxu0 0.0
  %1790 = vmatprep.subr.mxu0 0.0
  %1791 = vmatpush1.msra.mxu0 0.0
  %1792 = vmatprep.subr.mxu0 0.0
  %1793 = vmatpush1.msra.mxu0 0.0
  %1794 = vmatprep.subr.mxu0 0.0
  %1795 = vmatpush1.msra.mxu0 0.0
  %1796 = vmatprep.subr.mxu0 0.0
  %1797 = vmatpush1.msra.mxu0 0.0
  %1798 = vmatprep.subr.mxu0 0.0
  %1799 = vmatpush1.msra.mxu0 0.0
  %1800 = vmatprep.subr.mxu0 0.0
  %1801 = vmatpush1.msra.mxu0 0.0
  %1802 = vmatprep.subr.mxu0 0.0
  %1803 = vmatpush1.msra.mxu0 0.0
  %1804 = vmatprep.subr.mxu0 0.0
  %1805 = vmatpush1.msra.mxu0 0.0
  %1806 = vmatprep.subr.mxu0 0.0
  %1807 = vmatpush1.msra.mxu0 0.0
  %1808 = vmatprep.subr.mxu0 0.0
  %1809 = vmatpush1.msra.mxu0 0.0
  %1810 = vmatprep.subr.mxu0 0.0
  %1811 = vmatpush1.msra.mxu0 0.0
  %1812 = vmatprep.subr.mxu0 0.0
  %1813 = vmatpush1.msra.mxu0 0.0
  %1814 = vmatprep.subr.mxu0 0.0
  %1815 = vmatpush1.msra.mxu0 0.0
  %1816 = vmatprep.subr.mxu0 0.0
  %1817 = vmatpush1.msra.mxu0 0.0
  %1818 = vmatprep.subr.mxu0 0.0
  %1819 = vmatpush1.msra.mxu0 0.0
  %1820 = vmatprep.subr.mxu0 0.0
  %1821 = vmatpush1.msra.mxu0 0.0
  %1822 = vmatprep.subr.mxu0 0.0
  %1823 = vmatpush1.msra.mxu0 0.0
  %1824 = vmatprep.subr.mxu0 0.0
  %1825 = vmatpush1.msra.mxu0 0.0
  %1826 = vmatprep.subr.mxu0 0.0
  %1827 = vmatpush1.msra.mxu0 0.0
  %1828 = vmatprep.subr.mxu0 0.0
  %1829 = vmatpush1.msra.mxu0 0.0
  %1830 = vmatprep.subr.mxu0 0.0
  %1831 = vmatpush1.msra.mxu0 0.0
  %1832 = vmatprep.subr.mxu0 0.0
  %1833 = vmatpush1.msra.mxu0 0.0
  %1834 = vmatprep.subr.mxu0 0.0
  %1835 = vmatpush1.msra.mxu0 0.0
  %1836 = vmatprep.subr.mxu0 0.0
  %1837 = vmatpush1.msra.mxu0 0.0
  %1838 = vmatprep.subr.mxu0 0.0
  %1839 = vmatpush1.msra.mxu0 0.0
  %1840 = vmatprep.subr.mxu0 0.0
  %1841 = vmatpush1.msra.mxu0 0.0
  %1842 = vmatprep.subr.mxu0 0.0
  %1843 = vmatpush1.msra.mxu0 0.0
  %1844 = vmatprep.subr.mxu0 0.0
  %1845 = vmatpush1.msra.mxu0 0.0
  %1846 = vmatprep.subr.mxu0 0.0
  %1847 = vmatpush1.msra.mxu0 0.0
  %1848 = vmatprep.mubr.f32.mxu0 0.0
  %1849 = vmatmul.mubr.f32.gmra.mrb[0].mxu0 %v1773
  %v1850 = vpop.f32.mrb[0].mxu0
  %v1851 = vadd.f32 0.0, %v1850
  %v1852 = vpop.f32.mrb[0].mxu0
  %1853 = vmatprep.mubr.f32.mxu0 0.0
  %1854 = vmatmul.mubr.f32.gmra.mrb[0].mxu0 %v1776
  %v1855 = vpop.f32.mrb[0].mxu0
  %v1856 = vadd.f32 0.0, %v1855
  %v1857 = vpop.f32.mrb[0].mxu0
  %1858 = vmatprep.mubr.f32.mxu0 0.0
  %1859 = vmatmul.mubr.f32.gmra.mrb[0].mxu0 %v1779
  %v1860 = vpop.f32.mrb[0].mxu0
  %v1861 = vadd.f32 0.0, %v1860
  %v1862 = vpop.f32.mrb[0].mxu0
  %1863 = vdwg.mxu0
  %v1865 = vsel %vm510, %v1756, 0
  %v1868 = vsel %vm510, %v1757, 0
  %v1871 = vsel %vm510, %v1758, 0
  %v1873 = vsel %vm1781, %v1747, 0
  %1875 = vmatprep.subr.mxu0 0.0
  %1876 = vmatpush1.msra.mxu0 %v1873
  %1877 = vmatprep.subr.mxu0 0.0
  %1878 = vmatpush1.msra.mxu0 0.0
  %1879 = vmatprep.subr.mxu0 0.0
  %1880 = vmatpush1.msra.mxu0 0.0
  %1881 = vmatprep.subr.mxu0 0.0
  %1882 = vmatpush1.msra.mxu0 0.0
  %1883 = vmatprep.subr.mxu0 0.0
  %1884 = vmatpush1.msra.mxu0 0.0
  %1885 = vmatprep.subr.mxu0 0.0
  %1886 = vmatpush1.msra.mxu0 0.0
  %1887 = vmatprep.subr.mxu0 0.0
  %1888 = vmatpush1.msra.mxu0 0.0
  %1889 = vmatprep.subr.mxu0 0.0
  %1890 = vmatpush1.msra.mxu0 0.0
  %1891 = vmatprep.subr.mxu0 0.0
  %1892 = vmatpush1.msra.mxu0 0.0
  %1893 = vmatprep.subr.mxu0 0.0
  %1894 = vmatpush1.msra.mxu0 0.0
  %1895 = vmatprep.subr.mxu0 0.0
  %1896 = vmatpush1.msra.mxu0 0.0
  %1897 = vmatprep.subr.mxu0 0.0
  %1898 = vmatpush1.msra.mxu0 0.0
  %1899 = vmatprep.subr.mxu0 0.0
  %1900 = vmatpush1.msra.mxu0 0.0
  %1901 = vmatprep.subr.mxu0 0.0
  %1902 = vmatpush1.msra.mxu0 0.0
  %1903 = vmatprep.subr.mxu0 0.0
  %1904 = vmatpush1.msra.mxu0 0.0
  %1905 = vmatprep.subr.mxu0 0.0
  %1906 = vmatpush1.msra.mxu0 0.0
  %1907 = vmatprep.subr.mxu0 0.0
  %1908 = vmatpush1.msra.mxu0 0.0
  %1909 = vmatprep.subr.mxu0 0.0
  %1910 = vmatpush1.msra.mxu0 0.0
  %1911 = vmatprep.subr.mxu0 0.0
  %1912 = vmatpush1.msra.mxu0 0.0
  %1913 = vmatprep.subr.mxu0 0.0
  %1914 = vmatpush1.msra.mxu0 0.0
  %1915 = vmatprep.subr.mxu0 0.0
  %1916 = vmatpush1.msra.mxu0 0.0
  %1917 = vmatprep.subr.mxu0 0.0
  %1918 = vmatpush1.msra.mxu0 0.0
  %1919 = vmatprep.subr.mxu0 0.0
  %1920 = vmatpush1.msra.mxu0 0.0
  %1921 = vmatprep.subr.mxu0 0.0
  %1922 = vmatpush1.msra.mxu0 0.0
  %1923 = vmatprep.subr.mxu0 0.0
  %1924 = vmatpush1.msra.mxu0 0.0
  %1925 = vmatprep.subr.mxu0 0.0
  %1926 = vmatpush1.msra.mxu0 0.0
  %1927 = vmatprep.subr.mxu0 0.0
  %1928 = vmatpush1.msra.mxu0 0.0
  %1929 = vmatprep.subr.mxu0 0.0
  %1930 = vmatpush1.msra.mxu0 0.0
  %1931 = vmatprep.subr.mxu0 0.0
  %1932 = vmatpush1.msra.mxu0 0.0
  %1933 = vmatprep.subr.mxu0 0.0
  %1934 = vmatpush1.msra.mxu0 0.0
  %1935 = vmatprep.subr.mxu0 0.0
  %1936 = vmatpush1.msra.mxu0 0.0
  %1937 = vmatprep.subr.mxu0 0.0
  %1938 = vmatpush1.msra.mxu0 0.0
  %1939 = vmatprep.mubr.f32.mxu0 0.0
  %1940 = vmatmul.mubr.f32.gmra.mrb[0].mxu0 %v1865
  %v1941 = vpop.f32.mrb[0].mxu0
  %v1942 = vadd.f32 %v1851, %v1941
  %v1943 = vpop.f32.mrb[0].mxu0
  %1944 = vmatprep.mubr.f32.mxu0 0.0
  %1945 = vmatmul.mubr.f32.gmra.mrb[0].mxu0 %v1868
  %v1946 = vpop.f32.mrb[0].mxu0
  %v1947 = vadd.f32 %v1856, %v1946
  %v1948 = vpop.f32.mrb[0].mxu0
  %1949 = vmatprep.mubr.f32.mxu0 0.0
  %1950 = vmatmul.mubr.f32.gmra.mrb[0].mxu0 %v1871
  %v1951 = vpop.f32.mrb[0].mxu0
  %v1952 = vadd.f32 %v1861, %v1951
  %v1953 = vpop.f32.mrb[0].mxu0
  %1954 = vdwg.mxu0
  %v1955 = vadd.s32 %v156, 12
  %vm1956 = vcmp.eq.s32.totalorder %v147, %v1955
  %vm1957 = vcmp.eq.s32.totalorder %v148, %v1955
  %vm1958 = vcmp.eq.s32.totalorder %v149, %v1955
  %v1959 = vsel %vm1956, 1, 0
  %v1960 = vsel %vm1957, 1, 0
  %v1961 = vsel %vm1958, 1, 0
  %v1962 = vcvt.s32.f32 %v1959
  %v1963 = vcvt.s32.f32 %v1960
  %v1964 = vcvt.s32.f32 %v1961
  %1965 = vrot.lane.b32.xlu0 %v1747, 96
  %v1966 = vpop.permute.xlu0 %1965
  %v1968 = vsel %vm510, %v1962, 0
  %v1971 = vsel %vm510, %v1963, 0
  %v1974 = vsel %vm510, %v1964, 0
  %v1976 = vsel %vm1781, %v1966, 0
  %1978 = vmatprep.subr.mxu0 0.0
  %1979 = vmatpush1.msra.mxu0 %v1976
  %1980 = vmatprep.subr.mxu0 0.0
  %1981 = vmatpush1.msra.mxu0 0.0
  %1982 = vmatprep.subr.mxu0 0.0
  %1983 = vmatpush1.msra.mxu0 0.0
  %1984 = vmatprep.subr.mxu0 0.0
  %1985 = vmatpush1.msra.mxu0 0.0
  %1986 = vmatprep.subr.mxu0 0.0
  %1987 = vmatpush1.msra.mxu0 0.0
  %1988 = vmatprep.subr.mxu0 0.0
  %1989 = vmatpush1.msra.mxu0 0.0
  %1990 = vmatprep.subr.mxu0 0.0
  %1991 = vmatpush1.msra.mxu0 0.0
  %1992 = vmatprep.subr.mxu0 0.0
  %1993 = vmatpush1.msra.mxu0 0.0
  %1994 = vmatprep.subr.mxu0 0.0
  %1995 = vmatpush1.msra.mxu0 0.0
  %1996 = vmatprep.subr.mxu0 0.0
  %1997 = vmatpush1.msra.mxu0 0.0
  %1998 = vmatprep.subr.mxu0 0.0
  %1999 = vmatpush1.msra.mxu0 0.0
  %2000 = vmatprep.subr.mxu0 0.0
  %2001 = vmatpush1.msra.mxu0 0.0
  %2002 = vmatprep.subr.mxu0 0.0
  %2003 = vmatpush1.msra.mxu0 0.0
  %2004 = vmatprep.subr.mxu0 0.0
  %2005 = vmatpush1.msra.mxu0 0.0
  %2006 = vmatprep.subr.mxu0 0.0
  %2007 = vmatpush1.msra.mxu0 0.0
  %2008 = vmatprep.subr.mxu0 0.0
  %2009 = vmatpush1.msra.mxu0 0.0
  %2010 = vmatprep.subr.mxu0 0.0
  %2011 = vmatpush1.msra.mxu0 0.0
  %2012 = vmatprep.subr.mxu0 0.0
  %2013 = vmatpush1.msra.mxu0 0.0
  %2014 = vmatprep.subr.mxu0 0.0
  %2015 = vmatpush1.msra.mxu0 0.0
  %2016 = vmatprep.subr.mxu0 0.0
  %2017 = vmatpush1.msra.mxu0 0.0
  %2018 = vmatprep.subr.mxu0 0.0
  %2019 = vmatpush1.msra.mxu0 0.0
  %2020 = vmatprep.subr.mxu0 0.0
  %2021 = vmatpush1.msra.mxu0 0.0
  %2022 = vmatprep.subr.mxu0 0.0
  %2023 = vmatpush1.msra.mxu0 0.0
  %2024 = vmatprep.subr.mxu0 0.0
  %2025 = vmatpush1.msra.mxu0 0.0
  %2026 = vmatprep.subr.mxu0 0.0
  %2027 = vmatpush1.msra.mxu0 0.0
  %2028 = vmatprep.subr.mxu0 0.0
  %2029 = vmatpush1.msra.mxu0 0.0
  %2030 = vmatprep.subr.mxu0 0.0
  %2031 = vmatpush1.msra.mxu0 0.0
  %2032 = vmatprep.subr.mxu0 0.0
  %2033 = vmatpush1.msra.mxu0 0.0
  %2034 = vmatprep.subr.mxu0 0.0
  %2035 = vmatpush1.msra.mxu0 0.0
  %2036 = vmatprep.subr.mxu0 0.0
  %2037 = vmatpush1.msra.mxu0 0.0
  %2038 = vmatprep.subr.mxu0 0.0
  %2039 = vmatpush1.msra.mxu0 0.0
  %2040 = vmatprep.subr.mxu0 0.0
  %2041 = vmatpush1.msra.mxu0 0.0
  %2042 = vmatprep.mubr.f32.mxu0 0.0
  %2043 = vmatmul.mubr.f32.gmra.mrb[0].mxu0 %v1968
  %v2044 = vpop.f32.mrb[0].mxu0
  %v2045 = vadd.f32 0.0, %v2044
  %v2046 = vpop.f32.mrb[0].mxu0
  %2047 = vmatprep.mubr.f32.mxu0 0.0
  %2048 = vmatmul.mubr.f32.gmra.mrb[0].mxu0 %v1971
  %v2049 = vpop.f32.mrb[0].mxu0
  %v2050 = vadd.f32 0.0, %v2049
  %v2051 = vpop.f32.mrb[0].mxu0
  %2052 = vmatprep.mubr.f32.mxu0 0.0
  %2053 = vmatmul.mubr.f32.gmra.mrb[0].mxu0 %v1974
  %v2054 = vpop.f32.mrb[0].mxu0
  %v2055 = vadd.f32 0.0, %v2054
  %v2056 = vpop.f32.mrb[0].mxu0
  %2057 = vdwg.mxu0
  %v2058 = vadd.f32 %v1942, %v2045
  %v2059 = vadd.f32 %v1947, %v2050
  %v2060 = vadd.f32 %v1952, %v2055
  %v2061 = vadd.s32 %v156, 18
  %vm2062 = vcmp.eq.s32.totalorder %v147, %v2061
  %vm2063 = vcmp.eq.s32.totalorder %v148, %v2061
  %vm2064 = vcmp.eq.s32.totalorder %v149, %v2061
  %v2065 = vsel %vm2062, 1, 0
  %v2066 = vsel %vm2063, 1, 0
  %v2067 = vsel %vm2064, 1, 0
  %v2068 = vcvt.s32.f32 %v2065
  %v2069 = vcvt.s32.f32 %v2066
  %v2070 = vcvt.s32.f32 %v2067
  %2071 = vrot.lane.b32.xlu0 %v1747, 80
  %v2072 = vpop.permute.xlu0 %2071
  %v2074 = vsel %vm510, %v2068, 0
  %v2077 = vsel %vm510, %v2069, 0
  %v2080 = vsel %vm510, %v2070, 0
  %v2082 = vsel %vm1781, %v2072, 0
  %2084 = vmatprep.subr.mxu0 0.0
  %2085 = vmatpush1.msra.mxu0 %v2082
  %2086 = vmatprep.subr.mxu0 0.0
  %2087 = vmatpush1.msra.mxu0 0.0
  %2088 = vmatprep.subr.mxu0 0.0
  %2089 = vmatpush1.msra.mxu0 0.0
  %2090 = vmatprep.subr.mxu0 0.0
  %2091 = vmatpush1.msra.mxu0 0.0
  %2092 = vmatprep.subr.mxu0 0.0
  %2093 = vmatpush1.msra.mxu0 0.0
  %2094 = vmatprep.subr.mxu0 0.0
  %2095 = vmatpush1.msra.mxu0 0.0
  %2096 = vmatprep.subr.mxu0 0.0
  %2097 = vmatpush1.msra.mxu0 0.0
  %2098 = vmatprep.subr.mxu0 0.0
  %2099 = vmatpush1.msra.mxu0 0.0
  %2100 = vmatprep.subr.mxu0 0.0
  %2101 = vmatpush1.msra.mxu0 0.0
  %2102 = vmatprep.subr.mxu0 0.0
  %2103 = vmatpush1.msra.mxu0 0.0
  %2104 = vmatprep.subr.mxu0 0.0
  %2105 = vmatpush1.msra.mxu0 0.0
  %2106 = vmatprep.subr.mxu0 0.0
  %2107 = vmatpush1.msra.mxu0 0.0
  %2108 = vmatprep.subr.mxu0 0.0
  %2109 = vmatpush1.msra.mxu0 0.0
  %2110 = vmatprep.subr.mxu0 0.0
  %2111 = vmatpush1.msra.mxu0 0.0
  %2112 = vmatprep.subr.mxu0 0.0
  %2113 = vmatpush1.msra.mxu0 0.0
  %2114 = vmatprep.subr.mxu0 0.0
  %2115 = vmatpush1.msra.mxu0 0.0
  %2116 = vmatprep.subr.mxu0 0.0
  %2117 = vmatpush1.msra.mxu0 0.0
  %2118 = vmatprep.subr.mxu0 0.0
  %2119 = vmatpush1.msra.mxu0 0.0
  %2120 = vmatprep.subr.mxu0 0.0
  %2121 = vmatpush1.msra.mxu0 0.0
  %2122 = vmatprep.subr.mxu0 0.0
  %2123 = vmatpush1.msra.mxu0 0.0
  %2124 = vmatprep.subr.mxu0 0.0
  %2125 = vmatpush1.msra.mxu0 0.0
  %2126 = vmatprep.subr.mxu0 0.0
  %2127 = vmatpush1.msra.mxu0 0.0
  %2128 = vmatprep.subr.mxu0 0.0
  %2129 = vmatpush1.msra.mxu0 0.0
  %2130 = vmatprep.subr.mxu0 0.0
  %2131 = vmatpush1.msra.mxu0 0.0
  %2132 = vmatprep.subr.mxu0 0.0
  %2133 = vmatpush1.msra.mxu0 0.0
  %2134 = vmatprep.subr.mxu0 0.0
  %2135 = vmatpush1.msra.mxu0 0.0
  %2136 = vmatprep.subr.mxu0 0.0
  %2137 = vmatpush1.msra.mxu0 0.0
  %2138 = vmatprep.subr.mxu0 0.0
  %2139 = vmatpush1.msra.mxu0 0.0
  %2140 = vmatprep.subr.mxu0 0.0
  %2141 = vmatpush1.msra.mxu0 0.0
  %2142 = vmatprep.subr.mxu0 0.0
  %2143 = vmatpush1.msra.mxu0 0.0
  %2144 = vmatprep.subr.mxu0 0.0
  %2145 = vmatpush1.msra.mxu0 0.0
  %2146 = vmatprep.subr.mxu0 0.0
  %2147 = vmatpush1.msra.mxu0 0.0
  %2148 = vmatprep.mubr.f32.mxu0 0.0
  %2149 = vmatmul.mubr.f32.gmra.mrb[0].mxu0 %v2074
  %v2150 = vpop.f32.mrb[0].mxu0
  %v2151 = vadd.f32 0.0, %v2150
  %v2152 = vpop.f32.mrb[0].mxu0
  %2153 = vmatprep.mubr.f32.mxu0 0.0
  %2154 = vmatmul.mubr.f32.gmra.mrb[0].mxu0 %v2077
  %v2155 = vpop.f32.mrb[0].mxu0
  %v2156 = vadd.f32 0.0, %v2155
  %v2157 = vpop.f32.mrb[0].mxu0
  %2158 = vmatprep.mubr.f32.mxu0 0.0
  %2159 = vmatmul.mubr.f32.gmra.mrb[0].mxu0 %v2080
  %v2160 = vpop.f32.mrb[0].mxu0
  %v2161 = vadd.f32 0.0, %v2160
  %v2162 = vpop.f32.mrb[0].mxu0
  %2163 = vdwg.mxu0
  %v2164 = vadd.f32 %v2058, %v2151
  %v2165 = vadd.f32 %v2059, %v2156
  %v2166 = vadd.f32 %v2060, %v2161
  %v2167 = vld [vmem:[%s29] sm:$0xff]
  %v2168 = vld [vmem:[%s29 + $0x8] sm:$0xff]
  %v2169 = vld [vmem:[%s29 + $0x10] sm:$0xff]
  %v2170 = vld [vmem:[%s29 + $0x18] sm:$0xff]
  %v2171 = vld [vmem:[%s29 + $0x20] sm:$0xff]
  %v2172 = vld [vmem:[%s29 + $0x28] sm:$0xff]
  %v2173 = vld [vmem:[%s29 + $0x30] sm:$0xff]
  %v2174 = vld [vmem:[%s29 + $0x38] sm:$0xff]
  %v2175 = vld [vmem:[%s29 + $0x40] sm:$0xff]
  %v2176 = vld [vmem:[%s29 + $0x48] sm:$0xff]
  %v2177 = vld [vmem:[%s29 + $0x50] sm:$0xff]
  %v2178 = vld [vmem:[%s29 + $0x58] sm:$0xff]
  %v2179 = vld [vmem:[%s29 + $0x60] sm:$0xff]
  %v2180 = vld [vmem:[%s29 + $0x68] sm:$0xff]
  %v2181 = vld [vmem:[%s29 + $0x70] sm:$0xff]
  %v2182 = vld [vmem:[%s29 + $0x78] sm:$0xff]
  %v2183 = vld [vmem:[%s29 + $0x80] sm:$0xff]
  %v2184 = vld [vmem:[%s29 + $0x88] sm:$0xff]
  %v2185 = vld [vmem:[%s29 + $0x90] sm:$0xff]
  %v2186 = vld [vmem:[%s29 + $0x98] sm:$0xff]
  %v2187 = vld [vmem:[%s29 + $0xa0] sm:$0xff]
  %v2188 = vld [vmem:[%s29 + $0xa8] sm:$0xff]
  %v2189 = vld [vmem:[%s29 + $0xb0] sm:$0xff]
  %v2190 = vld [vmem:[%s29 + $0xb8] sm:$0xff]
  %v2191 = vld [vmem:[%s29 + $0xc0] sm:$0xff]
  %v2192 = vld [vmem:[%s29 + $0xc8] sm:$0xff]
  %v2193 = vld [vmem:[%s29 + $0xd0] sm:$0xff]
  %v2194 = vld [vmem:[%s29 + $0xd8] sm:$0xff]
  %v2195 = vld [vmem:[%s29 + $0xe0] sm:$0xff]
  %v2196 = vld [vmem:[%s29 + $0xe8] sm:$0xff]
  %v2197 = vld [vmem:[%s29 + $0xf0] sm:$0xff]
  %v2198 = vld [vmem:[%s29 + $0xf8] sm:$0xff]
  %v2199 = vld [vmem:[%s29 + $0x100] sm:$0xff]
  %v2200 = vld [vmem:[%s29 + $0x108] sm:$0xff]
  %v2201 = vld [vmem:[%s29 + $0x110] sm:$0xff]
  %v2202 = vld [vmem:[%s29 + $0x118] sm:$0xff]
  %v2203 = vld [vmem:[%s29 + $0x120] sm:$0xff]
  %v2204 = vld [vmem:[%s29 + $0x128] sm:$0xff]
  %v2205 = vld [vmem:[%s29 + $0x130] sm:$0xff]
  %v2206 = vld [vmem:[%s29 + $0x138] sm:$0xff]
  %v2207 = vld [vmem:[%s29 + $0x140] sm:$0xff]
  %v2208 = vld [vmem:[%s29 + $0x148] sm:$0xff]
  %v2209 = vld [vmem:[%s29 + $0x150] sm:$0xff]
  %v2210 = vld [vmem:[%s29 + $0x158] sm:$0xff]
  %v2211 = vld [vmem:[%s29 + $0x160] sm:$0xff]
  %v2212 = vld [vmem:[%s29 + $0x168] sm:$0xff]
  %v2213 = vld [vmem:[%s29 + $0x170] sm:$0xff]
  %v2214 = vld [vmem:[%s29 + $0x178] sm:$0xff]
  %v2215 = vld [vmem:[%s29 + $0x180] sm:$0xff]
  %v2216 = vld [vmem:[%s29 + $0x188] sm:$0xff]
  %v2217 = vld [vmem:[%s29 + $0x190] sm:$0xff]
  %v2218 = vld [vmem:[%s29 + $0x198] sm:$0xff]
  %v2219 = vld [vmem:[%s29 + $0x1a0] sm:$0xff]
  %v2220 = vld [vmem:[%s29 + $0x1a8] sm:$0xff]
  %v2221 = vld [vmem:[%s29 + $0x1b0] sm:$0xff]
  %v2222 = vld [vmem:[%s29 + $0x1b8] sm:$0xff]
  %v2223 = vld [vmem:[%s29 + $0x1c0] sm:$0xff]
  %v2224 = vld [vmem:[%s29 + $0x1c8] sm:$0xff]
  %v2225 = vld [vmem:[%s29 + $0x1d0] sm:$0xff]
  %v2226 = vld [vmem:[%s29 + $0x1d8] sm:$0xff]
  %v2227 = vld [vmem:[%s29 + $0x1e0] sm:$0xff]
  %v2228 = vld [vmem:[%s29 + $0x1e8] sm:$0xff]
  %v2229 = vld [vmem:[%s29 + $0x1f0] sm:$0xff]
  %v2230 = vld [vmem:[%s29 + $0x1f8] sm:$0xff]
  %v2295 = vunpack.c.l.b16 %v2167
  %v2296 = vunpack.c.h.b16 %v2167
  %v2297 = vunpack.c.l.b16 %v2168
  %v2298 = vunpack.c.h.b16 %v2168
  %v2299 = vunpack.c.l.b16 %v2169
  %v2300 = vunpack.c.h.b16 %v2169
  %v2301 = vunpack.c.l.b16 %v2170
  %v2302 = vunpack.c.h.b16 %v2170
  %v2303 = vunpack.c.l.b16 %v2171
  %v2304 = vunpack.c.h.b16 %v2171
  %v2305 = vunpack.c.l.b16 %v2172
  %v2306 = vunpack.c.h.b16 %v2172
  %v2307 = vunpack.c.l.b16 %v2173
  %v2308 = vunpack.c.h.b16 %v2173
  %v2309 = vunpack.c.l.b16 %v2174
  %v2310 = vunpack.c.h.b16 %v2174
  %v2311 = vunpack.c.l.b16 %v2175
  %v2312 = vunpack.c.h.b16 %v2175
  %v2313 = vunpack.c.l.b16 %v2176
  %v2314 = vunpack.c.h.b16 %v2176
  %v2315 = vunpack.c.l.b16 %v2177
  %v2316 = vunpack.c.h.b16 %v2177
  %v2317 = vunpack.c.l.b16 %v2178
  %v2318 = vunpack.c.h.b16 %v2178
  %v2319 = vunpack.c.l.b16 %v2179
  %v2320 = vunpack.c.h.b16 %v2179
  %v2321 = vunpack.c.l.b16 %v2180
  %v2322 = vunpack.c.h.b16 %v2180
  %v2323 = vunpack.c.l.b16 %v2181
  %v2324 = vunpack.c.h.b16 %v2181
  %v2325 = vunpack.c.l.b16 %v2182
  %v2326 = vunpack.c.h.b16 %v2182
  %v2327 = vunpack.c.l.b16 %v2183
  %v2328 = vunpack.c.h.b16 %v2183
  %v2329 = vunpack.c.l.b16 %v2184
  %v2330 = vunpack.c.h.b16 %v2184
  %v2331 = vunpack.c.l.b16 %v2185
  %v2332 = vunpack.c.h.b16 %v2185
  %v2333 = vunpack.c.l.b16 %v2186
  %v2334 = vunpack.c.h.b16 %v2186
  %v2335 = vunpack.c.l.b16 %v2187
  %v2336 = vunpack.c.h.b16 %v2187
  %v2337 = vunpack.c.l.b16 %v2188
  %v2338 = vunpack.c.h.b16 %v2188
  %v2339 = vunpack.c.l.b16 %v2189
  %v2340 = vunpack.c.h.b16 %v2189
  %v2341 = vunpack.c.l.b16 %v2190
  %v2342 = vunpack.c.h.b16 %v2190
  %v2343 = vunpack.c.l.b16 %v2191
  %v2344 = vunpack.c.h.b16 %v2191
  %v2345 = vunpack.c.l.b16 %v2192
  %v2346 = vunpack.c.h.b16 %v2192
  %v2347 = vunpack.c.l.b16 %v2193
  %v2348 = vunpack.c.h.b16 %v2193
  %v2349 = vunpack.c.l.b16 %v2194
  %v2350 = vunpack.c.h.b16 %v2194
  %v2351 = vunpack.c.l.b16 %v2195
  %v2352 = vunpack.c.h.b16 %v2195
  %v2353 = vunpack.c.l.b16 %v2196
  %v2354 = vunpack.c.h.b16 %v2196
  %v2355 = vunpack.c.l.b16 %v2197
  %v2356 = vunpack.c.h.b16 %v2197
  %v2357 = vunpack.c.l.b16 %v2198
  %v2358 = vunpack.c.h.b16 %v2198
  %v2359 = vunpack.c.l.b16 %v2199
  %v2360 = vunpack.c.h.b16 %v2199
  %v2361 = vunpack.c.l.b16 %v2200
  %v2362 = vunpack.c.h.b16 %v2200
  %v2363 = vunpack.c.l.b16 %v2201
  %v2364 = vunpack.c.h.b16 %v2201
  %v2365 = vunpack.c.l.b16 %v2202
  %v2366 = vunpack.c.h.b16 %v2202
  %v2367 = vunpack.c.l.b16 %v2203
  %v2368 = vunpack.c.h.b16 %v2203
  %v2369 = vunpack.c.l.b16 %v2204
  %v2370 = vunpack.c.h.b16 %v2204
  %v2371 = vunpack.c.l.b16 %v2205
  %v2372 = vunpack.c.h.b16 %v2205
  %v2373 = vunpack.c.l.b16 %v2206
  %v2374 = vunpack.c.h.b16 %v2206
  %v2375 = vunpack.c.l.b16 %v2207
  %v2376 = vunpack.c.h.b16 %v2207
  %v2377 = vunpack.c.l.b16 %v2208
  %v2378 = vunpack.c.h.b16 %v2208
  %v2379 = vunpack.c.l.b16 %v2209
  %v2380 = vunpack.c.h.b16 %v2209
  %v2381 = vunpack.c.l.b16 %v2210
  %v2382 = vunpack.c.h.b16 %v2210
  %v2383 = vunpack.c.l.b16 %v2211
  %v2384 = vunpack.c.h.b16 %v2211
  %v2385 = vunpack.c.l.b16 %v2212
  %v2386 = vunpack.c.h.b16 %v2212
  %v2387 = vunpack.c.l.b16 %v2213
  %v2388 = vunpack.c.h.b16 %v2213
  %v2389 = vunpack.c.l.b16 %v2214
  %v2390 = vunpack.c.h.b16 %v2214
  %v2391 = vunpack.c.l.b16 %v2215
  %v2392 = vunpack.c.h.b16 %v2215
  %v2393 = vunpack.c.l.b16 %v2216
  %v2394 = vunpack.c.h.b16 %v2216
  %v2395 = vunpack.c.l.b16 %v2217
  %v2396 = vunpack.c.h.b16 %v2217
  %v2397 = vunpack.c.l.b16 %v2218
  %v2398 = vunpack.c.h.b16 %v2218
  %v2399 = vunpack.c.l.b16 %v2219
  %v2400 = vunpack.c.h.b16 %v2219
  %v2401 = vunpack.c.l.b16 %v2220
  %v2402 = vunpack.c.h.b16 %v2220
  %v2403 = vunpack.c.l.b16 %v2221
  %v2404 = vunpack.c.h.b16 %v2221
  %v2405 = vunpack.c.l.b16 %v2222
  %v2406 = vunpack.c.h.b16 %v2222
  %v2407 = vunpack.c.l.b16 %v2223
  %v2408 = vunpack.c.h.b16 %v2223
  %v2409 = vunpack.c.l.b16 %v2224
  %v2410 = vunpack.c.h.b16 %v2224
  %v2411 = vunpack.c.l.b16 %v2225
  %v2412 = vunpack.c.h.b16 %v2225
  %v2413 = vunpack.c.l.b16 %v2226
  %v2414 = vunpack.c.h.b16 %v2226
  %v2415 = vunpack.c.l.b16 %v2227
  %v2416 = vunpack.c.h.b16 %v2227
  %v2417 = vunpack.c.l.b16 %v2228
  %v2418 = vunpack.c.h.b16 %v2228
  %v2419 = vunpack.c.l.b16 %v2229
  %v2420 = vunpack.c.h.b16 %v2229
  %v2421 = vunpack.c.l.b16 %v2230
  %v2422 = vunpack.c.h.b16 %v2230
  %v2423 = vpack.c.b16 %v2299, %v2295
  %v2424 = vpack.c.b16 %v2300, %v2296
  %v2425 = vpack.c.b16 %v2301, %v2297
  %v2426 = vpack.c.b16 %v2302, %v2298
  %v2427 = vpack.c.b16 %v2307, %v2303
  %v2428 = vpack.c.b16 %v2308, %v2304
  %v2429 = vpack.c.b16 %v2309, %v2305
  %v2430 = vpack.c.b16 %v2310, %v2306
  %v2431 = vpack.c.b16 %v2315, %v2311
  %v2432 = vpack.c.b16 %v2316, %v2312
  %v2433 = vpack.c.b16 %v2317, %v2313
  %v2434 = vpack.c.b16 %v2318, %v2314
  %v2435 = vpack.c.b16 %v2323, %v2319
  %v2436 = vpack.c.b16 %v2324, %v2320
  %v2437 = vpack.c.b16 %v2325, %v2321
  %v2438 = vpack.c.b16 %v2326, %v2322
  %v2439 = vpack.c.b16 %v2331, %v2327
  %v2440 = vpack.c.b16 %v2332, %v2328
  %v2441 = vpack.c.b16 %v2333, %v2329
  %v2442 = vpack.c.b16 %v2334, %v2330
  %v2443 = vpack.c.b16 %v2339, %v2335
  %v2444 = vpack.c.b16 %v2340, %v2336
  %v2445 = vpack.c.b16 %v2341, %v2337
  %v2446 = vpack.c.b16 %v2342, %v2338
  %v2447 = vpack.c.b16 %v2347, %v2343
  %v2448 = vpack.c.b16 %v2348, %v2344
  %v2449 = vpack.c.b16 %v2349, %v2345
  %v2450 = vpack.c.b16 %v2350, %v2346
  %v2451 = vpack.c.b16 %v2355, %v2351
  %v2452 = vpack.c.b16 %v2356, %v2352
  %v2453 = vpack.c.b16 %v2357, %v2353
  %v2454 = vpack.c.b16 %v2358, %v2354
  %v2455 = vpack.c.b16 %v2363, %v2359
  %v2456 = vpack.c.b16 %v2364, %v2360
  %v2457 = vpack.c.b16 %v2365, %v2361
  %v2458 = vpack.c.b16 %v2366, %v2362
  %v2459 = vpack.c.b16 %v2371, %v2367
  %v2460 = vpack.c.b16 %v2372, %v2368
  %v2461 = vpack.c.b16 %v2373, %v2369
  %v2462 = vpack.c.b16 %v2374, %v2370
  %v2463 = vpack.c.b16 %v2379, %v2375
  %v2464 = vpack.c.b16 %v2380, %v2376
  %v2465 = vpack.c.b16 %v2381, %v2377
  %v2466 = vpack.c.b16 %v2382, %v2378
  %v2467 = vpack.c.b16 %v2387, %v2383
  %v2468 = vpack.c.b16 %v2388, %v2384
  %v2469 = vpack.c.b16 %v2389, %v2385
  %v2470 = vpack.c.b16 %v2390, %v2386
  %v2471 = vpack.c.b16 %v2395, %v2391
  %v2472 = vpack.c.b16 %v2396, %v2392
  %v2473 = vpack.c.b16 %v2397, %v2393
  %v2474 = vpack.c.b16 %v2398, %v2394
  %v2475 = vpack.c.b16 %v2403, %v2399
  %v2476 = vpack.c.b16 %v2404, %v2400
  %v2477 = vpack.c.b16 %v2405, %v2401
  %v2478 = vpack.c.b16 %v2406, %v2402
  %v2479 = vpack.c.b16 %v2411, %v2407
  %v2480 = vpack.c.b16 %v2412, %v2408
  %v2481 = vpack.c.b16 %v2413, %v2409
  %v2482 = vpack.c.b16 %v2414, %v2410
  %v2483 = vpack.c.b16 %v2419, %v2415
  %v2484 = vpack.c.b16 %v2420, %v2416
  %v2485 = vpack.c.b16 %v2421, %v2417
  %v2486 = vpack.c.b16 %v2422, %v2418
  %2551 = vmatprep.subr.bf16.mxu0 %v2424
  %2552 = vmatpush1.bf16.msra.mxu0 %v2423
  %2553 = vmatprep.subr.bf16.mxu0 %v2428
  %2554 = vmatpush1.bf16.msra.mxu0 %v2427
  %2555 = vmatprep.subr.bf16.mxu0 %v2432
  %2556 = vmatpush1.bf16.msra.mxu0 %v2431
  %2557 = vmatprep.subr.bf16.mxu0 %v2436
  %2558 = vmatpush1.bf16.msra.mxu0 %v2435
  %2559 = vmatprep.subr.bf16.mxu0 %v2440
  %2560 = vmatpush1.bf16.msra.mxu0 %v2439
  %2561 = vmatprep.subr.bf16.mxu0 %v2444
  %2562 = vmatpush1.bf16.msra.mxu0 %v2443
  %2563 = vmatprep.subr.bf16.mxu0 %v2448
  %2564 = vmatpush1.bf16.msra.mxu0 %v2447
  %2565 = vmatprep.subr.bf16.mxu0 %v2452
  %2566 = vmatpush1.bf16.msra.mxu0 %v2451
  %2567 = vmatprep.subr.bf16.mxu0 %v2456
  %2568 = vmatpush1.bf16.msra.mxu0 %v2455
  %2569 = vmatprep.subr.bf16.mxu0 %v2460
  %2570 = vmatpush1.bf16.msra.mxu0 %v2459
  %2571 = vmatprep.subr.bf16.mxu0 %v2464
  %2572 = vmatpush1.bf16.msra.mxu0 %v2463
  %2573 = vmatprep.subr.bf16.mxu0 %v2468
  %2574 = vmatpush1.bf16.msra.mxu0 %v2467
  %2575 = vmatprep.subr.bf16.mxu0 %v2472
  %2576 = vmatpush1.bf16.msra.mxu0 %v2471
  %2577 = vmatprep.subr.bf16.mxu0 %v2476
  %2578 = vmatpush1.bf16.msra.mxu0 %v2475
  %2579 = vmatprep.subr.bf16.mxu0 %v2480
  %2580 = vmatpush1.bf16.msra.mxu0 %v2479
  %2581 = vmatprep.subr.bf16.mxu0 %v2484
  %2582 = vmatpush1.bf16.msra.mxu0 %v2483
  %2583 = vmatprep.mubr.bf16.mxu0 %v565
  %2584 = vmatmul.mubr.bf16.gmra.mrb[0].mxu0 %v564
  %v2585 = vpop.f32.mrb[0].mxu0
  %v2586 = vadd.f32 0.0, %v2585
  %v2587 = vpop.f32.mrb[0].mxu0
  %v2588 = vadd.f32 0.0, %v2587
  %v2589 = vpop.f32.mrb[0].mxu0
  %v2590 = vpop.f32.mrb[0].mxu0
  %2591 = vdwg.mxu0
  %2592 = vmatprep.subr.bf16.mxu0 %v2426
  %2593 = vmatpush1.bf16.msra.mxu0 %v2425
  %2594 = vmatprep.subr.bf16.mxu0 %v2430
  %2595 = vmatpush1.bf16.msra.mxu0 %v2429
  %2596 = vmatprep.subr.bf16.mxu0 %v2434
  %2597 = vmatpush1.bf16.msra.mxu0 %v2433
  %2598 = vmatprep.subr.bf16.mxu0 %v2438
  %2599 = vmatpush1.bf16.msra.mxu0 %v2437
  %2600 = vmatprep.subr.bf16.mxu0 %v2442
  %2601 = vmatpush1.bf16.msra.mxu0 %v2441
  %2602 = vmatprep.subr.bf16.mxu0 %v2446
  %2603 = vmatpush1.bf16.msra.mxu0 %v2445
  %2604 = vmatprep.subr.bf16.mxu0 %v2450
  %2605 = vmatpush1.bf16.msra.mxu0 %v2449
  %2606 = vmatprep.subr.bf16.mxu0 %v2454
  %2607 = vmatpush1.bf16.msra.mxu0 %v2453
  %2608 = vmatprep.subr.bf16.mxu0 %v2458
  %2609 = vmatpush1.bf16.msra.mxu0 %v2457
  %2610 = vmatprep.subr.bf16.mxu0 %v2462
  %2611 = vmatpush1.bf16.msra.mxu0 %v2461
  %2612 = vmatprep.subr.bf16.mxu0 %v2466
  %2613 = vmatpush1.bf16.msra.mxu0 %v2465
  %2614 = vmatprep.subr.bf16.mxu0 %v2470
  %2615 = vmatpush1.bf16.msra.mxu0 %v2469
  %2616 = vmatprep.subr.bf16.mxu0 %v2474
  %2617 = vmatpush1.bf16.msra.mxu0 %v2473
  %2618 = vmatprep.subr.bf16.mxu0 %v2478
  %2619 = vmatpush1.bf16.msra.mxu0 %v2477
  %2620 = vmatprep.subr.bf16.mxu0 %v2482
  %2621 = vmatpush1.bf16.msra.mxu0 %v2481
  %2622 = vmatprep.subr.bf16.mxu0 %v2486
  %2623 = vmatpush1.bf16.msra.mxu0 %v2485
  %2624 = vmatprep.mubr.bf16.mxu0 %v565
  %2625 = vmatmul.mubr.bf16.gmra.mrb[0].mxu0 %v564
  %v2626 = vpop.f32.mrb[0].mxu0
  %v2627 = vadd.f32 0.0, %v2626
  %v2628 = vpop.f32.mrb[0].mxu0
  %v2629 = vadd.f32 0.0, %v2628
  %v2630 = vpop.f32.mrb[0].mxu0
  %v2631 = vpop.f32.mrb[0].mxu0
  %2632 = vdwg.mxu0
  %v2633 = vld [vmem:[%s9] sm:$0xf]
  %v2634 = vld [vmem:[%s9 + $0x4] sm:$0xf]
  %v2635 = vld [vmem:[%s9 + $0x8] sm:$0xf]
  %v2636 = vpack.c.bf16 %v2586, %v2586
  %v2637 = vpack.c.bf16 %v2588, %v2588
  %v2638 = vpack.c.bf16 %v2627, %v2627
  %v2639 = vpack.c.bf16 %v2629, %v2629
  %v2640 = vpack.c.bf16 %v2165, %v2164
  %v2641 = vpack.c.bf16 %v2166, %v2166
  %v2642 = vld [vmem:[%s31] sm:$0xff]
  %v2643 = vld [vmem:[%s31 + $0x8] sm:$0xff]
  %v2644 = vld [vmem:[%s31 + $0x10] sm:$0xff]
  %v2645 = vld [vmem:[%s31 + $0x18] sm:$0xff]
  %v2650 = vunpack.c.l.b16 %v2642
  %v2651 = vunpack.c.h.b16 %v2642
  %v2652 = vunpack.c.l.b16 %v2643
  %v2653 = vunpack.c.h.b16 %v2643
  %v2654 = vunpack.c.l.b16 %v2644
  %v2655 = vunpack.c.h.b16 %v2644
  %v2656 = vunpack.c.l.b16 %v2645
  %v2657 = vunpack.c.h.b16 %v2645
  %v2658 = vpack.c.b16 %v2654, %v2650
  %v2659 = vpack.c.b16 %v2655, %v2651
  %v2660 = vpack.c.b16 %v2656, %v2652
  %v2661 = vpack.c.b16 %v2657, %v2653
  %v2667 = vsel %vm256, %v2640, 0
  %v2670 = vsel %vm256, %v2641, 0
  %2672 = vmatprep.subr.bf16.mxu0 %v2659
  %2673 = vmatpush1.bf16.msra.mxu0 %v2658
  %2674 = vmatprep.subr.bf16.mxu0 0
  %2675 = vmatpush1.bf16.msra.mxu0 0
  %2676 = vmatprep.subr.bf16.mxu0 0
  %2677 = vmatpush1.bf16.msra.mxu0 0
  %2678 = vmatprep.subr.bf16.mxu0 0
  %2679 = vmatpush1.bf16.msra.mxu0 0
  %2680 = vmatprep.subr.bf16.mxu0 0
  %2681 = vmatpush1.bf16.msra.mxu0 0
  %2682 = vmatprep.subr.bf16.mxu0 0
  %2683 = vmatpush1.bf16.msra.mxu0 0
  %2684 = vmatprep.subr.bf16.mxu0 0
  %2685 = vmatpush1.bf16.msra.mxu0 0
  %2686 = vmatprep.subr.bf16.mxu0 0
  %2687 = vmatpush1.bf16.msra.mxu0 0
  %2688 = vmatprep.subr.bf16.mxu0 0
  %2689 = vmatpush1.bf16.msra.mxu0 0
  %2690 = vmatprep.subr.bf16.mxu0 0
  %2691 = vmatpush1.bf16.msra.mxu0 0
  %2692 = vmatprep.subr.bf16.mxu0 0
  %2693 = vmatpush1.bf16.msra.mxu0 0
  %2694 = vmatprep.subr.bf16.mxu0 0
  %2695 = vmatpush1.bf16.msra.mxu0 0
  %2696 = vmatprep.subr.bf16.mxu0 0
  %2697 = vmatpush1.bf16.msra.mxu0 0
  %2698 = vmatprep.subr.bf16.mxu0 0
  %2699 = vmatpush1.bf16.msra.mxu0 0
  %2700 = vmatprep.subr.bf16.mxu0 0
  %2701 = vmatpush1.bf16.msra.mxu0 0
  %2702 = vmatprep.subr.bf16.mxu0 0
  %2703 = vmatpush1.bf16.msra.mxu0 0
  %2704 = vmatprep.mubr.bf16.mxu0 0
  %2705 = vmatmul.mubr.bf16.gmra.mrb[0].mxu0 %v2667
  %v2706 = vpop.f32.mrb[0].mxu0
  %v2707 = vadd.f32 0.0, %v2706
  %v2708 = vpop.f32.mrb[0].mxu0
  %v2709 = vadd.f32 0.0, %v2708
  %v2710 = vpop.f32.mrb[0].mxu0
  %v2711 = vadd.f32 0.0, %v2710
  %v2712 = vpop.f32.mrb[0].mxu0
  %v2713 = vadd.f32 0.0, %v2712
  %2714 = vmatprep.mubr.bf16.mxu0 0
  %2715 = vmatmul.mubr.bf16.gmra.mrb[0].mxu0 %v2670
  %v2716 = vpop.f32.mrb[0].mxu0
  %v2717 = vadd.f32 0.0, %v2716
  %v2718 = vpop.f32.mrb[0].mxu0
  %v2719 = vadd.f32 0.0, %v2718
  %v2720 = vpop.f32.mrb[0].mxu0
  %v2721 = vpop.f32.mrb[0].mxu0
  %2722 = vdwg.mxu0
  %2723 = vmatprep.subr.bf16.mxu0 %v2661
  %2724 = vmatpush1.bf16.msra.mxu0 %v2660
  %2725 = vmatprep.subr.bf16.mxu0 0
  %2726 = vmatpush1.bf16.msra.mxu0 0
  %2727 = vmatprep.subr.bf16.mxu0 0
  %2728 = vmatpush1.bf16.msra.mxu0 0
  %2729 = vmatprep.subr.bf16.mxu0 0
  %2730 = vmatpush1.bf16.msra.mxu0 0
  %2731 = vmatprep.subr.bf16.mxu0 0
  %2732 = vmatpush1.bf16.msra.mxu0 0
  %2733 = vmatprep.subr.bf16.mxu0 0
  %2734 = vmatpush1.bf16.msra.mxu0 0
  %2735 = vmatprep.subr.bf16.mxu0 0
  %2736 = vmatpush1.bf16.msra.mxu0 0
  %2737 = vmatprep.subr.bf16.mxu0 0
  %2738 = vmatpush1.bf16.msra.mxu0 0
  %2739 = vmatprep.subr.bf16.mxu0 0
  %2740 = vmatpush1.bf16.msra.mxu0 0
  %2741 = vmatprep.subr.bf16.mxu0 0
  %2742 = vmatpush1.bf16.msra.mxu0 0
  %2743 = vmatprep.subr.bf16.mxu0 0
  %2744 = vmatpush1.bf16.msra.mxu0 0
  %2745 = vmatprep.subr.bf16.mxu0 0
  %2746 = vmatpush1.bf16.msra.mxu0 0
  %2747 = vmatprep.subr.bf16.mxu0 0
  %2748 = vmatpush1.bf16.msra.mxu0 0
  %2749 = vmatprep.subr.bf16.mxu0 0
  %2750 = vmatpush1.bf16.msra.mxu0 0
  %2751 = vmatprep.subr.bf16.mxu0 0
  %2752 = vmatpush1.bf16.msra.mxu0 0
  %2753 = vmatprep.subr.bf16.mxu0 0
  %2754 = vmatpush1.bf16.msra.mxu0 0
  %2755 = vmatprep.mubr.bf16.mxu0 0
  %2756 = vmatmul.mubr.bf16.gmra.mrb[0].mxu0 %v2667
  %v2757 = vpop.f32.mrb[0].mxu0
  %v2758 = vadd.f32 0.0, %v2757
  %v2759 = vpop.f32.mrb[0].mxu0
  %v2760 = vadd.f32 0.0, %v2759
  %v2761 = vpop.f32.mrb[0].mxu0
  %v2762 = vadd.f32 0.0, %v2761
  %v2763 = vpop.f32.mrb[0].mxu0
  %v2764 = vadd.f32 0.0, %v2763
  %2765 = vmatprep.mubr.bf16.mxu0 0
  %2766 = vmatmul.mubr.bf16.gmra.mrb[0].mxu0 %v2670
  %v2767 = vpop.f32.mrb[0].mxu0
  %v2768 = vadd.f32 0.0, %v2767
  %v2769 = vpop.f32.mrb[0].mxu0
  %v2770 = vadd.f32 0.0, %v2769
  %v2771 = vpop.f32.mrb[0].mxu0
  %v2772 = vpop.f32.mrb[0].mxu0
  %2773 = vdwg.mxu0
  %v2777 = vunpack.c.l.b16 %v2633
  %v2778 = vunpack.c.l.b16 %v2634
  %v2779 = vunpack.c.l.b16 %v2635
  %v2780 = vpack.c.b16 %v2778, %v2777
  %v2781 = vpack.c.b16 %v2779, %v2779
  %v2783 = vsel %vm510, %v2780, 0
  %v2786 = vsel %vm510, %v2781, 0
  %v2789 = vsel %vm514, %v2636, 0
  %v2792 = vsel %vm514, %v2637, 0
  %v2795 = vsel %vm514, %v2638, 0
  %v2798 = vsel %vm514, %v2639, 0
  %2800 = vmatprep.subr.bf16.mxu0 %v2792
  %2801 = vmatpush1.bf16.msra.mxu0 %v2789
  %2802 = vmatprep.subr.bf16.mxu0 0
  %2803 = vmatpush1.bf16.msra.mxu0 0
  %2804 = vmatprep.subr.bf16.mxu0 0
  %2805 = vmatpush1.bf16.msra.mxu0 0
  %2806 = vmatprep.subr.bf16.mxu0 0
  %2807 = vmatpush1.bf16.msra.mxu0 0
  %2808 = vmatprep.subr.bf16.mxu0 0
  %2809 = vmatpush1.bf16.msra.mxu0 0
  %2810 = vmatprep.subr.bf16.mxu0 0
  %2811 = vmatpush1.bf16.msra.mxu0 0
  %2812 = vmatprep.subr.bf16.mxu0 0
  %2813 = vmatpush1.bf16.msra.mxu0 0
  %2814 = vmatprep.subr.bf16.mxu0 0
  %2815 = vmatpush1.bf16.msra.mxu0 0
  %2816 = vmatprep.subr.bf16.mxu0 0
  %2817 = vmatpush1.bf16.msra.mxu0 0
  %2818 = vmatprep.subr.bf16.mxu0 0
  %2819 = vmatpush1.bf16.msra.mxu0 0
  %2820 = vmatprep.subr.bf16.mxu0 0
  %2821 = vmatpush1.bf16.msra.mxu0 0
  %2822 = vmatprep.subr.bf16.mxu0 0
  %2823 = vmatpush1.bf16.msra.mxu0 0
  %2824 = vmatprep.subr.bf16.mxu0 0
  %2825 = vmatpush1.bf16.msra.mxu0 0
  %2826 = vmatprep.subr.bf16.mxu0 0
  %2827 = vmatpush1.bf16.msra.mxu0 0
  %2828 = vmatprep.subr.bf16.mxu0 0
  %2829 = vmatpush1.bf16.msra.mxu0 0
  %2830 = vmatprep.subr.bf16.mxu0 0
  %2831 = vmatpush1.bf16.msra.mxu0 0
  %2832 = vmatprep.mubr.bf16.mxu0 0
  %2833 = vmatmul.mubr.bf16.gmra.mrb[0].mxu0 %v2783
  %v2834 = vpop.f32.mrb[0].mxu0
  %v2835 = vadd.f32 %v2707, %v2834
  %v2836 = vpop.f32.mrb[0].mxu0
  %v2837 = vadd.f32 %v2709, %v2836
  %v2838 = vpop.f32.mrb[0].mxu0
  %v2839 = vadd.f32 %v2711, %v2838
  %v2840 = vpop.f32.mrb[0].mxu0
  %v2841 = vadd.f32 %v2713, %v2840
  %2842 = vmatprep.mubr.bf16.mxu0 0
  %2843 = vmatmul.mubr.bf16.gmra.mrb[0].mxu0 %v2786
  %v2844 = vpop.f32.mrb[0].mxu0
  %v2845 = vadd.f32 %v2717, %v2844
  %v2846 = vpop.f32.mrb[0].mxu0
  %v2847 = vadd.f32 %v2719, %v2846
  %v2848 = vpop.f32.mrb[0].mxu0
  %v2849 = vpop.f32.mrb[0].mxu0
  %2850 = vdwg.mxu0
  %2851 = vmatprep.subr.bf16.mxu0 %v2798
  %2852 = vmatpush1.bf16.msra.mxu0 %v2795
  %2853 = vmatprep.subr.bf16.mxu0 0
  %2854 = vmatpush1.bf16.msra.mxu0 0
  %2855 = vmatprep.subr.bf16.mxu0 0
  %2856 = vmatpush1.bf16.msra.mxu0 0
  %2857 = vmatprep.subr.bf16.mxu0 0
  %2858 = vmatpush1.bf16.msra.mxu0 0
  %2859 = vmatprep.subr.bf16.mxu0 0
  %2860 = vmatpush1.bf16.msra.mxu0 0
  %2861 = vmatprep.subr.bf16.mxu0 0
  %2862 = vmatpush1.bf16.msra.mxu0 0
  %2863 = vmatprep.subr.bf16.mxu0 0
  %2864 = vmatpush1.bf16.msra.mxu0 0
  %2865 = vmatprep.subr.bf16.mxu0 0
  %2866 = vmatpush1.bf16.msra.mxu0 0
  %2867 = vmatprep.subr.bf16.mxu0 0
  %2868 = vmatpush1.bf16.msra.mxu0 0
  %2869 = vmatprep.subr.bf16.mxu0 0
  %2870 = vmatpush1.bf16.msra.mxu0 0
  %2871 = vmatprep.subr.bf16.mxu0 0
  %2872 = vmatpush1.bf16.msra.mxu0 0
  %2873 = vmatprep.subr.bf16.mxu0 0
  %2874 = vmatpush1.bf16.msra.mxu0 0
  %2875 = vmatprep.subr.bf16.mxu0 0
  %2876 = vmatpush1.bf16.msra.mxu0 0
  %2877 = vmatprep.subr.bf16.mxu0 0
  %2878 = vmatpush1.bf16.msra.mxu0 0
  %2879 = vmatprep.subr.bf16.mxu0 0
  %2880 = vmatpush1.bf16.msra.mxu0 0
  %2881 = vmatprep.subr.bf16.mxu0 0
  %2882 = vmatpush1.bf16.msra.mxu0 0
  %2883 = vmatprep.mubr.bf16.mxu0 0
  %2884 = vmatmul.mubr.bf16.gmra.mrb[0].mxu0 %v2783
  %v2885 = vpop.f32.mrb[0].mxu0
  %v2886 = vadd.f32 %v2758, %v2885
  %v2887 = vpop.f32.mrb[0].mxu0
  %v2888 = vadd.f32 %v2760, %v2887
  %v2889 = vpop.f32.mrb[0].mxu0
  %v2890 = vadd.f32 %v2762, %v2889
  %v2891 = vpop.f32.mrb[0].mxu0
  %v2892 = vadd.f32 %v2764, %v2891
  %2893 = vmatprep.mubr.bf16.mxu0 0
  %2894 = vmatmul.mubr.bf16.gmra.mrb[0].mxu0 %v2786
  %v2895 = vpop.f32.mrb[0].mxu0
  %v2896 = vadd.f32 %v2768, %v2895
  %v2897 = vpop.f32.mrb[0].mxu0
  %v2898 = vadd.f32 %v2770, %v2897
  %v2899 = vpop.f32.mrb[0].mxu0
  %v2900 = vpop.f32.mrb[0].mxu0
  %2901 = vdwg.mxu0
  %v2902 = vld [vmem:[%s17 + $0x9] sm:$0xf]
  %v2904 = vlaneseq
  %v2905 = vshrl.u32 %v2904, 7
  %v2906 = vsub.s32 0, %v2905
  %v2907 = vrot.slane %v2902, %v2906
  %v2908 = vlaneseq
  %v2909 = vshrl.u32 %v2908, 7
  %v2910 = vsub.s32 1, %v2909
  %v2911 = vrot.slane %v2902, %v2910
  %v2912 = vlaneseq
  %v2913 = vshrl.u32 %v2912, 7
  %v2914 = vsub.s32 2, %v2913
  %v2915 = vrot.slane %v2902, %v2914
  %v2916 = vlaneseq
  %v2917 = vshrl.u32 %v2916, 7
  %v2918 = vsub.s32 3, %v2917
  %v2919 = vrot.slane %v2902, %v2918
  %v2924 = vadd.f32 %v2835, %v2907
  %v2925 = vadd.f32 %v2837, %v2911
  %v2926 = vadd.f32 %v2886, %v2915
  %v2927 = vadd.f32 %v2888, %v2919
  %v2928 = vadd.f32 %v2839, %v2907
  %v2929 = vadd.f32 %v2841, %v2911
  %v2930 = vadd.f32 %v2890, %v2915
  %v2931 = vadd.f32 %v2892, %v2919
  %v2932 = vadd.f32 %v2845, %v2907
  %v2933 = vadd.f32 %v2847, %v2911
  %v2934 = vadd.f32 %v2896, %v2915
  %v2935 = vadd.f32 %v2898, %v2919
  %v2936 = vmax.f32 %v2924, 0.0
  %v2937 = vmax.f32 %v2925, 0.0
  %v2938 = vmax.f32 %v2926, 0.0
  %v2939 = vmax.f32 %v2927, 0.0
  %v2940 = vmax.f32 %v2928, 0.0
  %v2941 = vmax.f32 %v2929, 0.0
  %v2942 = vmax.f32 %v2930, 0.0
  %v2943 = vmax.f32 %v2931, 0.0
  %v2944 = vmax.f32 %v2932, 0.0
  %v2945 = vmax.f32 %v2933, 0.0
  %v2946 = vmax.f32 %v2934, 0.0
  %v2947 = vmax.f32 %v2935, 0.0
  %v2948 = vpack.c.bf16 %v2940, %v2936
  %v2949 = vpack.c.bf16 %v2941, %v2937
  %v2950 = vpack.c.bf16 %v2942, %v2938
  %v2951 = vpack.c.bf16 %v2943, %v2939
  %v2952 = vpack.c.bf16 %v2944, %v2944
  %v2953 = vpack.c.bf16 %v2945, %v2945
  %v2954 = vpack.c.bf16 %v2946, %v2946
  %v2955 = vpack.c.bf16 %v2947, %v2947
  %v2956 = vld [vmem:[%s33] sm:$0xff]
  %v2957 = vld [vmem:[%s33 + $0x8] sm:$0xff]
  %v2958 = vld [vmem:[%s33 + $0x10] sm:$0xff]
  %v2959 = vld [vmem:[%s33 + $0x18] sm:$0xff]
  %v2960 = vld [vmem:[%s33 + $0x20] sm:$0xff]
  %v2961 = vld [vmem:[%s33 + $0x28] sm:$0xff]
  %v2962 = vld [vmem:[%s33 + $0x30] sm:$0xff]
  %v2963 = vld [vmem:[%s33 + $0x38] sm:$0xff]
  %v2964 = vld [vmem:[%s33 + $0x40] sm:$0xff]
  %v2965 = vld [vmem:[%s33 + $0x48] sm:$0xff]
  %v2966 = vld [vmem:[%s33 + $0x50] sm:$0xff]
  %v2967 = vld [vmem:[%s33 + $0x58] sm:$0xff]
  %v2968 = vld [vmem:[%s33 + $0x60] sm:$0xff]
  %v2969 = vld [vmem:[%s33 + $0x68] sm:$0xff]
  %v2970 = vld [vmem:[%s33 + $0x70] sm:$0xff]
  %v2971 = vld [vmem:[%s33 + $0x78] sm:$0xff]
  %v2972 = vld [vmem:[%s33 + $0x80] sm:$0xff]
  %v2973 = vld [vmem:[%s33 + $0x88] sm:$0xff]
  %v2974 = vld [vmem:[%s33 + $0x90] sm:$0xff]
  %v2975 = vld [vmem:[%s33 + $0x98] sm:$0xff]
  %v2976 = vld [vmem:[%s33 + $0xa0] sm:$0xff]
  %v2977 = vld [vmem:[%s33 + $0xa8] sm:$0xff]
  %v2978 = vld [vmem:[%s33 + $0xb0] sm:$0xff]
  %v2979 = vld [vmem:[%s33 + $0xb8] sm:$0xff]
  %v2980 = vld [vmem:[%s33 + $0xc0] sm:$0xff]
  %v2981 = vld [vmem:[%s33 + $0xc8] sm:$0xff]
  %v2982 = vld [vmem:[%s33 + $0xd0] sm:$0xff]
  %v2983 = vld [vmem:[%s33 + $0xd8] sm:$0xff]
  %v2984 = vld [vmem:[%s33 + $0xe0] sm:$0xff]
  %v2985 = vld [vmem:[%s33 + $0xe8] sm:$0xff]
  %v2986 = vld [vmem:[%s33 + $0xf0] sm:$0xff]
  %v2987 = vld [vmem:[%s33 + $0xf8] sm:$0xff]
  %v2988 = vld [vmem:[%s33 + $0x100] sm:$0xff]
  %v2989 = vld [vmem:[%s33 + $0x108] sm:$0xff]
  %v2990 = vld [vmem:[%s33 + $0x110] sm:$0xff]
  %v2991 = vld [vmem:[%s33 + $0x118] sm:$0xff]
  %v2992 = vld [vmem:[%s33 + $0x120] sm:$0xff]
  %v2993 = vld [vmem:[%s33 + $0x128] sm:$0xff]
  %v2994 = vld [vmem:[%s33 + $0x130] sm:$0xff]
  %v2995 = vld [vmem:[%s33 + $0x138] sm:$0xff]
  %v2996 = vld [vmem:[%s33 + $0x140] sm:$0xff]
  %v2997 = vld [vmem:[%s33 + $0x148] sm:$0xff]
  %v2998 = vld [vmem:[%s33 + $0x150] sm:$0xff]
  %v2999 = vld [vmem:[%s33 + $0x158] sm:$0xff]
  %v3000 = vld [vmem:[%s33 + $0x160] sm:$0xff]
  %v3001 = vld [vmem:[%s33 + $0x168] sm:$0xff]
  %v3002 = vld [vmem:[%s33 + $0x170] sm:$0xff]
  %v3003 = vld [vmem:[%s33 + $0x178] sm:$0xff]
  %v3004 = vld [vmem:[%s33 + $0x180] sm:$0xff]
  %v3005 = vld [vmem:[%s33 + $0x188] sm:$0xff]
  %v3006 = vld [vmem:[%s33 + $0x190] sm:$0xff]
  %v3007 = vld [vmem:[%s33 + $0x198] sm:$0xff]
  %v3008 = vld [vmem:[%s33 + $0x1a0] sm:$0xff]
  %v3009 = vld [vmem:[%s33 + $0x1a8] sm:$0xff]
  %v3010 = vld [vmem:[%s33 + $0x1b0] sm:$0xff]
  %v3011 = vld [vmem:[%s33 + $0x1b8] sm:$0xff]
  %v3012 = vld [vmem:[%s33 + $0x1c0] sm:$0xff]
  %v3013 = vld [vmem:[%s33 + $0x1c8] sm:$0xff]
  %v3014 = vld [vmem:[%s33 + $0x1d0] sm:$0xff]
  %v3015 = vld [vmem:[%s33 + $0x1d8] sm:$0xff]
  %v3016 = vld [vmem:[%s33 + $0x1e0] sm:$0xff]
  %v3017 = vld [vmem:[%s33 + $0x1e8] sm:$0xff]
  %v3018 = vld [vmem:[%s33 + $0x1f0] sm:$0xff]
  %v3019 = vld [vmem:[%s33 + $0x1f8] sm:$0xff]
  %v3020 = vld [vmem:[%s33 + $0x200] sm:$0xff]
  %v3021 = vld [vmem:[%s33 + $0x208] sm:$0xff]
  %v3022 = vld [vmem:[%s33 + $0x210] sm:$0xff]
  %v3023 = vld [vmem:[%s33 + $0x218] sm:$0xff]
  %v3024 = vld [vmem:[%s33 + $0x220] sm:$0xff]
  %v3025 = vld [vmem:[%s33 + $0x228] sm:$0xff]
  %v3026 = vld [vmem:[%s33 + $0x230] sm:$0xff]
  %v3027 = vld [vmem:[%s33 + $0x238] sm:$0xff]
  %v3028 = vld [vmem:[%s33 + $0x240] sm:$0xff]
  %v3029 = vld [vmem:[%s33 + $0x248] sm:$0xff]
  %v3030 = vld [vmem:[%s33 + $0x250] sm:$0xff]
  %v3031 = vld [vmem:[%s33 + $0x258] sm:$0xff]
  %v3032 = vld [vmem:[%s33 + $0x260] sm:$0xff]
  %v3033 = vld [vmem:[%s33 + $0x268] sm:$0xff]
  %v3034 = vld [vmem:[%s33 + $0x270] sm:$0xff]
  %v3035 = vld [vmem:[%s33 + $0x278] sm:$0xff]
  %v3036 = vld [vmem:[%s33 + $0x280] sm:$0xff]
  %v3037 = vld [vmem:[%s33 + $0x288] sm:$0xff]
  %v3038 = vld [vmem:[%s33 + $0x290] sm:$0xff]
  %v3039 = vld [vmem:[%s33 + $0x298] sm:$0xff]
  %v3040 = vld [vmem:[%s33 + $0x2a0] sm:$0xff]
  %v3041 = vld [vmem:[%s33 + $0x2a8] sm:$0xff]
  %v3042 = vld [vmem:[%s33 + $0x2b0] sm:$0xff]
  %v3043 = vld [vmem:[%s33 + $0x2b8] sm:$0xff]
  %v3044 = vld [vmem:[%s33 + $0x2c0] sm:$0xff]
  %v3045 = vld [vmem:[%s33 + $0x2c8] sm:$0xff]
  %v3046 = vld [vmem:[%s33 + $0x2d0] sm:$0xff]
  %v3047 = vld [vmem:[%s33 + $0x2d8] sm:$0xff]
  %v3048 = vld [vmem:[%s33 + $0x2e0] sm:$0xff]
  %v3049 = vld [vmem:[%s33 + $0x2e8] sm:$0xff]
  %v3050 = vld [vmem:[%s33 + $0x2f0] sm:$0xff]
  %v3051 = vld [vmem:[%s33 + $0x2f8] sm:$0xff]
  %v3052 = vld [vmem:[%s33 + $0x300] sm:$0xff]
  %v3053 = vld [vmem:[%s33 + $0x308] sm:$0xff]
  %v3054 = vld [vmem:[%s33 + $0x310] sm:$0xff]
  %v3055 = vld [vmem:[%s33 + $0x318] sm:$0xff]
  %v3056 = vld [vmem:[%s33 + $0x320] sm:$0xff]
  %v3057 = vld [vmem:[%s33 + $0x328] sm:$0xff]
  %v3058 = vld [vmem:[%s33 + $0x330] sm:$0xff]
  %v3059 = vld [vmem:[%s33 + $0x338] sm:$0xff]
  %v3060 = vld [vmem:[%s33 + $0x340] sm:$0xff]
  %v3061 = vld [vmem:[%s33 + $0x348] sm:$0xff]
  %v3062 = vld [vmem:[%s33 + $0x350] sm:$0xff]
  %v3063 = vld [vmem:[%s33 + $0x358] sm:$0xff]
  %v3064 = vld [vmem:[%s33 + $0x360] sm:$0xff]
  %v3065 = vld [vmem:[%s33 + $0x368] sm:$0xff]
  %v3066 = vld [vmem:[%s33 + $0x370] sm:$0xff]
  %v3067 = vld [vmem:[%s33 + $0x378] sm:$0xff]
  %v3068 = vld [vmem:[%s33 + $0x380] sm:$0xff]
  %v3069 = vld [vmem:[%s33 + $0x388] sm:$0xff]
  %v3070 = vld [vmem:[%s33 + $0x390] sm:$0xff]
  %v3071 = vld [vmem:[%s33 + $0x398] sm:$0xff]
  %v3072 = vld [vmem:[%s33 + $0x3a0] sm:$0xff]
  %v3073 = vld [vmem:[%s33 + $0x3a8] sm:$0xff]
  %v3074 = vld [vmem:[%s33 + $0x3b0] sm:$0xff]
  %v3075 = vld [vmem:[%s33 + $0x3b8] sm:$0xff]
  %v3076 = vld [vmem:[%s33 + $0x3c0] sm:$0xff]
  %v3077 = vld [vmem:[%s33 + $0x3c8] sm:$0xff]
  %v3078 = vld [vmem:[%s33 + $0x3d0] sm:$0xff]
  %v3079 = vld [vmem:[%s33 + $0x3d8] sm:$0xff]
  %v3080 = vld [vmem:[%s33 + $0x3e0] sm:$0xff]
  %v3081 = vld [vmem:[%s33 + $0x3e8] sm:$0xff]
  %v3082 = vld [vmem:[%s33 + $0x3f0] sm:$0xff]
  %v3083 = vld [vmem:[%s33 + $0x3f8] sm:$0xff]
  %v3084 = vld [vmem:[%s17 + $0xd] sm:$0xf]
  %v3086 = vlaneseq
  %v3087 = vshrl.u32 %v3086, 7
  %v3088 = vsub.s32 0, %v3087
  %v3089 = vrot.slane %v3084, %v3088
  %v3090 = vlaneseq
  %v3091 = vshrl.u32 %v3090, 7
  %v3092 = vsub.s32 1, %v3091
  %v3093 = vrot.slane %v3084, %v3092
  %v3094 = vlaneseq
  %v3095 = vshrl.u32 %v3094, 7
  %v3096 = vsub.s32 2, %v3095
  %v3097 = vrot.slane %v3084, %v3096
  %v3098 = vlaneseq
  %v3099 = vshrl.u32 %v3098, 7
  %v3100 = vsub.s32 3, %v3099
  %v3101 = vrot.slane %v3084, %v3100
  %v3234 = vunpack.c.l.b16 %v2956
  %v3235 = vunpack.c.h.b16 %v2956
  %v3236 = vunpack.c.l.b16 %v2957
  %v3237 = vunpack.c.h.b16 %v2957
  %v3238 = vunpack.c.l.b16 %v2958
  %v3239 = vunpack.c.h.b16 %v2958
  %v3240 = vunpack.c.l.b16 %v2959
  %v3241 = vunpack.c.h.b16 %v2959
  %v3242 = vunpack.c.l.b16 %v2960
  %v3243 = vunpack.c.h.b16 %v2960
  %v3244 = vunpack.c.l.b16 %v2961
  %v3245 = vunpack.c.h.b16 %v2961
  %v3246 = vunpack.c.l.b16 %v2962
  %v3247 = vunpack.c.h.b16 %v2962
  %v3248 = vunpack.c.l.b16 %v2963
  %v3249 = vunpack.c.h.b16 %v2963
  %v3250 = vunpack.c.l.b16 %v2964
  %v3251 = vunpack.c.h.b16 %v2964
  %v3252 = vunpack.c.l.b16 %v2965
  %v3253 = vunpack.c.h.b16 %v2965
  %v3254 = vunpack.c.l.b16 %v2966
  %v3255 = vunpack.c.h.b16 %v2966
  %v3256 = vunpack.c.l.b16 %v2967
  %v3257 = vunpack.c.h.b16 %v2967
  %v3258 = vunpack.c.l.b16 %v2968
  %v3259 = vunpack.c.h.b16 %v2968
  %v3260 = vunpack.c.l.b16 %v2969
  %v3261 = vunpack.c.h.b16 %v2969
  %v3262 = vunpack.c.l.b16 %v2970
  %v3263 = vunpack.c.h.b16 %v2970
  %v3264 = vunpack.c.l.b16 %v2971
  %v3265 = vunpack.c.h.b16 %v2971
  %v3266 = vunpack.c.l.b16 %v2972
  %v3267 = vunpack.c.h.b16 %v2972
  %v3268 = vunpack.c.l.b16 %v2973
  %v3269 = vunpack.c.h.b16 %v2973
  %v3270 = vunpack.c.l.b16 %v2974
  %v3271 = vunpack.c.h.b16 %v2974
  %v3272 = vunpack.c.l.b16 %v2975
  %v3273 = vunpack.c.h.b16 %v2975
  %v3274 = vunpack.c.l.b16 %v2976
  %v3275 = vunpack.c.h.b16 %v2976
  %v3276 = vunpack.c.l.b16 %v2977
  %v3277 = vunpack.c.h.b16 %v2977
  %v3278 = vunpack.c.l.b16 %v2978
  %v3279 = vunpack.c.h.b16 %v2978
  %v3280 = vunpack.c.l.b16 %v2979
  %v3281 = vunpack.c.h.b16 %v2979
  %v3282 = vunpack.c.l.b16 %v2980
  %v3283 = vunpack.c.h.b16 %v2980
  %v3284 = vunpack.c.l.b16 %v2981
  %v3285 = vunpack.c.h.b16 %v2981
  %v3286 = vunpack.c.l.b16 %v2982
  %v3287 = vunpack.c.h.b16 %v2982
  %v3288 = vunpack.c.l.b16 %v2983
  %v3289 = vunpack.c.h.b16 %v2983
  %v3290 = vunpack.c.l.b16 %v2984
  %v3291 = vunpack.c.h.b16 %v2984
  %v3292 = vunpack.c.l.b16 %v2985
  %v3293 = vunpack.c.h.b16 %v2985
  %v3294 = vunpack.c.l.b16 %v2986
  %v3295 = vunpack.c.h.b16 %v2986
  %v3296 = vunpack.c.l.b16 %v2987
  %v3297 = vunpack.c.h.b16 %v2987
  %v3298 = vunpack.c.l.b16 %v2988
  %v3299 = vunpack.c.h.b16 %v2988
  %v3300 = vunpack.c.l.b16 %v2989
  %v3301 = vunpack.c.h.b16 %v2989
  %v3302 = vunpack.c.l.b16 %v2990
  %v3303 = vunpack.c.h.b16 %v2990
  %v3304 = vunpack.c.l.b16 %v2991
  %v3305 = vunpack.c.h.b16 %v2991
  %v3306 = vunpack.c.l.b16 %v2992
  %v3307 = vunpack.c.h.b16 %v2992
  %v3308 = vunpack.c.l.b16 %v2993
  %v3309 = vunpack.c.h.b16 %v2993
  %v3310 = vunpack.c.l.b16 %v2994
  %v3311 = vunpack.c.h.b16 %v2994
  %v3312 = vunpack.c.l.b16 %v2995
  %v3313 = vunpack.c.h.b16 %v2995
  %v3314 = vunpack.c.l.b16 %v2996
  %v3315 = vunpack.c.h.b16 %v2996
  %v3316 = vunpack.c.l.b16 %v2997
  %v3317 = vunpack.c.h.b16 %v2997
  %v3318 = vunpack.c.l.b16 %v2998
  %v3319 = vunpack.c.h.b16 %v2998
  %v3320 = vunpack.c.l.b16 %v2999
  %v3321 = vunpack.c.h.b16 %v2999
  %v3322 = vunpack.c.l.b16 %v3000
  %v3323 = vunpack.c.h.b16 %v3000
  %v3324 = vunpack.c.l.b16 %v3001
  %v3325 = vunpack.c.h.b16 %v3001
  %v3326 = vunpack.c.l.b16 %v3002
  %v3327 = vunpack.c.h.b16 %v3002
  %v3328 = vunpack.c.l.b16 %v3003
  %v3329 = vunpack.c.h.b16 %v3003
  %v3330 = vunpack.c.l.b16 %v3004
  %v3331 = vunpack.c.h.b16 %v3004
  %v3332 = vunpack.c.l.b16 %v3005
  %v3333 = vunpack.c.h.b16 %v3005
  %v3334 = vunpack.c.l.b16 %v3006
  %v3335 = vunpack.c.h.b16 %v3006
  %v3336 = vunpack.c.l.b16 %v3007
  %v3337 = vunpack.c.h.b16 %v3007
  %v3338 = vunpack.c.l.b16 %v3008
  %v3339 = vunpack.c.h.b16 %v3008
  %v3340 = vunpack.c.l.b16 %v3009
  %v3341 = vunpack.c.h.b16 %v3009
  %v3342 = vunpack.c.l.b16 %v3010
  %v3343 = vunpack.c.h.b16 %v3010
  %v3344 = vunpack.c.l.b16 %v3011
  %v3345 = vunpack.c.h.b16 %v3011
  %v3346 = vunpack.c.l.b16 %v3012
  %v3347 = vunpack.c.h.b16 %v3012
  %v3348 = vunpack.c.l.b16 %v3013
  %v3349 = vunpack.c.h.b16 %v3013
  %v3350 = vunpack.c.l.b16 %v3014
  %v3351 = vunpack.c.h.b16 %v3014
  %v3352 = vunpack.c.l.b16 %v3015
  %v3353 = vunpack.c.h.b16 %v3015
  %v3354 = vunpack.c.l.b16 %v3016
  %v3355 = vunpack.c.h.b16 %v3016
  %v3356 = vunpack.c.l.b16 %v3017
  %v3357 = vunpack.c.h.b16 %v3017
  %v3358 = vunpack.c.l.b16 %v3018
  %v3359 = vunpack.c.h.b16 %v3018
  %v3360 = vunpack.c.l.b16 %v3019
  %v3361 = vunpack.c.h.b16 %v3019
  %v3362 = vunpack.c.l.b16 %v3020
  %v3363 = vunpack.c.h.b16 %v3020
  %v3364 = vunpack.c.l.b16 %v3021
  %v3365 = vunpack.c.h.b16 %v3021
  %v3366 = vunpack.c.l.b16 %v3022
  %v3367 = vunpack.c.h.b16 %v3022
  %v3368 = vunpack.c.l.b16 %v3023
  %v3369 = vunpack.c.h.b16 %v3023
  %v3370 = vunpack.c.l.b16 %v3024
  %v3371 = vunpack.c.h.b16 %v3024
  %v3372 = vunpack.c.l.b16 %v3025
  %v3373 = vunpack.c.h.b16 %v3025
  %v3374 = vunpack.c.l.b16 %v3026
  %v3375 = vunpack.c.h.b16 %v3026
  %v3376 = vunpack.c.l.b16 %v3027
  %v3377 = vunpack.c.h.b16 %v3027
  %v3378 = vunpack.c.l.b16 %v3028
  %v3379 = vunpack.c.h.b16 %v3028
  %v3380 = vunpack.c.l.b16 %v3029
  %v3381 = vunpack.c.h.b16 %v3029
  %v3382 = vunpack.c.l.b16 %v3030
  %v3383 = vunpack.c.h.b16 %v3030
  %v3384 = vunpack.c.l.b16 %v3031
  %v3385 = vunpack.c.h.b16 %v3031
  %v3386 = vunpack.c.l.b16 %v3032
  %v3387 = vunpack.c.h.b16 %v3032
  %v3388 = vunpack.c.l.b16 %v3033
  %v3389 = vunpack.c.h.b16 %v3033
  %v3390 = vunpack.c.l.b16 %v3034
  %v3391 = vunpack.c.h.b16 %v3034
  %v3392 = vunpack.c.l.b16 %v3035
  %v3393 = vunpack.c.h.b16 %v3035
  %v3394 = vunpack.c.l.b16 %v3036
  %v3395 = vunpack.c.h.b16 %v3036
  %v3396 = vunpack.c.l.b16 %v3037
  %v3397 = vunpack.c.h.b16 %v3037
  %v3398 = vunpack.c.l.b16 %v3038
  %v3399 = vunpack.c.h.b16 %v3038
  %v3400 = vunpack.c.l.b16 %v3039
  %v3401 = vunpack.c.h.b16 %v3039
  %v3402 = vunpack.c.l.b16 %v3040
  %v3403 = vunpack.c.h.b16 %v3040
  %v3404 = vunpack.c.l.b16 %v3041
  %v3405 = vunpack.c.h.b16 %v3041
  %v3406 = vunpack.c.l.b16 %v3042
  %v3407 = vunpack.c.h.b16 %v3042
  %v3408 = vunpack.c.l.b16 %v3043
  %v3409 = vunpack.c.h.b16 %v3043
  %v3410 = vunpack.c.l.b16 %v3044
  %v3411 = vunpack.c.h.b16 %v3044
  %v3412 = vunpack.c.l.b16 %v3045
  %v3413 = vunpack.c.h.b16 %v3045
  %v3414 = vunpack.c.l.b16 %v3046
  %v3415 = vunpack.c.h.b16 %v3046
  %v3416 = vunpack.c.l.b16 %v3047
  %v3417 = vunpack.c.h.b16 %v3047
  %v3418 = vunpack.c.l.b16 %v3048
  %v3419 = vunpack.c.h.b16 %v3048
  %v3420 = vunpack.c.l.b16 %v3049
  %v3421 = vunpack.c.h.b16 %v3049
  %v3422 = vunpack.c.l.b16 %v3050
  %v3423 = vunpack.c.h.b16 %v3050
  %v3424 = vunpack.c.l.b16 %v3051
  %v3425 = vunpack.c.h.b16 %v3051
  %v3426 = vunpack.c.l.b16 %v3052
  %v3427 = vunpack.c.h.b16 %v3052
  %v3428 = vunpack.c.l.b16 %v3053
  %v3429 = vunpack.c.h.b16 %v3053
  %v3430 = vunpack.c.l.b16 %v3054
  %v3431 = vunpack.c.h.b16 %v3054
  %v3432 = vunpack.c.l.b16 %v3055
  %v3433 = vunpack.c.h.b16 %v3055
  %v3434 = vunpack.c.l.b16 %v3056
  %v3435 = vunpack.c.h.b16 %v3056
  %v3436 = vunpack.c.l.b16 %v3057
  %v3437 = vunpack.c.h.b16 %v3057
  %v3438 = vunpack.c.l.b16 %v3058
  %v3439 = vunpack.c.h.b16 %v3058
  %v3440 = vunpack.c.l.b16 %v3059
  %v3441 = vunpack.c.h.b16 %v3059
  %v3442 = vunpack.c.l.b16 %v3060
  %v3443 = vunpack.c.h.b16 %v3060
  %v3444 = vunpack.c.l.b16 %v3061
  %v3445 = vunpack.c.h.b16 %v3061
  %v3446 = vunpack.c.l.b16 %v3062
  %v3447 = vunpack.c.h.b16 %v3062
  %v3448 = vunpack.c.l.b16 %v3063
  %v3449 = vunpack.c.h.b16 %v3063
  %v3450 = vunpack.c.l.b16 %v3064
  %v3451 = vunpack.c.h.b16 %v3064
  %v3452 = vunpack.c.l.b16 %v3065
  %v3453 = vunpack.c.h.b16 %v3065
  %v3454 = vunpack.c.l.b16 %v3066
  %v3455 = vunpack.c.h.b16 %v3066
  %v3456 = vunpack.c.l.b16 %v3067
  %v3457 = vunpack.c.h.b16 %v3067
  %v3458 = vunpack.c.l.b16 %v3068
  %v3459 = vunpack.c.h.b16 %v3068
  %v3460 = vunpack.c.l.b16 %v3069
  %v3461 = vunpack.c.h.b16 %v3069
  %v3462 = vunpack.c.l.b16 %v3070
  %v3463 = vunpack.c.h.b16 %v3070
  %v3464 = vunpack.c.l.b16 %v3071
  %v3465 = vunpack.c.h.b16 %v3071
  %v3466 = vunpack.c.l.b16 %v3072
  %v3467 = vunpack.c.h.b16 %v3072
  %v3468 = vunpack.c.l.b16 %v3073
  %v3469 = vunpack.c.h.b16 %v3073
  %v3470 = vunpack.c.l.b16 %v3074
  %v3471 = vunpack.c.h.b16 %v3074
  %v3472 = vunpack.c.l.b16 %v3075
  %v3473 = vunpack.c.h.b16 %v3075
  %v3474 = vunpack.c.l.b16 %v3076
  %v3475 = vunpack.c.h.b16 %v3076
  %v3476 = vunpack.c.l.b16 %v3077
  %v3477 = vunpack.c.h.b16 %v3077
  %v3478 = vunpack.c.l.b16 %v3078
  %v3479 = vunpack.c.h.b16 %v3078
  %v3480 = vunpack.c.l.b16 %v3079
  %v3481 = vunpack.c.h.b16 %v3079
  %v3482 = vunpack.c.l.b16 %v3080
  %v3483 = vunpack.c.h.b16 %v3080
  %v3484 = vunpack.c.l.b16 %v3081
  %v3485 = vunpack.c.h.b16 %v3081
  %v3486 = vunpack.c.l.b16 %v3082
  %v3487 = vunpack.c.h.b16 %v3082
  %v3488 = vunpack.c.l.b16 %v3083
  %v3489 = vunpack.c.h.b16 %v3083
  %v3490 = vpack.c.b16 %v3238, %v3234
  %v3491 = vpack.c.b16 %v3239, %v3235
  %v3492 = vpack.c.b16 %v3240, %v3236
  %v3493 = vpack.c.b16 %v3241, %v3237
  %v3494 = vpack.c.b16 %v3246, %v3242
  %v3495 = vpack.c.b16 %v3247, %v3243
  %v3496 = vpack.c.b16 %v3248, %v3244
  %v3497 = vpack.c.b16 %v3249, %v3245
  %v3498 = vpack.c.b16 %v3254, %v3250
  %v3499 = vpack.c.b16 %v3255, %v3251
  %v3500 = vpack.c.b16 %v3256, %v3252
  %v3501 = vpack.c.b16 %v3257, %v3253
  %v3502 = vpack.c.b16 %v3262, %v3258
  %v3503 = vpack.c.b16 %v3263, %v3259
  %v3504 = vpack.c.b16 %v3264, %v3260
  %v3505 = vpack.c.b16 %v3265, %v3261
  %v3506 = vpack.c.b16 %v3270, %v3266
  %v3507 = vpack.c.b16 %v3271, %v3267
  %v3508 = vpack.c.b16 %v3272, %v3268
  %v3509 = vpack.c.b16 %v3273, %v3269
  %v3510 = vpack.c.b16 %v3278, %v3274
  %v3511 = vpack.c.b16 %v3279, %v3275
  %v3512 = vpack.c.b16 %v3280, %v3276
  %v3513 = vpack.c.b16 %v3281, %v3277
  %v3514 = vpack.c.b16 %v3286, %v3282
  %v3515 = vpack.c.b16 %v3287, %v3283
  %v3516 = vpack.c.b16 %v3288, %v3284
  %v3517 = vpack.c.b16 %v3289, %v3285
  %v3518 = vpack.c.b16 %v3294, %v3290
  %v3519 = vpack.c.b16 %v3295, %v3291
  %v3520 = vpack.c.b16 %v3296, %v3292
  %v3521 = vpack.c.b16 %v3297, %v3293
  %v3522 = vpack.c.b16 %v3302, %v3298
  %v3523 = vpack.c.b16 %v3303, %v3299
  %v3524 = vpack.c.b16 %v3304, %v3300
  %v3525 = vpack.c.b16 %v3305, %v3301
  %v3526 = vpack.c.b16 %v3310, %v3306
  %v3527 = vpack.c.b16 %v3311, %v3307
  %v3528 = vpack.c.b16 %v3312, %v3308
  %v3529 = vpack.c.b16 %v3313, %v3309
  %v3530 = vpack.c.b16 %v3318, %v3314
  %v3531 = vpack.c.b16 %v3319, %v3315
  %v3532 = vpack.c.b16 %v3320, %v3316
  %v3533 = vpack.c.b16 %v3321, %v3317
  %v3534 = vpack.c.b16 %v3326, %v3322
  %v3535 = vpack.c.b16 %v3327, %v3323
  %v3536 = vpack.c.b16 %v3328, %v3324
  %v3537 = vpack.c.b16 %v3329, %v3325
  %v3538 = vpack.c.b16 %v3334, %v3330
  %v3539 = vpack.c.b16 %v3335, %v3331
  %v3540 = vpack.c.b16 %v3336, %v3332
  %v3541 = vpack.c.b16 %v3337, %v3333
  %v3542 = vpack.c.b16 %v3342, %v3338
  %v3543 = vpack.c.b16 %v3343, %v3339
  %v3544 = vpack.c.b16 %v3344, %v3340
  %v3545 = vpack.c.b16 %v3345, %v3341
  %v3546 = vpack.c.b16 %v3350, %v3346
  %v3547 = vpack.c.b16 %v3351, %v3347
  %v3548 = vpack.c.b16 %v3352, %v3348
  %v3549 = vpack.c.b16 %v3353, %v3349
  %v3550 = vpack.c.b16 %v3358, %v3354
  %v3551 = vpack.c.b16 %v3359, %v3355
  %v3552 = vpack.c.b16 %v3360, %v3356
  %v3553 = vpack.c.b16 %v3361, %v3357
  %v3554 = vpack.c.b16 %v3366, %v3362
  %v3555 = vpack.c.b16 %v3367, %v3363
  %v3556 = vpack.c.b16 %v3368, %v3364
  %v3557 = vpack.c.b16 %v3369, %v3365
  %v3558 = vpack.c.b16 %v3374, %v3370
  %v3559 = vpack.c.b16 %v3375, %v3371
  %v3560 = vpack.c.b16 %v3376, %v3372
  %v3561 = vpack.c.b16 %v3377, %v3373
  %v3562 = vpack.c.b16 %v3382, %v3378
  %v3563 = vpack.c.b16 %v3383, %v3379
  %v3564 = vpack.c.b16 %v3384, %v3380
  %v3565 = vpack.c.b16 %v3385, %v3381
  %v3566 = vpack.c.b16 %v3390, %v3386
  %v3567 = vpack.c.b16 %v3391, %v3387
  %v3568 = vpack.c.b16 %v3392, %v3388
  %v3569 = vpack.c.b16 %v3393, %v3389
  %v3570 = vpack.c.b16 %v3398, %v3394
  %v3571 = vpack.c.b16 %v3399, %v3395
  %v3572 = vpack.c.b16 %v3400, %v3396
  %v3573 = vpack.c.b16 %v3401, %v3397
  %v3574 = vpack.c.b16 %v3406, %v3402
  %v3575 = vpack.c.b16 %v3407, %v3403
  %v3576 = vpack.c.b16 %v3408, %v3404
  %v3577 = vpack.c.b16 %v3409, %v3405
  %v3578 = vpack.c.b16 %v3414, %v3410
  %v3579 = vpack.c.b16 %v3415, %v3411
  %v3580 = vpack.c.b16 %v3416, %v3412
  %v3581 = vpack.c.b16 %v3417, %v3413
  %v3582 = vpack.c.b16 %v3422, %v3418
  %v3583 = vpack.c.b16 %v3423, %v3419
  %v3584 = vpack.c.b16 %v3424, %v3420
  %v3585 = vpack.c.b16 %v3425, %v3421
  %v3586 = vpack.c.b16 %v3430, %v3426
  %v3587 = vpack.c.b16 %v3431, %v3427
  %v3588 = vpack.c.b16 %v3432, %v3428
  %v3589 = vpack.c.b16 %v3433, %v3429
  %v3590 = vpack.c.b16 %v3438, %v3434
  %v3591 = vpack.c.b16 %v3439, %v3435
  %v3592 = vpack.c.b16 %v3440, %v3436
  %v3593 = vpack.c.b16 %v3441, %v3437
  %v3594 = vpack.c.b16 %v3446, %v3442
  %v3595 = vpack.c.b16 %v3447, %v3443
  %v3596 = vpack.c.b16 %v3448, %v3444
  %v3597 = vpack.c.b16 %v3449, %v3445
  %v3598 = vpack.c.b16 %v3454, %v3450
  %v3599 = vpack.c.b16 %v3455, %v3451
  %v3600 = vpack.c.b16 %v3456, %v3452
  %v3601 = vpack.c.b16 %v3457, %v3453
  %v3602 = vpack.c.b16 %v3462, %v3458
  %v3603 = vpack.c.b16 %v3463, %v3459
  %v3604 = vpack.c.b16 %v3464, %v3460
  %v3605 = vpack.c.b16 %v3465, %v3461
  %v3606 = vpack.c.b16 %v3470, %v3466
  %v3607 = vpack.c.b16 %v3471, %v3467
  %v3608 = vpack.c.b16 %v3472, %v3468
  %v3609 = vpack.c.b16 %v3473, %v3469
  %v3610 = vpack.c.b16 %v3478, %v3474
  %v3611 = vpack.c.b16 %v3479, %v3475
  %v3612 = vpack.c.b16 %v3480, %v3476
  %v3613 = vpack.c.b16 %v3481, %v3477
  %v3614 = vpack.c.b16 %v3486, %v3482
  %v3615 = vpack.c.b16 %v3487, %v3483
  %v3616 = vpack.c.b16 %v3488, %v3484
  %v3617 = vpack.c.b16 %v3489, %v3485
  %3746 = vmatprep.subr.bf16.mxu0 %v3491
  %3747 = vmatpush1.bf16.msra.mxu0 %v3490
  %3748 = vmatprep.subr.bf16.mxu0 %v3495
  %3749 = vmatpush1.bf16.msra.mxu0 %v3494
  %3750 = vmatprep.subr.bf16.mxu0 %v3499
  %3751 = vmatpush1.bf16.msra.mxu0 %v3498
  %3752 = vmatprep.subr.bf16.mxu0 %v3503
  %3753 = vmatpush1.bf16.msra.mxu0 %v3502
  %3754 = vmatprep.subr.bf16.mxu0 %v3507
  %3755 = vmatpush1.bf16.msra.mxu0 %v3506
  %3756 = vmatprep.subr.bf16.mxu0 %v3511
  %3757 = vmatpush1.bf16.msra.mxu0 %v3510
  %3758 = vmatprep.subr.bf16.mxu0 %v3515
  %3759 = vmatpush1.bf16.msra.mxu0 %v3514
  %3760 = vmatprep.subr.bf16.mxu0 %v3519
  %3761 = vmatpush1.bf16.msra.mxu0 %v3518
  %3762 = vmatprep.subr.bf16.mxu0 %v3523
  %3763 = vmatpush1.bf16.msra.mxu0 %v3522
  %3764 = vmatprep.subr.bf16.mxu0 %v3527
  %3765 = vmatpush1.bf16.msra.mxu0 %v3526
  %3766 = vmatprep.subr.bf16.mxu0 %v3531
  %3767 = vmatpush1.bf16.msra.mxu0 %v3530
  %3768 = vmatprep.subr.bf16.mxu0 %v3535
  %3769 = vmatpush1.bf16.msra.mxu0 %v3534
  %3770 = vmatprep.subr.bf16.mxu0 %v3539
  %3771 = vmatpush1.bf16.msra.mxu0 %v3538
  %3772 = vmatprep.subr.bf16.mxu0 %v3543
  %3773 = vmatpush1.bf16.msra.mxu0 %v3542
  %3774 = vmatprep.subr.bf16.mxu0 %v3547
  %3775 = vmatpush1.bf16.msra.mxu0 %v3546
  %3776 = vmatprep.subr.bf16.mxu0 %v3551
  %3777 = vmatpush1.bf16.msra.mxu0 %v3550
  %3778 = vmatprep.mubr.bf16.mxu0 %v2949
  %3779 = vmatmul.mubr.bf16.gmra.mrb[0].mxu0 %v2948
  %v3780 = vpop.f32.mrb[0].mxu0
  %v3781 = vadd.f32 %v3089, %v3780
  %v3782 = vpop.f32.mrb[0].mxu0
  %v3783 = vadd.f32 %v3093, %v3782
  %v3784 = vpop.f32.mrb[0].mxu0
  %v3785 = vadd.f32 %v3089, %v3784
  %v3786 = vpop.f32.mrb[0].mxu0
  %v3787 = vadd.f32 %v3093, %v3786
  %3788 = vmatprep.mubr.bf16.mxu0 %v2953
  %3789 = vmatmul.mubr.bf16.gmra.mrb[0].mxu0 %v2952
  %v3790 = vpop.f32.mrb[0].mxu0
  %v3791 = vadd.f32 %v3089, %v3790
  %v3792 = vpop.f32.mrb[0].mxu0
  %v3793 = vadd.f32 %v3093, %v3792
  %v3794 = vpop.f32.mrb[0].mxu0
  %v3795 = vpop.f32.mrb[0].mxu0
  %3796 = vdwg.mxu0
  %3797 = vmatprep.subr.bf16.mxu0 %v3555
  %3798 = vmatpush1.bf16.msra.mxu0 %v3554
  %3799 = vmatprep.subr.bf16.mxu0 %v3559
  %3800 = vmatpush1.bf16.msra.mxu0 %v3558
  %3801 = vmatprep.subr.bf16.mxu0 %v3563
  %3802 = vmatpush1.bf16.msra.mxu0 %v3562
  %3803 = vmatprep.subr.bf16.mxu0 %v3567
  %3804 = vmatpush1.bf16.msra.mxu0 %v3566
  %3805 = vmatprep.subr.bf16.mxu0 %v3571
  %3806 = vmatpush1.bf16.msra.mxu0 %v3570
  %3807 = vmatprep.subr.bf16.mxu0 %v3575
  %3808 = vmatpush1.bf16.msra.mxu0 %v3574
  %3809 = vmatprep.subr.bf16.mxu0 %v3579
  %3810 = vmatpush1.bf16.msra.mxu0 %v3578
  %3811 = vmatprep.subr.bf16.mxu0 %v3583
  %3812 = vmatpush1.bf16.msra.mxu0 %v3582
  %3813 = vmatprep.subr.bf16.mxu0 %v3587
  %3814 = vmatpush1.bf16.msra.mxu0 %v3586
  %3815 = vmatprep.subr.bf16.mxu0 %v3591
  %3816 = vmatpush1.bf16.msra.mxu0 %v3590
  %3817 = vmatprep.subr.bf16.mxu0 %v3595
  %3818 = vmatpush1.bf16.msra.mxu0 %v3594
  %3819 = vmatprep.subr.bf16.mxu0 %v3599
  %3820 = vmatpush1.bf16.msra.mxu0 %v3598
  %3821 = vmatprep.subr.bf16.mxu0 %v3603
  %3822 = vmatpush1.bf16.msra.mxu0 %v3602
  %3823 = vmatprep.subr.bf16.mxu0 %v3607
  %3824 = vmatpush1.bf16.msra.mxu0 %v3606
  %3825 = vmatprep.subr.bf16.mxu0 %v3611
  %3826 = vmatpush1.bf16.msra.mxu0 %v3610
  %3827 = vmatprep.subr.bf16.mxu0 %v3615
  %3828 = vmatpush1.bf16.msra.mxu0 %v3614
  %3829 = vmatprep.mubr.bf16.mxu0 %v2951
  %3830 = vmatmul.mubr.bf16.gmra.mrb[0].mxu0 %v2950
  %v3831 = vpop.f32.mrb[0].mxu0
  %v3832 = vadd.f32 %v3781, %v3831
  %v3833 = vpop.f32.mrb[0].mxu0
  %v3834 = vadd.f32 %v3783, %v3833
  %v3835 = vpop.f32.mrb[0].mxu0
  %v3836 = vadd.f32 %v3785, %v3835
  %v3837 = vpop.f32.mrb[0].mxu0
  %v3838 = vadd.f32 %v3787, %v3837
  %3839 = vmatprep.mubr.bf16.mxu0 %v2955
  %3840 = vmatmul.mubr.bf16.gmra.mrb[0].mxu0 %v2954
  %v3841 = vpop.f32.mrb[0].mxu0
  %v3842 = vadd.f32 %v3791, %v3841
  %v3843 = vpop.f32.mrb[0].mxu0
  %v3844 = vadd.f32 %v3793, %v3843
  %v3845 = vpop.f32.mrb[0].mxu0
  %v3846 = vpop.f32.mrb[0].mxu0
  %3847 = vdwg.mxu0
  %3848 = vmatprep.subr.bf16.mxu0 %v3493
  %3849 = vmatpush1.bf16.msra.mxu0 %v3492
  %3850 = vmatprep.subr.bf16.mxu0 %v3497
  %3851 = vmatpush1.bf16.msra.mxu0 %v3496
  %3852 = vmatprep.subr.bf16.mxu0 %v3501
  %3853 = vmatpush1.bf16.msra.mxu0 %v3500
  %3854 = vmatprep.subr.bf16.mxu0 %v3505
  %3855 = vmatpush1.bf16.msra.mxu0 %v3504
  %3856 = vmatprep.subr.bf16.mxu0 %v3509
  %3857 = vmatpush1.bf16.msra.mxu0 %v3508
  %3858 = vmatprep.subr.bf16.mxu0 %v3513
  %3859 = vmatpush1.bf16.msra.mxu0 %v3512
  %3860 = vmatprep.subr.bf16.mxu0 %v3517
  %3861 = vmatpush1.bf16.msra.mxu0 %v3516
  %3862 = vmatprep.subr.bf16.mxu0 %v3521
  %3863 = vmatpush1.bf16.msra.mxu0 %v3520
  %3864 = vmatprep.subr.bf16.mxu0 %v3525
  %3865 = vmatpush1.bf16.msra.mxu0 %v3524
  %3866 = vmatprep.subr.bf16.mxu0 %v3529
  %3867 = vmatpush1.bf16.msra.mxu0 %v3528
  %3868 = vmatprep.subr.bf16.mxu0 %v3533
  %3869 = vmatpush1.bf16.msra.mxu0 %v3532
  %3870 = vmatprep.subr.bf16.mxu0 %v3537
  %3871 = vmatpush1.bf16.msra.mxu0 %v3536
  %3872 = vmatprep.subr.bf16.mxu0 %v3541
  %3873 = vmatpush1.bf16.msra.mxu0 %v3540
  %3874 = vmatprep.subr.bf16.mxu0 %v3545
  %3875 = vmatpush1.bf16.msra.mxu0 %v3544
  %3876 = vmatprep.subr.bf16.mxu0 %v3549
  %3877 = vmatpush1.bf16.msra.mxu0 %v3548
  %3878 = vmatprep.subr.bf16.mxu0 %v3553
  %3879 = vmatpush1.bf16.msra.mxu0 %v3552
  %3880 = vmatprep.mubr.bf16.mxu0 %v2949
  %3881 = vmatmul.mubr.bf16.gmra.mrb[0].mxu0 %v2948
  %v3882 = vpop.f32.mrb[0].mxu0
  %v3883 = vadd.f32 %v3097, %v3882
  %v3884 = vpop.f32.mrb[0].mxu0
  %v3885 = vadd.f32 %v3101, %v3884
  %v3886 = vpop.f32.mrb[0].mxu0
  %v3887 = vadd.f32 %v3097, %v3886
  %v3888 = vpop.f32.mrb[0].mxu0
  %v3889 = vadd.f32 %v3101, %v3888
  %3890 = vmatprep.mubr.bf16.mxu0 %v2953
  %3891 = vmatmul.mubr.bf16.gmra.mrb[0].mxu0 %v2952
  %v3892 = vpop.f32.mrb[0].mxu0
  %v3893 = vadd.f32 %v3097, %v3892
  %v3894 = vpop.f32.mrb[0].mxu0
  %v3895 = vadd.f32 %v3101, %v3894
  %v3896 = vpop.f32.mrb[0].mxu0
  %v3897 = vpop.f32.mrb[0].mxu0
  %3898 = vdwg.mxu0
  %3899 = vmatprep.subr.bf16.mxu0 %v3557
  %3900 = vmatpush1.bf16.msra.mxu0 %v3556
  %3901 = vmatprep.subr.bf16.mxu0 %v3561
  %3902 = vmatpush1.bf16.msra.mxu0 %v3560
  %3903 = vmatprep.subr.bf16.mxu0 %v3565
  %3904 = vmatpush1.bf16.msra.mxu0 %v3564
  %3905 = vmatprep.subr.bf16.mxu0 %v3569
  %3906 = vmatpush1.bf16.msra.mxu0 %v3568
  %3907 = vmatprep.subr.bf16.mxu0 %v3573
  %3908 = vmatpush1.bf16.msra.mxu0 %v3572
  %3909 = vmatprep.subr.bf16.mxu0 %v3577
  %3910 = vmatpush1.bf16.msra.mxu0 %v3576
  %3911 = vmatprep.subr.bf16.mxu0 %v3581
  %3912 = vmatpush1.bf16.msra.mxu0 %v3580
  %3913 = vmatprep.subr.bf16.mxu0 %v3585
  %3914 = vmatpush1.bf16.msra.mxu0 %v3584
  %3915 = vmatprep.subr.bf16.mxu0 %v3589
  %3916 = vmatpush1.bf16.msra.mxu0 %v3588
  %3917 = vmatprep.subr.bf16.mxu0 %v3593
  %3918 = vmatpush1.bf16.msra.mxu0 %v3592
  %3919 = vmatprep.subr.bf16.mxu0 %v3597
  %3920 = vmatpush1.bf16.msra.mxu0 %v3596
  %3921 = vmatprep.subr.bf16.mxu0 %v3601
  %3922 = vmatpush1.bf16.msra.mxu0 %v3600
  %3923 = vmatprep.subr.bf16.mxu0 %v3605
  %3924 = vmatpush1.bf16.msra.mxu0 %v3604
  %3925 = vmatprep.subr.bf16.mxu0 %v3609
  %3926 = vmatpush1.bf16.msra.mxu0 %v3608
  %3927 = vmatprep.subr.bf16.mxu0 %v3613
  %3928 = vmatpush1.bf16.msra.mxu0 %v3612
  %3929 = vmatprep.subr.bf16.mxu0 %v3617
  %3930 = vmatpush1.bf16.msra.mxu0 %v3616
  %3931 = vmatprep.mubr.bf16.mxu0 %v2951
  %3932 = vmatmul.mubr.bf16.gmra.mrb[0].mxu0 %v2950
  %v3933 = vpop.f32.mrb[0].mxu0
  %v3934 = vadd.f32 %v3883, %v3933
  %v3935 = vpop.f32.mrb[0].mxu0
  %v3936 = vadd.f32 %v3885, %v3935
  %v3937 = vpop.f32.mrb[0].mxu0
  %v3938 = vadd.f32 %v3887, %v3937
  %v3939 = vpop.f32.mrb[0].mxu0
  %v3940 = vadd.f32 %v3889, %v3939
  %3941 = vmatprep.mubr.bf16.mxu0 %v2955
  %3942 = vmatmul.mubr.bf16.gmra.mrb[0].mxu0 %v2954
  %v3943 = vpop.f32.mrb[0].mxu0
  %v3944 = vadd.f32 %v3893, %v3943
  %v3945 = vpop.f32.mrb[0].mxu0
  %v3946 = vadd.f32 %v3895, %v3945
  %v3947 = vpop.f32.mrb[0].mxu0
  %v3948 = vpop.f32.mrb[0].mxu0
  %3949 = vdwg.mxu0
  %v3950 = vmax.f32 %v3832, 0.0
  %v3951 = vmax.f32 %v3834, 0.0
  %v3952 = vmax.f32 %v3934, 0.0
  %v3953 = vmax.f32 %v3936, 0.0
  %v3954 = vmax.f32 %v3836, 0.0
  %v3955 = vmax.f32 %v3838, 0.0
  %v3956 = vmax.f32 %v3938, 0.0
  %v3957 = vmax.f32 %v3940, 0.0
  %v3958 = vmax.f32 %v3842, 0.0
  %v3959 = vmax.f32 %v3844, 0.0
  %v3960 = vmax.f32 %v3944, 0.0
  %v3961 = vmax.f32 %v3946, 0.0
  %v3962 = vpack.c.bf16 %v3954, %v3950
  %v3963 = vpack.c.bf16 %v3955, %v3951
  %v3964 = vpack.c.bf16 %v3956, %v3952
  %v3965 = vpack.c.bf16 %v3957, %v3953
  %v3966 = vpack.c.bf16 %v3958, %v3958
  %v3967 = vpack.c.bf16 %v3959, %v3959
  %v3968 = vpack.c.bf16 %v3960, %v3960
  %v3969 = vpack.c.bf16 %v3961, %v3961
  %v3970 = vld [vmem:[%s35] sm:$0xff]
  %v3971 = vld [vmem:[%s35 + $0x8] sm:$0xff]
  %v3972 = vld [vmem:[%s35 + $0x10] sm:$0xff]
  %v3973 = vld [vmem:[%s35 + $0x18] sm:$0xff]
  %v3974 = vld [vmem:[%s35 + $0x20] sm:$0xff]
  %v3975 = vld [vmem:[%s35 + $0x28] sm:$0xff]
  %v3976 = vld [vmem:[%s35 + $0x30] sm:$0xff]
  %v3977 = vld [vmem:[%s35 + $0x38] sm:$0xff]
  %v3978 = vld [vmem:[%s35 + $0x40] sm:$0xff]
  %v3979 = vld [vmem:[%s35 + $0x48] sm:$0xff]
  %v3980 = vld [vmem:[%s35 + $0x50] sm:$0xff]
  %v3981 = vld [vmem:[%s35 + $0x58] sm:$0xff]
  %v3982 = vld [vmem:[%s35 + $0x60] sm:$0xff]
  %v3983 = vld [vmem:[%s35 + $0x68] sm:$0xff]
  %v3984 = vld [vmem:[%s35 + $0x70] sm:$0xff]
  %v3985 = vld [vmem:[%s35 + $0x78] sm:$0xff]
  %v3986 = vld [vmem:[%s35 + $0x80] sm:$0xff]
  %v3987 = vld [vmem:[%s35 + $0x88] sm:$0xff]
  %v3988 = vld [vmem:[%s35 + $0x90] sm:$0xff]
  %v3989 = vld [vmem:[%s35 + $0x98] sm:$0xff]
  %v3990 = vld [vmem:[%s35 + $0xa0] sm:$0xff]
  %v3991 = vld [vmem:[%s35 + $0xa8] sm:$0xff]
  %v3992 = vld [vmem:[%s35 + $0xb0] sm:$0xff]
  %v3993 = vld [vmem:[%s35 + $0xb8] sm:$0xff]
  %v3994 = vld [vmem:[%s35 + $0xc0] sm:$0xff]
  %v3995 = vld [vmem:[%s35 + $0xc8] sm:$0xff]
  %v3996 = vld [vmem:[%s35 + $0xd0] sm:$0xff]
  %v3997 = vld [vmem:[%s35 + $0xd8] sm:$0xff]
  %v3998 = vld [vmem:[%s35 + $0xe0] sm:$0xff]
  %v3999 = vld [vmem:[%s35 + $0xe8] sm:$0xff]
  %v4000 = vld [vmem:[%s35 + $0xf0] sm:$0xff]
  %v4001 = vld [vmem:[%s35 + $0xf8] sm:$0xff]
  %v4002 = vld [vmem:[%s35 + $0x100] sm:$0xff]
  %v4003 = vld [vmem:[%s35 + $0x108] sm:$0xff]
  %v4004 = vld [vmem:[%s35 + $0x110] sm:$0xff]
  %v4005 = vld [vmem:[%s35 + $0x118] sm:$0xff]
  %v4006 = vld [vmem:[%s35 + $0x120] sm:$0xff]
  %v4007 = vld [vmem:[%s35 + $0x128] sm:$0xff]
  %v4008 = vld [vmem:[%s35 + $0x130] sm:$0xff]
  %v4009 = vld [vmem:[%s35 + $0x138] sm:$0xff]
  %v4010 = vld [vmem:[%s35 + $0x140] sm:$0xff]
  %v4011 = vld [vmem:[%s35 + $0x148] sm:$0xff]
  %v4012 = vld [vmem:[%s35 + $0x150] sm:$0xff]
  %v4013 = vld [vmem:[%s35 + $0x158] sm:$0xff]
  %v4014 = vld [vmem:[%s35 + $0x160] sm:$0xff]
  %v4015 = vld [vmem:[%s35 + $0x168] sm:$0xff]
  %v4016 = vld [vmem:[%s35 + $0x170] sm:$0xff]
  %v4017 = vld [vmem:[%s35 + $0x178] sm:$0xff]
  %v4018 = vld [vmem:[%s35 + $0x180] sm:$0xff]
  %v4019 = vld [vmem:[%s35 + $0x188] sm:$0xff]
  %v4020 = vld [vmem:[%s35 + $0x190] sm:$0xff]
  %v4021 = vld [vmem:[%s35 + $0x198] sm:$0xff]
  %v4022 = vld [vmem:[%s35 + $0x1a0] sm:$0xff]
  %v4023 = vld [vmem:[%s35 + $0x1a8] sm:$0xff]
  %v4024 = vld [vmem:[%s35 + $0x1b0] sm:$0xff]
  %v4025 = vld [vmem:[%s35 + $0x1b8] sm:$0xff]
  %v4026 = vld [vmem:[%s35 + $0x1c0] sm:$0xff]
  %v4027 = vld [vmem:[%s35 + $0x1c8] sm:$0xff]
  %v4028 = vld [vmem:[%s35 + $0x1d0] sm:$0xff]
  %v4029 = vld [vmem:[%s35 + $0x1d8] sm:$0xff]
  %v4030 = vld [vmem:[%s35 + $0x1e0] sm:$0xff]
  %v4031 = vld [vmem:[%s35 + $0x1e8] sm:$0xff]
  %v4032 = vld [vmem:[%s35 + $0x1f0] sm:$0xff]
  %v4033 = vld [vmem:[%s35 + $0x1f8] sm:$0xff]
  %v4034 = vld [vmem:[%s17 + $0x11] sm:$0x3]
  %v4036 = vlaneseq
  %v4037 = vshrl.u32 %v4036, 7
  %v4038 = vsub.s32 0, %v4037
  %v4039 = vrot.slane %v4034, %v4038
  %v4040 = vlaneseq
  %v4041 = vshrl.u32 %v4040, 7
  %v4042 = vsub.s32 1, %v4041
  %v4043 = vrot.slane %v4034, %v4042
  %v4110 = vunpack.c.l.b16 %v3970
  %v4111 = vunpack.c.h.b16 %v3970
  %v4112 = vunpack.c.l.b16 %v3971
  %v4113 = vunpack.c.h.b16 %v3971
  %v4114 = vunpack.c.l.b16 %v3972
  %v4115 = vunpack.c.h.b16 %v3972
  %v4116 = vunpack.c.l.b16 %v3973
  %v4117 = vunpack.c.h.b16 %v3973
  %v4118 = vunpack.c.l.b16 %v3974
  %v4119 = vunpack.c.h.b16 %v3974
  %v4120 = vunpack.c.l.b16 %v3975
  %v4121 = vunpack.c.h.b16 %v3975
  %v4122 = vunpack.c.l.b16 %v3976
  %v4123 = vunpack.c.h.b16 %v3976
  %v4124 = vunpack.c.l.b16 %v3977
  %v4125 = vunpack.c.h.b16 %v3977
  %v4126 = vunpack.c.l.b16 %v3978
  %v4127 = vunpack.c.h.b16 %v3978
  %v4128 = vunpack.c.l.b16 %v3979
  %v4129 = vunpack.c.h.b16 %v3979
  %v4130 = vunpack.c.l.b16 %v3980
  %v4131 = vunpack.c.h.b16 %v3980
  %v4132 = vunpack.c.l.b16 %v3981
  %v4133 = vunpack.c.h.b16 %v3981
  %v4134 = vunpack.c.l.b16 %v3982
  %v4135 = vunpack.c.h.b16 %v3982
  %v4136 = vunpack.c.l.b16 %v3983
  %v4137 = vunpack.c.h.b16 %v3983
  %v4138 = vunpack.c.l.b16 %v3984
  %v4139 = vunpack.c.h.b16 %v3984
  %v4140 = vunpack.c.l.b16 %v3985
  %v4141 = vunpack.c.h.b16 %v3985
  %v4142 = vunpack.c.l.b16 %v3986
  %v4143 = vunpack.c.h.b16 %v3986
  %v4144 = vunpack.c.l.b16 %v3987
  %v4145 = vunpack.c.h.b16 %v3987
  %v4146 = vunpack.c.l.b16 %v3988
  %v4147 = vunpack.c.h.b16 %v3988
  %v4148 = vunpack.c.l.b16 %v3989
  %v4149 = vunpack.c.h.b16 %v3989
  %v4150 = vunpack.c.l.b16 %v3990
  %v4151 = vunpack.c.h.b16 %v3990
  %v4152 = vunpack.c.l.b16 %v3991
  %v4153 = vunpack.c.h.b16 %v3991
  %v4154 = vunpack.c.l.b16 %v3992
  %v4155 = vunpack.c.h.b16 %v3992
  %v4156 = vunpack.c.l.b16 %v3993
  %v4157 = vunpack.c.h.b16 %v3993
  %v4158 = vunpack.c.l.b16 %v3994
  %v4159 = vunpack.c.h.b16 %v3994
  %v4160 = vunpack.c.l.b16 %v3995
  %v4161 = vunpack.c.h.b16 %v3995
  %v4162 = vunpack.c.l.b16 %v3996
  %v4163 = vunpack.c.h.b16 %v3996
  %v4164 = vunpack.c.l.b16 %v3997
  %v4165 = vunpack.c.h.b16 %v3997
  %v4166 = vunpack.c.l.b16 %v3998
  %v4167 = vunpack.c.h.b16 %v3998
  %v4168 = vunpack.c.l.b16 %v3999
  %v4169 = vunpack.c.h.b16 %v3999
  %v4170 = vunpack.c.l.b16 %v4000
  %v4171 = vunpack.c.h.b16 %v4000
  %v4172 = vunpack.c.l.b16 %v4001
  %v4173 = vunpack.c.h.b16 %v4001
  %v4174 = vunpack.c.l.b16 %v4002
  %v4175 = vunpack.c.h.b16 %v4002
  %v4176 = vunpack.c.l.b16 %v4003
  %v4177 = vunpack.c.h.b16 %v4003
  %v4178 = vunpack.c.l.b16 %v4004
  %v4179 = vunpack.c.h.b16 %v4004
  %v4180 = vunpack.c.l.b16 %v4005
  %v4181 = vunpack.c.h.b16 %v4005
  %v4182 = vunpack.c.l.b16 %v4006
  %v4183 = vunpack.c.h.b16 %v4006
  %v4184 = vunpack.c.l.b16 %v4007
  %v4185 = vunpack.c.h.b16 %v4007
  %v4186 = vunpack.c.l.b16 %v4008
  %v4187 = vunpack.c.h.b16 %v4008
  %v4188 = vunpack.c.l.b16 %v4009
  %v4189 = vunpack.c.h.b16 %v4009
  %v4190 = vunpack.c.l.b16 %v4010
  %v4191 = vunpack.c.h.b16 %v4010
  %v4192 = vunpack.c.l.b16 %v4011
  %v4193 = vunpack.c.h.b16 %v4011
  %v4194 = vunpack.c.l.b16 %v4012
  %v4195 = vunpack.c.h.b16 %v4012
  %v4196 = vunpack.c.l.b16 %v4013
  %v4197 = vunpack.c.h.b16 %v4013
  %v4198 = vunpack.c.l.b16 %v4014
  %v4199 = vunpack.c.h.b16 %v4014
  %v4200 = vunpack.c.l.b16 %v4015
  %v4201 = vunpack.c.h.b16 %v4015
  %v4202 = vunpack.c.l.b16 %v4016
  %v4203 = vunpack.c.h.b16 %v4016
  %v4204 = vunpack.c.l.b16 %v4017
  %v4205 = vunpack.c.h.b16 %v4017
  %v4206 = vunpack.c.l.b16 %v4018
  %v4207 = vunpack.c.h.b16 %v4018
  %v4208 = vunpack.c.l.b16 %v4019
  %v4209 = vunpack.c.h.b16 %v4019
  %v4210 = vunpack.c.l.b16 %v4020
  %v4211 = vunpack.c.h.b16 %v4020
  %v4212 = vunpack.c.l.b16 %v4021
  %v4213 = vunpack.c.h.b16 %v4021
  %v4214 = vunpack.c.l.b16 %v4022
  %v4215 = vunpack.c.h.b16 %v4022
  %v4216 = vunpack.c.l.b16 %v4023
  %v4217 = vunpack.c.h.b16 %v4023
  %v4218 = vunpack.c.l.b16 %v4024
  %v4219 = vunpack.c.h.b16 %v4024
  %v4220 = vunpack.c.l.b16 %v4025
  %v4221 = vunpack.c.h.b16 %v4025
  %v4222 = vunpack.c.l.b16 %v4026
  %v4223 = vunpack.c.h.b16 %v4026
  %v4224 = vunpack.c.l.b16 %v4027
  %v4225 = vunpack.c.h.b16 %v4027
  %v4226 = vunpack.c.l.b16 %v4028
  %v4227 = vunpack.c.h.b16 %v4028
  %v4228 = vunpack.c.l.b16 %v4029
  %v4229 = vunpack.c.h.b16 %v4029
  %v4230 = vunpack.c.l.b16 %v4030
  %v4231 = vunpack.c.h.b16 %v4030
  %v4232 = vunpack.c.l.b16 %v4031
  %v4233 = vunpack.c.h.b16 %v4031
  %v4234 = vunpack.c.l.b16 %v4032
  %v4235 = vunpack.c.h.b16 %v4032
  %v4236 = vunpack.c.l.b16 %v4033
  %v4237 = vunpack.c.h.b16 %v4033
  %v4238 = vpack.c.b16 %v4112, %v4110
  %v4239 = vpack.c.b16 %v4113, %v4111
  %v4240 = vpack.c.b16 %v4116, %v4114
  %v4241 = vpack.c.b16 %v4117, %v4115
  %v4242 = vpack.c.b16 %v4120, %v4118
  %v4243 = vpack.c.b16 %v4121, %v4119
  %v4244 = vpack.c.b16 %v4124, %v4122
  %v4245 = vpack.c.b16 %v4125, %v4123
  %v4246 = vpack.c.b16 %v4128, %v4126
  %v4247 = vpack.c.b16 %v4129, %v4127
  %v4248 = vpack.c.b16 %v4132, %v4130
  %v4249 = vpack.c.b16 %v4133, %v4131
  %v4250 = vpack.c.b16 %v4136, %v4134
  %v4251 = vpack.c.b16 %v4137, %v4135
  %v4252 = vpack.c.b16 %v4140, %v4138
  %v4253 = vpack.c.b16 %v4141, %v4139
  %v4254 = vpack.c.b16 %v4144, %v4142
  %v4255 = vpack.c.b16 %v4145, %v4143
  %v4256 = vpack.c.b16 %v4148, %v4146
  %v4257 = vpack.c.b16 %v4149, %v4147
  %v4258 = vpack.c.b16 %v4152, %v4150
  %v4259 = vpack.c.b16 %v4153, %v4151
  %v4260 = vpack.c.b16 %v4156, %v4154
  %v4261 = vpack.c.b16 %v4157, %v4155
  %v4262 = vpack.c.b16 %v4160, %v4158
  %v4263 = vpack.c.b16 %v4161, %v4159
  %v4264 = vpack.c.b16 %v4164, %v4162
  %v4265 = vpack.c.b16 %v4165, %v4163
  %v4266 = vpack.c.b16 %v4168, %v4166
  %v4267 = vpack.c.b16 %v4169, %v4167
  %v4268 = vpack.c.b16 %v4172, %v4170
  %v4269 = vpack.c.b16 %v4173, %v4171
  %v4270 = vpack.c.b16 %v4176, %v4174
  %v4271 = vpack.c.b16 %v4177, %v4175
  %v4272 = vpack.c.b16 %v4180, %v4178
  %v4273 = vpack.c.b16 %v4181, %v4179
  %v4274 = vpack.c.b16 %v4184, %v4182
  %v4275 = vpack.c.b16 %v4185, %v4183
  %v4276 = vpack.c.b16 %v4188, %v4186
  %v4277 = vpack.c.b16 %v4189, %v4187
  %v4278 = vpack.c.b16 %v4192, %v4190
  %v4279 = vpack.c.b16 %v4193, %v4191
  %v4280 = vpack.c.b16 %v4196, %v4194
  %v4281 = vpack.c.b16 %v4197, %v4195
  %v4282 = vpack.c.b16 %v4200, %v4198
  %v4283 = vpack.c.b16 %v4201, %v4199
  %v4284 = vpack.c.b16 %v4204, %v4202
  %v4285 = vpack.c.b16 %v4205, %v4203
  %v4286 = vpack.c.b16 %v4208, %v4206
  %v4287 = vpack.c.b16 %v4209, %v4207
  %v4288 = vpack.c.b16 %v4212, %v4210
  %v4289 = vpack.c.b16 %v4213, %v4211
  %v4290 = vpack.c.b16 %v4216, %v4214
  %v4291 = vpack.c.b16 %v4217, %v4215
  %v4292 = vpack.c.b16 %v4220, %v4218
  %v4293 = vpack.c.b16 %v4221, %v4219
  %v4294 = vpack.c.b16 %v4224, %v4222
  %v4295 = vpack.c.b16 %v4225, %v4223
  %v4296 = vpack.c.b16 %v4228, %v4226
  %v4297 = vpack.c.b16 %v4229, %v4227
  %v4298 = vpack.c.b16 %v4232, %v4230
  %v4299 = vpack.c.b16 %v4233, %v4231
  %v4300 = vpack.c.b16 %v4236, %v4234
  %v4301 = vpack.c.b16 %v4237, %v4235
  %4366 = vmatprep.subr.bf16.mxu0 %v4239
  %4367 = vmatpush1.bf16.msra.mxu0 %v4238
  %4368 = vmatprep.subr.bf16.mxu0 %v4241
  %4369 = vmatpush1.bf16.msra.mxu0 %v4240
  %4370 = vmatprep.subr.bf16.mxu0 %v4243
  %4371 = vmatpush1.bf16.msra.mxu0 %v4242
  %4372 = vmatprep.subr.bf16.mxu0 %v4245
  %4373 = vmatpush1.bf16.msra.mxu0 %v4244
  %4374 = vmatprep.subr.bf16.mxu0 %v4247
  %4375 = vmatpush1.bf16.msra.mxu0 %v4246
  %4376 = vmatprep.subr.bf16.mxu0 %v4249
  %4377 = vmatpush1.bf16.msra.mxu0 %v4248
  %4378 = vmatprep.subr.bf16.mxu0 %v4251
  %4379 = vmatpush1.bf16.msra.mxu0 %v4250
  %4380 = vmatprep.subr.bf16.mxu0 %v4253
  %4381 = vmatpush1.bf16.msra.mxu0 %v4252
  %4382 = vmatprep.subr.bf16.mxu0 %v4255
  %4383 = vmatpush1.bf16.msra.mxu0 %v4254
  %4384 = vmatprep.subr.bf16.mxu0 %v4257
  %4385 = vmatpush1.bf16.msra.mxu0 %v4256
  %4386 = vmatprep.subr.bf16.mxu0 %v4259
  %4387 = vmatpush1.bf16.msra.mxu0 %v4258
  %4388 = vmatprep.subr.bf16.mxu0 %v4261
  %4389 = vmatpush1.bf16.msra.mxu0 %v4260
  %4390 = vmatprep.subr.bf16.mxu0 %v4263
  %4391 = vmatpush1.bf16.msra.mxu0 %v4262
  %4392 = vmatprep.subr.bf16.mxu0 %v4265
  %4393 = vmatpush1.bf16.msra.mxu0 %v4264
  %4394 = vmatprep.subr.bf16.mxu0 %v4267
  %4395 = vmatpush1.bf16.msra.mxu0 %v4266
  %4396 = vmatprep.subr.bf16.mxu0 %v4269
  %4397 = vmatpush1.bf16.msra.mxu0 %v4268
  %4398 = vmatprep.mubr.bf16.mxu0 %v3963
  %4399 = vmatmul.mubr.bf16.gmra.mrb[0].mxu0 %v3962
  %v4400 = vpop.f32.mrb[0].mxu0
  %v4401 = vadd.f32 %v4039, %v4400
  %v4402 = vpop.f32.mrb[0].mxu0
  %v4403 = vadd.f32 %v4043, %v4402
  %v4404 = vpop.f32.mrb[0].mxu0
  %v4405 = vadd.f32 %v4039, %v4404
  %v4406 = vpop.f32.mrb[0].mxu0
  %v4407 = vadd.f32 %v4043, %v4406
  %4408 = vmatprep.mubr.bf16.mxu0 %v3967
  %4409 = vmatmul.mubr.bf16.gmra.mrb[0].mxu0 %v3966
  %v4410 = vpop.f32.mrb[0].mxu0
  %v4411 = vadd.f32 %v4039, %v4410
  %v4412 = vpop.f32.mrb[0].mxu0
  %v4413 = vadd.f32 %v4043, %v4412
  %v4414 = vpop.f32.mrb[0].mxu0
  %v4415 = vpop.f32.mrb[0].mxu0
  %4416 = vdwg.mxu0
  %4417 = vmatprep.subr.bf16.mxu0 %v4271
  %4418 = vmatpush1.bf16.msra.mxu0 %v4270
  %4419 = vmatprep.subr.bf16.mxu0 %v4273
  %4420 = vmatpush1.bf16.msra.mxu0 %v4272
  %4421 = vmatprep.subr.bf16.mxu0 %v4275
  %4422 = vmatpush1.bf16.msra.mxu0 %v4274
  %4423 = vmatprep.subr.bf16.mxu0 %v4277
  %4424 = vmatpush1.bf16.msra.mxu0 %v4276
  %4425 = vmatprep.subr.bf16.mxu0 %v4279
  %4426 = vmatpush1.bf16.msra.mxu0 %v4278
  %4427 = vmatprep.subr.bf16.mxu0 %v4281
  %4428 = vmatpush1.bf16.msra.mxu0 %v4280
  %4429 = vmatprep.subr.bf16.mxu0 %v4283
  %4430 = vmatpush1.bf16.msra.mxu0 %v4282
  %4431 = vmatprep.subr.bf16.mxu0 %v4285
  %4432 = vmatpush1.bf16.msra.mxu0 %v4284
  %4433 = vmatprep.subr.bf16.mxu0 %v4287
  %4434 = vmatpush1.bf16.msra.mxu0 %v4286
  %4435 = vmatprep.subr.bf16.mxu0 %v4289
  %4436 = vmatpush1.bf16.msra.mxu0 %v4288
  %4437 = vmatprep.subr.bf16.mxu0 %v4291
  %4438 = vmatpush1.bf16.msra.mxu0 %v4290
  %4439 = vmatprep.subr.bf16.mxu0 %v4293
  %4440 = vmatpush1.bf16.msra.mxu0 %v4292
  %4441 = vmatprep.subr.bf16.mxu0 %v4295
  %4442 = vmatpush1.bf16.msra.mxu0 %v4294
  %4443 = vmatprep.subr.bf16.mxu0 %v4297
  %4444 = vmatpush1.bf16.msra.mxu0 %v4296
  %4445 = vmatprep.subr.bf16.mxu0 %v4299
  %4446 = vmatpush1.bf16.msra.mxu0 %v4298
  %4447 = vmatprep.subr.bf16.mxu0 %v4301
  %4448 = vmatpush1.bf16.msra.mxu0 %v4300
  %4449 = vmatprep.mubr.bf16.mxu0 %v3965
  %4450 = vmatmul.mubr.bf16.gmra.mrb[0].mxu0 %v3964
  %v4451 = vpop.f32.mrb[0].mxu0
  %v4452 = vadd.f32 %v4401, %v4451
  %v4453 = vpop.f32.mrb[0].mxu0
  %v4454 = vadd.f32 %v4403, %v4453
  %v4455 = vpop.f32.mrb[0].mxu0
  %v4456 = vadd.f32 %v4405, %v4455
  %v4457 = vpop.f32.mrb[0].mxu0
  %v4458 = vadd.f32 %v4407, %v4457
  %4459 = vmatprep.mubr.bf16.mxu0 %v3969
  %4460 = vmatmul.mubr.bf16.gmra.mrb[0].mxu0 %v3968
  %v4461 = vpop.f32.mrb[0].mxu0
  %v4462 = vadd.f32 %v4411, %v4461
  %v4463 = vpop.f32.mrb[0].mxu0
  %v4464 = vadd.f32 %v4413, %v4463
  %v4465 = vpop.f32.mrb[0].mxu0
  %v4466 = vpop.f32.mrb[0].mxu0
  %4467 = vdwg.mxu0
  %v4468 = vmax.f32 %v4452, 0.0
  %v4469 = vmax.f32 %v4454, 0.0
  %v4470 = vmax.f32 %v4456, 0.0
  %v4471 = vmax.f32 %v4458, 0.0
  %v4472 = vmax.f32 %v4462, 0.0
  %v4473 = vmax.f32 %v4464, 0.0
  %v4474 = vpack.c.bf16 %v4470, %v4468
  %v4475 = vpack.c.bf16 %v4471, %v4469
  %v4476 = vpack.c.bf16 %v4472, %v4472
  %v4477 = vpack.c.bf16 %v4473, %v4473
  %v4478 = vld [vmem:[%s37] sm:$0xf]
  %v4479 = vld [vmem:[%s37 + $0x4] sm:$0xf]
  %v4480 = vld [vmem:[%s37 + $0x8] sm:$0xf]
  %v4481 = vld [vmem:[%s37 + $0xc] sm:$0xf]
  %v4482 = vld [vmem:[%s37 + $0x10] sm:$0xf]
  %v4483 = vld [vmem:[%s37 + $0x14] sm:$0xf]
  %v4484 = vld [vmem:[%s37 + $0x18] sm:$0xf]
  %v4485 = vld [vmem:[%s37 + $0x1c] sm:$0xf]
  %v4486 = vld [vmem:[%s37 + $0x20] sm:$0xf]
  %v4487 = vld [vmem:[%s37 + $0x24] sm:$0xf]
  %v4488 = vld [vmem:[%s37 + $0x28] sm:$0xf]
  %v4489 = vld [vmem:[%s37 + $0x2c] sm:$0xf]
  %v4490 = vld [vmem:[%s37 + $0x30] sm:$0xf]
  %v4491 = vld [vmem:[%s37 + $0x34] sm:$0xf]
  %v4492 = vld [vmem:[%s37 + $0x38] sm:$0xf]
  %v4493 = vld [vmem:[%s37 + $0x3c] sm:$0xf]
  %v4494 = vld [vmem:[%s37 + $0x40] sm:$0xf]
  %v4495 = vld [vmem:[%s37 + $0x44] sm:$0xf]
  %v4496 = vld [vmem:[%s37 + $0x48] sm:$0xf]
  %v4497 = vld [vmem:[%s37 + $0x4c] sm:$0xf]
  %v4498 = vld [vmem:[%s37 + $0x50] sm:$0xf]
  %v4499 = vld [vmem:[%s37 + $0x54] sm:$0xf]
  %v4500 = vld [vmem:[%s37 + $0x58] sm:$0xf]
  %v4501 = vld [vmem:[%s37 + $0x5c] sm:$0xf]
  %v4502 = vld [vmem:[%s37 + $0x60] sm:$0xf]
  %v4503 = vld [vmem:[%s37 + $0x64] sm:$0xf]
  %v4504 = vld [vmem:[%s37 + $0x68] sm:$0xf]
  %v4505 = vld [vmem:[%s37 + $0x6c] sm:$0xf]
  %v4506 = vld [vmem:[%s37 + $0x70] sm:$0xf]
  %v4507 = vld [vmem:[%s37 + $0x74] sm:$0xf]
  %v4508 = vld [vmem:[%s37 + $0x78] sm:$0xf]
  %v4509 = vld [vmem:[%s37 + $0x7c] sm:$0xf]
  %v4510 = vld [vmem:[%s17 + $0x13] sm:$0x1]
  %v4512 = vlaneseq
  %v4513 = vshrl.u32 %v4512, 7
  %v4514 = vsub.s32 0, %v4513
  %v4515 = vrot.slane %v4510, %v4514
  %v4549 = vunpack.c.l.b16 %v4478
  %v4550 = vunpack.c.l.b16 %v4479
  %v4551 = vunpack.c.l.b16 %v4480
  %v4552 = vunpack.c.l.b16 %v4481
  %v4553 = vunpack.c.l.b16 %v4482
  %v4554 = vunpack.c.l.b16 %v4483
  %v4555 = vunpack.c.l.b16 %v4484
  %v4556 = vunpack.c.l.b16 %v4485
  %v4557 = vunpack.c.l.b16 %v4486
  %v4558 = vunpack.c.l.b16 %v4487
  %v4559 = vunpack.c.l.b16 %v4488
  %v4560 = vunpack.c.l.b16 %v4489
  %v4561 = vunpack.c.l.b16 %v4490
  %v4562 = vunpack.c.l.b16 %v4491
  %v4563 = vunpack.c.l.b16 %v4492
  %v4564 = vunpack.c.l.b16 %v4493
  %v4565 = vunpack.c.l.b16 %v4494
  %v4566 = vunpack.c.l.b16 %v4495
  %v4567 = vunpack.c.l.b16 %v4496
  %v4568 = vunpack.c.l.b16 %v4497
  %v4569 = vunpack.c.l.b16 %v4498
  %v4570 = vunpack.c.l.b16 %v4499
  %v4571 = vunpack.c.l.b16 %v4500
  %v4572 = vunpack.c.l.b16 %v4501
  %v4573 = vunpack.c.l.b16 %v4502
  %v4574 = vunpack.c.l.b16 %v4503
  %v4575 = vunpack.c.l.b16 %v4504
  %v4576 = vunpack.c.l.b16 %v4505
  %v4577 = vunpack.c.l.b16 %v4506
  %v4578 = vunpack.c.l.b16 %v4507
  %v4579 = vunpack.c.l.b16 %v4508
  %v4580 = vunpack.c.l.b16 %v4509
  %v4581 = vpack.c.b16 %v4550, %v4549
  %v4582 = vpack.c.b16 %v4552, %v4551
  %v4583 = vpack.c.b16 %v4554, %v4553
  %v4584 = vpack.c.b16 %v4556, %v4555
  %v4585 = vpack.c.b16 %v4558, %v4557
  %v4586 = vpack.c.b16 %v4560, %v4559
  %v4587 = vpack.c.b16 %v4562, %v4561
  %v4588 = vpack.c.b16 %v4564, %v4563
  %v4589 = vpack.c.b16 %v4566, %v4565
  %v4590 = vpack.c.b16 %v4568, %v4567
  %v4591 = vpack.c.b16 %v4570, %v4569
  %v4592 = vpack.c.b16 %v4572, %v4571
  %v4593 = vpack.c.b16 %v4574, %v4573
  %v4594 = vpack.c.b16 %v4576, %v4575
  %v4595 = vpack.c.b16 %v4578, %v4577
  %v4596 = vpack.c.b16 %v4580, %v4579
  %4613 = vmatprep.subr.bf16.mxu0 0
  %4614 = vmatpush1.bf16.msra.mxu0 %v4581
  %4615 = vmatprep.subr.bf16.mxu0 0
  %4616 = vmatpush1.bf16.msra.mxu0 %v4582
  %4617 = vmatprep.subr.bf16.mxu0 0
  %4618 = vmatpush1.bf16.msra.mxu0 %v4583
  %4619 = vmatprep.subr.bf16.mxu0 0
  %4620 = vmatpush1.bf16.msra.mxu0 %v4584
  %4621 = vmatprep.subr.bf16.mxu0 0
  %4622 = vmatpush1.bf16.msra.mxu0 %v4585
  %4623 = vmatprep.subr.bf16.mxu0 0
  %4624 = vmatpush1.bf16.msra.mxu0 %v4586
  %4625 = vmatprep.subr.bf16.mxu0 0
  %4626 = vmatpush1.bf16.msra.mxu0 %v4587
  %4627 = vmatprep.subr.bf16.mxu0 0
  %4628 = vmatpush1.bf16.msra.mxu0 %v4588
  %4629 = vmatprep.subr.bf16.mxu0 0
  %4630 = vmatpush1.bf16.msra.mxu0 %v4589
  %4631 = vmatprep.subr.bf16.mxu0 0
  %4632 = vmatpush1.bf16.msra.mxu0 %v4590
  %4633 = vmatprep.subr.bf16.mxu0 0
  %4634 = vmatpush1.bf16.msra.mxu0 %v4591
  %4635 = vmatprep.subr.bf16.mxu0 0
  %4636 = vmatpush1.bf16.msra.mxu0 %v4592
  %4637 = vmatprep.subr.bf16.mxu0 0
  %4638 = vmatpush1.bf16.msra.mxu0 %v4593
  %4639 = vmatprep.subr.bf16.mxu0 0
  %4640 = vmatpush1.bf16.msra.mxu0 %v4594
  %4641 = vmatprep.subr.bf16.mxu0 0
  %4642 = vmatpush1.bf16.msra.mxu0 %v4595
  %4643 = vmatprep.subr.bf16.mxu0 0
  %4644 = vmatpush1.bf16.msra.mxu0 %v4596
  %4645 = vmatprep.mubr.bf16.mxu0 %v4475
  %4646 = vmatmul.mubr.bf16.gmra.mrb[0].mxu0 %v4474
  %v4647 = vpop.f32.mrb[0].mxu0
  %v4648 = vadd.f32 %v4515, %v4647
  %v4649 = vpop.f32.mrb[0].mxu0
  %v4650 = vpop.f32.mrb[0].mxu0
  %v4651 = vadd.f32 %v4515, %v4650
  %v4652 = vpop.f32.mrb[0].mxu0
  %4653 = vmatprep.mubr.bf16.mxu0 %v4477
  %4654 = vmatmul.mubr.bf16.gmra.mrb[0].mxu0 %v4476
  %v4655 = vpop.f32.mrb[0].mxu0
  %v4656 = vadd.f32 %v4515, %v4655
  %v4657 = vpop.f32.mrb[0].mxu0
  %v4658 = vpop.f32.mrb[0].mxu0
  %v4659 = vpop.f32.mrb[0].mxu0
  %4660 = vdwg.mxu0
  %v4661 = vld [vmem:[%s5] sm:$0x3f]
  %v4662 = vld [vmem:[%s11] sm:$0xff]
  %v4663 = vld [vmem:[%s11 + $0x8] sm:$0xff]
  %v4664 = vld [vmem:[%s11 + $0x10] sm:$0xff]
  %v4665 = vld [vmem:[%s11 + $0x18] sm:$0xff]
  %v4666 = vld [vmem:[%s11 + $0x20] sm:$0xf]
  %v4667 = vld [vmem:[%s7] sm:$0xff]
  %v4668 = vld [vmem:[%s7 + $0x8] sm:$0xff]
  %v4669 = vld [vmem:[%s7 + $0x10] sm:$0xff]
  %v4670 = vld [vmem:[%s7 + $0x18] sm:$0xff]
  %v4671 = vld [vmem:[%s7 + $0x20] sm:$0xf]
  %v4672 = vpack.c.bf16 %v4651, %v4648
  %v4673 = vpack.c.bf16 %v4656, %v4656
  %v4674 = vld [vmem:[%s39] sm:$0xf]
  %v4675 = vld [vmem:[%s39 + $0x4] sm:$0x1]
  %v4676 = vld [vmem:[%s17 + $0x14] sm:$0x1]
  %v4678 = vlaneseq
  %v4679 = vshrl.u32 %v4678, 7
  %v4680 = vsub.s32 0, %v4679
  %v4681 = vrot.slane %v4676, %v4680
  %v4685 = vunpack.c.l.b16 %v4674
  %v4686 = vunpack.c.l.b16 %v4675
  %v4687 = vpack.c.b16 %v4686, %v4685
  %vm4688 = vcmask 80896
  %v4690 = vsel %vm4688, %v4672, 0
  %v4693 = vsel %vm4688, %v4673, 0
  %vm4695 = vcmask 1044480
  %v4697 = vsel %vm4695, %v4687, 0
  %4699 = vmatprep.subr.bf16.mxu0 0
  %4700 = vmatpush1.bf16.msra.mxu0 %v4697
  %4701 = vmatprep.subr.bf16.mxu0 0
  %4702 = vmatpush1.bf16.msra.mxu0 0
  %4703 = vmatprep.subr.bf16.mxu0 0
  %4704 = vmatpush1.bf16.msra.mxu0 0
  %4705 = vmatprep.subr.bf16.mxu0 0
  %4706 = vmatpush1.bf16.msra.mxu0 0
  %4707 = vmatprep.subr.bf16.mxu0 0
  %4708 = vmatpush1.bf16.msra.mxu0 0
  %4709 = vmatprep.subr.bf16.mxu0 0
  %4710 = vmatpush1.bf16.msra.mxu0 0
  %4711 = vmatprep.subr.bf16.mxu0 0
  %4712 = vmatpush1.bf16.msra.mxu0 0
  %4713 = vmatprep.subr.bf16.mxu0 0
  %4714 = vmatpush1.bf16.msra.mxu0 0
  %4715 = vmatprep.subr.bf16.mxu0 0
  %4716 = vmatpush1.bf16.msra.mxu0 0
  %4717 = vmatprep.subr.bf16.mxu0 0
  %4718 = vmatpush1.bf16.msra.mxu0 0
  %4719 = vmatprep.subr.bf16.mxu0 0
  %4720 = vmatpush1.bf16.msra.mxu0 0
  %4721 = vmatprep.subr.bf16.mxu0 0
  %4722 = vmatpush1.bf16.msra.mxu0 0
  %4723 = vmatprep.subr.bf16.mxu0 0
  %4724 = vmatpush1.bf16.msra.mxu0 0
  %4725 = vmatprep.subr.bf16.mxu0 0
  %4726 = vmatpush1.bf16.msra.mxu0 0
  %4727 = vmatprep.subr.bf16.mxu0 0
  %4728 = vmatpush1.bf16.msra.mxu0 0
  %4729 = vmatprep.subr.bf16.mxu0 0
  %4730 = vmatpush1.bf16.msra.mxu0 0
  %4731 = vmatprep.mubr.bf16.mxu0 0
  %4732 = vmatmul.mubr.bf16.gmra.mrb[0].mxu0 %v4690
  %v4733 = vpop.f32.mrb[0].mxu0
  %v4734 = vadd.f32 %v4681, %v4733
  %v4735 = vpop.f32.mrb[0].mxu0
  %v4736 = vpop.f32.mrb[0].mxu0
  %v4737 = vadd.f32 %v4681, %v4736
  %v4738 = vpop.f32.mrb[0].mxu0
  %4739 = vmatprep.mubr.bf16.mxu0 0
  %4740 = vmatmul.mubr.bf16.gmra.mrb[0].mxu0 %v4693
  %v4741 = vpop.f32.mrb[0].mxu0
  %v4742 = vadd.f32 %v4681, %v4741
  %v4743 = vpop.f32.mrb[0].mxu0
  %v4744 = vpop.f32.mrb[0].mxu0
  %v4745 = vpop.f32.mrb[0].mxu0
  %4746 = vdwg.mxu0
  %v4747 = vmax.f32 %v4734, 0.0
  %v4748 = vmax.f32 %v4737, 0.0
  %v4749 = vmax.f32 %v4742, 0.0
  %v4750 = vpack.c.bf16 %v4748, %v4747
  %v4751 = vpack.c.bf16 %v4749, %v4749
  %v4752 = vld [vmem:[%s41] sm:$0xf]
  %v4753 = vld [vmem:[%s41 + $0x4] sm:$0xf]
  %v4754 = vld [vmem:[%s41 + $0x8] sm:$0xf]
  %v4755 = vld [vmem:[%s41 + $0xc] sm:$0xf]
  %v4756 = vld [vmem:[%s17 + $0x15] sm:$0x1]
  %v4758 = vlaneseq
  %v4759 = vshrl.u32 %v4758, 7
  %v4760 = vsub.s32 0, %v4759
  %v4761 = vrot.slane %v4756, %v4760
  %v4767 = vunpack.c.l.b16 %v4752
  %v4768 = vunpack.c.l.b16 %v4753
  %v4769 = vunpack.c.l.b16 %v4754
  %v4770 = vunpack.c.l.b16 %v4755
  %v4771 = vpack.c.b16 %v4768, %v4767
  %v4772 = vpack.c.b16 %v4770, %v4769
  %v4776 = vsel %vm1603, %v4750, 0
  %v4779 = vsel %vm1603, %v4751, 0
  %4781 = vmatprep.subr.bf16.mxu0 0
  %4782 = vmatpush1.bf16.msra.mxu0 %v4771
  %4783 = vmatprep.subr.bf16.mxu0 0
  %4784 = vmatpush1.bf16.msra.mxu0 %v4772
  %4785 = vmatprep.subr.bf16.mxu0 0
  %4786 = vmatpush1.bf16.msra.mxu0 0
  %4787 = vmatprep.subr.bf16.mxu0 0
  %4788 = vmatpush1.bf16.msra.mxu0 0
  %4789 = vmatprep.subr.bf16.mxu0 0
  %4790 = vmatpush1.bf16.msra.mxu0 0
  %4791 = vmatprep.subr.bf16.mxu0 0
  %4792 = vmatpush1.bf16.msra.mxu0 0
  %4793 = vmatprep.subr.bf16.mxu0 0
  %4794 = vmatpush1.bf16.msra.mxu0 0
  %4795 = vmatprep.subr.bf16.mxu0 0
  %4796 = vmatpush1.bf16.msra.mxu0 0
  %4797 = vmatprep.subr.bf16.mxu0 0
  %4798 = vmatpush1.bf16.msra.mxu0 0
  %4799 = vmatprep.subr.bf16.mxu0 0
  %4800 = vmatpush1.bf16.msra.mxu0 0
  %4801 = vmatprep.subr.bf16.mxu0 0
  %4802 = vmatpush1.bf16.msra.mxu0 0
  %4803 = vmatprep.subr.bf16.mxu0 0
  %4804 = vmatpush1.bf16.msra.mxu0 0
  %4805 = vmatprep.subr.bf16.mxu0 0
  %4806 = vmatpush1.bf16.msra.mxu0 0
  %4807 = vmatprep.subr.bf16.mxu0 0
  %4808 = vmatpush1.bf16.msra.mxu0 0
  %4809 = vmatprep.subr.bf16.mxu0 0
  %4810 = vmatpush1.bf16.msra.mxu0 0
  %4811 = vmatprep.subr.bf16.mxu0 0
  %4812 = vmatpush1.bf16.msra.mxu0 0
  %4813 = vmatprep.mubr.bf16.mxu0 0
  %4814 = vmatmul.mubr.bf16.gmra.mrb[0].mxu0 %v4776
  %v4815 = vpop.f32.mrb[0].mxu0
  %v4816 = vadd.f32 %v4761, %v4815
  %v4817 = vpop.f32.mrb[0].mxu0
  %v4818 = vpop.f32.mrb[0].mxu0
  %v4819 = vadd.f32 %v4761, %v4818
  %v4820 = vpop.f32.mrb[0].mxu0
  %4821 = vmatprep.mubr.bf16.mxu0 0
  %4822 = vmatmul.mubr.bf16.gmra.mrb[0].mxu0 %v4779
  %v4823 = vpop.f32.mrb[0].mxu0
  %v4824 = vadd.f32 %v4761, %v4823
  %v4825 = vpop.f32.mrb[0].mxu0
  %v4826 = vpop.f32.mrb[0].mxu0
  %v4827 = vpop.f32.mrb[0].mxu0
  %4828 = vdwg.mxu0
  %v4829 = vmax.f32 %v4816, 0.0
  %v4830 = vmax.f32 %v4819, 0.0
  %v4831 = vmax.f32 %v4824, 0.0
  %v4832 = vpack.c.bf16 %v4830, %v4829
  %v4833 = vpack.c.bf16 %v4831, %v4831
  %v4834 = vld [vmem:[%s43] sm:$0xf]
  %v4835 = vld [vmem:[%s43 + $0x4] sm:$0xf]
  %v4836 = vld [vmem:[%s43 + $0x8] sm:$0xf]
  %v4837 = vld [vmem:[%s43 + $0xc] sm:$0xf]
  %v4838 = vld [vmem:[%s17 + $0x16] sm:$0x1]
  %v4840 = vlaneseq
  %v4841 = vshrl.u32 %v4840, 7
  %v4842 = vsub.s32 0, %v4841
  %v4843 = vrot.slane %v4838, %v4842
  %v4849 = vunpack.c.l.b16 %v4834
  %v4850 = vunpack.c.l.b16 %v4835
  %v4851 = vunpack.c.l.b16 %v4836
  %v4852 = vunpack.c.l.b16 %v4837
  %v4853 = vpack.c.b16 %v4850, %v4849
  %v4854 = vpack.c.b16 %v4852, %v4851
  %v4858 = vsel %vm1603, %v4832, 0
  %v4861 = vsel %vm1603, %v4833, 0
  %4863 = vmatprep.subr.bf16.mxu0 0
  %4864 = vmatpush1.bf16.msra.mxu0 %v4853
  %4865 = vmatprep.subr.bf16.mxu0 0
  %4866 = vmatpush1.bf16.msra.mxu0 %v4854
  %4867 = vmatprep.subr.bf16.mxu0 0
  %4868 = vmatpush1.bf16.msra.mxu0 0
  %4869 = vmatprep.subr.bf16.mxu0 0
  %4870 = vmatpush1.bf16.msra.mxu0 0
  %4871 = vmatprep.subr.bf16.mxu0 0
  %4872 = vmatpush1.bf16.msra.mxu0 0
  %4873 = vmatprep.subr.bf16.mxu0 0
  %4874 = vmatpush1.bf16.msra.mxu0 0
  %4875 = vmatprep.subr.bf16.mxu0 0
  %4876 = vmatpush1.bf16.msra.mxu0 0
  %4877 = vmatprep.subr.bf16.mxu0 0
  %4878 = vmatpush1.bf16.msra.mxu0 0
  %4879 = vmatprep.subr.bf16.mxu0 0
  %4880 = vmatpush1.bf16.msra.mxu0 0
  %4881 = vmatprep.subr.bf16.mxu0 0
  %4882 = vmatpush1.bf16.msra.mxu0 0
  %4883 = vmatprep.subr.bf16.mxu0 0
  %4884 = vmatpush1.bf16.msra.mxu0 0
  %4885 = vmatprep.subr.bf16.mxu0 0
  %4886 = vmatpush1.bf16.msra.mxu0 0
  %4887 = vmatprep.subr.bf16.mxu0 0
  %4888 = vmatpush1.bf16.msra.mxu0 0
  %4889 = vmatprep.subr.bf16.mxu0 0
  %4890 = vmatpush1.bf16.msra.mxu0 0
  %4891 = vmatprep.subr.bf16.mxu0 0
  %4892 = vmatpush1.bf16.msra.mxu0 0
  %4893 = vmatprep.subr.bf16.mxu0 0
  %4894 = vmatpush1.bf16.msra.mxu0 0
  %4895 = vmatprep.mubr.bf16.mxu0 0
  %4896 = vmatmul.mubr.bf16.gmra.mrb[0].mxu0 %v4858
  %v4897 = vpop.f32.mrb[0].mxu0
  %v4898 = vadd.f32 %v4843, %v4897
  %v4899 = vpop.f32.mrb[0].mxu0
  %v4900 = vpop.f32.mrb[0].mxu0
  %v4901 = vadd.f32 %v4843, %v4900
  %v4902 = vpop.f32.mrb[0].mxu0
  %4903 = vmatprep.mubr.bf16.mxu0 0
  %4904 = vmatmul.mubr.bf16.gmra.mrb[0].mxu0 %v4861
  %v4905 = vpop.f32.mrb[0].mxu0
  %v4906 = vadd.f32 %v4843, %v4905
  %v4907 = vpop.f32.mrb[0].mxu0
  %v4908 = vpop.f32.mrb[0].mxu0
  %v4909 = vpop.f32.mrb[0].mxu0
  %4910 = vdwg.mxu0
  %4912 = vrot.lane.b32.xlu0 %v4661, 8
  %v4913 = vpop.permute.xlu0 %4912
  %v4915 = vadd.f32 %v4648, %v4913
  %4917 = vrot.lane.b32.xlu0 %v4915, 120
  %v4918 = vpop.permute.xlu0 %4917
  %v4920 = vsel %vm510, %v4662, 0
  %v4923 = vsel %vm510, %v4663, 0
  %v4926 = vsel %vm510, %v4664, 0
  %v4929 = vsel %vm510, %v4665, 0
  %v4932 = vsel %vm510, %v4666, 0
  %v4934 = vsel %vm1781, %v4918, 0
  %4936 = vmatprep.subr.mxu0 0.0
  %4937 = vmatpush1.msra.mxu0 %v4934
  %4938 = vmatprep.subr.mxu0 0.0
  %4939 = vmatpush1.msra.mxu0 0.0
  %4940 = vmatprep.subr.mxu0 0.0
  %4941 = vmatpush1.msra.mxu0 0.0
  %4942 = vmatprep.subr.mxu0 0.0
  %4943 = vmatpush1.msra.mxu0 0.0
  %4944 = vmatprep.subr.mxu0 0.0
  %4945 = vmatpush1.msra.mxu0 0.0
  %4946 = vmatprep.subr.mxu0 0.0
  %4947 = vmatpush1.msra.mxu0 0.0
  %4948 = vmatprep.subr.mxu0 0.0
  %4949 = vmatpush1.msra.mxu0 0.0
  %4950 = vmatprep.subr.mxu0 0.0
  %4951 = vmatpush1.msra.mxu0 0.0
  %4952 = vmatprep.subr.mxu0 0.0
  %4953 = vmatpush1.msra.mxu0 0.0
  %4954 = vmatprep.subr.mxu0 0.0
  %4955 = vmatpush1.msra.mxu0 0.0
  %4956 = vmatprep.subr.mxu0 0.0
  %4957 = vmatpush1.msra.mxu0 0.0
  %4958 = vmatprep.subr.mxu0 0.0
  %4959 = vmatpush1.msra.mxu0 0.0
  %4960 = vmatprep.subr.mxu0 0.0
  %4961 = vmatpush1.msra.mxu0 0.0
  %4962 = vmatprep.subr.mxu0 0.0
  %4963 = vmatpush1.msra.mxu0 0.0
  %4964 = vmatprep.subr.mxu0 0.0
  %4965 = vmatpush1.msra.mxu0 0.0
  %4966 = vmatprep.subr.mxu0 0.0
  %4967 = vmatpush1.msra.mxu0 0.0
  %4968 = vmatprep.subr.mxu0 0.0
  %4969 = vmatpush1.msra.mxu0 0.0
  %4970 = vmatprep.subr.mxu0 0.0
  %4971 = vmatpush1.msra.mxu0 0.0
  %4972 = vmatprep.subr.mxu0 0.0
  %4973 = vmatpush1.msra.mxu0 0.0
  %4974 = vmatprep.subr.mxu0 0.0
  %4975 = vmatpush1.msra.mxu0 0.0
  %4976 = vmatprep.subr.mxu0 0.0
  %4977 = vmatpush1.msra.mxu0 0.0
  %4978 = vmatprep.subr.mxu0 0.0
  %4979 = vmatpush1.msra.mxu0 0.0
  %4980 = vmatprep.subr.mxu0 0.0
  %4981 = vmatpush1.msra.mxu0 0.0
  %4982 = vmatprep.subr.mxu0 0.0
  %4983 = vmatpush1.msra.mxu0 0.0
  %4984 = vmatprep.subr.mxu0 0.0
  %4985 = vmatpush1.msra.mxu0 0.0
  %4986 = vmatprep.subr.mxu0 0.0
  %4987 = vmatpush1.msra.mxu0 0.0
  %4988 = vmatprep.subr.mxu0 0.0
  %4989 = vmatpush1.msra.mxu0 0.0
  %4990 = vmatprep.subr.mxu0 0.0
  %4991 = vmatpush1.msra.mxu0 0.0
  %4992 = vmatprep.subr.mxu0 0.0
  %4993 = vmatpush1.msra.mxu0 0.0
  %4994 = vmatprep.subr.mxu0 0.0
  %4995 = vmatpush1.msra.mxu0 0.0
  %4996 = vmatprep.subr.mxu0 0.0
  %4997 = vmatpush1.msra.mxu0 0.0
  %4998 = vmatprep.subr.mxu0 0.0
  %4999 = vmatpush1.msra.mxu0 0.0
  %5000 = vmatprep.mubr.f32.mxu0 0.0
  %5001 = vmatmul.mubr.f32.gmra.mrb[0].mxu0 %v4920
  %v5002 = vpop.f32.mrb[0].mxu0
  %v5003 = vadd.f32 0.0, %v5002
  %v5004 = vpop.f32.mrb[0].mxu0
  %5005 = vmatprep.mubr.f32.mxu0 0.0
  %5006 = vmatmul.mubr.f32.gmra.mrb[0].mxu0 %v4923
  %v5007 = vpop.f32.mrb[0].mxu0
  %v5008 = vadd.f32 0.0, %v5007
  %v5009 = vpop.f32.mrb[0].mxu0
  %5010 = vmatprep.mubr.f32.mxu0 0.0
  %5011 = vmatmul.mubr.f32.gmra.mrb[0].mxu0 %v4926
  %v5012 = vpop.f32.mrb[0].mxu0
  %v5013 = vadd.f32 0.0, %v5012
  %v5014 = vpop.f32.mrb[0].mxu0
  %5015 = vmatprep.mubr.f32.mxu0 0.0
  %5016 = vmatmul.mubr.f32.gmra.mrb[0].mxu0 %v4929
  %v5017 = vpop.f32.mrb[0].mxu0
  %v5018 = vadd.f32 0.0, %v5017
  %v5019 = vpop.f32.mrb[0].mxu0
  %5020 = vmatprep.mubr.f32.mxu0 0.0
  %5021 = vmatmul.mubr.f32.gmra.mrb[0].mxu0 %v4932
  %v5022 = vpop.f32.mrb[0].mxu0
  %v5023 = vadd.f32 0.0, %v5022
  %v5024 = vpop.f32.mrb[0].mxu0
  %5025 = vdwg.mxu0
  %v5026 = vmul.f32 %v5003, %v5003
  %v5027 = vmul.f32 %v5008, %v5008
  %v5028 = vmul.f32 %v5013, %v5013
  %v5029 = vmul.f32 %v5018, %v5018
  %v5030 = vmul.f32 %v5023, %v5023
  %vm5031 = vcmask 15360
  %v5032 = vsel %vm5031, %v5026, 0.0
  %5033 = vadd.xlane.f32.xlu0 %v5032
  %v5034 = vpop.xlane.xlu0 %5033
  %v5035 = vsel %vm5031, %v5027, 0.0
  %5036 = vadd.xlane.f32.xlu0 %v5035
  %v5037 = vpop.xlane.xlu0 %5036
  %v5038 = vsel %vm5031, %v5028, 0.0
  %5039 = vadd.xlane.f32.xlu0 %v5038
  %v5040 = vpop.xlane.xlu0 %5039
  %v5041 = vsel %vm5031, %v5029, 0.0
  %5042 = vadd.xlane.f32.xlu0 %v5041
  %v5043 = vpop.xlane.xlu0 %5042
  %vm5044 = vcmask 11264
  %v5045 = vsel %vm5044, %v5030, 0.0
  %5046 = vadd.xlane.f32.xlu0 %v5045
  %v5047 = vpop.xlane.xlu0 %5046
  %v5048 = vrsqrt.pop %v5034
  %v5049 = vmul.f32 %v5034, %v5048
  %vm5050 = vcmp.eq.f32.partialorder %v5034, inf
  %v5051 = vsel %vm5050, %v5034, %v5049
  %vm5052 = vcmp.eq.f32.partialorder %v5034, 0.0
  %v5053 = vand.u32 %v5034, 2147483648
  %v5054 = vsel %vm5052, %v5053, %v5051
  %v5055 = vrsqrt.pop %v5037
  %v5056 = vmul.f32 %v5037, %v5055
  %vm5057 = vcmp.eq.f32.partialorder %v5037, inf
  %v5058 = vsel %vm5057, %v5037, %v5056
  %vm5059 = vcmp.eq.f32.partialorder %v5037, 0.0
  %v5060 = vand.u32 %v5037, 2147483648
  %v5061 = vsel %vm5059, %v5060, %v5058
  %v5062 = vrsqrt.pop %v5040
  %v5063 = vmul.f32 %v5040, %v5062
  %vm5064 = vcmp.eq.f32.partialorder %v5040, inf
  %v5065 = vsel %vm5064, %v5040, %v5063
  %vm5066 = vcmp.eq.f32.partialorder %v5040, 0.0
  %v5067 = vand.u32 %v5040, 2147483648
  %v5068 = vsel %vm5066, %v5067, %v5065
  %v5069 = vrsqrt.pop %v5043
  %v5070 = vmul.f32 %v5043, %v5069
  %vm5071 = vcmp.eq.f32.partialorder %v5043, inf
  %v5072 = vsel %vm5071, %v5043, %v5070
  %vm5073 = vcmp.eq.f32.partialorder %v5043, 0.0
  %v5074 = vand.u32 %v5043, 2147483648
  %v5075 = vsel %vm5073, %v5074, %v5072
  %v5076 = vrsqrt.pop %v5047
  %v5077 = vmul.f32 %v5047, %v5076
  %vm5078 = vcmp.eq.f32.partialorder %v5047, inf
  %v5079 = vsel %vm5078, %v5047, %v5077
  %vm5080 = vcmp.eq.f32.partialorder %v5047, 0.0
  %v5081 = vand.u32 %v5047, 2147483648
  %v5082 = vsel %vm5080, %v5081, %v5079
  %vm5083 = vcmp.le.f32.partialorder %v5054, 3.0
  %vm5084 = vcmp.le.f32.partialorder %v5061, 3.0
  %vm5085 = vcmp.le.f32.partialorder %v5068, 3.0
  %vm5086 = vcmp.le.f32.partialorder %v5075, 3.0
  %vm5087 = vcmp.le.f32.partialorder %v5082, 3.0
  %v5088 = vsel %vm5083, 1, 0
  %v5089 = vsel %vm5084, 1, 0
  %v5090 = vsel %vm5085, 1, 0
  %v5091 = vsel %vm5086, 1, 0
  %v5092 = vsel %vm5087, 1, 0
  %v5093 = vcvt.s32.f32 %v5088
  %v5094 = vcvt.s32.f32 %v5089
  %v5095 = vcvt.s32.f32 %v5090
  %v5096 = vcvt.s32.f32 %v5091
  %v5097 = vcvt.s32.f32 %v5092
  %v5098 = vmul.f32 %v4667, %v5093
  %v5099 = vmul.f32 %v4668, %v5094
  %v5100 = vmul.f32 %v4669, %v5095
  %v5101 = vmul.f32 %v4670, %v5096
  %v5102 = vmul.f32 %v4671, %v5097
  %vm5103 = vcmp.gt.f32.partialorder %v5054, 0.0001
  %vm5104 = vcmp.gt.f32.partialorder %v5061, 0.0001
  %vm5105 = vcmp.gt.f32.partialorder %v5068, 0.0001
  %vm5106 = vcmp.gt.f32.partialorder %v5075, 0.0001
  %vm5107 = vcmp.gt.f32.partialorder %v5082, 0.0001
  %v5108 = vsel %vm5103, 1, 0
  %v5109 = vsel %vm5104, 1, 0
  %v5110 = vsel %vm5105, 1, 0
  %v5111 = vsel %vm5106, 1, 0
  %v5112 = vsel %vm5107, 1, 0
  %v5113 = vcvt.s32.f32 %v5108
  %v5114 = vcvt.s32.f32 %v5109
  %v5115 = vcvt.s32.f32 %v5110
  %v5116 = vcvt.s32.f32 %v5111
  %v5117 = vcvt.s32.f32 %v5112
  %v5118 = vmul.f32 %v5098, %v5113
  %v5119 = vmul.f32 %v5099, %v5114
  %v5120 = vmul.f32 %v5100, %v5115
  %v5121 = vmul.f32 %v5101, %v5116
  %v5122 = vmul.f32 %v5102, %v5117
  %vm5123 = vcmp.gt.f32.partialorder %v5118, 0.0
  %vm5124 = vcmp.gt.f32.partialorder %v5119, 0.0
  %vm5125 = vcmp.gt.f32.partialorder %v5120, 0.0
  %vm5126 = vcmp.gt.f32.partialorder %v5121, 0.0
  %vm5127 = vcmp.gt.f32.partialorder %v5122, 0.0
  %v5128 = vsel %vm5123, %v5054, 1.0
  %v5129 = vsel %vm5124, %v5061, 1.0
  %v5130 = vsel %vm5125, %v5068, 1.0
  %v5131 = vsel %vm5126, %v5075, 1.0
  %v5132 = vsel %vm5127, %v5082, 1.0
  %v5133 = vrcp.pop %v5128
  %v5134 = vrcp.pop %v5129
  %v5135 = vrcp.pop %v5130
  %v5136 = vrcp.pop %v5131
  %v5137 = vrcp.pop %v5132
  %v5138 = vpack.c.bf16 %v5008, %v5003
  %v5139 = vpack.c.bf16 %v5018, %v5013
  %v5140 = vpack.c.bf16 %v5023, %v5023
  %v5141 = vld [vmem:[%s45] sm:$0x1]
  %v5142 = vld [vmem:[%s47] sm:$0x1]
  %5144 = vset.pattern.permute.xlu0 0
  %5145 = vperm.xlu0 %5144, %v5133
  %v5146 = vpop.permute.xlu0 %5145
  %5149 = vset.pattern.permute.xlu0 0
  %5150 = vperm.xlu0 %5149, %v5134
  %v5151 = vpop.permute.xlu0 %5150
  %5154 = vset.pattern.permute.xlu0 0
  %5155 = vperm.xlu0 %5154, %v5135
  %v5156 = vpop.permute.xlu0 %5155
  %5159 = vset.pattern.permute.xlu0 0
  %5160 = vperm.xlu0 %5159, %v5136
  %v5161 = vpop.permute.xlu0 %5160
  %5164 = vset.pattern.permute.xlu0 0
  %5165 = vperm.xlu0 %5164, %v5137
  %v5166 = vpop.permute.xlu0 %5165
  %v5169 = vlaneseq
  %v5170 = vshrl.u32 %v5169, 7
  %v5171 = vsub.s32 0, %v5170
  %v5172 = vrot.slane %v5142, %v5171
  %v5174 = vmul.f32 %v5146, %v5172
  %v5175 = vmul.f32 %v5151, %v5172
  %v5176 = vmul.f32 %v5156, %v5172
  %v5177 = vmul.f32 %v5161, %v5172
  %v5178 = vmul.f32 %v5166, %v5172
  %v5180 = vsel %vm5031, %v5138, 0
  %v5183 = vsel %vm5031, %v5139, 0
  %v5186 = vsel %vm5031, %v5140, 0
  %vm5188 = vcmask 1040384
  %v5190 = vsel %vm5188, %v5141, 0
  %5192 = vmatprep.subr.bf16.mxu0 0
  %5193 = vmatpush1.bf16.msra.mxu0 %v5190
  %5194 = vmatprep.subr.bf16.mxu0 0
  %5195 = vmatpush1.bf16.msra.mxu0 0
  %5196 = vmatprep.subr.bf16.mxu0 0
  %5197 = vmatpush1.bf16.msra.mxu0 0
  %5198 = vmatprep.subr.bf16.mxu0 0
  %5199 = vmatpush1.bf16.msra.mxu0 0
  %5200 = vmatprep.subr.bf16.mxu0 0
  %5201 = vmatpush1.bf16.msra.mxu0 0
  %5202 = vmatprep.subr.bf16.mxu0 0
  %5203 = vmatpush1.bf16.msra.mxu0 0
  %5204 = vmatprep.subr.bf16.mxu0 0
  %5205 = vmatpush1.bf16.msra.mxu0 0
  %5206 = vmatprep.subr.bf16.mxu0 0
  %5207 = vmatpush1.bf16.msra.mxu0 0
  %5208 = vmatprep.subr.bf16.mxu0 0
  %5209 = vmatpush1.bf16.msra.mxu0 0
  %5210 = vmatprep.subr.bf16.mxu0 0
  %5211 = vmatpush1.bf16.msra.mxu0 0
  %5212 = vmatprep.subr.bf16.mxu0 0
  %5213 = vmatpush1.bf16.msra.mxu0 0
  %5214 = vmatprep.subr.bf16.mxu0 0
  %5215 = vmatpush1.bf16.msra.mxu0 0
  %5216 = vmatprep.subr.bf16.mxu0 0
  %5217 = vmatpush1.bf16.msra.mxu0 0
  %5218 = vmatprep.subr.bf16.mxu0 0
  %5219 = vmatpush1.bf16.msra.mxu0 0
  %5220 = vmatprep.subr.bf16.mxu0 0
  %5221 = vmatpush1.bf16.msra.mxu0 0
  %5222 = vmatprep.subr.bf16.mxu0 0
  %5223 = vmatpush1.bf16.msra.mxu0 0
  %5224 = vmatprep.mubr.bf16.mxu0 0
  %5225 = vmatmul.mubr.bf16.gmra.mrb[0].mxu0 %v5180
  %v5226 = vpop.f32.mrb[0].mxu0
  %v5227 = vadd.f32 %v5174, %v5226
  %v5228 = vpop.f32.mrb[0].mxu0
  %v5229 = vpop.f32.mrb[0].mxu0
  %v5230 = vadd.f32 %v5175, %v5229
  %v5231 = vpop.f32.mrb[0].mxu0
  %5232 = vmatprep.mubr.bf16.mxu0 0
  %5233 = vmatmul.mubr.bf16.gmra.mrb[0].mxu0 %v5183
  %v5234 = vpop.f32.mrb[0].mxu0
  %v5235 = vadd.f32 %v5176, %v5234
  %v5236 = vpop.f32.mrb[0].mxu0
  %v5237 = vpop.f32.mrb[0].mxu0
  %v5238 = vadd.f32 %v5177, %v5237
  %v5239 = vpop.f32.mrb[0].mxu0
  %5240 = vmatprep.mubr.bf16.mxu0 0
  %5241 = vmatmul.mubr.bf16.gmra.mrb[0].mxu0 %v5186
  %v5242 = vpop.f32.mrb[0].mxu0
  %v5243 = vadd.f32 %v5178, %v5242
  %v5244 = vpop.f32.mrb[0].mxu0
  %v5245 = vpop.f32.mrb[0].mxu0
  %v5246 = vpop.f32.mrb[0].mxu0
  %5247 = vdwg.mxu0
  %v5248 = vld [vmem:[%s17 + $0x17] sm:$0x1]
  %v5250 = vlaneseq
  %v5251 = vshrl.u32 %v5250, 7
  %v5252 = vsub.s32 0, %v5251
  %v5253 = vrot.slane %v5248, %v5252
  %v5255 = vadd.f32 %v5227, %v5253
  %v5256 = vadd.f32 %v5230, %v5253
  %v5257 = vadd.f32 %v5235, %v5253
  %v5258 = vadd.f32 %v5238, %v5253
  %v5259 = vadd.f32 %v5243, %v5253
  %v5260 = vmax.f32 %v5255, 0.0
  %v5261 = vmax.f32 %v5256, 0.0
  %v5262 = vmax.f32 %v5257, 0.0
  %v5263 = vmax.f32 %v5258, 0.0
  %v5264 = vmax.f32 %v5259, 0.0
  %v5265 = vpack.c.bf16 %v5261, %v5260
  %v5266 = vpack.c.bf16 %v5263, %v5262
  %v5267 = vpack.c.bf16 %v5264, %v5264
  %v5268 = vld [vmem:[%s49] sm:$0xf]
  %v5269 = vld [vmem:[%s49 + $0x4] sm:$0xf]
  %v5270 = vld [vmem:[%s17 + $0x18] sm:$0x1]
  %v5272 = vlaneseq
  %v5273 = vshrl.u32 %v5272, 7
  %v5274 = vsub.s32 0, %v5273
  %v5275 = vrot.slane %v5270, %v5274
  %v5279 = vunpack.c.l.b16 %v5268
  %v5280 = vunpack.c.l.b16 %v5269
  %v5281 = vpack.c.b16 %v5280, %v5279
  %v5284 = vsel %vm256, %v5265, 0
  %v5287 = vsel %vm256, %v5266, 0
  %v5290 = vsel %vm256, %v5267, 0
  %5292 = vmatprep.subr.bf16.mxu0 0
  %5293 = vmatpush1.bf16.msra.mxu0 %v5281
  %5294 = vmatprep.subr.bf16.mxu0 0
  %5295 = vmatpush1.bf16.msra.mxu0 0
  %5296 = vmatprep.subr.bf16.mxu0 0
  %5297 = vmatpush1.bf16.msra.mxu0 0
  %5298 = vmatprep.subr.bf16.mxu0 0
  %5299 = vmatpush1.bf16.msra.mxu0 0
  %5300 = vmatprep.subr.bf16.mxu0 0
  %5301 = vmatpush1.bf16.msra.mxu0 0
  %5302 = vmatprep.subr.bf16.mxu0 0
  %5303 = vmatpush1.bf16.msra.mxu0 0
  %5304 = vmatprep.subr.bf16.mxu0 0
  %5305 = vmatpush1.bf16.msra.mxu0 0
  %5306 = vmatprep.subr.bf16.mxu0 0
  %5307 = vmatpush1.bf16.msra.mxu0 0
  %5308 = vmatprep.subr.bf16.mxu0 0
  %5309 = vmatpush1.bf16.msra.mxu0 0
  %5310 = vmatprep.subr.bf16.mxu0 0
  %5311 = vmatpush1.bf16.msra.mxu0 0
  %5312 = vmatprep.subr.bf16.mxu0 0
  %5313 = vmatpush1.bf16.msra.mxu0 0
  %5314 = vmatprep.subr.bf16.mxu0 0
  %5315 = vmatpush1.bf16.msra.mxu0 0
  %5316 = vmatprep.subr.bf16.mxu0 0
  %5317 = vmatpush1.bf16.msra.mxu0 0
  %5318 = vmatprep.subr.bf16.mxu0 0
  %5319 = vmatpush1.bf16.msra.mxu0 0
  %5320 = vmatprep.subr.bf16.mxu0 0
  %5321 = vmatpush1.bf16.msra.mxu0 0
  %5322 = vmatprep.subr.bf16.mxu0 0
  %5323 = vmatpush1.bf16.msra.mxu0 0
  %5324 = vmatprep.mubr.bf16.mxu0 0
  %5325 = vmatmul.mubr.bf16.gmra.mrb[0].mxu0 %v5284
  %v5326 = vpop.f32.mrb[0].mxu0
  %v5327 = vadd.f32 %v5275, %v5326
  %v5328 = vpop.f32.mrb[0].mxu0
  %v5329 = vpop.f32.mrb[0].mxu0
  %v5330 = vadd.f32 %v5275, %v5329
  %v5331 = vpop.f32.mrb[0].mxu0
  %5332 = vmatprep.mubr.bf16.mxu0 0
  %5333 = vmatmul.mubr.bf16.gmra.mrb[0].mxu0 %v5287
  %v5334 = vpop.f32.mrb[0].mxu0
  %v5335 = vadd.f32 %v5275, %v5334
  %v5336 = vpop.f32.mrb[0].mxu0
  %v5337 = vpop.f32.mrb[0].mxu0
  %v5338 = vadd.f32 %v5275, %v5337
  %v5339 = vpop.f32.mrb[0].mxu0
  %5340 = vmatprep.mubr.bf16.mxu0 0
  %5341 = vmatmul.mubr.bf16.gmra.mrb[0].mxu0 %v5290
  %v5342 = vpop.f32.mrb[0].mxu0
  %v5343 = vadd.f32 %v5275, %v5342
  %v5344 = vpop.f32.mrb[0].mxu0
  %v5345 = vpop.f32.mrb[0].mxu0
  %v5346 = vpop.f32.mrb[0].mxu0
  %5347 = vdwg.mxu0
  %v5348 = vmax.f32 %v5327, 0.0
  %v5349 = vmax.f32 %v5330, 0.0
  %v5350 = vmax.f32 %v5335, 0.0
  %v5351 = vmax.f32 %v5338, 0.0
  %v5352 = vmax.f32 %v5343, 0.0
  %v5353 = vpack.c.bf16 %v5349, %v5348
  %v5354 = vpack.c.bf16 %v5351, %v5350
  %v5355 = vpack.c.bf16 %v5352, %v5352
  %v5356 = vld [vmem:[%s51] sm:$0xf]
  %v5357 = vld [vmem:[%s51 + $0x4] sm:$0xf]
  %v5358 = vld [vmem:[%s51 + $0x8] sm:$0xf]
  %v5359 = vld [vmem:[%s51 + $0xc] sm:$0xf]
  %v5360 = vld [vmem:[%s17 + $0x19] sm:$0x1]
  %v5362 = vlaneseq
  %v5363 = vshrl.u32 %v5362, 7
  %v5364 = vsub.s32 0, %v5363
  %v5365 = vrot.slane %v5360, %v5364
  %v5371 = vunpack.c.l.b16 %v5356
  %v5372 = vunpack.c.l.b16 %v5357
  %v5373 = vunpack.c.l.b16 %v5358
  %v5374 = vunpack.c.l.b16 %v5359
  %v5375 = vpack.c.b16 %v5372, %v5371
  %v5376 = vpack.c.b16 %v5374, %v5373
  %v5380 = vsel %vm1603, %v5353, 0
  %v5383 = vsel %vm1603, %v5354, 0
  %v5386 = vsel %vm1603, %v5355, 0
  %5388 = vmatprep.subr.bf16.mxu0 0
  %5389 = vmatpush1.bf16.msra.mxu0 %v5375
  %5390 = vmatprep.subr.bf16.mxu0 0
  %5391 = vmatpush1.bf16.msra.mxu0 %v5376
  %5392 = vmatprep.subr.bf16.mxu0 0
  %5393 = vmatpush1.bf16.msra.mxu0 0
  %5394 = vmatprep.subr.bf16.mxu0 0
  %5395 = vmatpush1.bf16.msra.mxu0 0
  %5396 = vmatprep.subr.bf16.mxu0 0
  %5397 = vmatpush1.bf16.msra.mxu0 0
  %5398 = vmatprep.subr.bf16.mxu0 0
  %5399 = vmatpush1.bf16.msra.mxu0 0
  %5400 = vmatprep.subr.bf16.mxu0 0
  %5401 = vmatpush1.bf16.msra.mxu0 0
  %5402 = vmatprep.subr.bf16.mxu0 0
  %5403 = vmatpush1.bf16.msra.mxu0 0
  %5404 = vmatprep.subr.bf16.mxu0 0
  %5405 = vmatpush1.bf16.msra.mxu0 0
  %5406 = vmatprep.subr.bf16.mxu0 0
  %5407 = vmatpush1.bf16.msra.mxu0 0
  %5408 = vmatprep.subr.bf16.mxu0 0
  %5409 = vmatpush1.bf16.msra.mxu0 0
  %5410 = vmatprep.subr.bf16.mxu0 0
  %5411 = vmatpush1.bf16.msra.mxu0 0
  %5412 = vmatprep.subr.bf16.mxu0 0
  %5413 = vmatpush1.bf16.msra.mxu0 0
  %5414 = vmatprep.subr.bf16.mxu0 0
  %5415 = vmatpush1.bf16.msra.mxu0 0
  %5416 = vmatprep.subr.bf16.mxu0 0
  %5417 = vmatpush1.bf16.msra.mxu0 0
  %5418 = vmatprep.subr.bf16.mxu0 0
  %5419 = vmatpush1.bf16.msra.mxu0 0
  %5420 = vmatprep.mubr.bf16.mxu0 0
  %5421 = vmatmul.mubr.bf16.gmra.mrb[0].mxu0 %v5380
  %v5422 = vpop.f32.mrb[0].mxu0
  %v5423 = vadd.f32 %v5365, %v5422
  %v5424 = vpop.f32.mrb[0].mxu0
  %v5425 = vpop.f32.mrb[0].mxu0
  %v5426 = vadd.f32 %v5365, %v5425
  %v5427 = vpop.f32.mrb[0].mxu0
  %5428 = vmatprep.mubr.bf16.mxu0 0
  %5429 = vmatmul.mubr.bf16.gmra.mrb[0].mxu0 %v5383
  %v5430 = vpop.f32.mrb[0].mxu0
  %v5431 = vadd.f32 %v5365, %v5430
  %v5432 = vpop.f32.mrb[0].mxu0
  %v5433 = vpop.f32.mrb[0].mxu0
  %v5434 = vadd.f32 %v5365, %v5433
  %v5435 = vpop.f32.mrb[0].mxu0
  %5436 = vmatprep.mubr.bf16.mxu0 0
  %5437 = vmatmul.mubr.bf16.gmra.mrb[0].mxu0 %v5386
  %v5438 = vpop.f32.mrb[0].mxu0
  %v5439 = vadd.f32 %v5365, %v5438
  %v5440 = vpop.f32.mrb[0].mxu0
  %v5441 = vpop.f32.mrb[0].mxu0
  %v5442 = vpop.f32.mrb[0].mxu0
  %5443 = vdwg.mxu0
  %5445 = vset.pattern.permute.xlu0 0
  %5446 = vperm.xlu0 %5445, %v5118
  %v5447 = vpop.permute.xlu0 %5446
  %5450 = vset.pattern.permute.xlu0 0
  %5451 = vperm.xlu0 %5450, %v5119
  %v5452 = vpop.permute.xlu0 %5451
  %5455 = vset.pattern.permute.xlu0 0
  %5456 = vperm.xlu0 %5455, %v5120
  %v5457 = vpop.permute.xlu0 %5456
  %5460 = vset.pattern.permute.xlu0 0
  %5461 = vperm.xlu0 %5460, %v5121
  %v5462 = vpop.permute.xlu0 %5461
  %5465 = vset.pattern.permute.xlu0 0
  %5466 = vperm.xlu0 %5465, %v5122
  %v5467 = vpop.permute.xlu0 %5466
  %v5469 = vmul.f32 %v5423, %v5447
  %v5470 = vmul.f32 %v5426, %v5452
  %v5471 = vmul.f32 %v5431, %v5457
  %v5472 = vmul.f32 %v5434, %v5462
  %v5473 = vmul.f32 %v5439, %v5467
  %v5474 = vld [vmem:[%s13] sm:$0x7]
  %v5475 = vpack.c.bf16 %v5470, %v5469
  %v5476 = vpack.c.bf16 %v5472, %v5471
  %v5477 = vpack.c.bf16 %v5473, %v5473
  %vm5478 = vcmask 293888
  %v5480 = vsel %vm5478, %v5474, 0
  %vm5482 = vcmask 1041408
  %v5484 = vsel %vm5482, %v5477, 0
  %5486 = vmatprep.subr.bf16.mxu0 0
  %5487 = vmatpush1.bf16.msra.mxu0 %v5475
  %5488 = vmatprep.subr.bf16.mxu0 0
  %5489 = vmatpush1.bf16.msra.mxu0 %v5476
  %5490 = vmatprep.subr.bf16.mxu0 0
  %5491 = vmatpush1.bf16.msra.mxu0 %v5484
  %5492 = vmatprep.subr.bf16.mxu0 0
  %5493 = vmatpush1.bf16.msra.mxu0 0
  %5494 = vmatprep.subr.bf16.mxu0 0
  %5495 = vmatpush1.bf16.msra.mxu0 0
  %5496 = vmatprep.subr.bf16.mxu0 0
  %5497 = vmatpush1.bf16.msra.mxu0 0
  %5498 = vmatprep.subr.bf16.mxu0 0
  %5499 = vmatpush1.bf16.msra.mxu0 0
  %5500 = vmatprep.subr.bf16.mxu0 0
  %5501 = vmatpush1.bf16.msra.mxu0 0
  %5502 = vmatprep.subr.bf16.mxu0 0
  %5503 = vmatpush1.bf16.msra.mxu0 0
  %5504 = vmatprep.subr.bf16.mxu0 0
  %5505 = vmatpush1.bf16.msra.mxu0 0
  %5506 = vmatprep.subr.bf16.mxu0 0
  %5507 = vmatpush1.bf16.msra.mxu0 0
  %5508 = vmatprep.subr.bf16.mxu0 0
  %5509 = vmatpush1.bf16.msra.mxu0 0
  %5510 = vmatprep.subr.bf16.mxu0 0
  %5511 = vmatpush1.bf16.msra.mxu0 0
  %5512 = vmatprep.subr.bf16.mxu0 0
  %5513 = vmatpush1.bf16.msra.mxu0 0
  %5514 = vmatprep.subr.bf16.mxu0 0
  %5515 = vmatpush1.bf16.msra.mxu0 0
  %5516 = vmatprep.subr.bf16.mxu0 0
  %5517 = vmatpush1.bf16.msra.mxu0 0
  %5518 = vmatprep.mubr.bf16.mxu0 0
  %5519 = vmatmul.mubr.bf16.gmra.mrb[0].mxu0 %v5480
  %v5520 = vpop.f32.mrb[0].mxu0
  %v5521 = vadd.f32 0.0, %v5520
  %v5522 = vpop.f32.mrb[0].mxu0
  %v5523 = vpop.f32.mrb[0].mxu0
  %v5524 = vpop.f32.mrb[0].mxu0
  %5525 = vdwg.mxu0
  %v5526 = vld [vmem:[%s15] sm:$0xff]
  %v5527 = vld [vmem:[%s15 + $0x8] sm:$0xff]
  %v5528 = vld [vmem:[%s15 + $0x10] sm:$0xff]
  %v5530 = vsel %vm510, %v5526, 0
  %v5533 = vsel %vm510, %v5527, 0
  %v5536 = vsel %vm510, %v5528, 0
  %v5539 = vsel %vm1781, %v5521, 0
  %5541 = vmatprep.subr.mxu0 0.0
  %5542 = vmatpush1.msra.mxu0 %v5539
  %5543 = vmatprep.subr.mxu0 0.0
  %5544 = vmatpush1.msra.mxu0 0.0
  %5545 = vmatprep.subr.mxu0 0.0
  %5546 = vmatpush1.msra.mxu0 0.0
  %5547 = vmatprep.subr.mxu0 0.0
  %5548 = vmatpush1.msra.mxu0 0.0
  %5549 = vmatprep.subr.mxu0 0.0
  %5550 = vmatpush1.msra.mxu0 0.0
  %5551 = vmatprep.subr.mxu0 0.0
  %5552 = vmatpush1.msra.mxu0 0.0
  %5553 = vmatprep.subr.mxu0 0.0
  %5554 = vmatpush1.msra.mxu0 0.0
  %5555 = vmatprep.subr.mxu0 0.0
  %5556 = vmatpush1.msra.mxu0 0.0
  %5557 = vmatprep.subr.mxu0 0.0
  %5558 = vmatpush1.msra.mxu0 0.0
  %5559 = vmatprep.subr.mxu0 0.0
  %5560 = vmatpush1.msra.mxu0 0.0
  %5561 = vmatprep.subr.mxu0 0.0
  %5562 = vmatpush1.msra.mxu0 0.0
  %5563 = vmatprep.subr.mxu0 0.0
  %5564 = vmatpush1.msra.mxu0 0.0
  %5565 = vmatprep.subr.mxu0 0.0
  %5566 = vmatpush1.msra.mxu0 0.0
  %5567 = vmatprep.subr.mxu0 0.0
  %5568 = vmatpush1.msra.mxu0 0.0
  %5569 = vmatprep.subr.mxu0 0.0
  %5570 = vmatpush1.msra.mxu0 0.0
  %5571 = vmatprep.subr.mxu0 0.0
  %5572 = vmatpush1.msra.mxu0 0.0
  %5573 = vmatprep.subr.mxu0 0.0
  %5574 = vmatpush1.msra.mxu0 0.0
  %5575 = vmatprep.subr.mxu0 0.0
  %5576 = vmatpush1.msra.mxu0 0.0
  %5577 = vmatprep.subr.mxu0 0.0
  %5578 = vmatpush1.msra.mxu0 0.0
  %5579 = vmatprep.subr.mxu0 0.0
  %5580 = vmatpush1.msra.mxu0 0.0
  %5581 = vmatprep.subr.mxu0 0.0
  %5582 = vmatpush1.msra.mxu0 0.0
  %5583 = vmatprep.subr.mxu0 0.0
  %5584 = vmatpush1.msra.mxu0 0.0
  %5585 = vmatprep.subr.mxu0 0.0
  %5586 = vmatpush1.msra.mxu0 0.0
  %5587 = vmatprep.subr.mxu0 0.0
  %5588 = vmatpush1.msra.mxu0 0.0
  %5589 = vmatprep.subr.mxu0 0.0
  %5590 = vmatpush1.msra.mxu0 0.0
  %5591 = vmatprep.subr.mxu0 0.0
  %5592 = vmatpush1.msra.mxu0 0.0
  %5593 = vmatprep.subr.mxu0 0.0
  %5594 = vmatpush1.msra.mxu0 0.0
  %5595 = vmatprep.subr.mxu0 0.0
  %5596 = vmatpush1.msra.mxu0 0.0
  %5597 = vmatprep.subr.mxu0 0.0
  %5598 = vmatpush1.msra.mxu0 0.0
  %5599 = vmatprep.subr.mxu0 0.0
  %5600 = vmatpush1.msra.mxu0 0.0
  %5601 = vmatprep.subr.mxu0 0.0
  %5602 = vmatpush1.msra.mxu0 0.0
  %5603 = vmatprep.subr.mxu0 0.0
  %5604 = vmatpush1.msra.mxu0 0.0
  %5605 = vmatprep.mubr.f32.mxu0 0.0
  %5606 = vmatmul.mubr.f32.gmra.mrb[0].mxu0 %v5530
  %v5607 = vpop.f32.mrb[0].mxu0
  %v5608 = vadd.f32 0.0, %v5607
  %v5609 = vpop.f32.mrb[0].mxu0
  %5610 = vmatprep.mubr.f32.mxu0 0.0
  %5611 = vmatmul.mubr.f32.gmra.mrb[0].mxu0 %v5533
  %v5612 = vpop.f32.mrb[0].mxu0
  %v5613 = vadd.f32 0.0, %v5612
  %v5614 = vpop.f32.mrb[0].mxu0
  %5615 = vmatprep.mubr.f32.mxu0 0.0
  %5616 = vmatmul.mubr.f32.gmra.mrb[0].mxu0 %v5536
  %v5617 = vpop.f32.mrb[0].mxu0
  %v5618 = vadd.f32 0.0, %v5617
  %v5619 = vpop.f32.mrb[0].mxu0
  %5620 = vdwg.mxu0
  %v5621 = vadd.f32 %v4898, %v5608
  %v5622 = vadd.f32 %v4901, %v5613
  %v5623 = vadd.f32 %v4906, %v5618
  %v5624 = vpack.c.bf16 %v5622, %v5621
  %v5625 = vpack.c.bf16 %v5623, %v5623
  %v5626 = vld [vmem:[%s53] sm:$0xf]
  %v5627 = vld [vmem:[%s53 + $0x4] sm:$0xf]
  %v5628 = vld [vmem:[%s53 + $0x8] sm:$0xf]
  %v5629 = vld [vmem:[%s53 + $0xc] sm:$0xf]
  %v5630 = vld [vmem:[%s17 + $0x1a] sm:$0x1]
  %v5632 = vlaneseq
  %v5633 = vshrl.u32 %v5632, 7
  %v5634 = vsub.s32 0, %v5633
  %v5635 = vrot.slane %v5630, %v5634
  %v5641 = vunpack.c.l.b16 %v5626
  %v5642 = vunpack.c.l.b16 %v5627
  %v5643 = vunpack.c.l.b16 %v5628
  %v5644 = vunpack.c.l.b16 %v5629
  %v5645 = vpack.c.b16 %v5642, %v5641
  %v5646 = vpack.c.b16 %v5644, %v5643
  %v5650 = vsel %vm1603, %v5624, 0
  %v5653 = vsel %vm1603, %v5625, 0
  %5655 = vmatprep.subr.bf16.mxu0 0
  %5656 = vmatpush1.bf16.msra.mxu0 %v5645
  %5657 = vmatprep.subr.bf16.mxu0 0
  %5658 = vmatpush1.bf16.msra.mxu0 %v5646
  %5659 = vmatprep.subr.bf16.mxu0 0
  %5660 = vmatpush1.bf16.msra.mxu0 0
  %5661 = vmatprep.subr.bf16.mxu0 0
  %5662 = vmatpush1.bf16.msra.mxu0 0
  %5663 = vmatprep.subr.bf16.mxu0 0
  %5664 = vmatpush1.bf16.msra.mxu0 0
  %5665 = vmatprep.subr.bf16.mxu0 0
  %5666 = vmatpush1.bf16.msra.mxu0 0
  %5667 = vmatprep.subr.bf16.mxu0 0
  %5668 = vmatpush1.bf16.msra.mxu0 0
  %5669 = vmatprep.subr.bf16.mxu0 0
  %5670 = vmatpush1.bf16.msra.mxu0 0
  %5671 = vmatprep.subr.bf16.mxu0 0
  %5672 = vmatpush1.bf16.msra.mxu0 0
  %5673 = vmatprep.subr.bf16.mxu0 0
  %5674 = vmatpush1.bf16.msra.mxu0 0
  %5675 = vmatprep.subr.bf16.mxu0 0
  %5676 = vmatpush1.bf16.msra.mxu0 0
  %5677 = vmatprep.subr.bf16.mxu0 0
  %5678 = vmatpush1.bf16.msra.mxu0 0
  %5679 = vmatprep.subr.bf16.mxu0 0
  %5680 = vmatpush1.bf16.msra.mxu0 0
  %5681 = vmatprep.subr.bf16.mxu0 0
  %5682 = vmatpush1.bf16.msra.mxu0 0
  %5683 = vmatprep.subr.bf16.mxu0 0
  %5684 = vmatpush1.bf16.msra.mxu0 0
  %5685 = vmatprep.subr.bf16.mxu0 0
  %5686 = vmatpush1.bf16.msra.mxu0 0
  %5687 = vmatprep.mubr.bf16.mxu0 0
  %5688 = vmatmul.mubr.bf16.gmra.mrb[0].mxu0 %v5650
  %v5689 = vpop.f32.mrb[0].mxu0
  %v5690 = vadd.f32 %v5635, %v5689
  %v5691 = vpop.f32.mrb[0].mxu0
  %v5692 = vpop.f32.mrb[0].mxu0
  %v5693 = vadd.f32 %v5635, %v5692
  %v5694 = vpop.f32.mrb[0].mxu0
  %5695 = vmatprep.mubr.bf16.mxu0 0
  %5696 = vmatmul.mubr.bf16.gmra.mrb[0].mxu0 %v5653
  %v5697 = vpop.f32.mrb[0].mxu0
  %v5698 = vadd.f32 %v5635, %v5697
  %v5699 = vpop.f32.mrb[0].mxu0
  %v5700 = vpop.f32.mrb[0].mxu0
  %v5701 = vpop.f32.mrb[0].mxu0
  %5702 = vdwg.mxu0
  %v5703 = vmax.f32 %v5690, 0.0
  %v5704 = vmax.f32 %v5693, 0.0
  %v5705 = vmax.f32 %v5698, 0.0
  %v5706 = vpack.c.bf16 %v5704, %v5703
  %v5707 = vpack.c.bf16 %v5705, %v5705
  %v5708 = vld [vmem:[%s55] sm:$0xf]
  %v5709 = vld [vmem:[%s55 + $0x4] sm:$0xf]
  %v5710 = vld [vmem:[%s55 + $0x8] sm:$0xf]
  %v5711 = vld [vmem:[%s55 + $0xc] sm:$0xf]
  %v5712 = vld [vmem:[%s17 + $0x1b] sm:$0x1]
  %v5714 = vlaneseq
  %v5715 = vshrl.u32 %v5714, 7
  %v5716 = vsub.s32 0, %v5715
  %v5717 = vrot.slane %v5712, %v5716
  %v5723 = vunpack.c.l.b16 %v5708
  %v5724 = vunpack.c.l.b16 %v5709
  %v5725 = vunpack.c.l.b16 %v5710
  %v5726 = vunpack.c.l.b16 %v5711
  %v5727 = vpack.c.b16 %v5724, %v5723
  %v5728 = vpack.c.b16 %v5726, %v5725
  %v5732 = vsel %vm1603, %v5706, 0
  %v5735 = vsel %vm1603, %v5707, 0
  %5737 = vmatprep.subr.bf16.mxu0 0
  %5738 = vmatpush1.bf16.msra.mxu0 %v5727
  %5739 = vmatprep.subr.bf16.mxu0 0
  %5740 = vmatpush1.bf16.msra.mxu0 %v5728
  %5741 = vmatprep.subr.bf16.mxu0 0
  %5742 = vmatpush1.bf16.msra.mxu0 0
  %5743 = vmatprep.subr.bf16.mxu0 0
  %5744 = vmatpush1.bf16.msra.mxu0 0
  %5745 = vmatprep.subr.bf16.mxu0 0
  %5746 = vmatpush1.bf16.msra.mxu0 0
  %5747 = vmatprep.subr.bf16.mxu0 0
  %5748 = vmatpush1.bf16.msra.mxu0 0
  %5749 = vmatprep.subr.bf16.mxu0 0
  %5750 = vmatpush1.bf16.msra.mxu0 0
  %5751 = vmatprep.subr.bf16.mxu0 0
  %5752 = vmatpush1.bf16.msra.mxu0 0
  %5753 = vmatprep.subr.bf16.mxu0 0
  %5754 = vmatpush1.bf16.msra.mxu0 0
  %5755 = vmatprep.subr.bf16.mxu0 0
  %5756 = vmatpush1.bf16.msra.mxu0 0
  %5757 = vmatprep.subr.bf16.mxu0 0
  %5758 = vmatpush1.bf16.msra.mxu0 0
  %5759 = vmatprep.subr.bf16.mxu0 0
  %5760 = vmatpush1.bf16.msra.mxu0 0
  %5761 = vmatprep.subr.bf16.mxu0 0
  %5762 = vmatpush1.bf16.msra.mxu0 0
  %5763 = vmatprep.subr.bf16.mxu0 0
  %5764 = vmatpush1.bf16.msra.mxu0 0
  %5765 = vmatprep.subr.bf16.mxu0 0
  %5766 = vmatpush1.bf16.msra.mxu0 0
  %5767 = vmatprep.subr.bf16.mxu0 0
  %5768 = vmatpush1.bf16.msra.mxu0 0
  %5769 = vmatprep.mubr.bf16.mxu0 0
  %5770 = vmatmul.mubr.bf16.gmra.mrb[0].mxu0 %v5732
  %v5771 = vpop.f32.mrb[0].mxu0
  %v5772 = vadd.f32 %v5717, %v5771
  %v5773 = vpop.f32.mrb[0].mxu0
  %v5774 = vpop.f32.mrb[0].mxu0
  %v5775 = vadd.f32 %v5717, %v5774
  %v5776 = vpop.f32.mrb[0].mxu0
  %5777 = vmatprep.mubr.bf16.mxu0 0
  %5778 = vmatmul.mubr.bf16.gmra.mrb[0].mxu0 %v5735
  %v5779 = vpop.f32.mrb[0].mxu0
  %v5780 = vadd.f32 %v5717, %v5779
  %v5781 = vpop.f32.mrb[0].mxu0
  %v5782 = vpop.f32.mrb[0].mxu0
  %v5783 = vpop.f32.mrb[0].mxu0
  %5784 = vdwg.mxu0
  %v5785 = vmax.f32 %v5772, 0.0
  %v5786 = vmax.f32 %v5775, 0.0
  %v5787 = vmax.f32 %v5780, 0.0
  %v5788 = vpack.c.bf16 %v5786, %v5785
  %v5789 = vpack.c.bf16 %v5787, %v5787
  %v5790 = vld [vmem:[%s57] sm:$0xf]
  %v5791 = vld [vmem:[%s57 + $0x4] sm:$0xf]
  %v5792 = vld [vmem:[%s57 + $0x8] sm:$0xf]
  %v5793 = vld [vmem:[%s57 + $0xc] sm:$0xf]
  %v5794 = vld [vmem:[%s57 + $0x10] sm:$0xf]
  %v5795 = vld [vmem:[%s57 + $0x14] sm:$0xf]
  %v5796 = vld [vmem:[%s57 + $0x18] sm:$0xf]
  %v5797 = vld [vmem:[%s57 + $0x1c] sm:$0xf]
  %v5798 = vld [vmem:[%s17 + $0x1c] sm:$0x1]
  %v5800 = vlaneseq
  %v5801 = vshrl.u32 %v5800, 7
  %v5802 = vsub.s32 0, %v5801
  %v5803 = vrot.slane %v5798, %v5802
  %v5813 = vunpack.c.l.b16 %v5790
  %v5814 = vunpack.c.l.b16 %v5791
  %v5815 = vunpack.c.l.b16 %v5792
  %v5816 = vunpack.c.l.b16 %v5793
  %v5817 = vunpack.c.l.b16 %v5794
  %v5818 = vunpack.c.l.b16 %v5795
  %v5819 = vunpack.c.l.b16 %v5796
  %v5820 = vunpack.c.l.b16 %v5797
  %v5821 = vpack.c.b16 %v5814, %v5813
  %v5822 = vpack.c.b16 %v5816, %v5815
  %v5823 = vpack.c.b16 %v5818, %v5817
  %v5824 = vpack.c.b16 %v5820, %v5819
  %v5830 = vsel %vm1397, %v5788, 0
  %v5833 = vsel %vm1397, %v5789, 0
  %5835 = vmatprep.subr.bf16.mxu0 0
  %5836 = vmatpush1.bf16.msra.mxu0 %v5821
  %5837 = vmatprep.subr.bf16.mxu0 0
  %5838 = vmatpush1.bf16.msra.mxu0 %v5822
  %5839 = vmatprep.subr.bf16.mxu0 0
  %5840 = vmatpush1.bf16.msra.mxu0 %v5823
  %5841 = vmatprep.subr.bf16.mxu0 0
  %5842 = vmatpush1.bf16.msra.mxu0 %v5824
  %5843 = vmatprep.subr.bf16.mxu0 0
  %5844 = vmatpush1.bf16.msra.mxu0 0
  %5845 = vmatprep.subr.bf16.mxu0 0
  %5846 = vmatpush1.bf16.msra.mxu0 0
  %5847 = vmatprep.subr.bf16.mxu0 0
  %5848 = vmatpush1.bf16.msra.mxu0 0
  %5849 = vmatprep.subr.bf16.mxu0 0
  %5850 = vmatpush1.bf16.msra.mxu0 0
  %5851 = vmatprep.subr.bf16.mxu0 0
  %5852 = vmatpush1.bf16.msra.mxu0 0
  %5853 = vmatprep.subr.bf16.mxu0 0
  %5854 = vmatpush1.bf16.msra.mxu0 0
  %5855 = vmatprep.subr.bf16.mxu0 0
  %5856 = vmatpush1.bf16.msra.mxu0 0
  %5857 = vmatprep.subr.bf16.mxu0 0
  %5858 = vmatpush1.bf16.msra.mxu0 0
  %5859 = vmatprep.subr.bf16.mxu0 0
  %5860 = vmatpush1.bf16.msra.mxu0 0
  %5861 = vmatprep.subr.bf16.mxu0 0
  %5862 = vmatpush1.bf16.msra.mxu0 0
  %5863 = vmatprep.subr.bf16.mxu0 0
  %5864 = vmatpush1.bf16.msra.mxu0 0
  %5865 = vmatprep.subr.bf16.mxu0 0
  %5866 = vmatpush1.bf16.msra.mxu0 0
  %5867 = vmatprep.mubr.bf16.mxu0 0
  %5868 = vmatmul.mubr.bf16.gmra.mrb[0].mxu0 %v5830
  %v5869 = vpop.f32.mrb[0].mxu0
  %v5870 = vadd.f32 %v5803, %v5869
  %v5871 = vpop.f32.mrb[0].mxu0
  %v5872 = vpop.f32.mrb[0].mxu0
  %v5873 = vadd.f32 %v5803, %v5872
  %v5874 = vpop.f32.mrb[0].mxu0
  %5875 = vmatprep.mubr.bf16.mxu0 0
  %5876 = vmatmul.mubr.bf16.gmra.mrb[0].mxu0 %v5833
  %v5877 = vpop.f32.mrb[0].mxu0
  %v5878 = vadd.f32 %v5803, %v5877
  %v5879 = vpop.f32.mrb[0].mxu0
  %v5880 = vpop.f32.mrb[0].mxu0
  %v5881 = vpop.f32.mrb[0].mxu0
  %5882 = vdwg.mxu0
  %v5883 = vsub.f32 0.0, %v5870
  %v5884 = vsub.f32 0.0, %v5873
  %v5885 = vsub.f32 0.0, %v5878
  %v5886 = vmul.f32 %v5883, 1.442695
  %v5887 = vpow.pop %v5886
  %v5888 = vmul.f32 %v5884, 1.442695
  %v5889 = vpow.pop %v5888
  %v5890 = vmul.f32 %v5885, 1.442695
  %v5891 = vpow.pop %v5890
  %v5892 = vadd.f32 %v5887, 1.0
  %v5893 = vadd.f32 %v5889, 1.0
  %v5894 = vadd.f32 %v5891, 1.0
  %v5895 = vrcp.pop %v5892
  %v5896 = vrcp.pop %v5893
  %v5897 = vrcp.pop %v5894
  %v5898 = vmax.f32 %v5895, 0.01
  %v5899 = vmax.f32 %v5896, 0.01
  %v5900 = vmax.f32 %v5897, 0.01
  %v5901 = vmin.f32 %v5898, 0.99
  %v5902 = vmin.f32 %v5899, 0.99
  %v5903 = vmin.f32 %v5900, 0.99
  %v5905 = vsel %vm256, %v5901, 0
  %v5908 = vsel %vm256, %v5902, 0
  %v5911 = vsel %vm256, %v5903, 0
  %5913 = vmatprep.subr.mxu0 0.0
  %5914 = vmatpush1.msra.mxu0 %v174
  %5915 = vmatprep.subr.mxu0 0.0
  %5916 = vmatpush1.msra.mxu0 %v175
  %5917 = vmatprep.subr.mxu0 0.0
  %5918 = vmatpush1.msra.mxu0 0.0
  %5919 = vmatprep.subr.mxu0 0.0
  %5920 = vmatpush1.msra.mxu0 0.0
  %5921 = vmatprep.subr.mxu0 0.0
  %5922 = vmatpush1.msra.mxu0 0.0
  %5923 = vmatprep.subr.mxu0 0.0
  %5924 = vmatpush1.msra.mxu0 0.0
  %5925 = vmatprep.subr.mxu0 0.0
  %5926 = vmatpush1.msra.mxu0 0.0
  %5927 = vmatprep.subr.mxu0 0.0
  %5928 = vmatpush1.msra.mxu0 0.0
  %5929 = vmatprep.subr.mxu0 0.0
  %5930 = vmatpush1.msra.mxu0 0.0
  %5931 = vmatprep.subr.mxu0 0.0
  %5932 = vmatpush1.msra.mxu0 0.0
  %5933 = vmatprep.subr.mxu0 0.0
  %5934 = vmatpush1.msra.mxu0 0.0
  %5935 = vmatprep.subr.mxu0 0.0
  %5936 = vmatpush1.msra.mxu0 0.0
  %5937 = vmatprep.subr.mxu0 0.0
  %5938 = vmatpush1.msra.mxu0 0.0
  %5939 = vmatprep.subr.mxu0 0.0
  %5940 = vmatpush1.msra.mxu0 0.0
  %5941 = vmatprep.subr.mxu0 0.0
  %5942 = vmatpush1.msra.mxu0 0.0
  %5943 = vmatprep.subr.mxu0 0.0
  %5944 = vmatpush1.msra.mxu0 0.0
  %5945 = vmatprep.subr.mxu0 0.0
  %5946 = vmatpush1.msra.mxu0 0.0
  %5947 = vmatprep.subr.mxu0 0.0
  %5948 = vmatpush1.msra.mxu0 0.0
  %5949 = vmatprep.subr.mxu0 0.0
  %5950 = vmatpush1.msra.mxu0 0.0
  %5951 = vmatprep.subr.mxu0 0.0
  %5952 = vmatpush1.msra.mxu0 0.0
  %5953 = vmatprep.subr.mxu0 0.0
  %5954 = vmatpush1.msra.mxu0 0.0
  %5955 = vmatprep.subr.mxu0 0.0
  %5956 = vmatpush1.msra.mxu0 0.0
  %5957 = vmatprep.subr.mxu0 0.0
  %5958 = vmatpush1.msra.mxu0 0.0
  %5959 = vmatprep.subr.mxu0 0.0
  %5960 = vmatpush1.msra.mxu0 0.0
  %5961 = vmatprep.subr.mxu0 0.0
  %5962 = vmatpush1.msra.mxu0 0.0
  %5963 = vmatprep.subr.mxu0 0.0
  %5964 = vmatpush1.msra.mxu0 0.0
  %5965 = vmatprep.subr.mxu0 0.0
  %5966 = vmatpush1.msra.mxu0 0.0
  %5967 = vmatprep.subr.mxu0 0.0
  %5968 = vmatpush1.msra.mxu0 0.0
  %5969 = vmatprep.subr.mxu0 0.0
  %5970 = vmatpush1.msra.mxu0 0.0
  %5971 = vmatprep.subr.mxu0 0.0
  %5972 = vmatpush1.msra.mxu0 0.0
  %5973 = vmatprep.subr.mxu0 0.0
  %5974 = vmatpush1.msra.mxu0 0.0
  %5975 = vmatprep.subr.mxu0 0.0
  %5976 = vmatpush1.msra.mxu0 0.0
  %5977 = vmatprep.mubr.f32.mxu0 0.0
  %5978 = vmatmul.mubr.f32.gmra.mrb[0].mxu0 %v5905
  %v5979 = vpop.f32.mrb[0].mxu0
  %v5980 = vadd.f32 0.0, %v5979
  %v5981 = vpop.f32.mrb[0].mxu0
  %5982 = vmatprep.mubr.f32.mxu0 0.0
  %5983 = vmatmul.mubr.f32.gmra.mrb[0].mxu0 %v5908
  %v5984 = vpop.f32.mrb[0].mxu0
  %v5985 = vadd.f32 0.0, %v5984
  %v5986 = vpop.f32.mrb[0].mxu0
  %5987 = vmatprep.mubr.f32.mxu0 0.0
  %5988 = vmatmul.mubr.f32.gmra.mrb[0].mxu0 %v5911
  %v5989 = vpop.f32.mrb[0].mxu0
  %v5990 = vadd.f32 0.0, %v5989
  %v5991 = vpop.f32.mrb[0].mxu0
  %5992 = vdwg.mxu0
  %5993 = vmatprep.subr.mxu0 0.0
  %5994 = vmatpush1.msra.mxu0 %v199
  %5995 = vmatprep.subr.mxu0 0.0
  %5996 = vmatpush1.msra.mxu0 %v200
  %5997 = vmatprep.subr.mxu0 0.0
  %5998 = vmatpush1.msra.mxu0 0.0
  %5999 = vmatprep.subr.mxu0 0.0
  %6000 = vmatpush1.msra.mxu0 0.0
  %6001 = vmatprep.subr.mxu0 0.0
  %6002 = vmatpush1.msra.mxu0 0.0
  %6003 = vmatprep.subr.mxu0 0.0
  %6004 = vmatpush1.msra.mxu0 0.0
  %6005 = vmatprep.subr.mxu0 0.0
  %6006 = vmatpush1.msra.mxu0 0.0
  %6007 = vmatprep.subr.mxu0 0.0
  %6008 = vmatpush1.msra.mxu0 0.0
  %6009 = vmatprep.subr.mxu0 0.0
  %6010 = vmatpush1.msra.mxu0 0.0
  %6011 = vmatprep.subr.mxu0 0.0
  %6012 = vmatpush1.msra.mxu0 0.0
  %6013 = vmatprep.subr.mxu0 0.0
  %6014 = vmatpush1.msra.mxu0 0.0
  %6015 = vmatprep.subr.mxu0 0.0
  %6016 = vmatpush1.msra.mxu0 0.0
  %6017 = vmatprep.subr.mxu0 0.0
  %6018 = vmatpush1.msra.mxu0 0.0
  %6019 = vmatprep.subr.mxu0 0.0
  %6020 = vmatpush1.msra.mxu0 0.0
  %6021 = vmatprep.subr.mxu0 0.0
  %6022 = vmatpush1.msra.mxu0 0.0
  %6023 = vmatprep.subr.mxu0 0.0
  %6024 = vmatpush1.msra.mxu0 0.0
  %6025 = vmatprep.subr.mxu0 0.0
  %6026 = vmatpush1.msra.mxu0 0.0
  %6027 = vmatprep.subr.mxu0 0.0
  %6028 = vmatpush1.msra.mxu0 0.0
  %6029 = vmatprep.subr.mxu0 0.0
  %6030 = vmatpush1.msra.mxu0 0.0
  %6031 = vmatprep.subr.mxu0 0.0
  %6032 = vmatpush1.msra.mxu0 0.0
  %6033 = vmatprep.subr.mxu0 0.0
  %6034 = vmatpush1.msra.mxu0 0.0
  %6035 = vmatprep.subr.mxu0 0.0
  %6036 = vmatpush1.msra.mxu0 0.0
  %6037 = vmatprep.subr.mxu0 0.0
  %6038 = vmatpush1.msra.mxu0 0.0
  %6039 = vmatprep.subr.mxu0 0.0
  %6040 = vmatpush1.msra.mxu0 0.0
  %6041 = vmatprep.subr.mxu0 0.0
  %6042 = vmatpush1.msra.mxu0 0.0
  %6043 = vmatprep.subr.mxu0 0.0
  %6044 = vmatpush1.msra.mxu0 0.0
  %6045 = vmatprep.subr.mxu0 0.0
  %6046 = vmatpush1.msra.mxu0 0.0
  %6047 = vmatprep.subr.mxu0 0.0
  %6048 = vmatpush1.msra.mxu0 0.0
  %6049 = vmatprep.subr.mxu0 0.0
  %6050 = vmatpush1.msra.mxu0 0.0
  %6051 = vmatprep.subr.mxu0 0.0
  %6052 = vmatpush1.msra.mxu0 0.0
  %6053 = vmatprep.subr.mxu0 0.0
  %6054 = vmatpush1.msra.mxu0 0.0
  %6055 = vmatprep.subr.mxu0 0.0
  %6056 = vmatpush1.msra.mxu0 0.0
  %6057 = vmatprep.mubr.f32.mxu0 0.0
  %6058 = vmatmul.mubr.f32.gmra.mrb[0].mxu0 %v5905
  %v6059 = vpop.f32.mrb[0].mxu0
  %v6060 = vadd.f32 0.0, %v6059
  %v6061 = vpop.f32.mrb[0].mxu0
  %6062 = vmatprep.mubr.f32.mxu0 0.0
  %6063 = vmatmul.mubr.f32.gmra.mrb[0].mxu0 %v5908
  %v6064 = vpop.f32.mrb[0].mxu0
  %v6065 = vadd.f32 0.0, %v6064
  %v6066 = vpop.f32.mrb[0].mxu0
  %6067 = vmatprep.mubr.f32.mxu0 0.0
  %6068 = vmatmul.mubr.f32.gmra.mrb[0].mxu0 %v5911
  %v6069 = vpop.f32.mrb[0].mxu0
  %v6070 = vadd.f32 0.0, %v6069
  %v6071 = vpop.f32.mrb[0].mxu0
  %6072 = vdwg.mxu0
  %v6073 = vlog2.pop %v5980
  %v6074 = vmul.f32 %v6073, 0.6931472
  %v6075 = vlog2.pop %v5985
  %v6076 = vmul.f32 %v6075, 0.6931472
  %v6077 = vlog2.pop %v5990
  %v6078 = vmul.f32 %v6077, 0.6931472
  %v6079 = vmul.f32 %v6074, -2.0
  %v6080 = vmul.f32 %v6076, -2.0
  %v6081 = vmul.f32 %v6078, -2.0
  %v6082 = vrsqrt.pop %v6079
  %v6083 = vmul.f32 %v6079, %v6082
  %vm6084 = vcmp.eq.f32.partialorder %v6079, inf
  %v6085 = vsel %vm6084, %v6079, %v6083
  %vm6086 = vcmp.eq.f32.partialorder %v6079, 0.0
  %v6087 = vand.u32 %v6079, 2147483648
  %v6088 = vsel %vm6086, %v6087, %v6085
  %v6089 = vrsqrt.pop %v6080
  %v6090 = vmul.f32 %v6080, %v6089
  %vm6091 = vcmp.eq.f32.partialorder %v6080, inf
  %v6092 = vsel %vm6091, %v6080, %v6090
  %vm6093 = vcmp.eq.f32.partialorder %v6080, 0.0
  %v6094 = vand.u32 %v6080, 2147483648
  %v6095 = vsel %vm6093, %v6094, %v6092
  %v6096 = vrsqrt.pop %v6081
  %v6097 = vmul.f32 %v6081, %v6096
  %vm6098 = vcmp.eq.f32.partialorder %v6081, inf
  %v6099 = vsel %vm6098, %v6081, %v6097
  %vm6100 = vcmp.eq.f32.partialorder %v6081, 0.0
  %v6101 = vand.u32 %v6081, 2147483648
  %v6102 = vsel %vm6100, %v6101, %v6099
  %v6103 = vmul.f32 %v6060, 4.0
  %v6104 = vmul.f32 %v6065, 4.0
  %v6105 = vmul.f32 %v6070, 4.0
  %vm6106 = vcmp.ge.f32.partialorder %v6103, 0.5
  %vm6107 = vcmp.ge.f32.partialorder %v6104, 0.5
  %vm6108 = vcmp.ge.f32.partialorder %v6105, 0.5
  %v6109 = vsel %vm6106, 1, 0
  %v6110 = vsel %vm6107, 1, 0
  %v6111 = vsel %vm6108, 1, 0
  %v6112 = vcvt.s32.f32 %v6109
  %v6113 = vcvt.s32.f32 %v6110
  %v6114 = vcvt.s32.f32 %v6111
  %vm6115 = vcmp.ge.f32.partialorder %v6103, 1.5
  %vm6116 = vcmp.ge.f32.partialorder %v6104, 1.5
  %vm6117 = vcmp.ge.f32.partialorder %v6105, 1.5
  %v6118 = vsel %vm6115, 1, 0
  %v6119 = vsel %vm6116, 1, 0
  %v6120 = vsel %vm6117, 1, 0
  %v6121 = vcvt.s32.f32 %v6118
  %v6122 = vcvt.s32.f32 %v6119
  %v6123 = vcvt.s32.f32 %v6120
  %v6124 = vadd.f32 %v6112, %v6121
  %v6125 = vadd.f32 %v6113, %v6122
  %v6126 = vadd.f32 %v6114, %v6123
  %vm6127 = vcmp.ge.f32.partialorder %v6103, 2.5
  %vm6128 = vcmp.ge.f32.partialorder %v6104, 2.5
  %vm6129 = vcmp.ge.f32.partialorder %v6105, 2.5
  %v6130 = vsel %vm6127, 1, 0
  %v6131 = vsel %vm6128, 1, 0
  %v6132 = vsel %vm6129, 1, 0
  %v6133 = vcvt.s32.f32 %v6130
  %v6134 = vcvt.s32.f32 %v6131
  %v6135 = vcvt.s32.f32 %v6132
  %v6136 = vadd.f32 %v6124, %v6133
  %v6137 = vadd.f32 %v6125, %v6134
  %v6138 = vadd.f32 %v6126, %v6135
  %vm6139 = vcmp.ge.f32.partialorder %v6103, 3.5
  %vm6140 = vcmp.ge.f32.partialorder %v6104, 3.5
  %vm6141 = vcmp.ge.f32.partialorder %v6105, 3.5
  %v6142 = vsel %vm6139, 1, 0
  %v6143 = vsel %vm6140, 1, 0
  %v6144 = vsel %vm6141, 1, 0
  %v6145 = vcvt.s32.f32 %v6142
  %v6146 = vcvt.s32.f32 %v6143
  %v6147 = vcvt.s32.f32 %v6144
  %v6148 = vadd.f32 %v6136, %v6145
  %v6149 = vadd.f32 %v6137, %v6146
  %v6150 = vadd.f32 %v6138, %v6147
  %v6151 = vsub.f32 %v6103, %v6148
  %v6152 = vsub.f32 %v6104, %v6149
  %v6153 = vsub.f32 %v6105, %v6150
  %v6154 = vmul.f32 %v6151, 1.5707964
  %v6155 = vmul.f32 %v6152, 1.5707964
  %v6156 = vmul.f32 %v6153, 1.5707964
  %v6157 = vmul.f32 %v6154, %v6154
  %v6158 = vmul.f32 %v6155, %v6155
  %v6159 = vmul.f32 %v6156, %v6156
  %v6160 = vmul.f32 %v6157, 2.4801588e-05
  %v6161 = vmul.f32 %v6158, 2.4801588e-05
  %v6162 = vmul.f32 %v6159, 2.4801588e-05
  %v6163 = vadd.f32 %v6160, -0.0013888889
  %v6164 = vadd.f32 %v6161, -0.0013888889
  %v6165 = vadd.f32 %v6162, -0.0013888889
  %v6166 = vmul.f32 %v6157, %v6163
  %v6167 = vmul.f32 %v6158, %v6164
  %v6168 = vmul.f32 %v6159, %v6165
  %v6169 = vadd.f32 %v6166, 0.041666668
  %v6170 = vadd.f32 %v6167, 0.041666668
  %v6171 = vadd.f32 %v6168, 0.041666668
  %v6172 = vmul.f32 %v6157, %v6169
  %v6173 = vmul.f32 %v6158, %v6170
  %v6174 = vmul.f32 %v6159, %v6171
  %v6175 = vadd.f32 %v6172, -0.5
  %v6176 = vadd.f32 %v6173, -0.5
  %v6177 = vadd.f32 %v6174, -0.5
  %v6178 = vmul.f32 %v6157, %v6175
  %v6179 = vmul.f32 %v6158, %v6176
  %v6180 = vmul.f32 %v6159, %v6177
  %v6181 = vadd.f32 %v6178, 1.0
  %v6182 = vadd.f32 %v6179, 1.0
  %v6183 = vadd.f32 %v6180, 1.0
  %v6184 = vmul.f32 %v6157, 2.7557319e-06
  %v6185 = vmul.f32 %v6158, 2.7557319e-06
  %v6186 = vmul.f32 %v6159, 2.7557319e-06
  %v6187 = vadd.f32 %v6184, -0.0001984127
  %v6188 = vadd.f32 %v6185, -0.0001984127
  %v6189 = vadd.f32 %v6186, -0.0001984127
  %v6190 = vmul.f32 %v6157, %v6187
  %v6191 = vmul.f32 %v6158, %v6188
  %v6192 = vmul.f32 %v6159, %v6189
  %v6193 = vadd.f32 %v6190, 0.008333334
  %v6194 = vadd.f32 %v6191, 0.008333334
  %v6195 = vadd.f32 %v6192, 0.008333334
  %v6196 = vmul.f32 %v6157, %v6193
  %v6197 = vmul.f32 %v6158, %v6194
  %v6198 = vmul.f32 %v6159, %v6195
  %v6199 = vadd.f32 %v6196, -0.16666667
  %v6200 = vadd.f32 %v6197, -0.16666667
  %v6201 = vadd.f32 %v6198, -0.16666667
  %v6202 = vmul.f32 %v6157, %v6199
  %v6203 = vmul.f32 %v6158, %v6200
  %v6204 = vmul.f32 %v6159, %v6201
  %v6205 = vadd.f32 %v6202, 1.0
  %v6206 = vadd.f32 %v6203, 1.0
  %v6207 = vadd.f32 %v6204, 1.0
  %v6208 = vmul.f32 %v6154, %v6205
  %v6209 = vmul.f32 %v6155, %v6206
  %v6210 = vmul.f32 %v6156, %v6207
  %vm6211 = vcmp.ge.f32.partialorder %v6148, 3.5
  %vm6212 = vcmp.ge.f32.partialorder %v6149, 3.5
  %vm6213 = vcmp.ge.f32.partialorder %v6150, 3.5
  %v6214 = vsub.f32 %v6148, 4.0
  %v6215 = vsub.f32 %v6149, 4.0
  %v6216 = vsub.f32 %v6150, 4.0
  %v6217 = vsel %vm6211, %v6214, %v6148
  %v6218 = vsel %vm6212, %v6215, %v6149
  %v6219 = vsel %vm6213, %v6216, %v6150
  %vm6220 = vcmp.eq.f32.partialorder %v6217, 0.0
  %vm6221 = vcmp.eq.f32.partialorder %v6218, 0.0
  %vm6222 = vcmp.eq.f32.partialorder %v6219, 0.0
  %vm6223 = vcmp.eq.f32.partialorder %v6217, 1.0
  %vm6224 = vcmp.eq.f32.partialorder %v6218, 1.0
  %vm6225 = vcmp.eq.f32.partialorder %v6219, 1.0
  %v6226 = vsub.f32 0.0, %v6208
  %v6227 = vsub.f32 0.0, %v6209
  %v6228 = vsub.f32 0.0, %v6210
  %vm6229 = vcmp.eq.f32.partialorder %v6217, 2.0
  %vm6230 = vcmp.eq.f32.partialorder %v6218, 2.0
  %vm6231 = vcmp.eq.f32.partialorder %v6219, 2.0
  %v6232 = vsub.f32 0.0, %v6181
  %v6233 = vsub.f32 0.0, %v6182
  %v6234 = vsub.f32 0.0, %v6183
  %v6235 = vsel %vm6229, %v6232, %v6208
  %v6236 = vsel %vm6230, %v6233, %v6209
  %v6237 = vsel %vm6231, %v6234, %v6210
  %v6238 = vsel %vm6223, %v6226, %v6235
  %v6239 = vsel %vm6224, %v6227, %v6236
  %v6240 = vsel %vm6225, %v6228, %v6237
  %v6241 = vsel %vm6220, %v6181, %v6238
  %v6242 = vsel %vm6221, %v6182, %v6239
  %v6243 = vsel %vm6222, %v6183, %v6240
  %v6244 = vsel %vm6229, %v6226, %v6232
  %v6245 = vsel %vm6230, %v6227, %v6233
  %v6246 = vsel %vm6231, %v6228, %v6234
  %v6247 = vsel %vm6223, %v6181, %v6244
  %v6248 = vsel %vm6224, %v6182, %v6245
  %v6249 = vsel %vm6225, %v6183, %v6246
  %v6250 = vsel %vm6220, %v6208, %v6247
  %v6251 = vsel %vm6221, %v6209, %v6248
  %v6252 = vsel %vm6222, %v6210, %v6249
  %v6253 = vmul.f32 %v6088, %v6241
  %v6254 = vmul.f32 %v6095, %v6242
  %v6255 = vmul.f32 %v6102, %v6243
  %v6256 = vmul.f32 %v6088, %v6250
  %v6257 = vmul.f32 %v6095, %v6251
  %v6258 = vmul.f32 %v6102, %v6252
  %vm6259 = vcmask 64512
  %v6261 = vsel %vm6259, %v6256, 0
  %v6264 = vsel %vm6259, %v6257, 0
  %v6267 = vsel %vm6259, %v6258, 0
  %6269 = vmatprep.subr.mxu0 0.0
  %6270 = vmatpush1.msra.mxu0 %v235
  %6271 = vmatprep.subr.mxu0 0.0
  %6272 = vmatpush1.msra.mxu0 0.0
  %6273 = vmatprep.subr.mxu0 0.0
  %6274 = vmatpush1.msra.mxu0 0.0
  %6275 = vmatprep.subr.mxu0 0.0
  %6276 = vmatpush1.msra.mxu0 0.0
  %6277 = vmatprep.subr.mxu0 0.0
  %6278 = vmatpush1.msra.mxu0 0.0
  %6279 = vmatprep.subr.mxu0 0.0
  %6280 = vmatpush1.msra.mxu0 0.0
  %6281 = vmatprep.subr.mxu0 0.0
  %6282 = vmatpush1.msra.mxu0 0.0
  %6283 = vmatprep.subr.mxu0 0.0
  %6284 = vmatpush1.msra.mxu0 0.0
  %6285 = vmatprep.subr.mxu0 0.0
  %6286 = vmatpush1.msra.mxu0 0.0
  %6287 = vmatprep.subr.mxu0 0.0
  %6288 = vmatpush1.msra.mxu0 0.0
  %6289 = vmatprep.subr.mxu0 0.0
  %6290 = vmatpush1.msra.mxu0 0.0
  %6291 = vmatprep.subr.mxu0 0.0
  %6292 = vmatpush1.msra.mxu0 0.0
  %6293 = vmatprep.subr.mxu0 0.0
  %6294 = vmatpush1.msra.mxu0 0.0
  %6295 = vmatprep.subr.mxu0 0.0
  %6296 = vmatpush1.msra.mxu0 0.0
  %6297 = vmatprep.subr.mxu0 0.0
  %6298 = vmatpush1.msra.mxu0 0.0
  %6299 = vmatprep.subr.mxu0 0.0
  %6300 = vmatpush1.msra.mxu0 0.0
  %6301 = vmatprep.subr.mxu0 0.0
  %6302 = vmatpush1.msra.mxu0 0.0
  %6303 = vmatprep.subr.mxu0 0.0
  %6304 = vmatpush1.msra.mxu0 0.0
  %6305 = vmatprep.subr.mxu0 0.0
  %6306 = vmatpush1.msra.mxu0 0.0
  %6307 = vmatprep.subr.mxu0 0.0
  %6308 = vmatpush1.msra.mxu0 0.0
  %6309 = vmatprep.subr.mxu0 0.0
  %6310 = vmatpush1.msra.mxu0 0.0
  %6311 = vmatprep.subr.mxu0 0.0
  %6312 = vmatpush1.msra.mxu0 0.0
  %6313 = vmatprep.subr.mxu0 0.0
  %6314 = vmatpush1.msra.mxu0 0.0
  %6315 = vmatprep.subr.mxu0 0.0
  %6316 = vmatpush1.msra.mxu0 0.0
  %6317 = vmatprep.subr.mxu0 0.0
  %6318 = vmatpush1.msra.mxu0 0.0
  %6319 = vmatprep.subr.mxu0 0.0
  %6320 = vmatpush1.msra.mxu0 0.0
  %6321 = vmatprep.subr.mxu0 0.0
  %6322 = vmatpush1.msra.mxu0 0.0
  %6323 = vmatprep.subr.mxu0 0.0
  %6324 = vmatpush1.msra.mxu0 0.0
  %6325 = vmatprep.subr.mxu0 0.0
  %6326 = vmatpush1.msra.mxu0 0.0
  %6327 = vmatprep.subr.mxu0 0.0
  %6328 = vmatpush1.msra.mxu0 0.0
  %6329 = vmatprep.subr.mxu0 0.0
  %6330 = vmatpush1.msra.mxu0 0.0
  %6331 = vmatprep.subr.mxu0 0.0
  %6332 = vmatpush1.msra.mxu0 0.0
  %6333 = vmatprep.mubr.f32.mxu0 0.0
  %6334 = vmatmul.mubr.f32.gmra.mrb[0].mxu0 %v6261
  %v6335 = vpop.f32.mrb[0].mxu0
  %v6336 = vadd.f32 0.0, %v6335
  %v6337 = vpop.f32.mrb[0].mxu0
  %6338 = vmatprep.mubr.f32.mxu0 0.0
  %6339 = vmatmul.mubr.f32.gmra.mrb[0].mxu0 %v6264
  %v6340 = vpop.f32.mrb[0].mxu0
  %v6341 = vadd.f32 0.0, %v6340
  %v6342 = vpop.f32.mrb[0].mxu0
  %6343 = vmatprep.mubr.f32.mxu0 0.0
  %6344 = vmatmul.mubr.f32.gmra.mrb[0].mxu0 %v6267
  %v6345 = vpop.f32.mrb[0].mxu0
  %v6346 = vadd.f32 0.0, %v6345
  %v6347 = vpop.f32.mrb[0].mxu0
  %6348 = vdwg.mxu0
  %v6350 = vsel %vm6259, %v6253, 0
  %v6353 = vsel %vm6259, %v6254, 0
  %v6356 = vsel %vm6259, %v6255, 0
  %6358 = vmatprep.subr.mxu0 0.0
  %6359 = vmatpush1.msra.mxu0 %v219
  %6360 = vmatprep.subr.mxu0 0.0
  %6361 = vmatpush1.msra.mxu0 0.0
  %6362 = vmatprep.subr.mxu0 0.0
  %6363 = vmatpush1.msra.mxu0 0.0
  %6364 = vmatprep.subr.mxu0 0.0
  %6365 = vmatpush1.msra.mxu0 0.0
  %6366 = vmatprep.subr.mxu0 0.0
  %6367 = vmatpush1.msra.mxu0 0.0
  %6368 = vmatprep.subr.mxu0 0.0
  %6369 = vmatpush1.msra.mxu0 0.0
  %6370 = vmatprep.subr.mxu0 0.0
  %6371 = vmatpush1.msra.mxu0 0.0
  %6372 = vmatprep.subr.mxu0 0.0
  %6373 = vmatpush1.msra.mxu0 0.0
  %6374 = vmatprep.subr.mxu0 0.0
  %6375 = vmatpush1.msra.mxu0 0.0
  %6376 = vmatprep.subr.mxu0 0.0
  %6377 = vmatpush1.msra.mxu0 0.0
  %6378 = vmatprep.subr.mxu0 0.0
  %6379 = vmatpush1.msra.mxu0 0.0
  %6380 = vmatprep.subr.mxu0 0.0
  %6381 = vmatpush1.msra.mxu0 0.0
  %6382 = vmatprep.subr.mxu0 0.0
  %6383 = vmatpush1.msra.mxu0 0.0
  %6384 = vmatprep.subr.mxu0 0.0
  %6385 = vmatpush1.msra.mxu0 0.0
  %6386 = vmatprep.subr.mxu0 0.0
  %6387 = vmatpush1.msra.mxu0 0.0
  %6388 = vmatprep.subr.mxu0 0.0
  %6389 = vmatpush1.msra.mxu0 0.0
  %6390 = vmatprep.subr.mxu0 0.0
  %6391 = vmatpush1.msra.mxu0 0.0
  %6392 = vmatprep.subr.mxu0 0.0
  %6393 = vmatpush1.msra.mxu0 0.0
  %6394 = vmatprep.subr.mxu0 0.0
  %6395 = vmatpush1.msra.mxu0 0.0
  %6396 = vmatprep.subr.mxu0 0.0
  %6397 = vmatpush1.msra.mxu0 0.0
  %6398 = vmatprep.subr.mxu0 0.0
  %6399 = vmatpush1.msra.mxu0 0.0
  %6400 = vmatprep.subr.mxu0 0.0
  %6401 = vmatpush1.msra.mxu0 0.0
  %6402 = vmatprep.subr.mxu0 0.0
  %6403 = vmatpush1.msra.mxu0 0.0
  %6404 = vmatprep.subr.mxu0 0.0
  %6405 = vmatpush1.msra.mxu0 0.0
  %6406 = vmatprep.subr.mxu0 0.0
  %6407 = vmatpush1.msra.mxu0 0.0
  %6408 = vmatprep.subr.mxu0 0.0
  %6409 = vmatpush1.msra.mxu0 0.0
  %6410 = vmatprep.subr.mxu0 0.0
  %6411 = vmatpush1.msra.mxu0 0.0
  %6412 = vmatprep.subr.mxu0 0.0
  %6413 = vmatpush1.msra.mxu0 0.0
  %6414 = vmatprep.subr.mxu0 0.0
  %6415 = vmatpush1.msra.mxu0 0.0
  %6416 = vmatprep.subr.mxu0 0.0
  %6417 = vmatpush1.msra.mxu0 0.0
  %6418 = vmatprep.subr.mxu0 0.0
  %6419 = vmatpush1.msra.mxu0 0.0
  %6420 = vmatprep.subr.mxu0 0.0
  %6421 = vmatpush1.msra.mxu0 0.0
  %6422 = vmatprep.mubr.f32.mxu0 0.0
  %6423 = vmatmul.mubr.f32.gmra.mrb[0].mxu0 %v6350
  %v6424 = vpop.f32.mrb[0].mxu0
  %v6425 = vadd.f32 %v6336, %v6424
  %v6426 = vpop.f32.mrb[0].mxu0
  %6427 = vmatprep.mubr.f32.mxu0 0.0
  %6428 = vmatmul.mubr.f32.gmra.mrb[0].mxu0 %v6353
  %v6429 = vpop.f32.mrb[0].mxu0
  %v6430 = vadd.f32 %v6341, %v6429
  %v6431 = vpop.f32.mrb[0].mxu0
  %6432 = vmatprep.mubr.f32.mxu0 0.0
  %6433 = vmatmul.mubr.f32.gmra.mrb[0].mxu0 %v6356
  %v6434 = vpop.f32.mrb[0].mxu0
  %v6435 = vadd.f32 %v6346, %v6434
  %v6436 = vpop.f32.mrb[0].mxu0
  %6437 = vdwg.mxu0
  %v6438 = vld [vmem:[%s59] sm:$0xf]
  %v6439 = vld [vmem:[%s59 + $0x4] sm:$0xf]
  %v6440 = vld [vmem:[%s59 + $0x8] sm:$0xf]
  %v6441 = vld [vmem:[%s59 + $0xc] sm:$0xf]
  %v6442 = vpack.c.bf16 %v6430, %v6425
  %v6443 = vpack.c.bf16 %v6435, %v6435
  %v6444 = vld [vmem:[%s61] sm:$0xf]
  %v6445 = vld [vmem:[%s61 + $0x4] sm:$0xf]
  %v6448 = vunpack.c.l.b16 %v6444
  %v6449 = vunpack.c.l.b16 %v6445
  %v6450 = vpack.c.b16 %v6449, %v6448
  %v6453 = vsel %vm256, %v6442, 0
  %v6456 = vsel %vm256, %v6443, 0
  %6458 = vmatprep.subr.bf16.mxu0 0
  %6459 = vmatpush1.bf16.msra.mxu0 %v6450
  %6460 = vmatprep.subr.bf16.mxu0 0
  %6461 = vmatpush1.bf16.msra.mxu0 0
  %6462 = vmatprep.subr.bf16.mxu0 0
  %6463 = vmatpush1.bf16.msra.mxu0 0
  %6464 = vmatprep.subr.bf16.mxu0 0
  %6465 = vmatpush1.bf16.msra.mxu0 0
  %6466 = vmatprep.subr.bf16.mxu0 0
  %6467 = vmatpush1.bf16.msra.mxu0 0
  %6468 = vmatprep.subr.bf16.mxu0 0
  %6469 = vmatpush1.bf16.msra.mxu0 0
  %6470 = vmatprep.subr.bf16.mxu0 0
  %6471 = vmatpush1.bf16.msra.mxu0 0
  %6472 = vmatprep.subr.bf16.mxu0 0
  %6473 = vmatpush1.bf16.msra.mxu0 0
  %6474 = vmatprep.subr.bf16.mxu0 0
  %6475 = vmatpush1.bf16.msra.mxu0 0
  %6476 = vmatprep.subr.bf16.mxu0 0
  %6477 = vmatpush1.bf16.msra.mxu0 0
  %6478 = vmatprep.subr.bf16.mxu0 0
  %6479 = vmatpush1.bf16.msra.mxu0 0
  %6480 = vmatprep.subr.bf16.mxu0 0
  %6481 = vmatpush1.bf16.msra.mxu0 0
  %6482 = vmatprep.subr.bf16.mxu0 0
  %6483 = vmatpush1.bf16.msra.mxu0 0
  %6484 = vmatprep.subr.bf16.mxu0 0
  %6485 = vmatpush1.bf16.msra.mxu0 0
  %6486 = vmatprep.subr.bf16.mxu0 0
  %6487 = vmatpush1.bf16.msra.mxu0 0
  %6488 = vmatprep.subr.bf16.mxu0 0
  %6489 = vmatpush1.bf16.msra.mxu0 0
  %6490 = vmatprep.mubr.bf16.mxu0 0
  %6491 = vmatmul.mubr.bf16.gmra.mrb[0].mxu0 %v6453
  %v6492 = vpop.f32.mrb[0].mxu0
  %v6493 = vadd.f32 0.0, %v6492
  %v6494 = vpop.f32.mrb[0].mxu0
  %v6495 = vpop.f32.mrb[0].mxu0
  %v6496 = vadd.f32 0.0, %v6495
  %v6497 = vpop.f32.mrb[0].mxu0
  %6498 = vmatprep.mubr.bf16.mxu0 0
  %6499 = vmatmul.mubr.bf16.gmra.mrb[0].mxu0 %v6456
  %v6500 = vpop.f32.mrb[0].mxu0
  %v6501 = vadd.f32 0.0, %v6500
  %v6502 = vpop.f32.mrb[0].mxu0
  %v6503 = vpop.f32.mrb[0].mxu0
  %v6504 = vpop.f32.mrb[0].mxu0
  %6505 = vdwg.mxu0
  %v6510 = vunpack.c.l.b16 %v6438
  %v6511 = vunpack.c.l.b16 %v6439
  %v6512 = vunpack.c.l.b16 %v6440
  %v6513 = vunpack.c.l.b16 %v6441
  %v6514 = vpack.c.b16 %v6511, %v6510
  %v6515 = vpack.c.b16 %v6513, %v6512
  %6518 = vmatprep.subr.bf16.mxu0 0
  %6519 = vmatpush1.bf16.msra.mxu0 %v6514
  %6520 = vmatprep.subr.bf16.mxu0 0
  %6521 = vmatpush1.bf16.msra.mxu0 %v6515
  %6522 = vmatprep.subr.bf16.mxu0 0
  %6523 = vmatpush1.bf16.msra.mxu0 0
  %6524 = vmatprep.subr.bf16.mxu0 0
  %6525 = vmatpush1.bf16.msra.mxu0 0
  %6526 = vmatprep.subr.bf16.mxu0 0
  %6527 = vmatpush1.bf16.msra.mxu0 0
  %6528 = vmatprep.subr.bf16.mxu0 0
  %6529 = vmatpush1.bf16.msra.mxu0 0
  %6530 = vmatprep.subr.bf16.mxu0 0
  %6531 = vmatpush1.bf16.msra.mxu0 0
  %6532 = vmatprep.subr.bf16.mxu0 0
  %6533 = vmatpush1.bf16.msra.mxu0 0
  %6534 = vmatprep.subr.bf16.mxu0 0
  %6535 = vmatpush1.bf16.msra.mxu0 0
  %6536 = vmatprep.subr.bf16.mxu0 0
  %6537 = vmatpush1.bf16.msra.mxu0 0
  %6538 = vmatprep.subr.bf16.mxu0 0
  %6539 = vmatpush1.bf16.msra.mxu0 0
  %6540 = vmatprep.subr.bf16.mxu0 0
  %6541 = vmatpush1.bf16.msra.mxu0 0
  %6542 = vmatprep.subr.bf16.mxu0 0
  %6543 = vmatpush1.bf16.msra.mxu0 0
  %6544 = vmatprep.subr.bf16.mxu0 0
  %6545 = vmatpush1.bf16.msra.mxu0 0
  %6546 = vmatprep.subr.bf16.mxu0 0
  %6547 = vmatpush1.bf16.msra.mxu0 0
  %6548 = vmatprep.subr.bf16.mxu0 0
  %6549 = vmatpush1.bf16.msra.mxu0 0
  %6550 = vmatprep.mubr.bf16.mxu0 0
  %6551 = vmatmul.mubr.bf16.gmra.mrb[0].mxu0 %v5650
  %v6552 = vpop.f32.mrb[0].mxu0
  %v6553 = vadd.f32 %v6493, %v6552
  %v6554 = vpop.f32.mrb[0].mxu0
  %v6555 = vpop.f32.mrb[0].mxu0
  %v6556 = vadd.f32 %v6496, %v6555
  %v6557 = vpop.f32.mrb[0].mxu0
  %6558 = vmatprep.mubr.bf16.mxu0 0
  %6559 = vmatmul.mubr.bf16.gmra.mrb[0].mxu0 %v5653
  %v6560 = vpop.f32.mrb[0].mxu0
  %v6561 = vadd.f32 %v6501, %v6560
  %v6562 = vpop.f32.mrb[0].mxu0
  %v6563 = vpop.f32.mrb[0].mxu0
  %v6564 = vpop.f32.mrb[0].mxu0
  %6565 = vdwg.mxu0
  %v6566 = vld [vmem:[%s17 + $0x1d] sm:$0x1]
  %v6568 = vlaneseq
  %v6569 = vshrl.u32 %v6568, 7
  %v6570 = vsub.s32 0, %v6569
  %v6571 = vrot.slane %v6566, %v6570
  %v6573 = vadd.f32 %v6553, %v6571
  %v6574 = vadd.f32 %v6556, %v6571
  %v6575 = vadd.f32 %v6561, %v6571
  %v6576 = vmax.f32 %v6573, 0.0
  %v6577 = vmax.f32 %v6574, 0.0
  %v6578 = vmax.f32 %v6575, 0.0
  %v6579 = vpack.c.bf16 %v6577, %v6576
  %v6580 = vpack.c.bf16 %v6578, %v6578
  %v6581 = vld [vmem:[%s63] sm:$0xf]
  %v6582 = vld [vmem:[%s63 + $0x4] sm:$0xf]
  %v6583 = vld [vmem:[%s63 + $0x8] sm:$0xf]
  %v6584 = vld [vmem:[%s63 + $0xc] sm:$0xf]
  %v6585 = vld [vmem:[%s63 + $0x10] sm:$0xf]
  %v6586 = vld [vmem:[%s63 + $0x14] sm:$0xf]
  %v6587 = vld [vmem:[%s63 + $0x18] sm:$0xf]
  %v6588 = vld [vmem:[%s63 + $0x1c] sm:$0xf]
  %v6589 = vld [vmem:[%s63 + $0x20] sm:$0xf]
  %v6590 = vld [vmem:[%s63 + $0x24] sm:$0xf]
  %v6591 = vld [vmem:[%s63 + $0x28] sm:$0xf]
  %v6592 = vld [vmem:[%s63 + $0x2c] sm:$0xf]
  %v6593 = vld [vmem:[%s63 + $0x30] sm:$0xf]
  %v6594 = vld [vmem:[%s63 + $0x34] sm:$0xf]
  %v6595 = vld [vmem:[%s63 + $0x38] sm:$0xf]
  %v6596 = vld [vmem:[%s63 + $0x3c] sm:$0xf]
  %v6597 = vld [vmem:[%s17 + $0x1e] sm:$0x1]
  %v6599 = vlaneseq
  %v6600 = vshrl.u32 %v6599, 7
  %v6601 = vsub.s32 0, %v6600
  %v6602 = vrot.slane %v6597, %v6601
  %v6620 = vunpack.c.l.b16 %v6581
  %v6621 = vunpack.c.l.b16 %v6582
  %v6622 = vunpack.c.l.b16 %v6583
  %v6623 = vunpack.c.l.b16 %v6584
  %v6624 = vunpack.c.l.b16 %v6585
  %v6625 = vunpack.c.l.b16 %v6586
  %v6626 = vunpack.c.l.b16 %v6587
  %v6627 = vunpack.c.l.b16 %v6588
  %v6628 = vunpack.c.l.b16 %v6589
  %v6629 = vunpack.c.l.b16 %v6590
  %v6630 = vunpack.c.l.b16 %v6591
  %v6631 = vunpack.c.l.b16 %v6592
  %v6632 = vunpack.c.l.b16 %v6593
  %v6633 = vunpack.c.l.b16 %v6594
  %v6634 = vunpack.c.l.b16 %v6595
  %v6635 = vunpack.c.l.b16 %v6596
  %v6636 = vpack.c.b16 %v6621, %v6620
  %v6637 = vpack.c.b16 %v6623, %v6622
  %v6638 = vpack.c.b16 %v6625, %v6624
  %v6639 = vpack.c.b16 %v6627, %v6626
  %v6640 = vpack.c.b16 %v6629, %v6628
  %v6641 = vpack.c.b16 %v6631, %v6630
  %v6642 = vpack.c.b16 %v6633, %v6632
  %v6643 = vpack.c.b16 %v6635, %v6634
  %6652 = vmatprep.subr.bf16.mxu0 0
  %6653 = vmatpush1.bf16.msra.mxu0 %v6636
  %6654 = vmatprep.subr.bf16.mxu0 0
  %6655 = vmatpush1.bf16.msra.mxu0 %v6637
  %6656 = vmatprep.subr.bf16.mxu0 0
  %6657 = vmatpush1.bf16.msra.mxu0 %v6638
  %6658 = vmatprep.subr.bf16.mxu0 0
  %6659 = vmatpush1.bf16.msra.mxu0 %v6639
  %6660 = vmatprep.subr.bf16.mxu0 0
  %6661 = vmatpush1.bf16.msra.mxu0 %v6640
  %6662 = vmatprep.subr.bf16.mxu0 0
  %6663 = vmatpush1.bf16.msra.mxu0 %v6641
  %6664 = vmatprep.subr.bf16.mxu0 0
  %6665 = vmatpush1.bf16.msra.mxu0 %v6642
  %6666 = vmatprep.subr.bf16.mxu0 0
  %6667 = vmatpush1.bf16.msra.mxu0 %v6643
  %6668 = vmatprep.subr.bf16.mxu0 0
  %6669 = vmatpush1.bf16.msra.mxu0 0
  %6670 = vmatprep.subr.bf16.mxu0 0
  %6671 = vmatpush1.bf16.msra.mxu0 0
  %6672 = vmatprep.subr.bf16.mxu0 0
  %6673 = vmatpush1.bf16.msra.mxu0 0
  %6674 = vmatprep.subr.bf16.mxu0 0
  %6675 = vmatpush1.bf16.msra.mxu0 0
  %6676 = vmatprep.subr.bf16.mxu0 0
  %6677 = vmatpush1.bf16.msra.mxu0 0
  %6678 = vmatprep.subr.bf16.mxu0 0
  %6679 = vmatpush1.bf16.msra.mxu0 0
  %6680 = vmatprep.subr.bf16.mxu0 0
  %6681 = vmatpush1.bf16.msra.mxu0 0
  %6682 = vmatprep.subr.bf16.mxu0 0
  %6683 = vmatpush1.bf16.msra.mxu0 0
  %6684 = vmatprep.mubr.bf16.mxu0 0
  %6685 = vmatmul.mubr.bf16.gmra.mrb[0].mxu0 %v6579
  %v6686 = vpop.f32.mrb[0].mxu0
  %v6687 = vadd.f32 %v6602, %v6686
  %v6688 = vpop.f32.mrb[0].mxu0
  %v6689 = vpop.f32.mrb[0].mxu0
  %v6690 = vadd.f32 %v6602, %v6689
  %v6691 = vpop.f32.mrb[0].mxu0
  %6692 = vmatprep.mubr.bf16.mxu0 0
  %6693 = vmatmul.mubr.bf16.gmra.mrb[0].mxu0 %v6580
  %v6694 = vpop.f32.mrb[0].mxu0
  %v6695 = vadd.f32 %v6602, %v6694
  %v6696 = vpop.f32.mrb[0].mxu0
  %v6697 = vpop.f32.mrb[0].mxu0
  %v6698 = vpop.f32.mrb[0].mxu0
  %6699 = vdwg.mxu0
  %v6700 = vmax.f32 %v6687, 0.0
  %v6701 = vmax.f32 %v6690, 0.0
  %v6702 = vmax.f32 %v6695, 0.0
  %v6703 = vpack.c.bf16 %v6701, %v6700
  %v6704 = vpack.c.bf16 %v6702, %v6702
  %v6705 = vld [vmem:[%s65] sm:$0xf]
  %v6706 = vld [vmem:[%s65 + $0x4] sm:$0xf]
  %v6707 = vld [vmem:[%s65 + $0x8] sm:$0xf]
  %v6708 = vld [vmem:[%s65 + $0xc] sm:$0xf]
  %v6709 = vld [vmem:[%s65 + $0x10] sm:$0xf]
  %v6710 = vld [vmem:[%s65 + $0x14] sm:$0xf]
  %v6711 = vld [vmem:[%s65 + $0x18] sm:$0xf]
  %v6712 = vld [vmem:[%s65 + $0x1c] sm:$0xf]
  %v6713 = vld [vmem:[%s65 + $0x20] sm:$0xf]
  %v6714 = vld [vmem:[%s65 + $0x24] sm:$0xf]
  %v6715 = vld [vmem:[%s65 + $0x28] sm:$0xf]
  %v6716 = vld [vmem:[%s65 + $0x2c] sm:$0xf]
  %v6717 = vld [vmem:[%s65 + $0x30] sm:$0xf]
  %v6718 = vld [vmem:[%s65 + $0x34] sm:$0xf]
  %v6719 = vld [vmem:[%s65 + $0x38] sm:$0xf]
  %v6720 = vld [vmem:[%s65 + $0x3c] sm:$0xf]
  %v6721 = vld [vmem:[%s17 + $0x1f] sm:$0x1]
  %v6723 = vlaneseq
  %v6724 = vshrl.u32 %v6723, 7
  %v6725 = vsub.s32 0, %v6724
  %v6726 = vrot.slane %v6721, %v6725
  %v6744 = vunpack.c.l.b16 %v6705
  %v6745 = vunpack.c.l.b16 %v6706
  %v6746 = vunpack.c.l.b16 %v6707
  %v6747 = vunpack.c.l.b16 %v6708
  %v6748 = vunpack.c.l.b16 %v6709
  %v6749 = vunpack.c.l.b16 %v6710
  %v6750 = vunpack.c.l.b16 %v6711
  %v6751 = vunpack.c.l.b16 %v6712
  %v6752 = vunpack.c.l.b16 %v6713
  %v6753 = vunpack.c.l.b16 %v6714
  %v6754 = vunpack.c.l.b16 %v6715
  %v6755 = vunpack.c.l.b16 %v6716
  %v6756 = vunpack.c.l.b16 %v6717
  %v6757 = vunpack.c.l.b16 %v6718
  %v6758 = vunpack.c.l.b16 %v6719
  %v6759 = vunpack.c.l.b16 %v6720
  %v6760 = vpack.c.b16 %v6745, %v6744
  %v6761 = vpack.c.b16 %v6747, %v6746
  %v6762 = vpack.c.b16 %v6749, %v6748
  %v6763 = vpack.c.b16 %v6751, %v6750
  %v6764 = vpack.c.b16 %v6753, %v6752
  %v6765 = vpack.c.b16 %v6755, %v6754
  %v6766 = vpack.c.b16 %v6757, %v6756
  %v6767 = vpack.c.b16 %v6759, %v6758
  %6776 = vmatprep.subr.bf16.mxu0 0
  %6777 = vmatpush1.bf16.msra.mxu0 %v6760
  %6778 = vmatprep.subr.bf16.mxu0 0
  %6779 = vmatpush1.bf16.msra.mxu0 %v6761
  %6780 = vmatprep.subr.bf16.mxu0 0
  %6781 = vmatpush1.bf16.msra.mxu0 %v6762
  %6782 = vmatprep.subr.bf16.mxu0 0
  %6783 = vmatpush1.bf16.msra.mxu0 %v6763
  %6784 = vmatprep.subr.bf16.mxu0 0
  %6785 = vmatpush1.bf16.msra.mxu0 %v6764
  %6786 = vmatprep.subr.bf16.mxu0 0
  %6787 = vmatpush1.bf16.msra.mxu0 %v6765
  %6788 = vmatprep.subr.bf16.mxu0 0
  %6789 = vmatpush1.bf16.msra.mxu0 %v6766
  %6790 = vmatprep.subr.bf16.mxu0 0
  %6791 = vmatpush1.bf16.msra.mxu0 %v6767
  %6792 = vmatprep.subr.bf16.mxu0 0
  %6793 = vmatpush1.bf16.msra.mxu0 0
  %6794 = vmatprep.subr.bf16.mxu0 0
  %6795 = vmatpush1.bf16.msra.mxu0 0
  %6796 = vmatprep.subr.bf16.mxu0 0
  %6797 = vmatpush1.bf16.msra.mxu0 0
  %6798 = vmatprep.subr.bf16.mxu0 0
  %6799 = vmatpush1.bf16.msra.mxu0 0
  %6800 = vmatprep.subr.bf16.mxu0 0
  %6801 = vmatpush1.bf16.msra.mxu0 0
  %6802 = vmatprep.subr.bf16.mxu0 0
  %6803 = vmatpush1.bf16.msra.mxu0 0
  %6804 = vmatprep.subr.bf16.mxu0 0
  %6805 = vmatpush1.bf16.msra.mxu0 0
  %6806 = vmatprep.subr.bf16.mxu0 0
  %6807 = vmatpush1.bf16.msra.mxu0 0
  %6808 = vmatprep.mubr.bf16.mxu0 0
  %6809 = vmatmul.mubr.bf16.gmra.mrb[0].mxu0 %v6703
  %v6810 = vpop.f32.mrb[0].mxu0
  %v6811 = vadd.f32 %v6726, %v6810
  %v6812 = vpop.f32.mrb[0].mxu0
  %v6813 = vpop.f32.mrb[0].mxu0
  %v6814 = vadd.f32 %v6726, %v6813
  %v6815 = vpop.f32.mrb[0].mxu0
  %6816 = vmatprep.mubr.bf16.mxu0 0
  %6817 = vmatmul.mubr.bf16.gmra.mrb[0].mxu0 %v6704
  %v6818 = vpop.f32.mrb[0].mxu0
  %v6819 = vadd.f32 %v6726, %v6818
  %v6820 = vpop.f32.mrb[0].mxu0
  %v6821 = vpop.f32.mrb[0].mxu0
  %v6822 = vpop.f32.mrb[0].mxu0
  %6823 = vdwg.mxu0
  %v6824 = vmax.f32 %v6811, 0.0
  %v6825 = vmax.f32 %v6814, 0.0
  %v6826 = vmax.f32 %v6819, 0.0
  %v6827 = vpack.c.bf16 %v6825, %v6824
  %v6828 = vpack.c.bf16 %v6826, %v6826
  %v6829 = vld [vmem:[%s67] sm:$0xf]
  %v6830 = vld [vmem:[%s67 + $0x4] sm:$0xf]
  %v6831 = vld [vmem:[%s67 + $0x8] sm:$0xf]
  %v6832 = vld [vmem:[%s67 + $0xc] sm:$0xf]
  %v6833 = vld [vmem:[%s67 + $0x10] sm:$0xf]
  %v6834 = vld [vmem:[%s67 + $0x14] sm:$0xf]
  %v6835 = vld [vmem:[%s67 + $0x18] sm:$0xf]
  %v6836 = vld [vmem:[%s67 + $0x1c] sm:$0xf]
  %v6837 = vld [vmem:[%s17 + $0x20] sm:$0x1]
  %v6839 = vlaneseq
  %v6840 = vshrl.u32 %v6839, 7
  %v6841 = vsub.s32 0, %v6840
  %v6842 = vrot.slane %v6837, %v6841
  %v6852 = vunpack.c.l.b16 %v6829
  %v6853 = vunpack.c.l.b16 %v6830
  %v6854 = vunpack.c.l.b16 %v6831
  %v6855 = vunpack.c.l.b16 %v6832
  %v6856 = vunpack.c.l.b16 %v6833
  %v6857 = vunpack.c.l.b16 %v6834
  %v6858 = vunpack.c.l.b16 %v6835
  %v6859 = vunpack.c.l.b16 %v6836
  %v6860 = vpack.c.b16 %v6853, %v6852
  %v6861 = vpack.c.b16 %v6855, %v6854
  %v6862 = vpack.c.b16 %v6857, %v6856
  %v6863 = vpack.c.b16 %v6859, %v6858
  %v6869 = vsel %vm1397, %v6827, 0
  %v6872 = vsel %vm1397, %v6828, 0
  %6874 = vmatprep.subr.bf16.mxu0 0
  %6875 = vmatpush1.bf16.msra.mxu0 %v6860
  %6876 = vmatprep.subr.bf16.mxu0 0
  %6877 = vmatpush1.bf16.msra.mxu0 %v6861
  %6878 = vmatprep.subr.bf16.mxu0 0
  %6879 = vmatpush1.bf16.msra.mxu0 %v6862
  %6880 = vmatprep.subr.bf16.mxu0 0
  %6881 = vmatpush1.bf16.msra.mxu0 %v6863
  %6882 = vmatprep.subr.bf16.mxu0 0
  %6883 = vmatpush1.bf16.msra.mxu0 0
  %6884 = vmatprep.subr.bf16.mxu0 0
  %6885 = vmatpush1.bf16.msra.mxu0 0
  %6886 = vmatprep.subr.bf16.mxu0 0
  %6887 = vmatpush1.bf16.msra.mxu0 0
  %6888 = vmatprep.subr.bf16.mxu0 0
  %6889 = vmatpush1.bf16.msra.mxu0 0
  %6890 = vmatprep.subr.bf16.mxu0 0
  %6891 = vmatpush1.bf16.msra.mxu0 0
  %6892 = vmatprep.subr.bf16.mxu0 0
  %6893 = vmatpush1.bf16.msra.mxu0 0
  %6894 = vmatprep.subr.bf16.mxu0 0
  %6895 = vmatpush1.bf16.msra.mxu0 0
  %6896 = vmatprep.subr.bf16.mxu0 0
  %6897 = vmatpush1.bf16.msra.mxu0 0
  %6898 = vmatprep.subr.bf16.mxu0 0
  %6899 = vmatpush1.bf16.msra.mxu0 0
  %6900 = vmatprep.subr.bf16.mxu0 0
  %6901 = vmatpush1.bf16.msra.mxu0 0
  %6902 = vmatprep.subr.bf16.mxu0 0
  %6903 = vmatpush1.bf16.msra.mxu0 0
  %6904 = vmatprep.subr.bf16.mxu0 0
  %6905 = vmatpush1.bf16.msra.mxu0 0
  %6906 = vmatprep.mubr.bf16.mxu0 0
  %6907 = vmatmul.mubr.bf16.gmra.mrb[0].mxu0 %v6869
  %v6908 = vpop.f32.mrb[0].mxu0
  %v6909 = vadd.f32 %v6842, %v6908
  %v6910 = vpop.f32.mrb[0].mxu0
  %v6911 = vpop.f32.mrb[0].mxu0
  %v6912 = vadd.f32 %v6842, %v6911
  %v6913 = vpop.f32.mrb[0].mxu0
  %6914 = vmatprep.mubr.bf16.mxu0 0
  %6915 = vmatmul.mubr.bf16.gmra.mrb[0].mxu0 %v6872
  %v6916 = vpop.f32.mrb[0].mxu0
  %v6917 = vadd.f32 %v6842, %v6916
  %v6918 = vpop.f32.mrb[0].mxu0
  %v6919 = vpop.f32.mrb[0].mxu0
  %v6920 = vpop.f32.mrb[0].mxu0
  %6921 = vdwg.mxu0
  %v6922 = vadd.f32 %v4648, %v6909
  %v6923 = vadd.f32 %v4651, %v6912
  %v6924 = vadd.f32 %v4656, %v6917
  %v6925 = vpack.c.bf16 %v6923, %v6922
  %v6926 = vpack.c.bf16 %v6924, %v6924
  %v6928 = vsel %vm4688, %v6925, 0
  %v6931 = vsel %vm4688, %v6926, 0
  %6933 = vmatprep.subr.bf16.mxu0 0
  %6934 = vmatpush1.bf16.msra.mxu0 %v4697
  %6935 = vmatprep.subr.bf16.mxu0 0
  %6936 = vmatpush1.bf16.msra.mxu0 0
  %6937 = vmatprep.subr.bf16.mxu0 0
  %6938 = vmatpush1.bf16.msra.mxu0 0
  %6939 = vmatprep.subr.bf16.mxu0 0
  %6940 = vmatpush1.bf16.msra.mxu0 0
  %6941 = vmatprep.subr.bf16.mxu0 0
  %6942 = vmatpush1.bf16.msra.mxu0 0
  %6943 = vmatprep.subr.bf16.mxu0 0
  %6944 = vmatpush1.bf16.msra.mxu0 0
  %6945 = vmatprep.subr.bf16.mxu0 0
  %6946 = vmatpush1.bf16.msra.mxu0 0
  %6947 = vmatprep.subr.bf16.mxu0 0
  %6948 = vmatpush1.bf16.msra.mxu0 0
  %6949 = vmatprep.subr.bf16.mxu0 0
  %6950 = vmatpush1.bf16.msra.mxu0 0
  %6951 = vmatprep.subr.bf16.mxu0 0
  %6952 = vmatpush1.bf16.msra.mxu0 0
  %6953 = vmatprep.subr.bf16.mxu0 0
  %6954 = vmatpush1.bf16.msra.mxu0 0
  %6955 = vmatprep.subr.bf16.mxu0 0
  %6956 = vmatpush1.bf16.msra.mxu0 0
  %6957 = vmatprep.subr.bf16.mxu0 0
  %6958 = vmatpush1.bf16.msra.mxu0 0
  %6959 = vmatprep.subr.bf16.mxu0 0
  %6960 = vmatpush1.bf16.msra.mxu0 0
  %6961 = vmatprep.subr.bf16.mxu0 0
  %6962 = vmatpush1.bf16.msra.mxu0 0
  %6963 = vmatprep.subr.bf16.mxu0 0
  %6964 = vmatpush1.bf16.msra.mxu0 0
  %6965 = vmatprep.mubr.bf16.mxu0 0
  %6966 = vmatmul.mubr.bf16.gmra.mrb[0].mxu0 %v6928
  %v6967 = vpop.f32.mrb[0].mxu0
  %v6968 = vadd.f32 %v4681, %v6967
  %v6969 = vpop.f32.mrb[0].mxu0
  %v6970 = vpop.f32.mrb[0].mxu0
  %v6971 = vadd.f32 %v4681, %v6970
  %v6972 = vpop.f32.mrb[0].mxu0
  %6973 = vmatprep.mubr.bf16.mxu0 0
  %6974 = vmatmul.mubr.bf16.gmra.mrb[0].mxu0 %v6931
  %v6975 = vpop.f32.mrb[0].mxu0
  %v6976 = vadd.f32 %v4681, %v6975
  %v6977 = vpop.f32.mrb[0].mxu0
  %v6978 = vpop.f32.mrb[0].mxu0
  %v6979 = vpop.f32.mrb[0].mxu0
  %6980 = vdwg.mxu0
  %v6981 = vmax.f32 %v6968, 0.0
  %v6982 = vmax.f32 %v6971, 0.0
  %v6983 = vmax.f32 %v6976, 0.0
  %v6984 = vpack.c.bf16 %v6982, %v6981
  %v6985 = vpack.c.bf16 %v6983, %v6983
  %v6987 = vsel %vm1603, %v6984, 0
  %v6990 = vsel %vm1603, %v6985, 0
  %6992 = vmatprep.subr.bf16.mxu0 0
  %6993 = vmatpush1.bf16.msra.mxu0 %v4771
  %6994 = vmatprep.subr.bf16.mxu0 0
  %6995 = vmatpush1.bf16.msra.mxu0 %v4772
  %6996 = vmatprep.subr.bf16.mxu0 0
  %6997 = vmatpush1.bf16.msra.mxu0 0
  %6998 = vmatprep.subr.bf16.mxu0 0
  %6999 = vmatpush1.bf16.msra.mxu0 0
  %7000 = vmatprep.subr.bf16.mxu0 0
  %7001 = vmatpush1.bf16.msra.mxu0 0
  %7002 = vmatprep.subr.bf16.mxu0 0
  %7003 = vmatpush1.bf16.msra.mxu0 0
  %7004 = vmatprep.subr.bf16.mxu0 0
  %7005 = vmatpush1.bf16.msra.mxu0 0
  %7006 = vmatprep.subr.bf16.mxu0 0
  %7007 = vmatpush1.bf16.msra.mxu0 0
  %7008 = vmatprep.subr.bf16.mxu0 0
  %7009 = vmatpush1.bf16.msra.mxu0 0
  %7010 = vmatprep.subr.bf16.mxu0 0
  %7011 = vmatpush1.bf16.msra.mxu0 0
  %7012 = vmatprep.subr.bf16.mxu0 0
  %7013 = vmatpush1.bf16.msra.mxu0 0
  %7014 = vmatprep.subr.bf16.mxu0 0
  %7015 = vmatpush1.bf16.msra.mxu0 0
  %7016 = vmatprep.subr.bf16.mxu0 0
  %7017 = vmatpush1.bf16.msra.mxu0 0
  %7018 = vmatprep.subr.bf16.mxu0 0
  %7019 = vmatpush1.bf16.msra.mxu0 0
  %7020 = vmatprep.subr.bf16.mxu0 0
  %7021 = vmatpush1.bf16.msra.mxu0 0
  %7022 = vmatprep.subr.bf16.mxu0 0
  %7023 = vmatpush1.bf16.msra.mxu0 0
  %7024 = vmatprep.mubr.bf16.mxu0 0
  %7025 = vmatmul.mubr.bf16.gmra.mrb[0].mxu0 %v6987
  %v7026 = vpop.f32.mrb[0].mxu0
  %v7027 = vadd.f32 %v4761, %v7026
  %v7028 = vpop.f32.mrb[0].mxu0
  %v7029 = vpop.f32.mrb[0].mxu0
  %v7030 = vadd.f32 %v4761, %v7029
  %v7031 = vpop.f32.mrb[0].mxu0
  %7032 = vmatprep.mubr.bf16.mxu0 0
  %7033 = vmatmul.mubr.bf16.gmra.mrb[0].mxu0 %v6990
  %v7034 = vpop.f32.mrb[0].mxu0
  %v7035 = vadd.f32 %v4761, %v7034
  %v7036 = vpop.f32.mrb[0].mxu0
  %v7037 = vpop.f32.mrb[0].mxu0
  %v7038 = vpop.f32.mrb[0].mxu0
  %7039 = vdwg.mxu0
  %v7040 = vmax.f32 %v7027, 0.0
  %v7041 = vmax.f32 %v7030, 0.0
  %v7042 = vmax.f32 %v7035, 0.0
  %v7043 = vpack.c.bf16 %v7041, %v7040
  %v7044 = vpack.c.bf16 %v7042, %v7042
  %v7046 = vsel %vm1603, %v7043, 0
  %v7049 = vsel %vm1603, %v7044, 0
  %7051 = vmatprep.subr.bf16.mxu0 0
  %7052 = vmatpush1.bf16.msra.mxu0 %v4853
  %7053 = vmatprep.subr.bf16.mxu0 0
  %7054 = vmatpush1.bf16.msra.mxu0 %v4854
  %7055 = vmatprep.subr.bf16.mxu0 0
  %7056 = vmatpush1.bf16.msra.mxu0 0
  %7057 = vmatprep.subr.bf16.mxu0 0
  %7058 = vmatpush1.bf16.msra.mxu0 0
  %7059 = vmatprep.subr.bf16.mxu0 0
  %7060 = vmatpush1.bf16.msra.mxu0 0
  %7061 = vmatprep.subr.bf16.mxu0 0
  %7062 = vmatpush1.bf16.msra.mxu0 0
  %7063 = vmatprep.subr.bf16.mxu0 0
  %7064 = vmatpush1.bf16.msra.mxu0 0
  %7065 = vmatprep.subr.bf16.mxu0 0
  %7066 = vmatpush1.bf16.msra.mxu0 0
  %7067 = vmatprep.subr.bf16.mxu0 0
  %7068 = vmatpush1.bf16.msra.mxu0 0
  %7069 = vmatprep.subr.bf16.mxu0 0
  %7070 = vmatpush1.bf16.msra.mxu0 0
  %7071 = vmatprep.subr.bf16.mxu0 0
  %7072 = vmatpush1.bf16.msra.mxu0 0
  %7073 = vmatprep.subr.bf16.mxu0 0
  %7074 = vmatpush1.bf16.msra.mxu0 0
  %7075 = vmatprep.subr.bf16.mxu0 0
  %7076 = vmatpush1.bf16.msra.mxu0 0
  %7077 = vmatprep.subr.bf16.mxu0 0
  %7078 = vmatpush1.bf16.msra.mxu0 0
  %7079 = vmatprep.subr.bf16.mxu0 0
  %7080 = vmatpush1.bf16.msra.mxu0 0
  %7081 = vmatprep.subr.bf16.mxu0 0
  %7082 = vmatpush1.bf16.msra.mxu0 0
  %7083 = vmatprep.mubr.bf16.mxu0 0
  %7084 = vmatmul.mubr.bf16.gmra.mrb[0].mxu0 %v7046
  %v7085 = vpop.f32.mrb[0].mxu0
  %v7086 = vadd.f32 %v4843, %v7085
  %v7087 = vpop.f32.mrb[0].mxu0
  %v7088 = vpop.f32.mrb[0].mxu0
  %v7089 = vadd.f32 %v4843, %v7088
  %v7090 = vpop.f32.mrb[0].mxu0
  %7091 = vmatprep.mubr.bf16.mxu0 0
  %7092 = vmatmul.mubr.bf16.gmra.mrb[0].mxu0 %v7049
  %v7093 = vpop.f32.mrb[0].mxu0
  %v7094 = vadd.f32 %v4843, %v7093
  %v7095 = vpop.f32.mrb[0].mxu0
  %v7096 = vpop.f32.mrb[0].mxu0
  %v7097 = vpop.f32.mrb[0].mxu0
  %7098 = vdwg.mxu0
  %v7099 = vadd.f32 %v6922, %v4913
  %7101 = vrot.lane.b32.xlu0 %v7099, 120
  %v7102 = vpop.permute.xlu0 %7101
  %v7103 = vsel %vm1781, %v7102, 0
  %7105 = vmatprep.subr.mxu0 0.0
  %7106 = vmatpush1.msra.mxu0 %v7103
  %7107 = vmatprep.subr.mxu0 0.0
  %7108 = vmatpush1.msra.mxu0 0.0
  %7109 = vmatprep.subr.mxu0 0.0
  %7110 = vmatpush1.msra.mxu0 0.0
  %7111 = vmatprep.subr.mxu0 0.0
  %7112 = vmatpush1.msra.mxu0 0.0
  %7113 = vmatprep.subr.mxu0 0.0
  %7114 = vmatpush1.msra.mxu0 0.0
  %7115 = vmatprep.subr.mxu0 0.0
  %7116 = vmatpush1.msra.mxu0 0.0
  %7117 = vmatprep.subr.mxu0 0.0
  %7118 = vmatpush1.msra.mxu0 0.0
  %7119 = vmatprep.subr.mxu0 0.0
  %7120 = vmatpush1.msra.mxu0 0.0
  %7121 = vmatprep.subr.mxu0 0.0
  %7122 = vmatpush1.msra.mxu0 0.0
  %7123 = vmatprep.subr.mxu0 0.0
  %7124 = vmatpush1.msra.mxu0 0.0
  %7125 = vmatprep.subr.mxu0 0.0
  %7126 = vmatpush1.msra.mxu0 0.0
  %7127 = vmatprep.subr.mxu0 0.0
  %7128 = vmatpush1.msra.mxu0 0.0
  %7129 = vmatprep.subr.mxu0 0.0
  %7130 = vmatpush1.msra.mxu0 0.0
  %7131 = vmatprep.subr.mxu0 0.0
  %7132 = vmatpush1.msra.mxu0 0.0
  %7133 = vmatprep.subr.mxu0 0.0
  %7134 = vmatpush1.msra.mxu0 0.0
  %7135 = vmatprep.subr.mxu0 0.0
  %7136 = vmatpush1.msra.mxu0 0.0
  %7137 = vmatprep.subr.mxu0 0.0
  %7138 = vmatpush1.msra.mxu0 0.0
  %7139 = vmatprep.subr.mxu0 0.0
  %7140 = vmatpush1.msra.mxu0 0.0
  %7141 = vmatprep.subr.mxu0 0.0
  %7142 = vmatpush1.msra.mxu0 0.0
  %7143 = vmatprep.subr.mxu0 0.0
  %7144 = vmatpush1.msra.mxu0 0.0
  %7145 = vmatprep.subr.mxu0 0.0
  %7146 = vmatpush1.msra.mxu0 0.0
  %7147 = vmatprep.subr.mxu0 0.0
  %7148 = vmatpush1.msra.mxu0 0.0
  %7149 = vmatprep.subr.mxu0 0.0
  %7150 = vmatpush1.msra.mxu0 0.0
  %7151 = vmatprep.subr.mxu0 0.0
  %7152 = vmatpush1.msra.mxu0 0.0
  %7153 = vmatprep.subr.mxu0 0.0
  %7154 = vmatpush1.msra.mxu0 0.0
  %7155 = vmatprep.subr.mxu0 0.0
  %7156 = vmatpush1.msra.mxu0 0.0
  %7157 = vmatprep.subr.mxu0 0.0
  %7158 = vmatpush1.msra.mxu0 0.0
  %7159 = vmatprep.subr.mxu0 0.0
  %7160 = vmatpush1.msra.mxu0 0.0
  %7161 = vmatprep.subr.mxu0 0.0
  %7162 = vmatpush1.msra.mxu0 0.0
  %7163 = vmatprep.subr.mxu0 0.0
  %7164 = vmatpush1.msra.mxu0 0.0
  %7165 = vmatprep.subr.mxu0 0.0
  %7166 = vmatpush1.msra.mxu0 0.0
  %7167 = vmatprep.subr.mxu0 0.0
  %7168 = vmatpush1.msra.mxu0 0.0
  %7169 = vmatprep.mubr.f32.mxu0 0.0
  %7170 = vmatmul.mubr.f32.gmra.mrb[0].mxu0 %v4920
  %v7171 = vpop.f32.mrb[0].mxu0
  %v7172 = vadd.f32 0.0, %v7171
  %v7173 = vpop.f32.mrb[0].mxu0
  %7174 = vmatprep.mubr.f32.mxu0 0.0
  %7175 = vmatmul.mubr.f32.gmra.mrb[0].mxu0 %v4923
  %v7176 = vpop.f32.mrb[0].mxu0
  %v7177 = vadd.f32 0.0, %v7176
  %v7178 = vpop.f32.mrb[0].mxu0
  %7179 = vmatprep.mubr.f32.mxu0 0.0
  %7180 = vmatmul.mubr.f32.gmra.mrb[0].mxu0 %v4926
  %v7181 = vpop.f32.mrb[0].mxu0
  %v7182 = vadd.f32 0.0, %v7181
  %v7183 = vpop.f32.mrb[0].mxu0
  %7184 = vmatprep.mubr.f32.mxu0 0.0
  %7185 = vmatmul.mubr.f32.gmra.mrb[0].mxu0 %v4929
  %v7186 = vpop.f32.mrb[0].mxu0
  %v7187 = vadd.f32 0.0, %v7186
  %v7188 = vpop.f32.mrb[0].mxu0
  %7189 = vmatprep.mubr.f32.mxu0 0.0
  %7190 = vmatmul.mubr.f32.gmra.mrb[0].mxu0 %v4932
  %v7191 = vpop.f32.mrb[0].mxu0
  %v7192 = vadd.f32 0.0, %v7191
  %v7193 = vpop.f32.mrb[0].mxu0
  %7194 = vdwg.mxu0
  %v7195 = vmul.f32 %v7172, %v7172
  %v7196 = vmul.f32 %v7177, %v7177
  %v7197 = vmul.f32 %v7182, %v7182
  %v7198 = vmul.f32 %v7187, %v7187
  %v7199 = vmul.f32 %v7192, %v7192
  %v7200 = vsel %vm5031, %v7195, 0.0
  %7201 = vadd.xlane.f32.xlu0 %v7200
  %v7202 = vpop.xlane.xlu0 %7201
  %v7203 = vsel %vm5031, %v7196, 0.0
  %7204 = vadd.xlane.f32.xlu0 %v7203
  %v7205 = vpop.xlane.xlu0 %7204
  %v7206 = vsel %vm5031, %v7197, 0.0
  %7207 = vadd.xlane.f32.xlu0 %v7206
  %v7208 = vpop.xlane.xlu0 %7207
  %v7209 = vsel %vm5031, %v7198, 0.0
  %7210 = vadd.xlane.f32.xlu0 %v7209
  %v7211 = vpop.xlane.xlu0 %7210
  %v7212 = vsel %vm5044, %v7199, 0.0
  %7213 = vadd.xlane.f32.xlu0 %v7212
  %v7214 = vpop.xlane.xlu0 %7213
  %v7215 = vrsqrt.pop %v7202
  %v7216 = vmul.f32 %v7202, %v7215
  %vm7217 = vcmp.eq.f32.partialorder %v7202, inf
  %v7218 = vsel %vm7217, %v7202, %v7216
  %vm7219 = vcmp.eq.f32.partialorder %v7202, 0.0
  %v7220 = vand.u32 %v7202, 2147483648
  %v7221 = vsel %vm7219, %v7220, %v7218
  %v7222 = vrsqrt.pop %v7205
  %v7223 = vmul.f32 %v7205, %v7222
  %vm7224 = vcmp.eq.f32.partialorder %v7205, inf
  %v7225 = vsel %vm7224, %v7205, %v7223
  %vm7226 = vcmp.eq.f32.partialorder %v7205, 0.0
  %v7227 = vand.u32 %v7205, 2147483648
  %v7228 = vsel %vm7226, %v7227, %v7225
  %v7229 = vrsqrt.pop %v7208
  %v7230 = vmul.f32 %v7208, %v7229
  %vm7231 = vcmp.eq.f32.partialorder %v7208, inf
  %v7232 = vsel %vm7231, %v7208, %v7230
  %vm7233 = vcmp.eq.f32.partialorder %v7208, 0.0
  %v7234 = vand.u32 %v7208, 2147483648
  %v7235 = vsel %vm7233, %v7234, %v7232
  %v7236 = vrsqrt.pop %v7211
  %v7237 = vmul.f32 %v7211, %v7236
  %vm7238 = vcmp.eq.f32.partialorder %v7211, inf
  %v7239 = vsel %vm7238, %v7211, %v7237
  %vm7240 = vcmp.eq.f32.partialorder %v7211, 0.0
  %v7241 = vand.u32 %v7211, 2147483648
  %v7242 = vsel %vm7240, %v7241, %v7239
  %v7243 = vrsqrt.pop %v7214
  %v7244 = vmul.f32 %v7214, %v7243
  %vm7245 = vcmp.eq.f32.partialorder %v7214, inf
  %v7246 = vsel %vm7245, %v7214, %v7244
  %vm7247 = vcmp.eq.f32.partialorder %v7214, 0.0
  %v7248 = vand.u32 %v7214, 2147483648
  %v7249 = vsel %vm7247, %v7248, %v7246
  %vm7250 = vcmp.le.f32.partialorder %v7221, 3.0
  %vm7251 = vcmp.le.f32.partialorder %v7228, 3.0
  %vm7252 = vcmp.le.f32.partialorder %v7235, 3.0
  %vm7253 = vcmp.le.f32.partialorder %v7242, 3.0
  %vm7254 = vcmp.le.f32.partialorder %v7249, 3.0
  %v7255 = vsel %vm7250, 1, 0
  %v7256 = vsel %vm7251, 1, 0
  %v7257 = vsel %vm7252, 1, 0
  %v7258 = vsel %vm7253, 1, 0
  %v7259 = vsel %vm7254, 1, 0
  %v7260 = vcvt.s32.f32 %v7255
  %v7261 = vcvt.s32.f32 %v7256
  %v7262 = vcvt.s32.f32 %v7257
  %v7263 = vcvt.s32.f32 %v7258
  %v7264 = vcvt.s32.f32 %v7259
  %v7265 = vmul.f32 %v4667, %v7260
  %v7266 = vmul.f32 %v4668, %v7261
  %v7267 = vmul.f32 %v4669, %v7262
  %v7268 = vmul.f32 %v4670, %v7263
  %v7269 = vmul.f32 %v4671, %v7264
  %vm7270 = vcmp.gt.f32.partialorder %v7221, 0.0001
  %vm7271 = vcmp.gt.f32.partialorder %v7228, 0.0001
  %vm7272 = vcmp.gt.f32.partialorder %v7235, 0.0001
  %vm7273 = vcmp.gt.f32.partialorder %v7242, 0.0001
  %vm7274 = vcmp.gt.f32.partialorder %v7249, 0.0001
  %v7275 = vsel %vm7270, 1, 0
  %v7276 = vsel %vm7271, 1, 0
  %v7277 = vsel %vm7272, 1, 0
  %v7278 = vsel %vm7273, 1, 0
  %v7279 = vsel %vm7274, 1, 0
  %v7280 = vcvt.s32.f32 %v7275
  %v7281 = vcvt.s32.f32 %v7276
  %v7282 = vcvt.s32.f32 %v7277
  %v7283 = vcvt.s32.f32 %v7278
  %v7284 = vcvt.s32.f32 %v7279
  %v7285 = vmul.f32 %v7265, %v7280
  %v7286 = vmul.f32 %v7266, %v7281
  %v7287 = vmul.f32 %v7267, %v7282
  %v7288 = vmul.f32 %v7268, %v7283
  %v7289 = vmul.f32 %v7269, %v7284
  %vm7290 = vcmp.gt.f32.partialorder %v7285, 0.0
  %vm7291 = vcmp.gt.f32.partialorder %v7286, 0.0
  %vm7292 = vcmp.gt.f32.partialorder %v7287, 0.0
  %vm7293 = vcmp.gt.f32.partialorder %v7288, 0.0
  %vm7294 = vcmp.gt.f32.partialorder %v7289, 0.0
  %v7295 = vsel %vm7290, %v7221, 1.0
  %v7296 = vsel %vm7291, %v7228, 1.0
  %v7297 = vsel %vm7292, %v7235, 1.0
  %v7298 = vsel %vm7293, %v7242, 1.0
  %v7299 = vsel %vm7294, %v7249, 1.0
  %v7300 = vrcp.pop %v7295
  %v7301 = vrcp.pop %v7296
  %v7302 = vrcp.pop %v7297
  %v7303 = vrcp.pop %v7298
  %v7304 = vrcp.pop %v7299
  %v7305 = vpack.c.bf16 %v7177, %v7172
  %v7306 = vpack.c.bf16 %v7187, %v7182
  %v7307 = vpack.c.bf16 %v7192, %v7192
  %7309 = vset.pattern.permute.xlu0 0
  %7310 = vperm.xlu0 %7309, %v7300
  %v7311 = vpop.permute.xlu0 %7310
  %7314 = vset.pattern.permute.xlu0 0
  %7315 = vperm.xlu0 %7314, %v7301
  %v7316 = vpop.permute.xlu0 %7315
  %7319 = vset.pattern.permute.xlu0 0
  %7320 = vperm.xlu0 %7319, %v7302
  %v7321 = vpop.permute.xlu0 %7320
  %7324 = vset.pattern.permute.xlu0 0
  %7325 = vperm.xlu0 %7324, %v7303
  %v7326 = vpop.permute.xlu0 %7325
  %7329 = vset.pattern.permute.xlu0 0
  %7330 = vperm.xlu0 %7329, %v7304
  %v7331 = vpop.permute.xlu0 %7330
  %v7333 = vmul.f32 %v7311, %v5172
  %v7334 = vmul.f32 %v7316, %v5172
  %v7335 = vmul.f32 %v7321, %v5172
  %v7336 = vmul.f32 %v7326, %v5172
  %v7337 = vmul.f32 %v7331, %v5172
  %v7339 = vsel %vm5031, %v7305, 0
  %v7342 = vsel %vm5031, %v7306, 0
  %v7345 = vsel %vm5031, %v7307, 0
  %7347 = vmatprep.subr.bf16.mxu0 0
  %7348 = vmatpush1.bf16.msra.mxu0 %v5190
  %7349 = vmatprep.subr.bf16.mxu0 0
  %7350 = vmatpush1.bf16.msra.mxu0 0
  %7351 = vmatprep.subr.bf16.mxu0 0
  %7352 = vmatpush1.bf16.msra.mxu0 0
  %7353 = vmatprep.subr.bf16.mxu0 0
  %7354 = vmatpush1.bf16.msra.mxu0 0
  %7355 = vmatprep.subr.bf16.mxu0 0
  %7356 = vmatpush1.bf16.msra.mxu0 0
  %7357 = vmatprep.subr.bf16.mxu0 0
  %7358 = vmatpush1.bf16.msra.mxu0 0
  %7359 = vmatprep.subr.bf16.mxu0 0
  %7360 = vmatpush1.bf16.msra.mxu0 0
  %7361 = vmatprep.subr.bf16.mxu0 0
  %7362 = vmatpush1.bf16.msra.mxu0 0
  %7363 = vmatprep.subr.bf16.mxu0 0
  %7364 = vmatpush1.bf16.msra.mxu0 0
  %7365 = vmatprep.subr.bf16.mxu0 0
  %7366 = vmatpush1.bf16.msra.mxu0 0
  %7367 = vmatprep.subr.bf16.mxu0 0
  %7368 = vmatpush1.bf16.msra.mxu0 0
  %7369 = vmatprep.subr.bf16.mxu0 0
  %7370 = vmatpush1.bf16.msra.mxu0 0
  %7371 = vmatprep.subr.bf16.mxu0 0
  %7372 = vmatpush1.bf16.msra.mxu0 0
  %7373 = vmatprep.subr.bf16.mxu0 0
  %7374 = vmatpush1.bf16.msra.mxu0 0
  %7375 = vmatprep.subr.bf16.mxu0 0
  %7376 = vmatpush1.bf16.msra.mxu0 0
  %7377 = vmatprep.subr.bf16.mxu0 0
  %7378 = vmatpush1.bf16.msra.mxu0 0
  %7379 = vmatprep.mubr.bf16.mxu0 0
  %7380 = vmatmul.mubr.bf16.gmra.mrb[0].mxu0 %v7339
  %v7381 = vpop.f32.mrb[0].mxu0
  %v7382 = vadd.f32 %v7333, %v7381
  %v7383 = vpop.f32.mrb[0].mxu0
  %v7384 = vpop.f32.mrb[0].mxu0
  %v7385 = vadd.f32 %v7334, %v7384
  %v7386 = vpop.f32.mrb[0].mxu0
  %7387 = vmatprep.mubr.bf16.mxu0 0
  %7388 = vmatmul.mubr.bf16.gmra.mrb[0].mxu0 %v7342
  %v7389 = vpop.f32.mrb[0].mxu0
  %v7390 = vadd.f32 %v7335, %v7389
  %v7391 = vpop.f32.mrb[0].mxu0
  %v7392 = vpop.f32.mrb[0].mxu0
  %v7393 = vadd.f32 %v7336, %v7392
  %v7394 = vpop.f32.mrb[0].mxu0
  %7395 = vmatprep.mubr.bf16.mxu0 0
  %7396 = vmatmul.mubr.bf16.gmra.mrb[0].mxu0 %v7345
  %v7397 = vpop.f32.mrb[0].mxu0
  %v7398 = vadd.f32 %v7337, %v7397
  %v7399 = vpop.f32.mrb[0].mxu0
  %v7400 = vpop.f32.mrb[0].mxu0
  %v7401 = vpop.f32.mrb[0].mxu0
  %7402 = vdwg.mxu0
  %v7403 = vadd.f32 %v7382, %v5253
  %v7404 = vadd.f32 %v7385, %v5253
  %v7405 = vadd.f32 %v7390, %v5253
  %v7406 = vadd.f32 %v7393, %v5253
  %v7407 = vadd.f32 %v7398, %v5253
  %v7408 = vmax.f32 %v7403, 0.0
  %v7409 = vmax.f32 %v7404, 0.0
  %v7410 = vmax.f32 %v7405, 0.0
  %v7411 = vmax.f32 %v7406, 0.0
  %v7412 = vmax.f32 %v7407, 0.0
  %v7413 = vpack.c.bf16 %v7409, %v7408
  %v7414 = vpack.c.bf16 %v7411, %v7410
  %v7415 = vpack.c.bf16 %v7412, %v7412
  %v7417 = vsel %vm256, %v7413, 0
  %v7420 = vsel %vm256, %v7414, 0
  %v7423 = vsel %vm256, %v7415, 0
  %7425 = vmatprep.subr.bf16.mxu0 0
  %7426 = vmatpush1.bf16.msra.mxu0 %v5281
  %7427 = vmatprep.subr.bf16.mxu0 0
  %7428 = vmatpush1.bf16.msra.mxu0 0
  %7429 = vmatprep.subr.bf16.mxu0 0
  %7430 = vmatpush1.bf16.msra.mxu0 0
  %7431 = vmatprep.subr.bf16.mxu0 0
  %7432 = vmatpush1.bf16.msra.mxu0 0
  %7433 = vmatprep.subr.bf16.mxu0 0
  %7434 = vmatpush1.bf16.msra.mxu0 0
  %7435 = vmatprep.subr.bf16.mxu0 0
  %7436 = vmatpush1.bf16.msra.mxu0 0
  %7437 = vmatprep.subr.bf16.mxu0 0
  %7438 = vmatpush1.bf16.msra.mxu0 0
  %7439 = vmatprep.subr.bf16.mxu0 0
  %7440 = vmatpush1.bf16.msra.mxu0 0
  %7441 = vmatprep.subr.bf16.mxu0 0
  %7442 = vmatpush1.bf16.msra.mxu0 0
  %7443 = vmatprep.subr.bf16.mxu0 0
  %7444 = vmatpush1.bf16.msra.mxu0 0
  %7445 = vmatprep.subr.bf16.mxu0 0
  %7446 = vmatpush1.bf16.msra.mxu0 0
  %7447 = vmatprep.subr.bf16.mxu0 0
  %7448 = vmatpush1.bf16.msra.mxu0 0
  %7449 = vmatprep.subr.bf16.mxu0 0
  %7450 = vmatpush1.bf16.msra.mxu0 0
  %7451 = vmatprep.subr.bf16.mxu0 0
  %7452 = vmatpush1.bf16.msra.mxu0 0
  %7453 = vmatprep.subr.bf16.mxu0 0
  %7454 = vmatpush1.bf16.msra.mxu0 0
  %7455 = vmatprep.subr.bf16.mxu0 0
  %7456 = vmatpush1.bf16.msra.mxu0 0
  %7457 = vmatprep.mubr.bf16.mxu0 0
  %7458 = vmatmul.mubr.bf16.gmra.mrb[0].mxu0 %v7417
  %v7459 = vpop.f32.mrb[0].mxu0
  %v7460 = vadd.f32 %v5275, %v7459
  %v7461 = vpop.f32.mrb[0].mxu0
  %v7462 = vpop.f32.mrb[0].mxu0
  %v7463 = vadd.f32 %v5275, %v7462
  %v7464 = vpop.f32.mrb[0].mxu0
  %7465 = vmatprep.mubr.bf16.mxu0 0
  %7466 = vmatmul.mubr.bf16.gmra.mrb[0].mxu0 %v7420
  %v7467 = vpop.f32.mrb[0].mxu0
  %v7468 = vadd.f32 %v5275, %v7467
  %v7469 = vpop.f32.mrb[0].mxu0
  %v7470 = vpop.f32.mrb[0].mxu0
  %v7471 = vadd.f32 %v5275, %v7470
  %v7472 = vpop.f32.mrb[0].mxu0
  %7473 = vmatprep.mubr.bf16.mxu0 0
  %7474 = vmatmul.mubr.bf16.gmra.mrb[0].mxu0 %v7423
  %v7475 = vpop.f32.mrb[0].mxu0
  %v7476 = vadd.f32 %v5275, %v7475
  %v7477 = vpop.f32.mrb[0].mxu0
  %v7478 = vpop.f32.mrb[0].mxu0
  %v7479 = vpop.f32.mrb[0].mxu0
  %7480 = vdwg.mxu0
  %v7481 = vmax.f32 %v7460, 0.0
  %v7482 = vmax.f32 %v7463, 0.0
  %v7483 = vmax.f32 %v7468, 0.0
  %v7484 = vmax.f32 %v7471, 0.0
  %v7485 = vmax.f32 %v7476, 0.0
  %v7486 = vpack.c.bf16 %v7482, %v7481
  %v7487 = vpack.c.bf16 %v7484, %v7483
  %v7488 = vpack.c.bf16 %v7485, %v7485
  %v7490 = vsel %vm1603, %v7486, 0
  %v7493 = vsel %vm1603, %v7487, 0
  %v7496 = vsel %vm1603, %v7488, 0
  %7498 = vmatprep.subr.bf16.mxu0 0
  %7499 = vmatpush1.bf16.msra.mxu0 %v5375
  %7500 = vmatprep.subr.bf16.mxu0 0
  %7501 = vmatpush1.bf16.msra.mxu0 %v5376
  %7502 = vmatprep.subr.bf16.mxu0 0
  %7503 = vmatpush1.bf16.msra.mxu0 0
  %7504 = vmatprep.subr.bf16.mxu0 0
  %7505 = vmatpush1.bf16.msra.mxu0 0
  %7506 = vmatprep.subr.bf16.mxu0 0
  %7507 = vmatpush1.bf16.msra.mxu0 0
  %7508 = vmatprep.subr.bf16.mxu0 0
  %7509 = vmatpush1.bf16.msra.mxu0 0
  %7510 = vmatprep.subr.bf16.mxu0 0
  %7511 = vmatpush1.bf16.msra.mxu0 0
  %7512 = vmatprep.subr.bf16.mxu0 0
  %7513 = vmatpush1.bf16.msra.mxu0 0
  %7514 = vmatprep.subr.bf16.mxu0 0
  %7515 = vmatpush1.bf16.msra.mxu0 0
  %7516 = vmatprep.subr.bf16.mxu0 0
  %7517 = vmatpush1.bf16.msra.mxu0 0
  %7518 = vmatprep.subr.bf16.mxu0 0
  %7519 = vmatpush1.bf16.msra.mxu0 0
  %7520 = vmatprep.subr.bf16.mxu0 0
  %7521 = vmatpush1.bf16.msra.mxu0 0
  %7522 = vmatprep.subr.bf16.mxu0 0
  %7523 = vmatpush1.bf16.msra.mxu0 0
  %7524 = vmatprep.subr.bf16.mxu0 0
  %7525 = vmatpush1.bf16.msra.mxu0 0
  %7526 = vmatprep.subr.bf16.mxu0 0
  %7527 = vmatpush1.bf16.msra.mxu0 0
  %7528 = vmatprep.subr.bf16.mxu0 0
  %7529 = vmatpush1.bf16.msra.mxu0 0
  %7530 = vmatprep.mubr.bf16.mxu0 0
  %7531 = vmatmul.mubr.bf16.gmra.mrb[0].mxu0 %v7490
  %v7532 = vpop.f32.mrb[0].mxu0
  %v7533 = vadd.f32 %v5365, %v7532
  %v7534 = vpop.f32.mrb[0].mxu0
  %v7535 = vpop.f32.mrb[0].mxu0
  %v7536 = vadd.f32 %v5365, %v7535
  %v7537 = vpop.f32.mrb[0].mxu0
  %7538 = vmatprep.mubr.bf16.mxu0 0
  %7539 = vmatmul.mubr.bf16.gmra.mrb[0].mxu0 %v7493
  %v7540 = vpop.f32.mrb[0].mxu0
  %v7541 = vadd.f32 %v5365, %v7540
  %v7542 = vpop.f32.mrb[0].mxu0
  %v7543 = vpop.f32.mrb[0].mxu0
  %v7544 = vadd.f32 %v5365, %v7543
  %v7545 = vpop.f32.mrb[0].mxu0
  %7546 = vmatprep.mubr.bf16.mxu0 0
  %7547 = vmatmul.mubr.bf16.gmra.mrb[0].mxu0 %v7496
  %v7548 = vpop.f32.mrb[0].mxu0
  %v7549 = vadd.f32 %v5365, %v7548
  %v7550 = vpop.f32.mrb[0].mxu0
  %v7551 = vpop.f32.mrb[0].mxu0
  %v7552 = vpop.f32.mrb[0].mxu0
  %7553 = vdwg.mxu0
  %7555 = vset.pattern.permute.xlu0 0
  %7556 = vperm.xlu0 %7555, %v7285
  %v7557 = vpop.permute.xlu0 %7556
  %7560 = vset.pattern.permute.xlu0 0
  %7561 = vperm.xlu0 %7560, %v7286
  %v7562 = vpop.permute.xlu0 %7561
  %7565 = vset.pattern.permute.xlu0 0
  %7566 = vperm.xlu0 %7565, %v7287
  %v7567 = vpop.permute.xlu0 %7566
  %7570 = vset.pattern.permute.xlu0 0
  %7571 = vperm.xlu0 %7570, %v7288
  %v7572 = vpop.permute.xlu0 %7571
  %7575 = vset.pattern.permute.xlu0 0
  %7576 = vperm.xlu0 %7575, %v7289
  %v7577 = vpop.permute.xlu0 %7576
  %v7579 = vmul.f32 %v7533, %v7557
  %v7580 = vmul.f32 %v7536, %v7562
  %v7581 = vmul.f32 %v7541, %v7567
  %v7582 = vmul.f32 %v7544, %v7572
  %v7583 = vmul.f32 %v7549, %v7577
  %v7584 = vpack.c.bf16 %v7580, %v7579
  %v7585 = vpack.c.bf16 %v7582, %v7581
  %v7586 = vpack.c.bf16 %v7583, %v7583
  %v7588 = vsel %vm5482, %v7586, 0
  %7590 = vmatprep.subr.bf16.mxu0 0
  %7591 = vmatpush1.bf16.msra.mxu0 %v7584
  %7592 = vmatprep.subr.bf16.mxu0 0
  %7593 = vmatpush1.bf16.msra.mxu0 %v7585
  %7594 = vmatprep.subr.bf16.mxu0 0
  %7595 = vmatpush1.bf16.msra.mxu0 %v7588
  %7596 = vmatprep.subr.bf16.mxu0 0
  %7597 = vmatpush1.bf16.msra.mxu0 0
  %7598 = vmatprep.subr.bf16.mxu0 0
  %7599 = vmatpush1.bf16.msra.mxu0 0
  %7600 = vmatprep.subr.bf16.mxu0 0
  %7601 = vmatpush1.bf16.msra.mxu0 0
  %7602 = vmatprep.subr.bf16.mxu0 0
  %7603 = vmatpush1.bf16.msra.mxu0 0
  %7604 = vmatprep.subr.bf16.mxu0 0
  %7605 = vmatpush1.bf16.msra.mxu0 0
  %7606 = vmatprep.subr.bf16.mxu0 0
  %7607 = vmatpush1.bf16.msra.mxu0 0
  %7608 = vmatprep.subr.bf16.mxu0 0
  %7609 = vmatpush1.bf16.msra.mxu0 0
  %7610 = vmatprep.subr.bf16.mxu0 0
  %7611 = vmatpush1.bf16.msra.mxu0 0
  %7612 = vmatprep.subr.bf16.mxu0 0
  %7613 = vmatpush1.bf16.msra.mxu0 0
  %7614 = vmatprep.subr.bf16.mxu0 0
  %7615 = vmatpush1.bf16.msra.mxu0 0
  %7616 = vmatprep.subr.bf16.mxu0 0
  %7617 = vmatpush1.bf16.msra.mxu0 0
  %7618 = vmatprep.subr.bf16.mxu0 0
  %7619 = vmatpush1.bf16.msra.mxu0 0
  %7620 = vmatprep.subr.bf16.mxu0 0
  %7621 = vmatpush1.bf16.msra.mxu0 0
  %7622 = vmatprep.mubr.bf16.mxu0 0
  %7623 = vmatmul.mubr.bf16.gmra.mrb[0].mxu0 %v5480
  %v7624 = vpop.f32.mrb[0].mxu0
  %v7625 = vadd.f32 0.0, %v7624
  %v7626 = vpop.f32.mrb[0].mxu0
  %v7627 = vpop.f32.mrb[0].mxu0
  %v7628 = vpop.f32.mrb[0].mxu0
  %7629 = vdwg.mxu0
  %v7631 = vsel %vm1781, %v7625, 0
  %7633 = vmatprep.subr.mxu0 0.0
  %7634 = vmatpush1.msra.mxu0 %v7631
  %7635 = vmatprep.subr.mxu0 0.0
  %7636 = vmatpush1.msra.mxu0 0.0
  %7637 = vmatprep.subr.mxu0 0.0
  %7638 = vmatpush1.msra.mxu0 0.0
  %7639 = vmatprep.subr.mxu0 0.0
  %7640 = vmatpush1.msra.mxu0 0.0
  %7641 = vmatprep.subr.mxu0 0.0
  %7642 = vmatpush1.msra.mxu0 0.0
  %7643 = vmatprep.subr.mxu0 0.0
  %7644 = vmatpush1.msra.mxu0 0.0
  %7645 = vmatprep.subr.mxu0 0.0
  %7646 = vmatpush1.msra.mxu0 0.0
  %7647 = vmatprep.subr.mxu0 0.0
  %7648 = vmatpush1.msra.mxu0 0.0
  %7649 = vmatprep.subr.mxu0 0.0
  %7650 = vmatpush1.msra.mxu0 0.0
  %7651 = vmatprep.subr.mxu0 0.0
  %7652 = vmatpush1.msra.mxu0 0.0
  %7653 = vmatprep.subr.mxu0 0.0
  %7654 = vmatpush1.msra.mxu0 0.0
  %7655 = vmatprep.subr.mxu0 0.0
  %7656 = vmatpush1.msra.mxu0 0.0
  %7657 = vmatprep.subr.mxu0 0.0
  %7658 = vmatpush1.msra.mxu0 0.0
  %7659 = vmatprep.subr.mxu0 0.0
  %7660 = vmatpush1.msra.mxu0 0.0
  %7661 = vmatprep.subr.mxu0 0.0
  %7662 = vmatpush1.msra.mxu0 0.0
  %7663 = vmatprep.subr.mxu0 0.0
  %7664 = vmatpush1.msra.mxu0 0.0
  %7665 = vmatprep.subr.mxu0 0.0
  %7666 = vmatpush1.msra.mxu0 0.0
  %7667 = vmatprep.subr.mxu0 0.0
  %7668 = vmatpush1.msra.mxu0 0.0
  %7669 = vmatprep.subr.mxu0 0.0
  %7670 = vmatpush1.msra.mxu0 0.0
  %7671 = vmatprep.subr.mxu0 0.0
  %7672 = vmatpush1.msra.mxu0 0.0
  %7673 = vmatprep.subr.mxu0 0.0
  %7674 = vmatpush1.msra.mxu0 0.0
  %7675 = vmatprep.subr.mxu0 0.0
  %7676 = vmatpush1.msra.mxu0 0.0
  %7677 = vmatprep.subr.mxu0 0.0
  %7678 = vmatpush1.msra.mxu0 0.0
  %7679 = vmatprep.subr.mxu0 0.0
  %7680 = vmatpush1.msra.mxu0 0.0
  %7681 = vmatprep.subr.mxu0 0.0
  %7682 = vmatpush1.msra.mxu0 0.0
  %7683 = vmatprep.subr.mxu0 0.0
  %7684 = vmatpush1.msra.mxu0 0.0
  %7685 = vmatprep.subr.mxu0 0.0
  %7686 = vmatpush1.msra.mxu0 0.0
  %7687 = vmatprep.subr.mxu0 0.0
  %7688 = vmatpush1.msra.mxu0 0.0
  %7689 = vmatprep.subr.mxu0 0.0
  %7690 = vmatpush1.msra.mxu0 0.0
  %7691 = vmatprep.subr.mxu0 0.0
  %7692 = vmatpush1.msra.mxu0 0.0
  %7693 = vmatprep.subr.mxu0 0.0
  %7694 = vmatpush1.msra.mxu0 0.0
  %7695 = vmatprep.subr.mxu0 0.0
  %7696 = vmatpush1.msra.mxu0 0.0
  %7697 = vmatprep.mubr.f32.mxu0 0.0
  %7698 = vmatmul.mubr.f32.gmra.mrb[0].mxu0 %v5530
  %v7699 = vpop.f32.mrb[0].mxu0
  %v7700 = vadd.f32 0.0, %v7699
  %v7701 = vpop.f32.mrb[0].mxu0
  %7702 = vmatprep.mubr.f32.mxu0 0.0
  %7703 = vmatmul.mubr.f32.gmra.mrb[0].mxu0 %v5533
  %v7704 = vpop.f32.mrb[0].mxu0
  %v7705 = vadd.f32 0.0, %v7704
  %v7706 = vpop.f32.mrb[0].mxu0
  %7707 = vmatprep.mubr.f32.mxu0 0.0
  %7708 = vmatmul.mubr.f32.gmra.mrb[0].mxu0 %v5536
  %v7709 = vpop.f32.mrb[0].mxu0
  %v7710 = vadd.f32 0.0, %v7709
  %v7711 = vpop.f32.mrb[0].mxu0
  %7712 = vdwg.mxu0
  %v7713 = vadd.f32 %v7086, %v7700
  %v7714 = vadd.f32 %v7089, %v7705
  %v7715 = vadd.f32 %v7094, %v7710
  %v7716 = vpack.c.bf16 %v7714, %v7713
  %v7717 = vpack.c.bf16 %v7715, %v7715
  %v7719 = vsel %vm1603, %v7716, 0
  %v7722 = vsel %vm1603, %v7717, 0
  %7724 = vmatprep.subr.bf16.mxu0 0
  %7725 = vmatpush1.bf16.msra.mxu0 %v5645
  %7726 = vmatprep.subr.bf16.mxu0 0
  %7727 = vmatpush1.bf16.msra.mxu0 %v5646
  %7728 = vmatprep.subr.bf16.mxu0 0
  %7729 = vmatpush1.bf16.msra.mxu0 0
  %7730 = vmatprep.subr.bf16.mxu0 0
  %7731 = vmatpush1.bf16.msra.mxu0 0
  %7732 = vmatprep.subr.bf16.mxu0 0
  %7733 = vmatpush1.bf16.msra.mxu0 0
  %7734 = vmatprep.subr.bf16.mxu0 0
  %7735 = vmatpush1.bf16.msra.mxu0 0
  %7736 = vmatprep.subr.bf16.mxu0 0
  %7737 = vmatpush1.bf16.msra.mxu0 0
  %7738 = vmatprep.subr.bf16.mxu0 0
  %7739 = vmatpush1.bf16.msra.mxu0 0
  %7740 = vmatprep.subr.bf16.mxu0 0
  %7741 = vmatpush1.bf16.msra.mxu0 0
  %7742 = vmatprep.subr.bf16.mxu0 0
  %7743 = vmatpush1.bf16.msra.mxu0 0
  %7744 = vmatprep.subr.bf16.mxu0 0
  %7745 = vmatpush1.bf16.msra.mxu0 0
  %7746 = vmatprep.subr.bf16.mxu0 0
  %7747 = vmatpush1.bf16.msra.mxu0 0
  %7748 = vmatprep.subr.bf16.mxu0 0
  %7749 = vmatpush1.bf16.msra.mxu0 0
  %7750 = vmatprep.subr.bf16.mxu0 0
  %7751 = vmatpush1.bf16.msra.mxu0 0
  %7752 = vmatprep.subr.bf16.mxu0 0
  %7753 = vmatpush1.bf16.msra.mxu0 0
  %7754 = vmatprep.subr.bf16.mxu0 0
  %7755 = vmatpush1.bf16.msra.mxu0 0
  %7756 = vmatprep.mubr.bf16.mxu0 0
  %7757 = vmatmul.mubr.bf16.gmra.mrb[0].mxu0 %v7719
  %v7758 = vpop.f32.mrb[0].mxu0
  %v7759 = vadd.f32 %v5635, %v7758
  %v7760 = vpop.f32.mrb[0].mxu0
  %v7761 = vpop.f32.mrb[0].mxu0
  %v7762 = vadd.f32 %v5635, %v7761
  %v7763 = vpop.f32.mrb[0].mxu0
  %7764 = vmatprep.mubr.bf16.mxu0 0
  %7765 = vmatmul.mubr.bf16.gmra.mrb[0].mxu0 %v7722
  %v7766 = vpop.f32.mrb[0].mxu0
  %v7767 = vadd.f32 %v5635, %v7766
  %v7768 = vpop.f32.mrb[0].mxu0
  %v7769 = vpop.f32.mrb[0].mxu0
  %v7770 = vpop.f32.mrb[0].mxu0
  %7771 = vdwg.mxu0
  %v7772 = vmax.f32 %v7759, 0.0
  %v7773 = vmax.f32 %v7762, 0.0
  %v7774 = vmax.f32 %v7767, 0.0
  %v7775 = vpack.c.bf16 %v7773, %v7772
  %v7776 = vpack.c.bf16 %v7774, %v7774
  %v7778 = vsel %vm1603, %v7775, 0
  %v7781 = vsel %vm1603, %v7776, 0
  %7783 = vmatprep.subr.bf16.mxu0 0
  %7784 = vmatpush1.bf16.msra.mxu0 %v5727
  %7785 = vmatprep.subr.bf16.mxu0 0
  %7786 = vmatpush1.bf16.msra.mxu0 %v5728
  %7787 = vmatprep.subr.bf16.mxu0 0
  %7788 = vmatpush1.bf16.msra.mxu0 0
  %7789 = vmatprep.subr.bf16.mxu0 0
  %7790 = vmatpush1.bf16.msra.mxu0 0
  %7791 = vmatprep.subr.bf16.mxu0 0
  %7792 = vmatpush1.bf16.msra.mxu0 0
  %7793 = vmatprep.subr.bf16.mxu0 0
  %7794 = vmatpush1.bf16.msra.mxu0 0
  %7795 = vmatprep.subr.bf16.mxu0 0
  %7796 = vmatpush1.bf16.msra.mxu0 0
  %7797 = vmatprep.subr.bf16.mxu0 0
  %7798 = vmatpush1.bf16.msra.mxu0 0
  %7799 = vmatprep.subr.bf16.mxu0 0
  %7800 = vmatpush1.bf16.msra.mxu0 0
  %7801 = vmatprep.subr.bf16.mxu0 0
  %7802 = vmatpush1.bf16.msra.mxu0 0
  %7803 = vmatprep.subr.bf16.mxu0 0
  %7804 = vmatpush1.bf16.msra.mxu0 0
  %7805 = vmatprep.subr.bf16.mxu0 0
  %7806 = vmatpush1.bf16.msra.mxu0 0
  %7807 = vmatprep.subr.bf16.mxu0 0
  %7808 = vmatpush1.bf16.msra.mxu0 0
  %7809 = vmatprep.subr.bf16.mxu0 0
  %7810 = vmatpush1.bf16.msra.mxu0 0
  %7811 = vmatprep.subr.bf16.mxu0 0
  %7812 = vmatpush1.bf16.msra.mxu0 0
  %7813 = vmatprep.subr.bf16.mxu0 0
  %7814 = vmatpush1.bf16.msra.mxu0 0
  %7815 = vmatprep.mubr.bf16.mxu0 0
  %7816 = vmatmul.mubr.bf16.gmra.mrb[0].mxu0 %v7778
  %v7817 = vpop.f32.mrb[0].mxu0
  %v7818 = vadd.f32 %v5717, %v7817
  %v7819 = vpop.f32.mrb[0].mxu0
  %v7820 = vpop.f32.mrb[0].mxu0
  %v7821 = vadd.f32 %v5717, %v7820
  %v7822 = vpop.f32.mrb[0].mxu0
  %7823 = vmatprep.mubr.bf16.mxu0 0
  %7824 = vmatmul.mubr.bf16.gmra.mrb[0].mxu0 %v7781
  %v7825 = vpop.f32.mrb[0].mxu0
  %v7826 = vadd.f32 %v5717, %v7825
  %v7827 = vpop.f32.mrb[0].mxu0
  %v7828 = vpop.f32.mrb[0].mxu0
  %v7829 = vpop.f32.mrb[0].mxu0
  %7830 = vdwg.mxu0
  %v7831 = vmax.f32 %v7818, 0.0
  %v7832 = vmax.f32 %v7821, 0.0
  %v7833 = vmax.f32 %v7826, 0.0
  %v7834 = vpack.c.bf16 %v7832, %v7831
  %v7835 = vpack.c.bf16 %v7833, %v7833
  %v7837 = vsel %vm1397, %v7834, 0
  %v7840 = vsel %vm1397, %v7835, 0
  %7842 = vmatprep.subr.bf16.mxu0 0
  %7843 = vmatpush1.bf16.msra.mxu0 %v5821
  %7844 = vmatprep.subr.bf16.mxu0 0
  %7845 = vmatpush1.bf16.msra.mxu0 %v5822
  %7846 = vmatprep.subr.bf16.mxu0 0
  %7847 = vmatpush1.bf16.msra.mxu0 %v5823
  %7848 = vmatprep.subr.bf16.mxu0 0
  %7849 = vmatpush1.bf16.msra.mxu0 %v5824
  %7850 = vmatprep.subr.bf16.mxu0 0
  %7851 = vmatpush1.bf16.msra.mxu0 0
  %7852 = vmatprep.subr.bf16.mxu0 0
  %7853 = vmatpush1.bf16.msra.mxu0 0
  %7854 = vmatprep.subr.bf16.mxu0 0
  %7855 = vmatpush1.bf16.msra.mxu0 0
  %7856 = vmatprep.subr.bf16.mxu0 0
  %7857 = vmatpush1.bf16.msra.mxu0 0
  %7858 = vmatprep.subr.bf16.mxu0 0
  %7859 = vmatpush1.bf16.msra.mxu0 0
  %7860 = vmatprep.subr.bf16.mxu0 0
  %7861 = vmatpush1.bf16.msra.mxu0 0
  %7862 = vmatprep.subr.bf16.mxu0 0
  %7863 = vmatpush1.bf16.msra.mxu0 0
  %7864 = vmatprep.subr.bf16.mxu0 0
  %7865 = vmatpush1.bf16.msra.mxu0 0
  %7866 = vmatprep.subr.bf16.mxu0 0
  %7867 = vmatpush1.bf16.msra.mxu0 0
  %7868 = vmatprep.subr.bf16.mxu0 0
  %7869 = vmatpush1.bf16.msra.mxu0 0
  %7870 = vmatprep.subr.bf16.mxu0 0
  %7871 = vmatpush1.bf16.msra.mxu0 0
  %7872 = vmatprep.subr.bf16.mxu0 0
  %7873 = vmatpush1.bf16.msra.mxu0 0
  %7874 = vmatprep.mubr.bf16.mxu0 0
  %7875 = vmatmul.mubr.bf16.gmra.mrb[0].mxu0 %v7837
  %v7876 = vpop.f32.mrb[0].mxu0
  %v7877 = vadd.f32 %v5803, %v7876
  %v7878 = vpop.f32.mrb[0].mxu0
  %v7879 = vpop.f32.mrb[0].mxu0
  %v7880 = vadd.f32 %v5803, %v7879
  %v7881 = vpop.f32.mrb[0].mxu0
  %7882 = vmatprep.mubr.bf16.mxu0 0
  %7883 = vmatmul.mubr.bf16.gmra.mrb[0].mxu0 %v7840
  %v7884 = vpop.f32.mrb[0].mxu0
  %v7885 = vadd.f32 %v5803, %v7884
  %v7886 = vpop.f32.mrb[0].mxu0
  %v7887 = vpop.f32.mrb[0].mxu0
  %v7888 = vpop.f32.mrb[0].mxu0
  %7889 = vdwg.mxu0
  %v7890 = vsub.f32 0.0, %v7877
  %v7891 = vsub.f32 0.0, %v7880
  %v7892 = vsub.f32 0.0, %v7885
  %v7893 = vmul.f32 %v7890, 1.442695
  %v7894 = vpow.pop %v7893
  %v7895 = vmul.f32 %v7891, 1.442695
  %v7896 = vpow.pop %v7895
  %v7897 = vmul.f32 %v7892, 1.442695
  %v7898 = vpow.pop %v7897
  %v7899 = vadd.f32 %v7894, 1.0
  %v7900 = vadd.f32 %v7896, 1.0
  %v7901 = vadd.f32 %v7898, 1.0
  %v7902 = vrcp.pop %v7899
  %v7903 = vrcp.pop %v7900
  %v7904 = vrcp.pop %v7901
  %v7905 = vmax.f32 %v7902, 0.01
  %v7906 = vmax.f32 %v7903, 0.01
  %v7907 = vmax.f32 %v7904, 0.01
  %v7908 = vmin.f32 %v7905, 0.99
  %v7909 = vmin.f32 %v7906, 0.99
  %v7910 = vmin.f32 %v7907, 0.99
  %v7912 = vsel %vm256, %v7908, 0
  %v7915 = vsel %vm256, %v7909, 0
  %v7918 = vsel %vm256, %v7910, 0
  %7920 = vmatprep.subr.mxu0 0.0
  %7921 = vmatpush1.msra.mxu0 %v174
  %7922 = vmatprep.subr.mxu0 0.0
  %7923 = vmatpush1.msra.mxu0 %v175
  %7924 = vmatprep.subr.mxu0 0.0
  %7925 = vmatpush1.msra.mxu0 0.0
  %7926 = vmatprep.subr.mxu0 0.0
  %7927 = vmatpush1.msra.mxu0 0.0
  %7928 = vmatprep.subr.mxu0 0.0
  %7929 = vmatpush1.msra.mxu0 0.0
  %7930 = vmatprep.subr.mxu0 0.0
  %7931 = vmatpush1.msra.mxu0 0.0
  %7932 = vmatprep.subr.mxu0 0.0
  %7933 = vmatpush1.msra.mxu0 0.0
  %7934 = vmatprep.subr.mxu0 0.0
  %7935 = vmatpush1.msra.mxu0 0.0
  %7936 = vmatprep.subr.mxu0 0.0
  %7937 = vmatpush1.msra.mxu0 0.0
  %7938 = vmatprep.subr.mxu0 0.0
  %7939 = vmatpush1.msra.mxu0 0.0
  %7940 = vmatprep.subr.mxu0 0.0
  %7941 = vmatpush1.msra.mxu0 0.0
  %7942 = vmatprep.subr.mxu0 0.0
  %7943 = vmatpush1.msra.mxu0 0.0
  %7944 = vmatprep.subr.mxu0 0.0
  %7945 = vmatpush1.msra.mxu0 0.0
  %7946 = vmatprep.subr.mxu0 0.0
  %7947 = vmatpush1.msra.mxu0 0.0
  %7948 = vmatprep.subr.mxu0 0.0
  %7949 = vmatpush1.msra.mxu0 0.0
  %7950 = vmatprep.subr.mxu0 0.0
  %7951 = vmatpush1.msra.mxu0 0.0
  %7952 = vmatprep.subr.mxu0 0.0
  %7953 = vmatpush1.msra.mxu0 0.0
  %7954 = vmatprep.subr.mxu0 0.0
  %7955 = vmatpush1.msra.mxu0 0.0
  %7956 = vmatprep.subr.mxu0 0.0
  %7957 = vmatpush1.msra.mxu0 0.0
  %7958 = vmatprep.subr.mxu0 0.0
  %7959 = vmatpush1.msra.mxu0 0.0
  %7960 = vmatprep.subr.mxu0 0.0
  %7961 = vmatpush1.msra.mxu0 0.0
  %7962 = vmatprep.subr.mxu0 0.0
  %7963 = vmatpush1.msra.mxu0 0.0
  %7964 = vmatprep.subr.mxu0 0.0
  %7965 = vmatpush1.msra.mxu0 0.0
  %7966 = vmatprep.subr.mxu0 0.0
  %7967 = vmatpush1.msra.mxu0 0.0
  %7968 = vmatprep.subr.mxu0 0.0
  %7969 = vmatpush1.msra.mxu0 0.0
  %7970 = vmatprep.subr.mxu0 0.0
  %7971 = vmatpush1.msra.mxu0 0.0
  %7972 = vmatprep.subr.mxu0 0.0
  %7973 = vmatpush1.msra.mxu0 0.0
  %7974 = vmatprep.subr.mxu0 0.0
  %7975 = vmatpush1.msra.mxu0 0.0
  %7976 = vmatprep.subr.mxu0 0.0
  %7977 = vmatpush1.msra.mxu0 0.0
  %7978 = vmatprep.subr.mxu0 0.0
  %7979 = vmatpush1.msra.mxu0 0.0
  %7980 = vmatprep.subr.mxu0 0.0
  %7981 = vmatpush1.msra.mxu0 0.0
  %7982 = vmatprep.subr.mxu0 0.0
  %7983 = vmatpush1.msra.mxu0 0.0
  %7984 = vmatprep.mubr.f32.mxu0 0.0
  %7985 = vmatmul.mubr.f32.gmra.mrb[0].mxu0 %v7912
  %v7986 = vpop.f32.mrb[0].mxu0
  %v7987 = vadd.f32 0.0, %v7986
  %v7988 = vpop.f32.mrb[0].mxu0
  %7989 = vmatprep.mubr.f32.mxu0 0.0
  %7990 = vmatmul.mubr.f32.gmra.mrb[0].mxu0 %v7915
  %v7991 = vpop.f32.mrb[0].mxu0
  %v7992 = vadd.f32 0.0, %v7991
  %v7993 = vpop.f32.mrb[0].mxu0
  %7994 = vmatprep.mubr.f32.mxu0 0.0
  %7995 = vmatmul.mubr.f32.gmra.mrb[0].mxu0 %v7918
  %v7996 = vpop.f32.mrb[0].mxu0
  %v7997 = vadd.f32 0.0, %v7996
  %v7998 = vpop.f32.mrb[0].mxu0
  %7999 = vdwg.mxu0
  %8000 = vmatprep.subr.mxu0 0.0
  %8001 = vmatpush1.msra.mxu0 %v199
  %8002 = vmatprep.subr.mxu0 0.0
  %8003 = vmatpush1.msra.mxu0 %v200
  %8004 = vmatprep.subr.mxu0 0.0
  %8005 = vmatpush1.msra.mxu0 0.0
  %8006 = vmatprep.subr.mxu0 0.0
  %8007 = vmatpush1.msra.mxu0 0.0
  %8008 = vmatprep.subr.mxu0 0.0
  %8009 = vmatpush1.msra.mxu0 0.0
  %8010 = vmatprep.subr.mxu0 0.0
  %8011 = vmatpush1.msra.mxu0 0.0
  %8012 = vmatprep.subr.mxu0 0.0
  %8013 = vmatpush1.msra.mxu0 0.0
  %8014 = vmatprep.subr.mxu0 0.0
  %8015 = vmatpush1.msra.mxu0 0.0
  %8016 = vmatprep.subr.mxu0 0.0
  %8017 = vmatpush1.msra.mxu0 0.0
  %8018 = vmatprep.subr.mxu0 0.0
  %8019 = vmatpush1.msra.mxu0 0.0
  %8020 = vmatprep.subr.mxu0 0.0
  %8021 = vmatpush1.msra.mxu0 0.0
  %8022 = vmatprep.subr.mxu0 0.0
  %8023 = vmatpush1.msra.mxu0 0.0
  %8024 = vmatprep.subr.mxu0 0.0
  %8025 = vmatpush1.msra.mxu0 0.0
  %8026 = vmatprep.subr.mxu0 0.0
  %8027 = vmatpush1.msra.mxu0 0.0
  %8028 = vmatprep.subr.mxu0 0.0
  %8029 = vmatpush1.msra.mxu0 0.0
  %8030 = vmatprep.subr.mxu0 0.0
  %8031 = vmatpush1.msra.mxu0 0.0
  %8032 = vmatprep.subr.mxu0 0.0
  %8033 = vmatpush1.msra.mxu0 0.0
  %8034 = vmatprep.subr.mxu0 0.0
  %8035 = vmatpush1.msra.mxu0 0.0
  %8036 = vmatprep.subr.mxu0 0.0
  %8037 = vmatpush1.msra.mxu0 0.0
  %8038 = vmatprep.subr.mxu0 0.0
  %8039 = vmatpush1.msra.mxu0 0.0
  %8040 = vmatprep.subr.mxu0 0.0
  %8041 = vmatpush1.msra.mxu0 0.0
  %8042 = vmatprep.subr.mxu0 0.0
  %8043 = vmatpush1.msra.mxu0 0.0
  %8044 = vmatprep.subr.mxu0 0.0
  %8045 = vmatpush1.msra.mxu0 0.0
  %8046 = vmatprep.subr.mxu0 0.0
  %8047 = vmatpush1.msra.mxu0 0.0
  %8048 = vmatprep.subr.mxu0 0.0
  %8049 = vmatpush1.msra.mxu0 0.0
  %8050 = vmatprep.subr.mxu0 0.0
  %8051 = vmatpush1.msra.mxu0 0.0
  %8052 = vmatprep.subr.mxu0 0.0
  %8053 = vmatpush1.msra.mxu0 0.0
  %8054 = vmatprep.subr.mxu0 0.0
  %8055 = vmatpush1.msra.mxu0 0.0
  %8056 = vmatprep.subr.mxu0 0.0
  %8057 = vmatpush1.msra.mxu0 0.0
  %8058 = vmatprep.subr.mxu0 0.0
  %8059 = vmatpush1.msra.mxu0 0.0
  %8060 = vmatprep.subr.mxu0 0.0
  %8061 = vmatpush1.msra.mxu0 0.0
  %8062 = vmatprep.subr.mxu0 0.0
  %8063 = vmatpush1.msra.mxu0 0.0
  %8064 = vmatprep.mubr.f32.mxu0 0.0
  %8065 = vmatmul.mubr.f32.gmra.mrb[0].mxu0 %v7912
  %v8066 = vpop.f32.mrb[0].mxu0
  %v8067 = vadd.f32 0.0, %v8066
  %v8068 = vpop.f32.mrb[0].mxu0
  %8069 = vmatprep.mubr.f32.mxu0 0.0
  %8070 = vmatmul.mubr.f32.gmra.mrb[0].mxu0 %v7915
  %v8071 = vpop.f32.mrb[0].mxu0
  %v8072 = vadd.f32 0.0, %v8071
  %v8073 = vpop.f32.mrb[0].mxu0
  %8074 = vmatprep.mubr.f32.mxu0 0.0
  %8075 = vmatmul.mubr.f32.gmra.mrb[0].mxu0 %v7918
  %v8076 = vpop.f32.mrb[0].mxu0
  %v8077 = vadd.f32 0.0, %v8076
  %v8078 = vpop.f32.mrb[0].mxu0
  %8079 = vdwg.mxu0
  %v8080 = vlog2.pop %v7987
  %v8081 = vmul.f32 %v8080, 0.6931472
  %v8082 = vlog2.pop %v7992
  %v8083 = vmul.f32 %v8082, 0.6931472
  %v8084 = vlog2.pop %v7997
  %v8085 = vmul.f32 %v8084, 0.6931472
  %v8086 = vmul.f32 %v8081, -2.0
  %v8087 = vmul.f32 %v8083, -2.0
  %v8088 = vmul.f32 %v8085, -2.0
  %v8089 = vrsqrt.pop %v8086
  %v8090 = vmul.f32 %v8086, %v8089
  %vm8091 = vcmp.eq.f32.partialorder %v8086, inf
  %v8092 = vsel %vm8091, %v8086, %v8090
  %vm8093 = vcmp.eq.f32.partialorder %v8086, 0.0
  %v8094 = vand.u32 %v8086, 2147483648
  %v8095 = vsel %vm8093, %v8094, %v8092
  %v8096 = vrsqrt.pop %v8087
  %v8097 = vmul.f32 %v8087, %v8096
  %vm8098 = vcmp.eq.f32.partialorder %v8087, inf
  %v8099 = vsel %vm8098, %v8087, %v8097
  %vm8100 = vcmp.eq.f32.partialorder %v8087, 0.0
  %v8101 = vand.u32 %v8087, 2147483648
  %v8102 = vsel %vm8100, %v8101, %v8099
  %v8103 = vrsqrt.pop %v8088
  %v8104 = vmul.f32 %v8088, %v8103
  %vm8105 = vcmp.eq.f32.partialorder %v8088, inf
  %v8106 = vsel %vm8105, %v8088, %v8104
  %vm8107 = vcmp.eq.f32.partialorder %v8088, 0.0
  %v8108 = vand.u32 %v8088, 2147483648
  %v8109 = vsel %vm8107, %v8108, %v8106
  %v8110 = vmul.f32 %v8067, 4.0
  %v8111 = vmul.f32 %v8072, 4.0
  %v8112 = vmul.f32 %v8077, 4.0
  %vm8113 = vcmp.ge.f32.partialorder %v8110, 0.5
  %vm8114 = vcmp.ge.f32.partialorder %v8111, 0.5
  %vm8115 = vcmp.ge.f32.partialorder %v8112, 0.5
  %v8116 = vsel %vm8113, 1, 0
  %v8117 = vsel %vm8114, 1, 0
  %v8118 = vsel %vm8115, 1, 0
  %v8119 = vcvt.s32.f32 %v8116
  %v8120 = vcvt.s32.f32 %v8117
  %v8121 = vcvt.s32.f32 %v8118
  %vm8122 = vcmp.ge.f32.partialorder %v8110, 1.5
  %vm8123 = vcmp.ge.f32.partialorder %v8111, 1.5
  %vm8124 = vcmp.ge.f32.partialorder %v8112, 1.5
  %v8125 = vsel %vm8122, 1, 0
  %v8126 = vsel %vm8123, 1, 0
  %v8127 = vsel %vm8124, 1, 0
  %v8128 = vcvt.s32.f32 %v8125
  %v8129 = vcvt.s32.f32 %v8126
  %v8130 = vcvt.s32.f32 %v8127
  %v8131 = vadd.f32 %v8119, %v8128
  %v8132 = vadd.f32 %v8120, %v8129
  %v8133 = vadd.f32 %v8121, %v8130
  %vm8134 = vcmp.ge.f32.partialorder %v8110, 2.5
  %vm8135 = vcmp.ge.f32.partialorder %v8111, 2.5
  %vm8136 = vcmp.ge.f32.partialorder %v8112, 2.5
  %v8137 = vsel %vm8134, 1, 0
  %v8138 = vsel %vm8135, 1, 0
  %v8139 = vsel %vm8136, 1, 0
  %v8140 = vcvt.s32.f32 %v8137
  %v8141 = vcvt.s32.f32 %v8138
  %v8142 = vcvt.s32.f32 %v8139
  %v8143 = vadd.f32 %v8131, %v8140
  %v8144 = vadd.f32 %v8132, %v8141
  %v8145 = vadd.f32 %v8133, %v8142
  %vm8146 = vcmp.ge.f32.partialorder %v8110, 3.5
  %vm8147 = vcmp.ge.f32.partialorder %v8111, 3.5
  %vm8148 = vcmp.ge.f32.partialorder %v8112, 3.5
  %v8149 = vsel %vm8146, 1, 0
  %v8150 = vsel %vm8147, 1, 0
  %v8151 = vsel %vm8148, 1, 0
  %v8152 = vcvt.s32.f32 %v8149
  %v8153 = vcvt.s32.f32 %v8150
  %v8154 = vcvt.s32.f32 %v8151
  %v8155 = vadd.f32 %v8143, %v8152
  %v8156 = vadd.f32 %v8144, %v8153
  %v8157 = vadd.f32 %v8145, %v8154
  %v8158 = vsub.f32 %v8110, %v8155
  %v8159 = vsub.f32 %v8111, %v8156
  %v8160 = vsub.f32 %v8112, %v8157
  %v8161 = vmul.f32 %v8158, 1.5707964
  %v8162 = vmul.f32 %v8159, 1.5707964
  %v8163 = vmul.f32 %v8160, 1.5707964
  %v8164 = vmul.f32 %v8161, %v8161
  %v8165 = vmul.f32 %v8162, %v8162
  %v8166 = vmul.f32 %v8163, %v8163
  %v8167 = vmul.f32 %v8164, 2.4801588e-05
  %v8168 = vmul.f32 %v8165, 2.4801588e-05
  %v8169 = vmul.f32 %v8166, 2.4801588e-05
  %v8170 = vadd.f32 %v8167, -0.0013888889
  %v8171 = vadd.f32 %v8168, -0.0013888889
  %v8172 = vadd.f32 %v8169, -0.0013888889
  %v8173 = vmul.f32 %v8164, %v8170
  %v8174 = vmul.f32 %v8165, %v8171
  %v8175 = vmul.f32 %v8166, %v8172
  %v8176 = vadd.f32 %v8173, 0.041666668
  %v8177 = vadd.f32 %v8174, 0.041666668
  %v8178 = vadd.f32 %v8175, 0.041666668
  %v8179 = vmul.f32 %v8164, %v8176
  %v8180 = vmul.f32 %v8165, %v8177
  %v8181 = vmul.f32 %v8166, %v8178
  %v8182 = vadd.f32 %v8179, -0.5
  %v8183 = vadd.f32 %v8180, -0.5
  %v8184 = vadd.f32 %v8181, -0.5
  %v8185 = vmul.f32 %v8164, %v8182
  %v8186 = vmul.f32 %v8165, %v8183
  %v8187 = vmul.f32 %v8166, %v8184
  %v8188 = vadd.f32 %v8185, 1.0
  %v8189 = vadd.f32 %v8186, 1.0
  %v8190 = vadd.f32 %v8187, 1.0
  %v8191 = vmul.f32 %v8164, 2.7557319e-06
  %v8192 = vmul.f32 %v8165, 2.7557319e-06
  %v8193 = vmul.f32 %v8166, 2.7557319e-06
  %v8194 = vadd.f32 %v8191, -0.0001984127
  %v8195 = vadd.f32 %v8192, -0.0001984127
  %v8196 = vadd.f32 %v8193, -0.0001984127
  %v8197 = vmul.f32 %v8164, %v8194
  %v8198 = vmul.f32 %v8165, %v8195
  %v8199 = vmul.f32 %v8166, %v8196
  %v8200 = vadd.f32 %v8197, 0.008333334
  %v8201 = vadd.f32 %v8198, 0.008333334
  %v8202 = vadd.f32 %v8199, 0.008333334
  %v8203 = vmul.f32 %v8164, %v8200
  %v8204 = vmul.f32 %v8165, %v8201
  %v8205 = vmul.f32 %v8166, %v8202
  %v8206 = vadd.f32 %v8203, -0.16666667
  %v8207 = vadd.f32 %v8204, -0.16666667
  %v8208 = vadd.f32 %v8205, -0.16666667
  %v8209 = vmul.f32 %v8164, %v8206
  %v8210 = vmul.f32 %v8165, %v8207
  %v8211 = vmul.f32 %v8166, %v8208
  %v8212 = vadd.f32 %v8209, 1.0
  %v8213 = vadd.f32 %v8210, 1.0
  %v8214 = vadd.f32 %v8211, 1.0
  %v8215 = vmul.f32 %v8161, %v8212
  %v8216 = vmul.f32 %v8162, %v8213
  %v8217 = vmul.f32 %v8163, %v8214
  %vm8218 = vcmp.ge.f32.partialorder %v8155, 3.5
  %vm8219 = vcmp.ge.f32.partialorder %v8156, 3.5
  %vm8220 = vcmp.ge.f32.partialorder %v8157, 3.5
  %v8221 = vsub.f32 %v8155, 4.0
  %v8222 = vsub.f32 %v8156, 4.0
  %v8223 = vsub.f32 %v8157, 4.0
  %v8224 = vsel %vm8218, %v8221, %v8155
  %v8225 = vsel %vm8219, %v8222, %v8156
  %v8226 = vsel %vm8220, %v8223, %v8157
  %vm8227 = vcmp.eq.f32.partialorder %v8224, 0.0
  %vm8228 = vcmp.eq.f32.partialorder %v8225, 0.0
  %vm8229 = vcmp.eq.f32.partialorder %v8226, 0.0
  %vm8230 = vcmp.eq.f32.partialorder %v8224, 1.0
  %vm8231 = vcmp.eq.f32.partialorder %v8225, 1.0
  %vm8232 = vcmp.eq.f32.partialorder %v8226, 1.0
  %v8233 = vsub.f32 0.0, %v8215
  %v8234 = vsub.f32 0.0, %v8216
  %v8235 = vsub.f32 0.0, %v8217
  %vm8236 = vcmp.eq.f32.partialorder %v8224, 2.0
  %vm8237 = vcmp.eq.f32.partialorder %v8225, 2.0
  %vm8238 = vcmp.eq.f32.partialorder %v8226, 2.0
  %v8239 = vsub.f32 0.0, %v8188
  %v8240 = vsub.f32 0.0, %v8189
  %v8241 = vsub.f32 0.0, %v8190
  %v8242 = vsel %vm8236, %v8239, %v8215
  %v8243 = vsel %vm8237, %v8240, %v8216
  %v8244 = vsel %vm8238, %v8241, %v8217
  %v8245 = vsel %vm8230, %v8233, %v8242
  %v8246 = vsel %vm8231, %v8234, %v8243
  %v8247 = vsel %vm8232, %v8235, %v8244
  %v8248 = vsel %vm8227, %v8188, %v8245
  %v8249 = vsel %vm8228, %v8189, %v8246
  %v8250 = vsel %vm8229, %v8190, %v8247
  %v8251 = vsel %vm8236, %v8233, %v8239
  %v8252 = vsel %vm8237, %v8234, %v8240
  %v8253 = vsel %vm8238, %v8235, %v8241
  %v8254 = vsel %vm8230, %v8188, %v8251
  %v8255 = vsel %vm8231, %v8189, %v8252
  %v8256 = vsel %vm8232, %v8190, %v8253
  %v8257 = vsel %vm8227, %v8215, %v8254
  %v8258 = vsel %vm8228, %v8216, %v8255
  %v8259 = vsel %vm8229, %v8217, %v8256
  %v8260 = vmul.f32 %v8095, %v8248
  %v8261 = vmul.f32 %v8102, %v8249
  %v8262 = vmul.f32 %v8109, %v8250
  %v8263 = vmul.f32 %v8095, %v8257
  %v8264 = vmul.f32 %v8102, %v8258
  %v8265 = vmul.f32 %v8109, %v8259
  %v8267 = vsel %vm6259, %v8263, 0
  %v8270 = vsel %vm6259, %v8264, 0
  %v8273 = vsel %vm6259, %v8265, 0
  %8275 = vmatprep.subr.mxu0 0.0
  %8276 = vmatpush1.msra.mxu0 %v235
  %8277 = vmatprep.subr.mxu0 0.0
  %8278 = vmatpush1.msra.mxu0 0.0
  %8279 = vmatprep.subr.mxu0 0.0
  %8280 = vmatpush1.msra.mxu0 0.0
  %8281 = vmatprep.subr.mxu0 0.0
  %8282 = vmatpush1.msra.mxu0 0.0
  %8283 = vmatprep.subr.mxu0 0.0
  %8284 = vmatpush1.msra.mxu0 0.0
  %8285 = vmatprep.subr.mxu0 0.0
  %8286 = vmatpush1.msra.mxu0 0.0
  %8287 = vmatprep.subr.mxu0 0.0
  %8288 = vmatpush1.msra.mxu0 0.0
  %8289 = vmatprep.subr.mxu0 0.0
  %8290 = vmatpush1.msra.mxu0 0.0
  %8291 = vmatprep.subr.mxu0 0.0
  %8292 = vmatpush1.msra.mxu0 0.0
  %8293 = vmatprep.subr.mxu0 0.0
  %8294 = vmatpush1.msra.mxu0 0.0
  %8295 = vmatprep.subr.mxu0 0.0
  %8296 = vmatpush1.msra.mxu0 0.0
  %8297 = vmatprep.subr.mxu0 0.0
  %8298 = vmatpush1.msra.mxu0 0.0
  %8299 = vmatprep.subr.mxu0 0.0
  %8300 = vmatpush1.msra.mxu0 0.0
  %8301 = vmatprep.subr.mxu0 0.0
  %8302 = vmatpush1.msra.mxu0 0.0
  %8303 = vmatprep.subr.mxu0 0.0
  %8304 = vmatpush1.msra.mxu0 0.0
  %8305 = vmatprep.subr.mxu0 0.0
  %8306 = vmatpush1.msra.mxu0 0.0
  %8307 = vmatprep.subr.mxu0 0.0
  %8308 = vmatpush1.msra.mxu0 0.0
  %8309 = vmatprep.subr.mxu0 0.0
  %8310 = vmatpush1.msra.mxu0 0.0
  %8311 = vmatprep.subr.mxu0 0.0
  %8312 = vmatpush1.msra.mxu0 0.0
  %8313 = vmatprep.subr.mxu0 0.0
  %8314 = vmatpush1.msra.mxu0 0.0
  %8315 = vmatprep.subr.mxu0 0.0
  %8316 = vmatpush1.msra.mxu0 0.0
  %8317 = vmatprep.subr.mxu0 0.0
  %8318 = vmatpush1.msra.mxu0 0.0
  %8319 = vmatprep.subr.mxu0 0.0
  %8320 = vmatpush1.msra.mxu0 0.0
  %8321 = vmatprep.subr.mxu0 0.0
  %8322 = vmatpush1.msra.mxu0 0.0
  %8323 = vmatprep.subr.mxu0 0.0
  %8324 = vmatpush1.msra.mxu0 0.0
  %8325 = vmatprep.subr.mxu0 0.0
  %8326 = vmatpush1.msra.mxu0 0.0
  %8327 = vmatprep.subr.mxu0 0.0
  %8328 = vmatpush1.msra.mxu0 0.0
  %8329 = vmatprep.subr.mxu0 0.0
  %8330 = vmatpush1.msra.mxu0 0.0
  %8331 = vmatprep.subr.mxu0 0.0
  %8332 = vmatpush1.msra.mxu0 0.0
  %8333 = vmatprep.subr.mxu0 0.0
  %8334 = vmatpush1.msra.mxu0 0.0
  %8335 = vmatprep.subr.mxu0 0.0
  %8336 = vmatpush1.msra.mxu0 0.0
  %8337 = vmatprep.subr.mxu0 0.0
  %8338 = vmatpush1.msra.mxu0 0.0
  %8339 = vmatprep.mubr.f32.mxu0 0.0
  %8340 = vmatmul.mubr.f32.gmra.mrb[0].mxu0 %v8267
  %v8341 = vpop.f32.mrb[0].mxu0
  %v8342 = vadd.f32 0.0, %v8341
  %v8343 = vpop.f32.mrb[0].mxu0
  %8344 = vmatprep.mubr.f32.mxu0 0.0
  %8345 = vmatmul.mubr.f32.gmra.mrb[0].mxu0 %v8270
  %v8346 = vpop.f32.mrb[0].mxu0
  %v8347 = vadd.f32 0.0, %v8346
  %v8348 = vpop.f32.mrb[0].mxu0
  %8349 = vmatprep.mubr.f32.mxu0 0.0
  %8350 = vmatmul.mubr.f32.gmra.mrb[0].mxu0 %v8273
  %v8351 = vpop.f32.mrb[0].mxu0
  %v8352 = vadd.f32 0.0, %v8351
  %v8353 = vpop.f32.mrb[0].mxu0
  %8354 = vdwg.mxu0
  %v8356 = vsel %vm6259, %v8260, 0
  %v8359 = vsel %vm6259, %v8261, 0
  %v8362 = vsel %vm6259, %v8262, 0
  %8364 = vmatprep.subr.mxu0 0.0
  %8365 = vmatpush1.msra.mxu0 %v219
  %8366 = vmatprep.subr.mxu0 0.0
  %8367 = vmatpush1.msra.mxu0 0.0
  %8368 = vmatprep.subr.mxu0 0.0
  %8369 = vmatpush1.msra.mxu0 0.0
  %8370 = vmatprep.subr.mxu0 0.0
  %8371 = vmatpush1.msra.mxu0 0.0
  %8372 = vmatprep.subr.mxu0 0.0
  %8373 = vmatpush1.msra.mxu0 0.0
  %8374 = vmatprep.subr.mxu0 0.0
  %8375 = vmatpush1.msra.mxu0 0.0
  %8376 = vmatprep.subr.mxu0 0.0
  %8377 = vmatpush1.msra.mxu0 0.0
  %8378 = vmatprep.subr.mxu0 0.0
  %8379 = vmatpush1.msra.mxu0 0.0
  %8380 = vmatprep.subr.mxu0 0.0
  %8381 = vmatpush1.msra.mxu0 0.0
  %8382 = vmatprep.subr.mxu0 0.0
  %8383 = vmatpush1.msra.mxu0 0.0
  %8384 = vmatprep.subr.mxu0 0.0
  %8385 = vmatpush1.msra.mxu0 0.0
  %8386 = vmatprep.subr.mxu0 0.0
  %8387 = vmatpush1.msra.mxu0 0.0
  %8388 = vmatprep.subr.mxu0 0.0
  %8389 = vmatpush1.msra.mxu0 0.0
  %8390 = vmatprep.subr.mxu0 0.0
  %8391 = vmatpush1.msra.mxu0 0.0
  %8392 = vmatprep.subr.mxu0 0.0
  %8393 = vmatpush1.msra.mxu0 0.0
  %8394 = vmatprep.subr.mxu0 0.0
  %8395 = vmatpush1.msra.mxu0 0.0
  %8396 = vmatprep.subr.mxu0 0.0
  %8397 = vmatpush1.msra.mxu0 0.0
  %8398 = vmatprep.subr.mxu0 0.0
  %8399 = vmatpush1.msra.mxu0 0.0
  %8400 = vmatprep.subr.mxu0 0.0
  %8401 = vmatpush1.msra.mxu0 0.0
  %8402 = vmatprep.subr.mxu0 0.0
  %8403 = vmatpush1.msra.mxu0 0.0
  %8404 = vmatprep.subr.mxu0 0.0
  %8405 = vmatpush1.msra.mxu0 0.0
  %8406 = vmatprep.subr.mxu0 0.0
  %8407 = vmatpush1.msra.mxu0 0.0
  %8408 = vmatprep.subr.mxu0 0.0
  %8409 = vmatpush1.msra.mxu0 0.0
  %8410 = vmatprep.subr.mxu0 0.0
  %8411 = vmatpush1.msra.mxu0 0.0
  %8412 = vmatprep.subr.mxu0 0.0
  %8413 = vmatpush1.msra.mxu0 0.0
  %8414 = vmatprep.subr.mxu0 0.0
  %8415 = vmatpush1.msra.mxu0 0.0
  %8416 = vmatprep.subr.mxu0 0.0
  %8417 = vmatpush1.msra.mxu0 0.0
  %8418 = vmatprep.subr.mxu0 0.0
  %8419 = vmatpush1.msra.mxu0 0.0
  %8420 = vmatprep.subr.mxu0 0.0
  %8421 = vmatpush1.msra.mxu0 0.0
  %8422 = vmatprep.subr.mxu0 0.0
  %8423 = vmatpush1.msra.mxu0 0.0
  %8424 = vmatprep.subr.mxu0 0.0
  %8425 = vmatpush1.msra.mxu0 0.0
  %8426 = vmatprep.subr.mxu0 0.0
  %8427 = vmatpush1.msra.mxu0 0.0
  %8428 = vmatprep.mubr.f32.mxu0 0.0
  %8429 = vmatmul.mubr.f32.gmra.mrb[0].mxu0 %v8356
  %v8430 = vpop.f32.mrb[0].mxu0
  %v8431 = vadd.f32 %v8342, %v8430
  %v8432 = vpop.f32.mrb[0].mxu0
  %8433 = vmatprep.mubr.f32.mxu0 0.0
  %8434 = vmatmul.mubr.f32.gmra.mrb[0].mxu0 %v8359
  %v8435 = vpop.f32.mrb[0].mxu0
  %v8436 = vadd.f32 %v8347, %v8435
  %v8437 = vpop.f32.mrb[0].mxu0
  %8438 = vmatprep.mubr.f32.mxu0 0.0
  %8439 = vmatmul.mubr.f32.gmra.mrb[0].mxu0 %v8362
  %v8440 = vpop.f32.mrb[0].mxu0
  %v8441 = vadd.f32 %v8352, %v8440
  %v8442 = vpop.f32.mrb[0].mxu0
  %8443 = vdwg.mxu0
  %v8444 = vpack.c.bf16 %v8436, %v8431
  %v8445 = vpack.c.bf16 %v8441, %v8441
  %v8447 = vsel %vm256, %v8444, 0
  %v8450 = vsel %vm256, %v8445, 0
  %8452 = vmatprep.subr.bf16.mxu0 0
  %8453 = vmatpush1.bf16.msra.mxu0 %v6450
  %8454 = vmatprep.subr.bf16.mxu0 0
  %8455 = vmatpush1.bf16.msra.mxu0 0
  %8456 = vmatprep.subr.bf16.mxu0 0
  %8457 = vmatpush1.bf16.msra.mxu0 0
  %8458 = vmatprep.subr.bf16.mxu0 0
  %8459 = vmatpush1.bf16.msra.mxu0 0
  %8460 = vmatprep.subr.bf16.mxu0 0
  %8461 = vmatpush1.bf16.msra.mxu0 0
  %8462 = vmatprep.subr.bf16.mxu0 0
  %8463 = vmatpush1.bf16.msra.mxu0 0
  %8464 = vmatprep.subr.bf16.mxu0 0
  %8465 = vmatpush1.bf16.msra.mxu0 0
  %8466 = vmatprep.subr.bf16.mxu0 0
  %8467 = vmatpush1.bf16.msra.mxu0 0
  %8468 = vmatprep.subr.bf16.mxu0 0
  %8469 = vmatpush1.bf16.msra.mxu0 0
  %8470 = vmatprep.subr.bf16.mxu0 0
  %8471 = vmatpush1.bf16.msra.mxu0 0
  %8472 = vmatprep.subr.bf16.mxu0 0
  %8473 = vmatpush1.bf16.msra.mxu0 0
  %8474 = vmatprep.subr.bf16.mxu0 0
  %8475 = vmatpush1.bf16.msra.mxu0 0
  %8476 = vmatprep.subr.bf16.mxu0 0
  %8477 = vmatpush1.bf16.msra.mxu0 0
  %8478 = vmatprep.subr.bf16.mxu0 0
  %8479 = vmatpush1.bf16.msra.mxu0 0
  %8480 = vmatprep.subr.bf16.mxu0 0
  %8481 = vmatpush1.bf16.msra.mxu0 0
  %8482 = vmatprep.subr.bf16.mxu0 0
  %8483 = vmatpush1.bf16.msra.mxu0 0
  %8484 = vmatprep.mubr.bf16.mxu0 0
  %8485 = vmatmul.mubr.bf16.gmra.mrb[0].mxu0 %v8447
  %v8486 = vpop.f32.mrb[0].mxu0
  %v8487 = vadd.f32 0.0, %v8486
  %v8488 = vpop.f32.mrb[0].mxu0
  %v8489 = vpop.f32.mrb[0].mxu0
  %v8490 = vadd.f32 0.0, %v8489
  %v8491 = vpop.f32.mrb[0].mxu0
  %8492 = vmatprep.mubr.bf16.mxu0 0
  %8493 = vmatmul.mubr.bf16.gmra.mrb[0].mxu0 %v8450
  %v8494 = vpop.f32.mrb[0].mxu0
  %v8495 = vadd.f32 0.0, %v8494
  %v8496 = vpop.f32.mrb[0].mxu0
  %v8497 = vpop.f32.mrb[0].mxu0
  %v8498 = vpop.f32.mrb[0].mxu0
  %8499 = vdwg.mxu0
  %8500 = vmatprep.subr.bf16.mxu0 0
  %8501 = vmatpush1.bf16.msra.mxu0 %v6514
  %8502 = vmatprep.subr.bf16.mxu0 0
  %8503 = vmatpush1.bf16.msra.mxu0 %v6515
  %8504 = vmatprep.subr.bf16.mxu0 0
  %8505 = vmatpush1.bf16.msra.mxu0 0
  %8506 = vmatprep.subr.bf16.mxu0 0
  %8507 = vmatpush1.bf16.msra.mxu0 0
  %8508 = vmatprep.subr.bf16.mxu0 0
  %8509 = vmatpush1.bf16.msra.mxu0 0
  %8510 = vmatprep.subr.bf16.mxu0 0
  %8511 = vmatpush1.bf16.msra.mxu0 0
  %8512 = vmatprep.subr.bf16.mxu0 0
  %8513 = vmatpush1.bf16.msra.mxu0 0
  %8514 = vmatprep.subr.bf16.mxu0 0
  %8515 = vmatpush1.bf16.msra.mxu0 0
  %8516 = vmatprep.subr.bf16.mxu0 0
  %8517 = vmatpush1.bf16.msra.mxu0 0
  %8518 = vmatprep.subr.bf16.mxu0 0
  %8519 = vmatpush1.bf16.msra.mxu0 0
  %8520 = vmatprep.subr.bf16.mxu0 0
  %8521 = vmatpush1.bf16.msra.mxu0 0
  %8522 = vmatprep.subr.bf16.mxu0 0
  %8523 = vmatpush1.bf16.msra.mxu0 0
  %8524 = vmatprep.subr.bf16.mxu0 0
  %8525 = vmatpush1.bf16.msra.mxu0 0
  %8526 = vmatprep.subr.bf16.mxu0 0
  %8527 = vmatpush1.bf16.msra.mxu0 0
  %8528 = vmatprep.subr.bf16.mxu0 0
  %8529 = vmatpush1.bf16.msra.mxu0 0
  %8530 = vmatprep.subr.bf16.mxu0 0
  %8531 = vmatpush1.bf16.msra.mxu0 0
  %8532 = vmatprep.mubr.bf16.mxu0 0
  %8533 = vmatmul.mubr.bf16.gmra.mrb[0].mxu0 %v7719
  %v8534 = vpop.f32.mrb[0].mxu0
  %v8535 = vadd.f32 %v8487, %v8534
  %v8536 = vpop.f32.mrb[0].mxu0
  %v8537 = vpop.f32.mrb[0].mxu0
  %v8538 = vadd.f32 %v8490, %v8537
  %v8539 = vpop.f32.mrb[0].mxu0
  %8540 = vmatprep.mubr.bf16.mxu0 0
  %8541 = vmatmul.mubr.bf16.gmra.mrb[0].mxu0 %v7722
  %v8542 = vpop.f32.mrb[0].mxu0
  %v8543 = vadd.f32 %v8495, %v8542
  %v8544 = vpop.f32.mrb[0].mxu0
  %v8545 = vpop.f32.mrb[0].mxu0
  %v8546 = vpop.f32.mrb[0].mxu0
  %8547 = vdwg.mxu0
  %v8548 = vadd.f32 %v8535, %v6571
  %v8549 = vadd.f32 %v8538, %v6571
  %v8550 = vadd.f32 %v8543, %v6571
  %v8551 = vmax.f32 %v8548, 0.0
  %v8552 = vmax.f32 %v8549, 0.0
  %v8553 = vmax.f32 %v8550, 0.0
  %v8554 = vpack.c.bf16 %v8552, %v8551
  %v8555 = vpack.c.bf16 %v8553, %v8553
  %8556 = vmatprep.subr.bf16.mxu0 0
  %8557 = vmatpush1.bf16.msra.mxu0 %v6636
  %8558 = vmatprep.subr.bf16.mxu0 0
  %8559 = vmatpush1.bf16.msra.mxu0 %v6637
  %8560 = vmatprep.subr.bf16.mxu0 0
  %8561 = vmatpush1.bf16.msra.mxu0 %v6638
  %8562 = vmatprep.subr.bf16.mxu0 0
  %8563 = vmatpush1.bf16.msra.mxu0 %v6639
  %8564 = vmatprep.subr.bf16.mxu0 0
  %8565 = vmatpush1.bf16.msra.mxu0 %v6640
  %8566 = vmatprep.subr.bf16.mxu0 0
  %8567 = vmatpush1.bf16.msra.mxu0 %v6641
  %8568 = vmatprep.subr.bf16.mxu0 0
  %8569 = vmatpush1.bf16.msra.mxu0 %v6642
  %8570 = vmatprep.subr.bf16.mxu0 0
  %8571 = vmatpush1.bf16.msra.mxu0 %v6643
  %8572 = vmatprep.subr.bf16.mxu0 0
  %8573 = vmatpush1.bf16.msra.mxu0 0
  %8574 = vmatprep.subr.bf16.mxu0 0
  %8575 = vmatpush1.bf16.msra.mxu0 0
  %8576 = vmatprep.subr.bf16.mxu0 0
  %8577 = vmatpush1.bf16.msra.mxu0 0
  %8578 = vmatprep.subr.bf16.mxu0 0
  %8579 = vmatpush1.bf16.msra.mxu0 0
  %8580 = vmatprep.subr.bf16.mxu0 0
  %8581 = vmatpush1.bf16.msra.mxu0 0
  %8582 = vmatprep.subr.bf16.mxu0 0
  %8583 = vmatpush1.bf16.msra.mxu0 0
  %8584 = vmatprep.subr.bf16.mxu0 0
  %8585 = vmatpush1.bf16.msra.mxu0 0
  %8586 = vmatprep.subr.bf16.mxu0 0
  %8587 = vmatpush1.bf16.msra.mxu0 0
  %8588 = vmatprep.mubr.bf16.mxu0 0
  %8589 = vmatmul.mubr.bf16.gmra.mrb[0].mxu0 %v8554
  %v8590 = vpop.f32.mrb[0].mxu0
  %v8591 = vadd.f32 %v6602, %v8590
  %v8592 = vpop.f32.mrb[0].mxu0
  %v8593 = vpop.f32.mrb[0].mxu0
  %v8594 = vadd.f32 %v6602, %v8593
  %v8595 = vpop.f32.mrb[0].mxu0
  %8596 = vmatprep.mubr.bf16.mxu0 0
  %8597 = vmatmul.mubr.bf16.gmra.mrb[0].mxu0 %v8555
  %v8598 = vpop.f32.mrb[0].mxu0
  %v8599 = vadd.f32 %v6602, %v8598
  %v8600 = vpop.f32.mrb[0].mxu0
  %v8601 = vpop.f32.mrb[0].mxu0
  %v8602 = vpop.f32.mrb[0].mxu0
  %8603 = vdwg.mxu0
  %v8604 = vmax.f32 %v8591, 0.0
  %v8605 = vmax.f32 %v8594, 0.0
  %v8606 = vmax.f32 %v8599, 0.0
  %v8607 = vpack.c.bf16 %v8605, %v8604
  %v8608 = vpack.c.bf16 %v8606, %v8606
  %8609 = vmatprep.subr.bf16.mxu0 0
  %8610 = vmatpush1.bf16.msra.mxu0 %v6760
  %8611 = vmatprep.subr.bf16.mxu0 0
  %8612 = vmatpush1.bf16.msra.mxu0 %v6761
  %8613 = vmatprep.subr.bf16.mxu0 0
  %8614 = vmatpush1.bf16.msra.mxu0 %v6762
  %8615 = vmatprep.subr.bf16.mxu0 0
  %8616 = vmatpush1.bf16.msra.mxu0 %v6763
  %8617 = vmatprep.subr.bf16.mxu0 0
  %8618 = vmatpush1.bf16.msra.mxu0 %v6764
  %8619 = vmatprep.subr.bf16.mxu0 0
  %8620 = vmatpush1.bf16.msra.mxu0 %v6765
  %8621 = vmatprep.subr.bf16.mxu0 0
  %8622 = vmatpush1.bf16.msra.mxu0 %v6766
  %8623 = vmatprep.subr.bf16.mxu0 0
  %8624 = vmatpush1.bf16.msra.mxu0 %v6767
  %8625 = vmatprep.subr.bf16.mxu0 0
  %8626 = vmatpush1.bf16.msra.mxu0 0
  %8627 = vmatprep.subr.bf16.mxu0 0
  %8628 = vmatpush1.bf16.msra.mxu0 0
  %8629 = vmatprep.subr.bf16.mxu0 0
  %8630 = vmatpush1.bf16.msra.mxu0 0
  %8631 = vmatprep.subr.bf16.mxu0 0
  %8632 = vmatpush1.bf16.msra.mxu0 0
  %8633 = vmatprep.subr.bf16.mxu0 0
  %8634 = vmatpush1.bf16.msra.mxu0 0
  %8635 = vmatprep.subr.bf16.mxu0 0
  %8636 = vmatpush1.bf16.msra.mxu0 0
  %8637 = vmatprep.subr.bf16.mxu0 0
  %8638 = vmatpush1.bf16.msra.mxu0 0
  %8639 = vmatprep.subr.bf16.mxu0 0
  %8640 = vmatpush1.bf16.msra.mxu0 0
  %8641 = vmatprep.mubr.bf16.mxu0 0
  %8642 = vmatmul.mubr.bf16.gmra.mrb[0].mxu0 %v8607
  %v8643 = vpop.f32.mrb[0].mxu0
  %v8644 = vadd.f32 %v6726, %v8643
  %v8645 = vpop.f32.mrb[0].mxu0
  %v8646 = vpop.f32.mrb[0].mxu0
  %v8647 = vadd.f32 %v6726, %v8646
  %v8648 = vpop.f32.mrb[0].mxu0
  %8649 = vmatprep.mubr.bf16.mxu0 0
  %8650 = vmatmul.mubr.bf16.gmra.mrb[0].mxu0 %v8608
  %v8651 = vpop.f32.mrb[0].mxu0
  %v8652 = vadd.f32 %v6726, %v8651
  %v8653 = vpop.f32.mrb[0].mxu0
  %v8654 = vpop.f32.mrb[0].mxu0
  %v8655 = vpop.f32.mrb[0].mxu0
  %8656 = vdwg.mxu0
  %v8657 = vmax.f32 %v8644, 0.0
  %v8658 = vmax.f32 %v8647, 0.0
  %v8659 = vmax.f32 %v8652, 0.0
  %v8660 = vpack.c.bf16 %v8658, %v8657
  %v8661 = vpack.c.bf16 %v8659, %v8659
  %v8663 = vsel %vm1397, %v8660, 0
  %v8666 = vsel %vm1397, %v8661, 0
  %8668 = vmatprep.subr.bf16.mxu0 0
  %8669 = vmatpush1.bf16.msra.mxu0 %v6860
  %8670 = vmatprep.subr.bf16.mxu0 0
  %8671 = vmatpush1.bf16.msra.mxu0 %v6861
  %8672 = vmatprep.subr.bf16.mxu0 0
  %8673 = vmatpush1.bf16.msra.mxu0 %v6862
  %8674 = vmatprep.subr.bf16.mxu0 0
  %8675 = vmatpush1.bf16.msra.mxu0 %v6863
  %8676 = vmatprep.subr.bf16.mxu0 0
  %8677 = vmatpush1.bf16.msra.mxu0 0
  %8678 = vmatprep.subr.bf16.mxu0 0
  %8679 = vmatpush1.bf16.msra.mxu0 0
  %8680 = vmatprep.subr.bf16.mxu0 0
  %8681 = vmatpush1.bf16.msra.mxu0 0
  %8682 = vmatprep.subr.bf16.mxu0 0
  %8683 = vmatpush1.bf16.msra.mxu0 0
  %8684 = vmatprep.subr.bf16.mxu0 0
  %8685 = vmatpush1.bf16.msra.mxu0 0
  %8686 = vmatprep.subr.bf16.mxu0 0
  %8687 = vmatpush1.bf16.msra.mxu0 0
  %8688 = vmatprep.subr.bf16.mxu0 0
  %8689 = vmatpush1.bf16.msra.mxu0 0
  %8690 = vmatprep.subr.bf16.mxu0 0
  %8691 = vmatpush1.bf16.msra.mxu0 0
  %8692 = vmatprep.subr.bf16.mxu0 0
  %8693 = vmatpush1.bf16.msra.mxu0 0
  %8694 = vmatprep.subr.bf16.mxu0 0
  %8695 = vmatpush1.bf16.msra.mxu0 0
  %8696 = vmatprep.subr.bf16.mxu0 0
  %8697 = vmatpush1.bf16.msra.mxu0 0
  %8698 = vmatprep.subr.bf16.mxu0 0
  %8699 = vmatpush1.bf16.msra.mxu0 0
  %8700 = vmatprep.mubr.bf16.mxu0 0
  %8701 = vmatmul.mubr.bf16.gmra.mrb[0].mxu0 %v8663
  %v8702 = vpop.f32.mrb[0].mxu0
  %v8703 = vadd.f32 %v6842, %v8702
  %v8704 = vpop.f32.mrb[0].mxu0
  %v8705 = vpop.f32.mrb[0].mxu0
  %v8706 = vadd.f32 %v6842, %v8705
  %v8707 = vpop.f32.mrb[0].mxu0
  %8708 = vmatprep.mubr.bf16.mxu0 0
  %8709 = vmatmul.mubr.bf16.gmra.mrb[0].mxu0 %v8666
  %v8710 = vpop.f32.mrb[0].mxu0
  %v8711 = vadd.f32 %v6842, %v8710
  %v8712 = vpop.f32.mrb[0].mxu0
  %v8713 = vpop.f32.mrb[0].mxu0
  %v8714 = vpop.f32.mrb[0].mxu0
  %8715 = vdwg.mxu0
  %v8716 = vadd.f32 %v6922, %v8703
  %v8717 = vadd.f32 %v6923, %v8706
  %v8718 = vadd.f32 %v6924, %v8711
  %v8719 = vpack.c.bf16 %v8717, %v8716
  %v8720 = vpack.c.bf16 %v8718, %v8718
  %v8722 = vsel %vm4688, %v8719, 0
  %v8725 = vsel %vm4688, %v8720, 0
  %8727 = vmatprep.subr.bf16.mxu0 0
  %8728 = vmatpush1.bf16.msra.mxu0 %v4697
  %8729 = vmatprep.subr.bf16.mxu0 0
  %8730 = vmatpush1.bf16.msra.mxu0 0
  %8731 = vmatprep.subr.bf16.mxu0 0
  %8732 = vmatpush1.bf16.msra.mxu0 0
  %8733 = vmatprep.subr.bf16.mxu0 0
  %8734 = vmatpush1.bf16.msra.mxu0 0
  %8735 = vmatprep.subr.bf16.mxu0 0
  %8736 = vmatpush1.bf16.msra.mxu0 0
  %8737 = vmatprep.subr.bf16.mxu0 0
  %8738 = vmatpush1.bf16.msra.mxu0 0
  %8739 = vmatprep.subr.bf16.mxu0 0
  %8740 = vmatpush1.bf16.msra.mxu0 0
  %8741 = vmatprep.subr.bf16.mxu0 0
  %8742 = vmatpush1.bf16.msra.mxu0 0
  %8743 = vmatprep.subr.bf16.mxu0 0
  %8744 = vmatpush1.bf16.msra.mxu0 0
  %8745 = vmatprep.subr.bf16.mxu0 0
  %8746 = vmatpush1.bf16.msra.mxu0 0
  %8747 = vmatprep.subr.bf16.mxu0 0
  %8748 = vmatpush1.bf16.msra.mxu0 0
  %8749 = vmatprep.subr.bf16.mxu0 0
  %8750 = vmatpush1.bf16.msra.mxu0 0
  %8751 = vmatprep.subr.bf16.mxu0 0
  %8752 = vmatpush1.bf16.msra.mxu0 0
  %8753 = vmatprep.subr.bf16.mxu0 0
  %8754 = vmatpush1.bf16.msra.mxu0 0
  %8755 = vmatprep.subr.bf16.mxu0 0
  %8756 = vmatpush1.bf16.msra.mxu0 0
  %8757 = vmatprep.subr.bf16.mxu0 0
  %8758 = vmatpush1.bf16.msra.mxu0 0
  %8759 = vmatprep.mubr.bf16.mxu0 0
  %8760 = vmatmul.mubr.bf16.gmra.mrb[0].mxu0 %v8722
  %v8761 = vpop.f32.mrb[0].mxu0
  %v8762 = vadd.f32 %v4681, %v8761
  %v8763 = vpop.f32.mrb[0].mxu0
  %v8764 = vpop.f32.mrb[0].mxu0
  %v8765 = vadd.f32 %v4681, %v8764
  %v8766 = vpop.f32.mrb[0].mxu0
  %8767 = vmatprep.mubr.bf16.mxu0 0
  %8768 = vmatmul.mubr.bf16.gmra.mrb[0].mxu0 %v8725
  %v8769 = vpop.f32.mrb[0].mxu0
  %v8770 = vadd.f32 %v4681, %v8769
  %v8771 = vpop.f32.mrb[0].mxu0
  %v8772 = vpop.f32.mrb[0].mxu0
  %v8773 = vpop.f32.mrb[0].mxu0
  %8774 = vdwg.mxu0
  %v8775 = vmax.f32 %v8762, 0.0
  %v8776 = vmax.f32 %v8765, 0.0
  %v8777 = vmax.f32 %v8770, 0.0
  %v8778 = vpack.c.bf16 %v8776, %v8775
  %v8779 = vpack.c.bf16 %v8777, %v8777
  %v8781 = vsel %vm1603, %v8778, 0
  %v8784 = vsel %vm1603, %v8779, 0
  %8786 = vmatprep.subr.bf16.mxu0 0
  %8787 = vmatpush1.bf16.msra.mxu0 %v4771
  %8788 = vmatprep.subr.bf16.mxu0 0
  %8789 = vmatpush1.bf16.msra.mxu0 %v4772
  %8790 = vmatprep.subr.bf16.mxu0 0
  %8791 = vmatpush1.bf16.msra.mxu0 0
  %8792 = vmatprep.subr.bf16.mxu0 0
  %8793 = vmatpush1.bf16.msra.mxu0 0
  %8794 = vmatprep.subr.bf16.mxu0 0
  %8795 = vmatpush1.bf16.msra.mxu0 0
  %8796 = vmatprep.subr.bf16.mxu0 0
  %8797 = vmatpush1.bf16.msra.mxu0 0
  %8798 = vmatprep.subr.bf16.mxu0 0
  %8799 = vmatpush1.bf16.msra.mxu0 0
  %8800 = vmatprep.subr.bf16.mxu0 0
  %8801 = vmatpush1.bf16.msra.mxu0 0
  %8802 = vmatprep.subr.bf16.mxu0 0
  %8803 = vmatpush1.bf16.msra.mxu0 0
  %8804 = vmatprep.subr.bf16.mxu0 0
  %8805 = vmatpush1.bf16.msra.mxu0 0
  %8806 = vmatprep.subr.bf16.mxu0 0
  %8807 = vmatpush1.bf16.msra.mxu0 0
  %8808 = vmatprep.subr.bf16.mxu0 0
  %8809 = vmatpush1.bf16.msra.mxu0 0
  %8810 = vmatprep.subr.bf16.mxu0 0
  %8811 = vmatpush1.bf16.msra.mxu0 0
  %8812 = vmatprep.subr.bf16.mxu0 0
  %8813 = vmatpush1.bf16.msra.mxu0 0
  %8814 = vmatprep.subr.bf16.mxu0 0
  %8815 = vmatpush1.bf16.msra.mxu0 0
  %8816 = vmatprep.subr.bf16.mxu0 0
  %8817 = vmatpush1.bf16.msra.mxu0 0
  %8818 = vmatprep.mubr.bf16.mxu0 0
  %8819 = vmatmul.mubr.bf16.gmra.mrb[0].mxu0 %v8781
  %v8820 = vpop.f32.mrb[0].mxu0
  %v8821 = vadd.f32 %v4761, %v8820
  %v8822 = vpop.f32.mrb[0].mxu0
  %v8823 = vpop.f32.mrb[0].mxu0
  %v8824 = vadd.f32 %v4761, %v8823
  %v8825 = vpop.f32.mrb[0].mxu0
  %8826 = vmatprep.mubr.bf16.mxu0 0
  %8827 = vmatmul.mubr.bf16.gmra.mrb[0].mxu0 %v8784
  %v8828 = vpop.f32.mrb[0].mxu0
  %v8829 = vadd.f32 %v4761, %v8828
  %v8830 = vpop.f32.mrb[0].mxu0
  %v8831 = vpop.f32.mrb[0].mxu0
  %v8832 = vpop.f32.mrb[0].mxu0
  %8833 = vdwg.mxu0
  %v8834 = vmax.f32 %v8821, 0.0
  %v8835 = vmax.f32 %v8824, 0.0
  %v8836 = vmax.f32 %v8829, 0.0
  %v8837 = vpack.c.bf16 %v8835, %v8834
  %v8838 = vpack.c.bf16 %v8836, %v8836
  %v8840 = vsel %vm1603, %v8837, 0
  %v8843 = vsel %vm1603, %v8838, 0
  %8845 = vmatprep.subr.bf16.mxu0 0
  %8846 = vmatpush1.bf16.msra.mxu0 %v4853
  %8847 = vmatprep.subr.bf16.mxu0 0
  %8848 = vmatpush1.bf16.msra.mxu0 %v4854
  %8849 = vmatprep.subr.bf16.mxu0 0
  %8850 = vmatpush1.bf16.msra.mxu0 0
  %8851 = vmatprep.subr.bf16.mxu0 0
  %8852 = vmatpush1.bf16.msra.mxu0 0
  %8853 = vmatprep.subr.bf16.mxu0 0
  %8854 = vmatpush1.bf16.msra.mxu0 0
  %8855 = vmatprep.subr.bf16.mxu0 0
  %8856 = vmatpush1.bf16.msra.mxu0 0
  %8857 = vmatprep.subr.bf16.mxu0 0
  %8858 = vmatpush1.bf16.msra.mxu0 0
  %8859 = vmatprep.subr.bf16.mxu0 0
  %8860 = vmatpush1.bf16.msra.mxu0 0
  %8861 = vmatprep.subr.bf16.mxu0 0
  %8862 = vmatpush1.bf16.msra.mxu0 0
  %8863 = vmatprep.subr.bf16.mxu0 0
  %8864 = vmatpush1.bf16.msra.mxu0 0
  %8865 = vmatprep.subr.bf16.mxu0 0
  %8866 = vmatpush1.bf16.msra.mxu0 0
  %8867 = vmatprep.subr.bf16.mxu0 0
  %8868 = vmatpush1.bf16.msra.mxu0 0
  %8869 = vmatprep.subr.bf16.mxu0 0
  %8870 = vmatpush1.bf16.msra.mxu0 0
  %8871 = vmatprep.subr.bf16.mxu0 0
  %8872 = vmatpush1.bf16.msra.mxu0 0
  %8873 = vmatprep.subr.bf16.mxu0 0
  %8874 = vmatpush1.bf16.msra.mxu0 0
  %8875 = vmatprep.subr.bf16.mxu0 0
  %8876 = vmatpush1.bf16.msra.mxu0 0
  %8877 = vmatprep.mubr.bf16.mxu0 0
  %8878 = vmatmul.mubr.bf16.gmra.mrb[0].mxu0 %v8840
  %v8879 = vpop.f32.mrb[0].mxu0
  %v8880 = vadd.f32 %v4843, %v8879
  %v8881 = vpop.f32.mrb[0].mxu0
  %v8882 = vpop.f32.mrb[0].mxu0
  %v8883 = vadd.f32 %v4843, %v8882
  %v8884 = vpop.f32.mrb[0].mxu0
  %8885 = vmatprep.mubr.bf16.mxu0 0
  %8886 = vmatmul.mubr.bf16.gmra.mrb[0].mxu0 %v8843
  %v8887 = vpop.f32.mrb[0].mxu0
  %v8888 = vadd.f32 %v4843, %v8887
  %v8889 = vpop.f32.mrb[0].mxu0
  %v8890 = vpop.f32.mrb[0].mxu0
  %v8891 = vpop.f32.mrb[0].mxu0
  %8892 = vdwg.mxu0
  %v8893 = vadd.f32 %v8716, %v4913
  %8895 = vrot.lane.b32.xlu0 %v8893, 120
  %v8896 = vpop.permute.xlu0 %8895
  %v8897 = vsel %vm1781, %v8896, 0
  %8899 = vmatprep.subr.mxu0 0.0
  %8900 = vmatpush1.msra.mxu0 %v8897
  %8901 = vmatprep.subr.mxu0 0.0
  %8902 = vmatpush1.msra.mxu0 0.0
  %8903 = vmatprep.subr.mxu0 0.0
  %8904 = vmatpush1.msra.mxu0 0.0
  %8905 = vmatprep.subr.mxu0 0.0
  %8906 = vmatpush1.msra.mxu0 0.0
  %8907 = vmatprep.subr.mxu0 0.0
  %8908 = vmatpush1.msra.mxu0 0.0
  %8909 = vmatprep.subr.mxu0 0.0
  %8910 = vmatpush1.msra.mxu0 0.0
  %8911 = vmatprep.subr.mxu0 0.0
  %8912 = vmatpush1.msra.mxu0 0.0
  %8913 = vmatprep.subr.mxu0 0.0
  %8914 = vmatpush1.msra.mxu0 0.0
  %8915 = vmatprep.subr.mxu0 0.0
  %8916 = vmatpush1.msra.mxu0 0.0
  %8917 = vmatprep.subr.mxu0 0.0
  %8918 = vmatpush1.msra.mxu0 0.0
  %8919 = vmatprep.subr.mxu0 0.0
  %8920 = vmatpush1.msra.mxu0 0.0
  %8921 = vmatprep.subr.mxu0 0.0
  %8922 = vmatpush1.msra.mxu0 0.0
  %8923 = vmatprep.subr.mxu0 0.0
  %8924 = vmatpush1.msra.mxu0 0.0
  %8925 = vmatprep.subr.mxu0 0.0
  %8926 = vmatpush1.msra.mxu0 0.0
  %8927 = vmatprep.subr.mxu0 0.0
  %8928 = vmatpush1.msra.mxu0 0.0
  %8929 = vmatprep.subr.mxu0 0.0
  %8930 = vmatpush1.msra.mxu0 0.0
  %8931 = vmatprep.subr.mxu0 0.0
  %8932 = vmatpush1.msra.mxu0 0.0
  %8933 = vmatprep.subr.mxu0 0.0
  %8934 = vmatpush1.msra.mxu0 0.0
  %8935 = vmatprep.subr.mxu0 0.0
  %8936 = vmatpush1.msra.mxu0 0.0
  %8937 = vmatprep.subr.mxu0 0.0
  %8938 = vmatpush1.msra.mxu0 0.0
  %8939 = vmatprep.subr.mxu0 0.0
  %8940 = vmatpush1.msra.mxu0 0.0
  %8941 = vmatprep.subr.mxu0 0.0
  %8942 = vmatpush1.msra.mxu0 0.0
  %8943 = vmatprep.subr.mxu0 0.0
  %8944 = vmatpush1.msra.mxu0 0.0
  %8945 = vmatprep.subr.mxu0 0.0
  %8946 = vmatpush1.msra.mxu0 0.0
  %8947 = vmatprep.subr.mxu0 0.0
  %8948 = vmatpush1.msra.mxu0 0.0
  %8949 = vmatprep.subr.mxu0 0.0
  %8950 = vmatpush1.msra.mxu0 0.0
  %8951 = vmatprep.subr.mxu0 0.0
  %8952 = vmatpush1.msra.mxu0 0.0
  %8953 = vmatprep.subr.mxu0 0.0
  %8954 = vmatpush1.msra.mxu0 0.0
  %8955 = vmatprep.subr.mxu0 0.0
  %8956 = vmatpush1.msra.mxu0 0.0
  %8957 = vmatprep.subr.mxu0 0.0
  %8958 = vmatpush1.msra.mxu0 0.0
  %8959 = vmatprep.subr.mxu0 0.0
  %8960 = vmatpush1.msra.mxu0 0.0
  %8961 = vmatprep.subr.mxu0 0.0
  %8962 = vmatpush1.msra.mxu0 0.0
  %8963 = vmatprep.mubr.f32.mxu0 0.0
  %8964 = vmatmul.mubr.f32.gmra.mrb[0].mxu0 %v4920
  %v8965 = vpop.f32.mrb[0].mxu0
  %v8966 = vadd.f32 0.0, %v8965
  %v8967 = vpop.f32.mrb[0].mxu0
  %8968 = vmatprep.mubr.f32.mxu0 0.0
  %8969 = vmatmul.mubr.f32.gmra.mrb[0].mxu0 %v4923
  %v8970 = vpop.f32.mrb[0].mxu0
  %v8971 = vadd.f32 0.0, %v8970
  %v8972 = vpop.f32.mrb[0].mxu0
  %8973 = vmatprep.mubr.f32.mxu0 0.0
  %8974 = vmatmul.mubr.f32.gmra.mrb[0].mxu0 %v4926
  %v8975 = vpop.f32.mrb[0].mxu0
  %v8976 = vadd.f32 0.0, %v8975
  %v8977 = vpop.f32.mrb[0].mxu0
  %8978 = vmatprep.mubr.f32.mxu0 0.0
  %8979 = vmatmul.mubr.f32.gmra.mrb[0].mxu0 %v4929
  %v8980 = vpop.f32.mrb[0].mxu0
  %v8981 = vadd.f32 0.0, %v8980
  %v8982 = vpop.f32.mrb[0].mxu0
  %8983 = vmatprep.mubr.f32.mxu0 0.0
  %8984 = vmatmul.mubr.f32.gmra.mrb[0].mxu0 %v4932
  %v8985 = vpop.f32.mrb[0].mxu0
  %v8986 = vadd.f32 0.0, %v8985
  %v8987 = vpop.f32.mrb[0].mxu0
  %8988 = vdwg.mxu0
  %v8989 = vmul.f32 %v8966, %v8966
  %v8990 = vmul.f32 %v8971, %v8971
  %v8991 = vmul.f32 %v8976, %v8976
  %v8992 = vmul.f32 %v8981, %v8981
  %v8993 = vmul.f32 %v8986, %v8986
  %v8994 = vsel %vm5031, %v8989, 0.0
  %8995 = vadd.xlane.f32.xlu0 %v8994
  %v8996 = vpop.xlane.xlu0 %8995
  %v8997 = vsel %vm5031, %v8990, 0.0
  %8998 = vadd.xlane.f32.xlu0 %v8997
  %v8999 = vpop.xlane.xlu0 %8998
  %v9000 = vsel %vm5031, %v8991, 0.0
  %9001 = vadd.xlane.f32.xlu0 %v9000
  %v9002 = vpop.xlane.xlu0 %9001
  %v9003 = vsel %vm5031, %v8992, 0.0
  %9004 = vadd.xlane.f32.xlu0 %v9003
  %v9005 = vpop.xlane.xlu0 %9004
  %v9006 = vsel %vm5044, %v8993, 0.0
  %9007 = vadd.xlane.f32.xlu0 %v9006
  %v9008 = vpop.xlane.xlu0 %9007
  %v9009 = vrsqrt.pop %v8996
  %v9010 = vmul.f32 %v8996, %v9009
  %vm9011 = vcmp.eq.f32.partialorder %v8996, inf
  %v9012 = vsel %vm9011, %v8996, %v9010
  %vm9013 = vcmp.eq.f32.partialorder %v8996, 0.0
  %v9014 = vand.u32 %v8996, 2147483648
  %v9015 = vsel %vm9013, %v9014, %v9012
  %v9016 = vrsqrt.pop %v8999
  %v9017 = vmul.f32 %v8999, %v9016
  %vm9018 = vcmp.eq.f32.partialorder %v8999, inf
  %v9019 = vsel %vm9018, %v8999, %v9017
  %vm9020 = vcmp.eq.f32.partialorder %v8999, 0.0
  %v9021 = vand.u32 %v8999, 2147483648
  %v9022 = vsel %vm9020, %v9021, %v9019
  %v9023 = vrsqrt.pop %v9002
  %v9024 = vmul.f32 %v9002, %v9023
  %vm9025 = vcmp.eq.f32.partialorder %v9002, inf
  %v9026 = vsel %vm9025, %v9002, %v9024
  %vm9027 = vcmp.eq.f32.partialorder %v9002, 0.0
  %v9028 = vand.u32 %v9002, 2147483648
  %v9029 = vsel %vm9027, %v9028, %v9026
  %v9030 = vrsqrt.pop %v9005
  %v9031 = vmul.f32 %v9005, %v9030
  %vm9032 = vcmp.eq.f32.partialorder %v9005, inf
  %v9033 = vsel %vm9032, %v9005, %v9031
  %vm9034 = vcmp.eq.f32.partialorder %v9005, 0.0
  %v9035 = vand.u32 %v9005, 2147483648
  %v9036 = vsel %vm9034, %v9035, %v9033
  %v9037 = vrsqrt.pop %v9008
  %v9038 = vmul.f32 %v9008, %v9037
  %vm9039 = vcmp.eq.f32.partialorder %v9008, inf
  %v9040 = vsel %vm9039, %v9008, %v9038
  %vm9041 = vcmp.eq.f32.partialorder %v9008, 0.0
  %v9042 = vand.u32 %v9008, 2147483648
  %v9043 = vsel %vm9041, %v9042, %v9040
  %vm9044 = vcmp.le.f32.partialorder %v9015, 3.0
  %vm9045 = vcmp.le.f32.partialorder %v9022, 3.0
  %vm9046 = vcmp.le.f32.partialorder %v9029, 3.0
  %vm9047 = vcmp.le.f32.partialorder %v9036, 3.0
  %vm9048 = vcmp.le.f32.partialorder %v9043, 3.0
  %v9049 = vsel %vm9044, 1, 0
  %v9050 = vsel %vm9045, 1, 0
  %v9051 = vsel %vm9046, 1, 0
  %v9052 = vsel %vm9047, 1, 0
  %v9053 = vsel %vm9048, 1, 0
  %v9054 = vcvt.s32.f32 %v9049
  %v9055 = vcvt.s32.f32 %v9050
  %v9056 = vcvt.s32.f32 %v9051
  %v9057 = vcvt.s32.f32 %v9052
  %v9058 = vcvt.s32.f32 %v9053
  %v9059 = vmul.f32 %v4667, %v9054
  %v9060 = vmul.f32 %v4668, %v9055
  %v9061 = vmul.f32 %v4669, %v9056
  %v9062 = vmul.f32 %v4670, %v9057
  %v9063 = vmul.f32 %v4671, %v9058
  %vm9064 = vcmp.gt.f32.partialorder %v9015, 0.0001
  %vm9065 = vcmp.gt.f32.partialorder %v9022, 0.0001
  %vm9066 = vcmp.gt.f32.partialorder %v9029, 0.0001
  %vm9067 = vcmp.gt.f32.partialorder %v9036, 0.0001
  %vm9068 = vcmp.gt.f32.partialorder %v9043, 0.0001
  %v9069 = vsel %vm9064, 1, 0
  %v9070 = vsel %vm9065, 1, 0
  %v9071 = vsel %vm9066, 1, 0
  %v9072 = vsel %vm9067, 1, 0
  %v9073 = vsel %vm9068, 1, 0
  %v9074 = vcvt.s32.f32 %v9069
  %v9075 = vcvt.s32.f32 %v9070
  %v9076 = vcvt.s32.f32 %v9071
  %v9077 = vcvt.s32.f32 %v9072
  %v9078 = vcvt.s32.f32 %v9073
  %v9079 = vmul.f32 %v9059, %v9074
  %v9080 = vmul.f32 %v9060, %v9075
  %v9081 = vmul.f32 %v9061, %v9076
  %v9082 = vmul.f32 %v9062, %v9077
  %v9083 = vmul.f32 %v9063, %v9078
  %vm9084 = vcmp.gt.f32.partialorder %v9079, 0.0
  %vm9085 = vcmp.gt.f32.partialorder %v9080, 0.0
  %vm9086 = vcmp.gt.f32.partialorder %v9081, 0.0
  %vm9087 = vcmp.gt.f32.partialorder %v9082, 0.0
  %vm9088 = vcmp.gt.f32.partialorder %v9083, 0.0
  %v9089 = vsel %vm9084, %v9015, 1.0
  %v9090 = vsel %vm9085, %v9022, 1.0
  %v9091 = vsel %vm9086, %v9029, 1.0
  %v9092 = vsel %vm9087, %v9036, 1.0
  %v9093 = vsel %vm9088, %v9043, 1.0
  %v9094 = vrcp.pop %v9089
  %v9095 = vrcp.pop %v9090
  %v9096 = vrcp.pop %v9091
  %v9097 = vrcp.pop %v9092
  %v9098 = vrcp.pop %v9093
  %v9099 = vpack.c.bf16 %v8971, %v8966
  %v9100 = vpack.c.bf16 %v8981, %v8976
  %v9101 = vpack.c.bf16 %v8986, %v8986
  %9103 = vset.pattern.permute.xlu0 0
  %9104 = vperm.xlu0 %9103, %v9094
  %v9105 = vpop.permute.xlu0 %9104
  %9108 = vset.pattern.permute.xlu0 0
  %9109 = vperm.xlu0 %9108, %v9095
  %v9110 = vpop.permute.xlu0 %9109
  %9113 = vset.pattern.permute.xlu0 0
  %9114 = vperm.xlu0 %9113, %v9096
  %v9115 = vpop.permute.xlu0 %9114
  %9118 = vset.pattern.permute.xlu0 0
  %9119 = vperm.xlu0 %9118, %v9097
  %v9120 = vpop.permute.xlu0 %9119
  %9123 = vset.pattern.permute.xlu0 0
  %9124 = vperm.xlu0 %9123, %v9098
  %v9125 = vpop.permute.xlu0 %9124
  %v9127 = vmul.f32 %v9105, %v5172
  %v9128 = vmul.f32 %v9110, %v5172
  %v9129 = vmul.f32 %v9115, %v5172
  %v9130 = vmul.f32 %v9120, %v5172
  %v9131 = vmul.f32 %v9125, %v5172
  %v9133 = vsel %vm5031, %v9099, 0
  %v9136 = vsel %vm5031, %v9100, 0
  %v9139 = vsel %vm5031, %v9101, 0
  %9141 = vmatprep.subr.bf16.mxu0 0
  %9142 = vmatpush1.bf16.msra.mxu0 %v5190
  %9143 = vmatprep.subr.bf16.mxu0 0
  %9144 = vmatpush1.bf16.msra.mxu0 0
  %9145 = vmatprep.subr.bf16.mxu0 0
  %9146 = vmatpush1.bf16.msra.mxu0 0
  %9147 = vmatprep.subr.bf16.mxu0 0
  %9148 = vmatpush1.bf16.msra.mxu0 0
  %9149 = vmatprep.subr.bf16.mxu0 0
  %9150 = vmatpush1.bf16.msra.mxu0 0
  %9151 = vmatprep.subr.bf16.mxu0 0
  %9152 = vmatpush1.bf16.msra.mxu0 0
  %9153 = vmatprep.subr.bf16.mxu0 0
  %9154 = vmatpush1.bf16.msra.mxu0 0
  %9155 = vmatprep.subr.bf16.mxu0 0
  %9156 = vmatpush1.bf16.msra.mxu0 0
  %9157 = vmatprep.subr.bf16.mxu0 0
  %9158 = vmatpush1.bf16.msra.mxu0 0
  %9159 = vmatprep.subr.bf16.mxu0 0
  %9160 = vmatpush1.bf16.msra.mxu0 0
  %9161 = vmatprep.subr.bf16.mxu0 0
  %9162 = vmatpush1.bf16.msra.mxu0 0
  %9163 = vmatprep.subr.bf16.mxu0 0
  %9164 = vmatpush1.bf16.msra.mxu0 0
  %9165 = vmatprep.subr.bf16.mxu0 0
  %9166 = vmatpush1.bf16.msra.mxu0 0
  %9167 = vmatprep.subr.bf16.mxu0 0
  %9168 = vmatpush1.bf16.msra.mxu0 0
  %9169 = vmatprep.subr.bf16.mxu0 0
  %9170 = vmatpush1.bf16.msra.mxu0 0
  %9171 = vmatprep.subr.bf16.mxu0 0
  %9172 = vmatpush1.bf16.msra.mxu0 0
  %9173 = vmatprep.mubr.bf16.mxu0 0
  %9174 = vmatmul.mubr.bf16.gmra.mrb[0].mxu0 %v9133
  %v9175 = vpop.f32.mrb[0].mxu0
  %v9176 = vadd.f32 %v9127, %v9175
  %v9177 = vpop.f32.mrb[0].mxu0
  %v9178 = vpop.f32.mrb[0].mxu0
  %v9179 = vadd.f32 %v9128, %v9178
  %v9180 = vpop.f32.mrb[0].mxu0
  %9181 = vmatprep.mubr.bf16.mxu0 0
  %9182 = vmatmul.mubr.bf16.gmra.mrb[0].mxu0 %v9136
  %v9183 = vpop.f32.mrb[0].mxu0
  %v9184 = vadd.f32 %v9129, %v9183
  %v9185 = vpop.f32.mrb[0].mxu0
  %v9186 = vpop.f32.mrb[0].mxu0
  %v9187 = vadd.f32 %v9130, %v9186
  %v9188 = vpop.f32.mrb[0].mxu0
  %9189 = vmatprep.mubr.bf16.mxu0 0
  %9190 = vmatmul.mubr.bf16.gmra.mrb[0].mxu0 %v9139
  %v9191 = vpop.f32.mrb[0].mxu0
  %v9192 = vadd.f32 %v9131, %v9191
  %v9193 = vpop.f32.mrb[0].mxu0
  %v9194 = vpop.f32.mrb[0].mxu0
  %v9195 = vpop.f32.mrb[0].mxu0
  %9196 = vdwg.mxu0
  %v9197 = vadd.f32 %v9176, %v5253
  %v9198 = vadd.f32 %v9179, %v5253
  %v9199 = vadd.f32 %v9184, %v5253
  %v9200 = vadd.f32 %v9187, %v5253
  %v9201 = vadd.f32 %v9192, %v5253
  %v9202 = vmax.f32 %v9197, 0.0
  %v9203 = vmax.f32 %v9198, 0.0
  %v9204 = vmax.f32 %v9199, 0.0
  %v9205 = vmax.f32 %v9200, 0.0
  %v9206 = vmax.f32 %v9201, 0.0
  %v9207 = vpack.c.bf16 %v9203, %v9202
  %v9208 = vpack.c.bf16 %v9205, %v9204
  %v9209 = vpack.c.bf16 %v9206, %v9206
  %v9211 = vsel %vm256, %v9207, 0
  %v9214 = vsel %vm256, %v9208, 0
  %v9217 = vsel %vm256, %v9209, 0
  %9219 = vmatprep.subr.bf16.mxu0 0
  %9220 = vmatpush1.bf16.msra.mxu0 %v5281
  %9221 = vmatprep.subr.bf16.mxu0 0
  %9222 = vmatpush1.bf16.msra.mxu0 0
  %9223 = vmatprep.subr.bf16.mxu0 0
  %9224 = vmatpush1.bf16.msra.mxu0 0
  %9225 = vmatprep.subr.bf16.mxu0 0
  %9226 = vmatpush1.bf16.msra.mxu0 0
  %9227 = vmatprep.subr.bf16.mxu0 0
  %9228 = vmatpush1.bf16.msra.mxu0 0
  %9229 = vmatprep.subr.bf16.mxu0 0
  %9230 = vmatpush1.bf16.msra.mxu0 0
  %9231 = vmatprep.subr.bf16.mxu0 0
  %9232 = vmatpush1.bf16.msra.mxu0 0
  %9233 = vmatprep.subr.bf16.mxu0 0
  %9234 = vmatpush1.bf16.msra.mxu0 0
  %9235 = vmatprep.subr.bf16.mxu0 0
  %9236 = vmatpush1.bf16.msra.mxu0 0
  %9237 = vmatprep.subr.bf16.mxu0 0
  %9238 = vmatpush1.bf16.msra.mxu0 0
  %9239 = vmatprep.subr.bf16.mxu0 0
  %9240 = vmatpush1.bf16.msra.mxu0 0
  %9241 = vmatprep.subr.bf16.mxu0 0
  %9242 = vmatpush1.bf16.msra.mxu0 0
  %9243 = vmatprep.subr.bf16.mxu0 0
  %9244 = vmatpush1.bf16.msra.mxu0 0
  %9245 = vmatprep.subr.bf16.mxu0 0
  %9246 = vmatpush1.bf16.msra.mxu0 0
  %9247 = vmatprep.subr.bf16.mxu0 0
  %9248 = vmatpush1.bf16.msra.mxu0 0
  %9249 = vmatprep.subr.bf16.mxu0 0
  %9250 = vmatpush1.bf16.msra.mxu0 0
  %9251 = vmatprep.mubr.bf16.mxu0 0
  %9252 = vmatmul.mubr.bf16.gmra.mrb[0].mxu0 %v9211
  %v9253 = vpop.f32.mrb[0].mxu0
  %v9254 = vadd.f32 %v5275, %v9253
  %v9255 = vpop.f32.mrb[0].mxu0
  %v9256 = vpop.f32.mrb[0].mxu0
  %v9257 = vadd.f32 %v5275, %v9256
  %v9258 = vpop.f32.mrb[0].mxu0
  %9259 = vmatprep.mubr.bf16.mxu0 0
  %9260 = vmatmul.mubr.bf16.gmra.mrb[0].mxu0 %v9214
  %v9261 = vpop.f32.mrb[0].mxu0
  %v9262 = vadd.f32 %v5275, %v9261
  %v9263 = vpop.f32.mrb[0].mxu0
  %v9264 = vpop.f32.mrb[0].mxu0
  %v9265 = vadd.f32 %v5275, %v9264
  %v9266 = vpop.f32.mrb[0].mxu0
  %9267 = vmatprep.mubr.bf16.mxu0 0
  %9268 = vmatmul.mubr.bf16.gmra.mrb[0].mxu0 %v9217
  %v9269 = vpop.f32.mrb[0].mxu0
  %v9270 = vadd.f32 %v5275, %v9269
  %v9271 = vpop.f32.mrb[0].mxu0
  %v9272 = vpop.f32.mrb[0].mxu0
  %v9273 = vpop.f32.mrb[0].mxu0
  %9274 = vdwg.mxu0
  %v9275 = vmax.f32 %v9254, 0.0
  %v9276 = vmax.f32 %v9257, 0.0
  %v9277 = vmax.f32 %v9262, 0.0
  %v9278 = vmax.f32 %v9265, 0.0
  %v9279 = vmax.f32 %v9270, 0.0
  %v9280 = vpack.c.bf16 %v9276, %v9275
  %v9281 = vpack.c.bf16 %v9278, %v9277
  %v9282 = vpack.c.bf16 %v9279, %v9279
  %v9284 = vsel %vm1603, %v9280, 0
  %v9287 = vsel %vm1603, %v9281, 0
  %v9290 = vsel %vm1603, %v9282, 0
  %9292 = vmatprep.subr.bf16.mxu0 0
  %9293 = vmatpush1.bf16.msra.mxu0 %v5375
  %9294 = vmatprep.subr.bf16.mxu0 0
  %9295 = vmatpush1.bf16.msra.mxu0 %v5376
  %9296 = vmatprep.subr.bf16.mxu0 0
  %9297 = vmatpush1.bf16.msra.mxu0 0
  %9298 = vmatprep.subr.bf16.mxu0 0
  %9299 = vmatpush1.bf16.msra.mxu0 0
  %9300 = vmatprep.subr.bf16.mxu0 0
  %9301 = vmatpush1.bf16.msra.mxu0 0
  %9302 = vmatprep.subr.bf16.mxu0 0
  %9303 = vmatpush1.bf16.msra.mxu0 0
  %9304 = vmatprep.subr.bf16.mxu0 0
  %9305 = vmatpush1.bf16.msra.mxu0 0
  %9306 = vmatprep.subr.bf16.mxu0 0
  %9307 = vmatpush1.bf16.msra.mxu0 0
  %9308 = vmatprep.subr.bf16.mxu0 0
  %9309 = vmatpush1.bf16.msra.mxu0 0
  %9310 = vmatprep.subr.bf16.mxu0 0
  %9311 = vmatpush1.bf16.msra.mxu0 0
  %9312 = vmatprep.subr.bf16.mxu0 0
  %9313 = vmatpush1.bf16.msra.mxu0 0
  %9314 = vmatprep.subr.bf16.mxu0 0
  %9315 = vmatpush1.bf16.msra.mxu0 0
  %9316 = vmatprep.subr.bf16.mxu0 0
  %9317 = vmatpush1.bf16.msra.mxu0 0
  %9318 = vmatprep.subr.bf16.mxu0 0
  %9319 = vmatpush1.bf16.msra.mxu0 0
  %9320 = vmatprep.subr.bf16.mxu0 0
  %9321 = vmatpush1.bf16.msra.mxu0 0
  %9322 = vmatprep.subr.bf16.mxu0 0
  %9323 = vmatpush1.bf16.msra.mxu0 0
  %9324 = vmatprep.mubr.bf16.mxu0 0
  %9325 = vmatmul.mubr.bf16.gmra.mrb[0].mxu0 %v9284
  %v9326 = vpop.f32.mrb[0].mxu0
  %v9327 = vadd.f32 %v5365, %v9326
  %v9328 = vpop.f32.mrb[0].mxu0
  %v9329 = vpop.f32.mrb[0].mxu0
  %v9330 = vadd.f32 %v5365, %v9329
  %v9331 = vpop.f32.mrb[0].mxu0
  %9332 = vmatprep.mubr.bf16.mxu0 0
  %9333 = vmatmul.mubr.bf16.gmra.mrb[0].mxu0 %v9287
  %v9334 = vpop.f32.mrb[0].mxu0
  %v9335 = vadd.f32 %v5365, %v9334
  %v9336 = vpop.f32.mrb[0].mxu0
  %v9337 = vpop.f32.mrb[0].mxu0
  %v9338 = vadd.f32 %v5365, %v9337
  %v9339 = vpop.f32.mrb[0].mxu0
  %9340 = vmatprep.mubr.bf16.mxu0 0
  %9341 = vmatmul.mubr.bf16.gmra.mrb[0].mxu0 %v9290
  %v9342 = vpop.f32.mrb[0].mxu0
  %v9343 = vadd.f32 %v5365, %v9342
  %v9344 = vpop.f32.mrb[0].mxu0
  %v9345 = vpop.f32.mrb[0].mxu0
  %v9346 = vpop.f32.mrb[0].mxu0
  %9347 = vdwg.mxu0
  %9349 = vset.pattern.permute.xlu0 0
  %9350 = vperm.xlu0 %9349, %v9079
  %v9351 = vpop.permute.xlu0 %9350
  %9354 = vset.pattern.permute.xlu0 0
  %9355 = vperm.xlu0 %9354, %v9080
  %v9356 = vpop.permute.xlu0 %9355
  %9359 = vset.pattern.permute.xlu0 0
  %9360 = vperm.xlu0 %9359, %v9081
  %v9361 = vpop.permute.xlu0 %9360
  %9364 = vset.pattern.permute.xlu0 0
  %9365 = vperm.xlu0 %9364, %v9082
  %v9366 = vpop.permute.xlu0 %9365
  %9369 = vset.pattern.permute.xlu0 0
  %9370 = vperm.xlu0 %9369, %v9083
  %v9371 = vpop.permute.xlu0 %9370
  %v9373 = vmul.f32 %v9327, %v9351
  %v9374 = vmul.f32 %v9330, %v9356
  %v9375 = vmul.f32 %v9335, %v9361
  %v9376 = vmul.f32 %v9338, %v9366
  %v9377 = vmul.f32 %v9343, %v9371
  %v9378 = vpack.c.bf16 %v9374, %v9373
  %v9379 = vpack.c.bf16 %v9376, %v9375
  %v9380 = vpack.c.bf16 %v9377, %v9377
  %v9382 = vsel %vm5482, %v9380, 0
  %9384 = vmatprep.subr.bf16.mxu0 0
  %9385 = vmatpush1.bf16.msra.mxu0 %v9378
  %9386 = vmatprep.subr.bf16.mxu0 0
  %9387 = vmatpush1.bf16.msra.mxu0 %v9379
  %9388 = vmatprep.subr.bf16.mxu0 0
  %9389 = vmatpush1.bf16.msra.mxu0 %v9382
  %9390 = vmatprep.subr.bf16.mxu0 0
  %9391 = vmatpush1.bf16.msra.mxu0 0
  %9392 = vmatprep.subr.bf16.mxu0 0
  %9393 = vmatpush1.bf16.msra.mxu0 0
  %9394 = vmatprep.subr.bf16.mxu0 0
  %9395 = vmatpush1.bf16.msra.mxu0 0
  %9396 = vmatprep.subr.bf16.mxu0 0
  %9397 = vmatpush1.bf16.msra.mxu0 0
  %9398 = vmatprep.subr.bf16.mxu0 0
  %9399 = vmatpush1.bf16.msra.mxu0 0
  %9400 = vmatprep.subr.bf16.mxu0 0
  %9401 = vmatpush1.bf16.msra.mxu0 0
  %9402 = vmatprep.subr.bf16.mxu0 0
  %9403 = vmatpush1.bf16.msra.mxu0 0
  %9404 = vmatprep.subr.bf16.mxu0 0
  %9405 = vmatpush1.bf16.msra.mxu0 0
  %9406 = vmatprep.subr.bf16.mxu0 0
  %9407 = vmatpush1.bf16.msra.mxu0 0
  %9408 = vmatprep.subr.bf16.mxu0 0
  %9409 = vmatpush1.bf16.msra.mxu0 0
  %9410 = vmatprep.subr.bf16.mxu0 0
  %9411 = vmatpush1.bf16.msra.mxu0 0
  %9412 = vmatprep.subr.bf16.mxu0 0
  %9413 = vmatpush1.bf16.msra.mxu0 0
  %9414 = vmatprep.subr.bf16.mxu0 0
  %9415 = vmatpush1.bf16.msra.mxu0 0
  %9416 = vmatprep.mubr.bf16.mxu0 0
  %9417 = vmatmul.mubr.bf16.gmra.mrb[0].mxu0 %v5480
  %v9418 = vpop.f32.mrb[0].mxu0
  %v9419 = vadd.f32 0.0, %v9418
  %v9420 = vpop.f32.mrb[0].mxu0
  %v9421 = vpop.f32.mrb[0].mxu0
  %v9422 = vpop.f32.mrb[0].mxu0
  %9423 = vdwg.mxu0
  %v9425 = vsel %vm1781, %v9419, 0
  %9427 = vmatprep.subr.mxu0 0.0
  %9428 = vmatpush1.msra.mxu0 %v9425
  %9429 = vmatprep.subr.mxu0 0.0
  %9430 = vmatpush1.msra.mxu0 0.0
  %9431 = vmatprep.subr.mxu0 0.0
  %9432 = vmatpush1.msra.mxu0 0.0
  %9433 = vmatprep.subr.mxu0 0.0
  %9434 = vmatpush1.msra.mxu0 0.0
  %9435 = vmatprep.subr.mxu0 0.0
  %9436 = vmatpush1.msra.mxu0 0.0
  %9437 = vmatprep.subr.mxu0 0.0
  %9438 = vmatpush1.msra.mxu0 0.0
  %9439 = vmatprep.subr.mxu0 0.0
  %9440 = vmatpush1.msra.mxu0 0.0
  %9441 = vmatprep.subr.mxu0 0.0
  %9442 = vmatpush1.msra.mxu0 0.0
  %9443 = vmatprep.subr.mxu0 0.0
  %9444 = vmatpush1.msra.mxu0 0.0
  %9445 = vmatprep.subr.mxu0 0.0
  %9446 = vmatpush1.msra.mxu0 0.0
  %9447 = vmatprep.subr.mxu0 0.0
  %9448 = vmatpush1.msra.mxu0 0.0
  %9449 = vmatprep.subr.mxu0 0.0
  %9450 = vmatpush1.msra.mxu0 0.0
  %9451 = vmatprep.subr.mxu0 0.0
  %9452 = vmatpush1.msra.mxu0 0.0
  %9453 = vmatprep.subr.mxu0 0.0
  %9454 = vmatpush1.msra.mxu0 0.0
  %9455 = vmatprep.subr.mxu0 0.0
  %9456 = vmatpush1.msra.mxu0 0.0
  %9457 = vmatprep.subr.mxu0 0.0
  %9458 = vmatpush1.msra.mxu0 0.0
  %9459 = vmatprep.subr.mxu0 0.0
  %9460 = vmatpush1.msra.mxu0 0.0
  %9461 = vmatprep.subr.mxu0 0.0
  %9462 = vmatpush1.msra.mxu0 0.0
  %9463 = vmatprep.subr.mxu0 0.0
  %9464 = vmatpush1.msra.mxu0 0.0
  %9465 = vmatprep.subr.mxu0 0.0
  %9466 = vmatpush1.msra.mxu0 0.0
  %9467 = vmatprep.subr.mxu0 0.0
  %9468 = vmatpush1.msra.mxu0 0.0
  %9469 = vmatprep.subr.mxu0 0.0
  %9470 = vmatpush1.msra.mxu0 0.0
  %9471 = vmatprep.subr.mxu0 0.0
  %9472 = vmatpush1.msra.mxu0 0.0
  %9473 = vmatprep.subr.mxu0 0.0
  %9474 = vmatpush1.msra.mxu0 0.0
  %9475 = vmatprep.subr.mxu0 0.0
  %9476 = vmatpush1.msra.mxu0 0.0
  %9477 = vmatprep.subr.mxu0 0.0
  %9478 = vmatpush1.msra.mxu0 0.0
  %9479 = vmatprep.subr.mxu0 0.0
  %9480 = vmatpush1.msra.mxu0 0.0
  %9481 = vmatprep.subr.mxu0 0.0
  %9482 = vmatpush1.msra.mxu0 0.0
  %9483 = vmatprep.subr.mxu0 0.0
  %9484 = vmatpush1.msra.mxu0 0.0
  %9485 = vmatprep.subr.mxu0 0.0
  %9486 = vmatpush1.msra.mxu0 0.0
  %9487 = vmatprep.subr.mxu0 0.0
  %9488 = vmatpush1.msra.mxu0 0.0
  %9489 = vmatprep.subr.mxu0 0.0
  %9490 = vmatpush1.msra.mxu0 0.0
  %9491 = vmatprep.mubr.f32.mxu0 0.0
  %9492 = vmatmul.mubr.f32.gmra.mrb[0].mxu0 %v5530
  %v9493 = vpop.f32.mrb[0].mxu0
  %v9494 = vadd.f32 0.0, %v9493
  %v9495 = vpop.f32.mrb[0].mxu0
  %9496 = vmatprep.mubr.f32.mxu0 0.0
  %9497 = vmatmul.mubr.f32.gmra.mrb[0].mxu0 %v5533
  %v9498 = vpop.f32.mrb[0].mxu0
  %v9499 = vadd.f32 0.0, %v9498
  %v9500 = vpop.f32.mrb[0].mxu0
  %9501 = vmatprep.mubr.f32.mxu0 0.0
  %9502 = vmatmul.mubr.f32.gmra.mrb[0].mxu0 %v5536
  %v9503 = vpop.f32.mrb[0].mxu0
  %v9504 = vadd.f32 0.0, %v9503
  %v9505 = vpop.f32.mrb[0].mxu0
  %9506 = vdwg.mxu0
  %v9507 = vadd.f32 %v8880, %v9494
  %v9508 = vadd.f32 %v8883, %v9499
  %v9509 = vadd.f32 %v8888, %v9504
  %v9510 = vpack.c.bf16 %v9508, %v9507
  %v9511 = vpack.c.bf16 %v9509, %v9509
  %v9513 = vsel %vm1603, %v9510, 0
  %v9516 = vsel %vm1603, %v9511, 0
  %9518 = vmatprep.subr.bf16.mxu0 0
  %9519 = vmatpush1.bf16.msra.mxu0 %v5645
  %9520 = vmatprep.subr.bf16.mxu0 0
  %9521 = vmatpush1.bf16.msra.mxu0 %v5646
  %9522 = vmatprep.subr.bf16.mxu0 0
  %9523 = vmatpush1.bf16.msra.mxu0 0
  %9524 = vmatprep.subr.bf16.mxu0 0
  %9525 = vmatpush1.bf16.msra.mxu0 0
  %9526 = vmatprep.subr.bf16.mxu0 0
  %9527 = vmatpush1.bf16.msra.mxu0 0
  %9528 = vmatprep.subr.bf16.mxu0 0
  %9529 = vmatpush1.bf16.msra.mxu0 0
  %9530 = vmatprep.subr.bf16.mxu0 0
  %9531 = vmatpush1.bf16.msra.mxu0 0
  %9532 = vmatprep.subr.bf16.mxu0 0
  %9533 = vmatpush1.bf16.msra.mxu0 0
  %9534 = vmatprep.subr.bf16.mxu0 0
  %9535 = vmatpush1.bf16.msra.mxu0 0
  %9536 = vmatprep.subr.bf16.mxu0 0
  %9537 = vmatpush1.bf16.msra.mxu0 0
  %9538 = vmatprep.subr.bf16.mxu0 0
  %9539 = vmatpush1.bf16.msra.mxu0 0
  %9540 = vmatprep.subr.bf16.mxu0 0
  %9541 = vmatpush1.bf16.msra.mxu0 0
  %9542 = vmatprep.subr.bf16.mxu0 0
  %9543 = vmatpush1.bf16.msra.mxu0 0
  %9544 = vmatprep.subr.bf16.mxu0 0
  %9545 = vmatpush1.bf16.msra.mxu0 0
  %9546 = vmatprep.subr.bf16.mxu0 0
  %9547 = vmatpush1.bf16.msra.mxu0 0
  %9548 = vmatprep.subr.bf16.mxu0 0
  %9549 = vmatpush1.bf16.msra.mxu0 0
  %9550 = vmatprep.mubr.bf16.mxu0 0
  %9551 = vmatmul.mubr.bf16.gmra.mrb[0].mxu0 %v9513
  %v9552 = vpop.f32.mrb[0].mxu0
  %v9553 = vadd.f32 %v5635, %v9552
  %v9554 = vpop.f32.mrb[0].mxu0
  %v9555 = vpop.f32.mrb[0].mxu0
  %v9556 = vadd.f32 %v5635, %v9555
  %v9557 = vpop.f32.mrb[0].mxu0
  %9558 = vmatprep.mubr.bf16.mxu0 0
  %9559 = vmatmul.mubr.bf16.gmra.mrb[0].mxu0 %v9516
  %v9560 = vpop.f32.mrb[0].mxu0
  %v9561 = vadd.f32 %v5635, %v9560
  %v9562 = vpop.f32.mrb[0].mxu0
  %v9563 = vpop.f32.mrb[0].mxu0
  %v9564 = vpop.f32.mrb[0].mxu0
  %9565 = vdwg.mxu0
  %v9566 = vmax.f32 %v9553, 0.0
  %v9567 = vmax.f32 %v9556, 0.0
  %v9568 = vmax.f32 %v9561, 0.0
  %v9569 = vpack.c.bf16 %v9567, %v9566
  %v9570 = vpack.c.bf16 %v9568, %v9568
  %v9572 = vsel %vm1603, %v9569, 0
  %v9575 = vsel %vm1603, %v9570, 0
  %9577 = vmatprep.subr.bf16.mxu0 0
  %9578 = vmatpush1.bf16.msra.mxu0 %v5727
  %9579 = vmatprep.subr.bf16.mxu0 0
  %9580 = vmatpush1.bf16.msra.mxu0 %v5728
  %9581 = vmatprep.subr.bf16.mxu0 0
  %9582 = vmatpush1.bf16.msra.mxu0 0
  %9583 = vmatprep.subr.bf16.mxu0 0
  %9584 = vmatpush1.bf16.msra.mxu0 0
  %9585 = vmatprep.subr.bf16.mxu0 0
  %9586 = vmatpush1.bf16.msra.mxu0 0
  %9587 = vmatprep.subr.bf16.mxu0 0
  %9588 = vmatpush1.bf16.msra.mxu0 0
  %9589 = vmatprep.subr.bf16.mxu0 0
  %9590 = vmatpush1.bf16.msra.mxu0 0
  %9591 = vmatprep.subr.bf16.mxu0 0
  %9592 = vmatpush1.bf16.msra.mxu0 0
  %9593 = vmatprep.subr.bf16.mxu0 0
  %9594 = vmatpush1.bf16.msra.mxu0 0
  %9595 = vmatprep.subr.bf16.mxu0 0
  %9596 = vmatpush1.bf16.msra.mxu0 0
  %9597 = vmatprep.subr.bf16.mxu0 0
  %9598 = vmatpush1.bf16.msra.mxu0 0
  %9599 = vmatprep.subr.bf16.mxu0 0
  %9600 = vmatpush1.bf16.msra.mxu0 0
  %9601 = vmatprep.subr.bf16.mxu0 0
  %9602 = vmatpush1.bf16.msra.mxu0 0
  %9603 = vmatprep.subr.bf16.mxu0 0
  %9604 = vmatpush1.bf16.msra.mxu0 0
  %9605 = vmatprep.subr.bf16.mxu0 0
  %9606 = vmatpush1.bf16.msra.mxu0 0
  %9607 = vmatprep.subr.bf16.mxu0 0
  %9608 = vmatpush1.bf16.msra.mxu0 0
  %9609 = vmatprep.mubr.bf16.mxu0 0
  %9610 = vmatmul.mubr.bf16.gmra.mrb[0].mxu0 %v9572
  %v9611 = vpop.f32.mrb[0].mxu0
  %v9612 = vadd.f32 %v5717, %v9611
  %v9613 = vpop.f32.mrb[0].mxu0
  %v9614 = vpop.f32.mrb[0].mxu0
  %v9615 = vadd.f32 %v5717, %v9614
  %v9616 = vpop.f32.mrb[0].mxu0
  %9617 = vmatprep.mubr.bf16.mxu0 0
  %9618 = vmatmul.mubr.bf16.gmra.mrb[0].mxu0 %v9575
  %v9619 = vpop.f32.mrb[0].mxu0
  %v9620 = vadd.f32 %v5717, %v9619
  %v9621 = vpop.f32.mrb[0].mxu0
  %v9622 = vpop.f32.mrb[0].mxu0
  %v9623 = vpop.f32.mrb[0].mxu0
  %9624 = vdwg.mxu0
  %v9625 = vmax.f32 %v9612, 0.0
  %v9626 = vmax.f32 %v9615, 0.0
  %v9627 = vmax.f32 %v9620, 0.0
  %v9628 = vpack.c.bf16 %v9626, %v9625
  %v9629 = vpack.c.bf16 %v9627, %v9627
  %v9631 = vsel %vm1397, %v9628, 0
  %v9634 = vsel %vm1397, %v9629, 0
  %9636 = vmatprep.subr.bf16.mxu0 0
  %9637 = vmatpush1.bf16.msra.mxu0 %v5821
  %9638 = vmatprep.subr.bf16.mxu0 0
  %9639 = vmatpush1.bf16.msra.mxu0 %v5822
  %9640 = vmatprep.subr.bf16.mxu0 0
  %9641 = vmatpush1.bf16.msra.mxu0 %v5823
  %9642 = vmatprep.subr.bf16.mxu0 0
  %9643 = vmatpush1.bf16.msra.mxu0 %v5824
  %9644 = vmatprep.subr.bf16.mxu0 0
  %9645 = vmatpush1.bf16.msra.mxu0 0
  %9646 = vmatprep.subr.bf16.mxu0 0
  %9647 = vmatpush1.bf16.msra.mxu0 0
  %9648 = vmatprep.subr.bf16.mxu0 0
  %9649 = vmatpush1.bf16.msra.mxu0 0
  %9650 = vmatprep.subr.bf16.mxu0 0
  %9651 = vmatpush1.bf16.msra.mxu0 0
  %9652 = vmatprep.subr.bf16.mxu0 0
  %9653 = vmatpush1.bf16.msra.mxu0 0
  %9654 = vmatprep.subr.bf16.mxu0 0
  %9655 = vmatpush1.bf16.msra.mxu0 0
  %9656 = vmatprep.subr.bf16.mxu0 0
  %9657 = vmatpush1.bf16.msra.mxu0 0
  %9658 = vmatprep.subr.bf16.mxu0 0
  %9659 = vmatpush1.bf16.msra.mxu0 0
  %9660 = vmatprep.subr.bf16.mxu0 0
  %9661 = vmatpush1.bf16.msra.mxu0 0
  %9662 = vmatprep.subr.bf16.mxu0 0
  %9663 = vmatpush1.bf16.msra.mxu0 0
  %9664 = vmatprep.subr.bf16.mxu0 0
  %9665 = vmatpush1.bf16.msra.mxu0 0
  %9666 = vmatprep.subr.bf16.mxu0 0
  %9667 = vmatpush1.bf16.msra.mxu0 0
  %9668 = vmatprep.mubr.bf16.mxu0 0
  %9669 = vmatmul.mubr.bf16.gmra.mrb[0].mxu0 %v9631
  %v9670 = vpop.f32.mrb[0].mxu0
  %v9671 = vadd.f32 %v5803, %v9670
  %v9672 = vpop.f32.mrb[0].mxu0
  %v9673 = vpop.f32.mrb[0].mxu0
  %v9674 = vadd.f32 %v5803, %v9673
  %v9675 = vpop.f32.mrb[0].mxu0
  %9676 = vmatprep.mubr.bf16.mxu0 0
  %9677 = vmatmul.mubr.bf16.gmra.mrb[0].mxu0 %v9634
  %v9678 = vpop.f32.mrb[0].mxu0
  %v9679 = vadd.f32 %v5803, %v9678
  %v9680 = vpop.f32.mrb[0].mxu0
  %v9681 = vpop.f32.mrb[0].mxu0
  %v9682 = vpop.f32.mrb[0].mxu0
  %9683 = vdwg.mxu0
  %v9684 = vsub.f32 0.0, %v9671
  %v9685 = vsub.f32 0.0, %v9674
  %v9686 = vsub.f32 0.0, %v9679
  %v9687 = vmul.f32 %v9684, 1.442695
  %v9688 = vpow.pop %v9687
  %v9689 = vmul.f32 %v9685, 1.442695
  %v9690 = vpow.pop %v9689
  %v9691 = vmul.f32 %v9686, 1.442695
  %v9692 = vpow.pop %v9691
  %v9693 = vadd.f32 %v9688, 1.0
  %v9694 = vadd.f32 %v9690, 1.0
  %v9695 = vadd.f32 %v9692, 1.0
  %v9696 = vrcp.pop %v9693
  %v9697 = vrcp.pop %v9694
  %v9698 = vrcp.pop %v9695
  %v9699 = vmax.f32 %v9696, 0.01
  %v9700 = vmax.f32 %v9697, 0.01
  %v9701 = vmax.f32 %v9698, 0.01
  %v9702 = vmin.f32 %v9699, 0.99
  %v9703 = vmin.f32 %v9700, 0.99
  %v9704 = vmin.f32 %v9701, 0.99
  %v9706 = vsel %vm256, %v9702, 0
  %v9709 = vsel %vm256, %v9703, 0
  %v9712 = vsel %vm256, %v9704, 0
  %9714 = vmatprep.subr.mxu0 0.0
  %9715 = vmatpush1.msra.mxu0 %v174
  %9716 = vmatprep.subr.mxu0 0.0
  %9717 = vmatpush1.msra.mxu0 %v175
  %9718 = vmatprep.subr.mxu0 0.0
  %9719 = vmatpush1.msra.mxu0 0.0
  %9720 = vmatprep.subr.mxu0 0.0
  %9721 = vmatpush1.msra.mxu0 0.0
  %9722 = vmatprep.subr.mxu0 0.0
  %9723 = vmatpush1.msra.mxu0 0.0
  %9724 = vmatprep.subr.mxu0 0.0
  %9725 = vmatpush1.msra.mxu0 0.0
  %9726 = vmatprep.subr.mxu0 0.0
  %9727 = vmatpush1.msra.mxu0 0.0
  %9728 = vmatprep.subr.mxu0 0.0
  %9729 = vmatpush1.msra.mxu0 0.0
  %9730 = vmatprep.subr.mxu0 0.0
  %9731 = vmatpush1.msra.mxu0 0.0
  %9732 = vmatprep.subr.mxu0 0.0
  %9733 = vmatpush1.msra.mxu0 0.0
  %9734 = vmatprep.subr.mxu0 0.0
  %9735 = vmatpush1.msra.mxu0 0.0
  %9736 = vmatprep.subr.mxu0 0.0
  %9737 = vmatpush1.msra.mxu0 0.0
  %9738 = vmatprep.subr.mxu0 0.0
  %9739 = vmatpush1.msra.mxu0 0.0
  %9740 = vmatprep.subr.mxu0 0.0
  %9741 = vmatpush1.msra.mxu0 0.0
  %9742 = vmatprep.subr.mxu0 0.0
  %9743 = vmatpush1.msra.mxu0 0.0
  %9744 = vmatprep.subr.mxu0 0.0
  %9745 = vmatpush1.msra.mxu0 0.0
  %9746 = vmatprep.subr.mxu0 0.0
  %9747 = vmatpush1.msra.mxu0 0.0
  %9748 = vmatprep.subr.mxu0 0.0
  %9749 = vmatpush1.msra.mxu0 0.0
  %9750 = vmatprep.subr.mxu0 0.0
  %9751 = vmatpush1.msra.mxu0 0.0
  %9752 = vmatprep.subr.mxu0 0.0
  %9753 = vmatpush1.msra.mxu0 0.0
  %9754 = vmatprep.subr.mxu0 0.0
  %9755 = vmatpush1.msra.mxu0 0.0
  %9756 = vmatprep.subr.mxu0 0.0
  %9757 = vmatpush1.msra.mxu0 0.0
  %9758 = vmatprep.subr.mxu0 0.0
  %9759 = vmatpush1.msra.mxu0 0.0
  %9760 = vmatprep.subr.mxu0 0.0
  %9761 = vmatpush1.msra.mxu0 0.0
  %9762 = vmatprep.subr.mxu0 0.0
  %9763 = vmatpush1.msra.mxu0 0.0
  %9764 = vmatprep.subr.mxu0 0.0
  %9765 = vmatpush1.msra.mxu0 0.0
  %9766 = vmatprep.subr.mxu0 0.0
  %9767 = vmatpush1.msra.mxu0 0.0
  %9768 = vmatprep.subr.mxu0 0.0
  %9769 = vmatpush1.msra.mxu0 0.0
  %9770 = vmatprep.subr.mxu0 0.0
  %9771 = vmatpush1.msra.mxu0 0.0
  %9772 = vmatprep.subr.mxu0 0.0
  %9773 = vmatpush1.msra.mxu0 0.0
  %9774 = vmatprep.subr.mxu0 0.0
  %9775 = vmatpush1.msra.mxu0 0.0
  %9776 = vmatprep.subr.mxu0 0.0
  %9777 = vmatpush1.msra.mxu0 0.0
  %9778 = vmatprep.mubr.f32.mxu0 0.0
  %9779 = vmatmul.mubr.f32.gmra.mrb[0].mxu0 %v9706
  %v9780 = vpop.f32.mrb[0].mxu0
  %v9781 = vadd.f32 0.0, %v9780
  %v9782 = vpop.f32.mrb[0].mxu0
  %9783 = vmatprep.mubr.f32.mxu0 0.0
  %9784 = vmatmul.mubr.f32.gmra.mrb[0].mxu0 %v9709
  %v9785 = vpop.f32.mrb[0].mxu0
  %v9786 = vadd.f32 0.0, %v9785
  %v9787 = vpop.f32.mrb[0].mxu0
  %9788 = vmatprep.mubr.f32.mxu0 0.0
  %9789 = vmatmul.mubr.f32.gmra.mrb[0].mxu0 %v9712
  %v9790 = vpop.f32.mrb[0].mxu0
  %v9791 = vadd.f32 0.0, %v9790
  %v9792 = vpop.f32.mrb[0].mxu0
  %9793 = vdwg.mxu0
  %9794 = vmatprep.subr.mxu0 0.0
  %9795 = vmatpush1.msra.mxu0 %v199
  %9796 = vmatprep.subr.mxu0 0.0
  %9797 = vmatpush1.msra.mxu0 %v200
  %9798 = vmatprep.subr.mxu0 0.0
  %9799 = vmatpush1.msra.mxu0 0.0
  %9800 = vmatprep.subr.mxu0 0.0
  %9801 = vmatpush1.msra.mxu0 0.0
  %9802 = vmatprep.subr.mxu0 0.0
  %9803 = vmatpush1.msra.mxu0 0.0
  %9804 = vmatprep.subr.mxu0 0.0
  %9805 = vmatpush1.msra.mxu0 0.0
  %9806 = vmatprep.subr.mxu0 0.0
  %9807 = vmatpush1.msra.mxu0 0.0
  %9808 = vmatprep.subr.mxu0 0.0
  %9809 = vmatpush1.msra.mxu0 0.0
  %9810 = vmatprep.subr.mxu0 0.0
  %9811 = vmatpush1.msra.mxu0 0.0
  %9812 = vmatprep.subr.mxu0 0.0
  %9813 = vmatpush1.msra.mxu0 0.0
  %9814 = vmatprep.subr.mxu0 0.0
  %9815 = vmatpush1.msra.mxu0 0.0
  %9816 = vmatprep.subr.mxu0 0.0
  %9817 = vmatpush1.msra.mxu0 0.0
  %9818 = vmatprep.subr.mxu0 0.0
  %9819 = vmatpush1.msra.mxu0 0.0
  %9820 = vmatprep.subr.mxu0 0.0
  %9821 = vmatpush1.msra.mxu0 0.0
  %9822 = vmatprep.subr.mxu0 0.0
  %9823 = vmatpush1.msra.mxu0 0.0
  %9824 = vmatprep.subr.mxu0 0.0
  %9825 = vmatpush1.msra.mxu0 0.0
  %9826 = vmatprep.subr.mxu0 0.0
  %9827 = vmatpush1.msra.mxu0 0.0
  %9828 = vmatprep.subr.mxu0 0.0
  %9829 = vmatpush1.msra.mxu0 0.0
  %9830 = vmatprep.subr.mxu0 0.0
  %9831 = vmatpush1.msra.mxu0 0.0
  %9832 = vmatprep.subr.mxu0 0.0
  %9833 = vmatpush1.msra.mxu0 0.0
  %9834 = vmatprep.subr.mxu0 0.0
  %9835 = vmatpush1.msra.mxu0 0.0
  %9836 = vmatprep.subr.mxu0 0.0
  %9837 = vmatpush1.msra.mxu0 0.0
  %9838 = vmatprep.subr.mxu0 0.0
  %9839 = vmatpush1.msra.mxu0 0.0
  %9840 = vmatprep.subr.mxu0 0.0
  %9841 = vmatpush1.msra.mxu0 0.0
  %9842 = vmatprep.subr.mxu0 0.0
  %9843 = vmatpush1.msra.mxu0 0.0
  %9844 = vmatprep.subr.mxu0 0.0
  %9845 = vmatpush1.msra.mxu0 0.0
  %9846 = vmatprep.subr.mxu0 0.0
  %9847 = vmatpush1.msra.mxu0 0.0
  %9848 = vmatprep.subr.mxu0 0.0
  %9849 = vmatpush1.msra.mxu0 0.0
  %9850 = vmatprep.subr.mxu0 0.0
  %9851 = vmatpush1.msra.mxu0 0.0
  %9852 = vmatprep.subr.mxu0 0.0
  %9853 = vmatpush1.msra.mxu0 0.0
  %9854 = vmatprep.subr.mxu0 0.0
  %9855 = vmatpush1.msra.mxu0 0.0
  %9856 = vmatprep.subr.mxu0 0.0
  %9857 = vmatpush1.msra.mxu0 0.0
  %9858 = vmatprep.mubr.f32.mxu0 0.0
  %9859 = vmatmul.mubr.f32.gmra.mrb[0].mxu0 %v9706
  %v9860 = vpop.f32.mrb[0].mxu0
  %v9861 = vadd.f32 0.0, %v9860
  %v9862 = vpop.f32.mrb[0].mxu0
  %9863 = vmatprep.mubr.f32.mxu0 0.0
  %9864 = vmatmul.mubr.f32.gmra.mrb[0].mxu0 %v9709
  %v9865 = vpop.f32.mrb[0].mxu0
  %v9866 = vadd.f32 0.0, %v9865
  %v9867 = vpop.f32.mrb[0].mxu0
  %9868 = vmatprep.mubr.f32.mxu0 0.0
  %9869 = vmatmul.mubr.f32.gmra.mrb[0].mxu0 %v9712
  %v9870 = vpop.f32.mrb[0].mxu0
  %v9871 = vadd.f32 0.0, %v9870
  %v9872 = vpop.f32.mrb[0].mxu0
  %9873 = vdwg.mxu0
  %v9874 = vlog2.pop %v9781
  %v9875 = vmul.f32 %v9874, 0.6931472
  %v9876 = vlog2.pop %v9786
  %v9877 = vmul.f32 %v9876, 0.6931472
  %v9878 = vlog2.pop %v9791
  %v9879 = vmul.f32 %v9878, 0.6931472
  %v9880 = vmul.f32 %v9875, -2.0
  %v9881 = vmul.f32 %v9877, -2.0
  %v9882 = vmul.f32 %v9879, -2.0
  %v9883 = vrsqrt.pop %v9880
  %v9884 = vmul.f32 %v9880, %v9883
  %vm9885 = vcmp.eq.f32.partialorder %v9880, inf
  %v9886 = vsel %vm9885, %v9880, %v9884
  %vm9887 = vcmp.eq.f32.partialorder %v9880, 0.0
  %v9888 = vand.u32 %v9880, 2147483648
  %v9889 = vsel %vm9887, %v9888, %v9886
  %v9890 = vrsqrt.pop %v9881
  %v9891 = vmul.f32 %v9881, %v9890
  %vm9892 = vcmp.eq.f32.partialorder %v9881, inf
  %v9893 = vsel %vm9892, %v9881, %v9891
  %vm9894 = vcmp.eq.f32.partialorder %v9881, 0.0
  %v9895 = vand.u32 %v9881, 2147483648
  %v9896 = vsel %vm9894, %v9895, %v9893
  %v9897 = vrsqrt.pop %v9882
  %v9898 = vmul.f32 %v9882, %v9897
  %vm9899 = vcmp.eq.f32.partialorder %v9882, inf
  %v9900 = vsel %vm9899, %v9882, %v9898
  %vm9901 = vcmp.eq.f32.partialorder %v9882, 0.0
  %v9902 = vand.u32 %v9882, 2147483648
  %v9903 = vsel %vm9901, %v9902, %v9900
  %v9904 = vmul.f32 %v9861, 4.0
  %v9905 = vmul.f32 %v9866, 4.0
  %v9906 = vmul.f32 %v9871, 4.0
  %vm9907 = vcmp.ge.f32.partialorder %v9904, 0.5
  %vm9908 = vcmp.ge.f32.partialorder %v9905, 0.5
  %vm9909 = vcmp.ge.f32.partialorder %v9906, 0.5
  %v9910 = vsel %vm9907, 1, 0
  %v9911 = vsel %vm9908, 1, 0
  %v9912 = vsel %vm9909, 1, 0
  %v9913 = vcvt.s32.f32 %v9910
  %v9914 = vcvt.s32.f32 %v9911
  %v9915 = vcvt.s32.f32 %v9912
  %vm9916 = vcmp.ge.f32.partialorder %v9904, 1.5
  %vm9917 = vcmp.ge.f32.partialorder %v9905, 1.5
  %vm9918 = vcmp.ge.f32.partialorder %v9906, 1.5
  %v9919 = vsel %vm9916, 1, 0
  %v9920 = vsel %vm9917, 1, 0
  %v9921 = vsel %vm9918, 1, 0
  %v9922 = vcvt.s32.f32 %v9919
  %v9923 = vcvt.s32.f32 %v9920
  %v9924 = vcvt.s32.f32 %v9921
  %v9925 = vadd.f32 %v9913, %v9922
  %v9926 = vadd.f32 %v9914, %v9923
  %v9927 = vadd.f32 %v9915, %v9924
  %vm9928 = vcmp.ge.f32.partialorder %v9904, 2.5
  %vm9929 = vcmp.ge.f32.partialorder %v9905, 2.5
  %vm9930 = vcmp.ge.f32.partialorder %v9906, 2.5
  %v9931 = vsel %vm9928, 1, 0
  %v9932 = vsel %vm9929, 1, 0
  %v9933 = vsel %vm9930, 1, 0
  %v9934 = vcvt.s32.f32 %v9931
  %v9935 = vcvt.s32.f32 %v9932
  %v9936 = vcvt.s32.f32 %v9933
  %v9937 = vadd.f32 %v9925, %v9934
  %v9938 = vadd.f32 %v9926, %v9935
  %v9939 = vadd.f32 %v9927, %v9936
  %vm9940 = vcmp.ge.f32.partialorder %v9904, 3.5
  %vm9941 = vcmp.ge.f32.partialorder %v9905, 3.5
  %vm9942 = vcmp.ge.f32.partialorder %v9906, 3.5
  %v9943 = vsel %vm9940, 1, 0
  %v9944 = vsel %vm9941, 1, 0
  %v9945 = vsel %vm9942, 1, 0
  %v9946 = vcvt.s32.f32 %v9943
  %v9947 = vcvt.s32.f32 %v9944
  %v9948 = vcvt.s32.f32 %v9945
  %v9949 = vadd.f32 %v9937, %v9946
  %v9950 = vadd.f32 %v9938, %v9947
  %v9951 = vadd.f32 %v9939, %v9948
  %v9952 = vsub.f32 %v9904, %v9949
  %v9953 = vsub.f32 %v9905, %v9950
  %v9954 = vsub.f32 %v9906, %v9951
  %v9955 = vmul.f32 %v9952, 1.5707964
  %v9956 = vmul.f32 %v9953, 1.5707964
  %v9957 = vmul.f32 %v9954, 1.5707964
  %v9958 = vmul.f32 %v9955, %v9955
  %v9959 = vmul.f32 %v9956, %v9956
  %v9960 = vmul.f32 %v9957, %v9957
  %v9961 = vmul.f32 %v9958, 2.4801588e-05
  %v9962 = vmul.f32 %v9959, 2.4801588e-05
  %v9963 = vmul.f32 %v9960, 2.4801588e-05
  %v9964 = vadd.f32 %v9961, -0.0013888889
  %v9965 = vadd.f32 %v9962, -0.0013888889
  %v9966 = vadd.f32 %v9963, -0.0013888889
  %v9967 = vmul.f32 %v9958, %v9964
  %v9968 = vmul.f32 %v9959, %v9965
  %v9969 = vmul.f32 %v9960, %v9966
  %v9970 = vadd.f32 %v9967, 0.041666668
  %v9971 = vadd.f32 %v9968, 0.041666668
  %v9972 = vadd.f32 %v9969, 0.041666668
  %v9973 = vmul.f32 %v9958, %v9970
  %v9974 = vmul.f32 %v9959, %v9971
  %v9975 = vmul.f32 %v9960, %v9972
  %v9976 = vadd.f32 %v9973, -0.5
  %v9977 = vadd.f32 %v9974, -0.5
  %v9978 = vadd.f32 %v9975, -0.5
  %v9979 = vmul.f32 %v9958, %v9976
  %v9980 = vmul.f32 %v9959, %v9977
  %v9981 = vmul.f32 %v9960, %v9978
  %v9982 = vadd.f32 %v9979, 1.0
  %v9983 = vadd.f32 %v9980, 1.0
  %v9984 = vadd.f32 %v9981, 1.0
  %v9985 = vmul.f32 %v9958, 2.7557319e-06
  %v9986 = vmul.f32 %v9959, 2.7557319e-06
  %v9987 = vmul.f32 %v9960, 2.7557319e-06
  %v9988 = vadd.f32 %v9985, -0.0001984127
  %v9989 = vadd.f32 %v9986, -0.0001984127
  %v9990 = vadd.f32 %v9987, -0.0001984127
  %v9991 = vmul.f32 %v9958, %v9988
  %v9992 = vmul.f32 %v9959, %v9989
  %v9993 = vmul.f32 %v9960, %v9990
  %v9994 = vadd.f32 %v9991, 0.008333334
  %v9995 = vadd.f32 %v9992, 0.008333334
  %v9996 = vadd.f32 %v9993, 0.008333334
  %v9997 = vmul.f32 %v9958, %v9994
  %v9998 = vmul.f32 %v9959, %v9995
  %v9999 = vmul.f32 %v9960, %v9996
  %v10000 = vadd.f32 %v9997, -0.16666667
  %v10001 = vadd.f32 %v9998, -0.16666667
  %v10002 = vadd.f32 %v9999, -0.16666667
  %v10003 = vmul.f32 %v9958, %v10000
  %v10004 = vmul.f32 %v9959, %v10001
  %v10005 = vmul.f32 %v9960, %v10002
  %v10006 = vadd.f32 %v10003, 1.0
  %v10007 = vadd.f32 %v10004, 1.0
  %v10008 = vadd.f32 %v10005, 1.0
  %v10009 = vmul.f32 %v9955, %v10006
  %v10010 = vmul.f32 %v9956, %v10007
  %v10011 = vmul.f32 %v9957, %v10008
  %vm10012 = vcmp.ge.f32.partialorder %v9949, 3.5
  %vm10013 = vcmp.ge.f32.partialorder %v9950, 3.5
  %vm10014 = vcmp.ge.f32.partialorder %v9951, 3.5
  %v10015 = vsub.f32 %v9949, 4.0
  %v10016 = vsub.f32 %v9950, 4.0
  %v10017 = vsub.f32 %v9951, 4.0
  %v10018 = vsel %vm10012, %v10015, %v9949
  %v10019 = vsel %vm10013, %v10016, %v9950
  %v10020 = vsel %vm10014, %v10017, %v9951
  %vm10021 = vcmp.eq.f32.partialorder %v10018, 0.0
  %vm10022 = vcmp.eq.f32.partialorder %v10019, 0.0
  %vm10023 = vcmp.eq.f32.partialorder %v10020, 0.0
  %vm10024 = vcmp.eq.f32.partialorder %v10018, 1.0
  %vm10025 = vcmp.eq.f32.partialorder %v10019, 1.0
  %vm10026 = vcmp.eq.f32.partialorder %v10020, 1.0
  %v10027 = vsub.f32 0.0, %v10009
  %v10028 = vsub.f32 0.0, %v10010
  %v10029 = vsub.f32 0.0, %v10011
  %vm10030 = vcmp.eq.f32.partialorder %v10018, 2.0
  %vm10031 = vcmp.eq.f32.partialorder %v10019, 2.0
  %vm10032 = vcmp.eq.f32.partialorder %v10020, 2.0
  %v10033 = vsub.f32 0.0, %v9982
  %v10034 = vsub.f32 0.0, %v9983
  %v10035 = vsub.f32 0.0, %v9984
  %v10036 = vsel %vm10030, %v10033, %v10009
  %v10037 = vsel %vm10031, %v10034, %v10010
  %v10038 = vsel %vm10032, %v10035, %v10011
  %v10039 = vsel %vm10024, %v10027, %v10036
  %v10040 = vsel %vm10025, %v10028, %v10037
  %v10041 = vsel %vm10026, %v10029, %v10038
  %v10042 = vsel %vm10021, %v9982, %v10039
  %v10043 = vsel %vm10022, %v9983, %v10040
  %v10044 = vsel %vm10023, %v9984, %v10041
  %v10045 = vsel %vm10030, %v10027, %v10033
  %v10046 = vsel %vm10031, %v10028, %v10034
  %v10047 = vsel %vm10032, %v10029, %v10035
  %v10048 = vsel %vm10024, %v9982, %v10045
  %v10049 = vsel %vm10025, %v9983, %v10046
  %v10050 = vsel %vm10026, %v9984, %v10047
  %v10051 = vsel %vm10021, %v10009, %v10048
  %v10052 = vsel %vm10022, %v10010, %v10049
  %v10053 = vsel %vm10023, %v10011, %v10050
  %v10054 = vmul.f32 %v9889, %v10042
  %v10055 = vmul.f32 %v9896, %v10043
  %v10056 = vmul.f32 %v9903, %v10044
  %v10057 = vmul.f32 %v9889, %v10051
  %v10058 = vmul.f32 %v9896, %v10052
  %v10059 = vmul.f32 %v9903, %v10053
  %v10061 = vsel %vm6259, %v10057, 0
  %v10064 = vsel %vm6259, %v10058, 0
  %v10067 = vsel %vm6259, %v10059, 0
  %10069 = vmatprep.subr.mxu0 0.0
  %10070 = vmatpush1.msra.mxu0 %v235
  %10071 = vmatprep.subr.mxu0 0.0
  %10072 = vmatpush1.msra.mxu0 0.0
  %10073 = vmatprep.subr.mxu0 0.0
  %10074 = vmatpush1.msra.mxu0 0.0
  %10075 = vmatprep.subr.mxu0 0.0
  %10076 = vmatpush1.msra.mxu0 0.0
  %10077 = vmatprep.subr.mxu0 0.0
  %10078 = vmatpush1.msra.mxu0 0.0
  %10079 = vmatprep.subr.mxu0 0.0
  %10080 = vmatpush1.msra.mxu0 0.0
  %10081 = vmatprep.subr.mxu0 0.0
  %10082 = vmatpush1.msra.mxu0 0.0
  %10083 = vmatprep.subr.mxu0 0.0
  %10084 = vmatpush1.msra.mxu0 0.0
  %10085 = vmatprep.subr.mxu0 0.0
  %10086 = vmatpush1.msra.mxu0 0.0
  %10087 = vmatprep.subr.mxu0 0.0
  %10088 = vmatpush1.msra.mxu0 0.0
  %10089 = vmatprep.subr.mxu0 0.0
  %10090 = vmatpush1.msra.mxu0 0.0
  %10091 = vmatprep.subr.mxu0 0.0
  %10092 = vmatpush1.msra.mxu0 0.0
  %10093 = vmatprep.subr.mxu0 0.0
  %10094 = vmatpush1.msra.mxu0 0.0
  %10095 = vmatprep.subr.mxu0 0.0
  %10096 = vmatpush1.msra.mxu0 0.0
  %10097 = vmatprep.subr.mxu0 0.0
  %10098 = vmatpush1.msra.mxu0 0.0
  %10099 = vmatprep.subr.mxu0 0.0
  %10100 = vmatpush1.msra.mxu0 0.0
  %10101 = vmatprep.subr.mxu0 0.0
  %10102 = vmatpush1.msra.mxu0 0.0
  %10103 = vmatprep.subr.mxu0 0.0
  %10104 = vmatpush1.msra.mxu0 0.0
  %10105 = vmatprep.subr.mxu0 0.0
  %10106 = vmatpush1.msra.mxu0 0.0
  %10107 = vmatprep.subr.mxu0 0.0
  %10108 = vmatpush1.msra.mxu0 0.0
  %10109 = vmatprep.subr.mxu0 0.0
  %10110 = vmatpush1.msra.mxu0 0.0
  %10111 = vmatprep.subr.mxu0 0.0
  %10112 = vmatpush1.msra.mxu0 0.0
  %10113 = vmatprep.subr.mxu0 0.0
  %10114 = vmatpush1.msra.mxu0 0.0
  %10115 = vmatprep.subr.mxu0 0.0
  %10116 = vmatpush1.msra.mxu0 0.0
  %10117 = vmatprep.subr.mxu0 0.0
  %10118 = vmatpush1.msra.mxu0 0.0
  %10119 = vmatprep.subr.mxu0 0.0
  %10120 = vmatpush1.msra.mxu0 0.0
  %10121 = vmatprep.subr.mxu0 0.0
  %10122 = vmatpush1.msra.mxu0 0.0
  %10123 = vmatprep.subr.mxu0 0.0
  %10124 = vmatpush1.msra.mxu0 0.0
  %10125 = vmatprep.subr.mxu0 0.0
  %10126 = vmatpush1.msra.mxu0 0.0
  %10127 = vmatprep.subr.mxu0 0.0
  %10128 = vmatpush1.msra.mxu0 0.0
  %10129 = vmatprep.subr.mxu0 0.0
  %10130 = vmatpush1.msra.mxu0 0.0
  %10131 = vmatprep.subr.mxu0 0.0
  %10132 = vmatpush1.msra.mxu0 0.0
  %10133 = vmatprep.mubr.f32.mxu0 0.0
  %10134 = vmatmul.mubr.f32.gmra.mrb[0].mxu0 %v10061
  %v10135 = vpop.f32.mrb[0].mxu0
  %v10136 = vadd.f32 0.0, %v10135
  %v10137 = vpop.f32.mrb[0].mxu0
  %10138 = vmatprep.mubr.f32.mxu0 0.0
  %10139 = vmatmul.mubr.f32.gmra.mrb[0].mxu0 %v10064
  %v10140 = vpop.f32.mrb[0].mxu0
  %v10141 = vadd.f32 0.0, %v10140
  %v10142 = vpop.f32.mrb[0].mxu0
  %10143 = vmatprep.mubr.f32.mxu0 0.0
  %10144 = vmatmul.mubr.f32.gmra.mrb[0].mxu0 %v10067
  %v10145 = vpop.f32.mrb[0].mxu0
  %v10146 = vadd.f32 0.0, %v10145
  %v10147 = vpop.f32.mrb[0].mxu0
  %10148 = vdwg.mxu0
  %v10150 = vsel %vm6259, %v10054, 0
  %v10153 = vsel %vm6259, %v10055, 0
  %v10156 = vsel %vm6259, %v10056, 0
  %10158 = vmatprep.subr.mxu0 0.0
  %10159 = vmatpush1.msra.mxu0 %v219
  %10160 = vmatprep.subr.mxu0 0.0
  %10161 = vmatpush1.msra.mxu0 0.0
  %10162 = vmatprep.subr.mxu0 0.0
  %10163 = vmatpush1.msra.mxu0 0.0
  %10164 = vmatprep.subr.mxu0 0.0
  %10165 = vmatpush1.msra.mxu0 0.0
  %10166 = vmatprep.subr.mxu0 0.0
  %10167 = vmatpush1.msra.mxu0 0.0
  %10168 = vmatprep.subr.mxu0 0.0
  %10169 = vmatpush1.msra.mxu0 0.0
  %10170 = vmatprep.subr.mxu0 0.0
  %10171 = vmatpush1.msra.mxu0 0.0
  %10172 = vmatprep.subr.mxu0 0.0
  %10173 = vmatpush1.msra.mxu0 0.0
  %10174 = vmatprep.subr.mxu0 0.0
  %10175 = vmatpush1.msra.mxu0 0.0
  %10176 = vmatprep.subr.mxu0 0.0
  %10177 = vmatpush1.msra.mxu0 0.0
  %10178 = vmatprep.subr.mxu0 0.0
  %10179 = vmatpush1.msra.mxu0 0.0
  %10180 = vmatprep.subr.mxu0 0.0
  %10181 = vmatpush1.msra.mxu0 0.0
  %10182 = vmatprep.subr.mxu0 0.0
  %10183 = vmatpush1.msra.mxu0 0.0
  %10184 = vmatprep.subr.mxu0 0.0
  %10185 = vmatpush1.msra.mxu0 0.0
  %10186 = vmatprep.subr.mxu0 0.0
  %10187 = vmatpush1.msra.mxu0 0.0
  %10188 = vmatprep.subr.mxu0 0.0
  %10189 = vmatpush1.msra.mxu0 0.0
  %10190 = vmatprep.subr.mxu0 0.0
  %10191 = vmatpush1.msra.mxu0 0.0
  %10192 = vmatprep.subr.mxu0 0.0
  %10193 = vmatpush1.msra.mxu0 0.0
  %10194 = vmatprep.subr.mxu0 0.0
  %10195 = vmatpush1.msra.mxu0 0.0
  %10196 = vmatprep.subr.mxu0 0.0
  %10197 = vmatpush1.msra.mxu0 0.0
  %10198 = vmatprep.subr.mxu0 0.0
  %10199 = vmatpush1.msra.mxu0 0.0
  %10200 = vmatprep.subr.mxu0 0.0
  %10201 = vmatpush1.msra.mxu0 0.0
  %10202 = vmatprep.subr.mxu0 0.0
  %10203 = vmatpush1.msra.mxu0 0.0
  %10204 = vmatprep.subr.mxu0 0.0
  %10205 = vmatpush1.msra.mxu0 0.0
  %10206 = vmatprep.subr.mxu0 0.0
  %10207 = vmatpush1.msra.mxu0 0.0
  %10208 = vmatprep.subr.mxu0 0.0
  %10209 = vmatpush1.msra.mxu0 0.0
  %10210 = vmatprep.subr.mxu0 0.0
  %10211 = vmatpush1.msra.mxu0 0.0
  %10212 = vmatprep.subr.mxu0 0.0
  %10213 = vmatpush1.msra.mxu0 0.0
  %10214 = vmatprep.subr.mxu0 0.0
  %10215 = vmatpush1.msra.mxu0 0.0
  %10216 = vmatprep.subr.mxu0 0.0
  %10217 = vmatpush1.msra.mxu0 0.0
  %10218 = vmatprep.subr.mxu0 0.0
  %10219 = vmatpush1.msra.mxu0 0.0
  %10220 = vmatprep.subr.mxu0 0.0
  %10221 = vmatpush1.msra.mxu0 0.0
  %10222 = vmatprep.mubr.f32.mxu0 0.0
  %10223 = vmatmul.mubr.f32.gmra.mrb[0].mxu0 %v10150
  %v10224 = vpop.f32.mrb[0].mxu0
  %v10225 = vadd.f32 %v10136, %v10224
  %v10226 = vpop.f32.mrb[0].mxu0
  %10227 = vmatprep.mubr.f32.mxu0 0.0
  %10228 = vmatmul.mubr.f32.gmra.mrb[0].mxu0 %v10153
  %v10229 = vpop.f32.mrb[0].mxu0
  %v10230 = vadd.f32 %v10141, %v10229
  %v10231 = vpop.f32.mrb[0].mxu0
  %10232 = vmatprep.mubr.f32.mxu0 0.0
  %10233 = vmatmul.mubr.f32.gmra.mrb[0].mxu0 %v10156
  %v10234 = vpop.f32.mrb[0].mxu0
  %v10235 = vadd.f32 %v10146, %v10234
  %v10236 = vpop.f32.mrb[0].mxu0
  %10237 = vdwg.mxu0
  %v10238 = vpack.c.bf16 %v10230, %v10225
  %v10239 = vpack.c.bf16 %v10235, %v10235
  %v10241 = vsel %vm256, %v10238, 0
  %v10244 = vsel %vm256, %v10239, 0
  %10246 = vmatprep.subr.bf16.mxu0 0
  %10247 = vmatpush1.bf16.msra.mxu0 %v6450
  %10248 = vmatprep.subr.bf16.mxu0 0
  %10249 = vmatpush1.bf16.msra.mxu0 0
  %10250 = vmatprep.subr.bf16.mxu0 0
  %10251 = vmatpush1.bf16.msra.mxu0 0
  %10252 = vmatprep.subr.bf16.mxu0 0
  %10253 = vmatpush1.bf16.msra.mxu0 0
  %10254 = vmatprep.subr.bf16.mxu0 0
  %10255 = vmatpush1.bf16.msra.mxu0 0
  %10256 = vmatprep.subr.bf16.mxu0 0
  %10257 = vmatpush1.bf16.msra.mxu0 0
  %10258 = vmatprep.subr.bf16.mxu0 0
  %10259 = vmatpush1.bf16.msra.mxu0 0
  %10260 = vmatprep.subr.bf16.mxu0 0
  %10261 = vmatpush1.bf16.msra.mxu0 0
  %10262 = vmatprep.subr.bf16.mxu0 0
  %10263 = vmatpush1.bf16.msra.mxu0 0
  %10264 = vmatprep.subr.bf16.mxu0 0
  %10265 = vmatpush1.bf16.msra.mxu0 0
  %10266 = vmatprep.subr.bf16.mxu0 0
  %10267 = vmatpush1.bf16.msra.mxu0 0
  %10268 = vmatprep.subr.bf16.mxu0 0
  %10269 = vmatpush1.bf16.msra.mxu0 0
  %10270 = vmatprep.subr.bf16.mxu0 0
  %10271 = vmatpush1.bf16.msra.mxu0 0
  %10272 = vmatprep.subr.bf16.mxu0 0
  %10273 = vmatpush1.bf16.msra.mxu0 0
  %10274 = vmatprep.subr.bf16.mxu0 0
  %10275 = vmatpush1.bf16.msra.mxu0 0
  %10276 = vmatprep.subr.bf16.mxu0 0
  %10277 = vmatpush1.bf16.msra.mxu0 0
  %10278 = vmatprep.mubr.bf16.mxu0 0
  %10279 = vmatmul.mubr.bf16.gmra.mrb[0].mxu0 %v10241
  %v10280 = vpop.f32.mrb[0].mxu0
  %v10281 = vadd.f32 0.0, %v10280
  %v10282 = vpop.f32.mrb[0].mxu0
  %v10283 = vpop.f32.mrb[0].mxu0
  %v10284 = vadd.f32 0.0, %v10283
  %v10285 = vpop.f32.mrb[0].mxu0
  %10286 = vmatprep.mubr.bf16.mxu0 0
  %10287 = vmatmul.mubr.bf16.gmra.mrb[0].mxu0 %v10244
  %v10288 = vpop.f32.mrb[0].mxu0
  %v10289 = vadd.f32 0.0, %v10288
  %v10290 = vpop.f32.mrb[0].mxu0
  %v10291 = vpop.f32.mrb[0].mxu0
  %v10292 = vpop.f32.mrb[0].mxu0
  %10293 = vdwg.mxu0
  %10294 = vmatprep.subr.bf16.mxu0 0
  %10295 = vmatpush1.bf16.msra.mxu0 %v6514
  %10296 = vmatprep.subr.bf16.mxu0 0
  %10297 = vmatpush1.bf16.msra.mxu0 %v6515
  %10298 = vmatprep.subr.bf16.mxu0 0
  %10299 = vmatpush1.bf16.msra.mxu0 0
  %10300 = vmatprep.subr.bf16.mxu0 0
  %10301 = vmatpush1.bf16.msra.mxu0 0
  %10302 = vmatprep.subr.bf16.mxu0 0
  %10303 = vmatpush1.bf16.msra.mxu0 0
  %10304 = vmatprep.subr.bf16.mxu0 0
  %10305 = vmatpush1.bf16.msra.mxu0 0
  %10306 = vmatprep.subr.bf16.mxu0 0
  %10307 = vmatpush1.bf16.msra.mxu0 0
  %10308 = vmatprep.subr.bf16.mxu0 0
  %10309 = vmatpush1.bf16.msra.mxu0 0
  %10310 = vmatprep.subr.bf16.mxu0 0
  %10311 = vmatpush1.bf16.msra.mxu0 0
  %10312 = vmatprep.subr.bf16.mxu0 0
  %10313 = vmatpush1.bf16.msra.mxu0 0
  %10314 = vmatprep.subr.bf16.mxu0 0
  %10315 = vmatpush1.bf16.msra.mxu0 0
  %10316 = vmatprep.subr.bf16.mxu0 0
  %10317 = vmatpush1.bf16.msra.mxu0 0
  %10318 = vmatprep.subr.bf16.mxu0 0
  %10319 = vmatpush1.bf16.msra.mxu0 0
  %10320 = vmatprep.subr.bf16.mxu0 0
  %10321 = vmatpush1.bf16.msra.mxu0 0
  %10322 = vmatprep.subr.bf16.mxu0 0
  %10323 = vmatpush1.bf16.msra.mxu0 0
  %10324 = vmatprep.subr.bf16.mxu0 0
  %10325 = vmatpush1.bf16.msra.mxu0 0
  %10326 = vmatprep.mubr.bf16.mxu0 0
  %10327 = vmatmul.mubr.bf16.gmra.mrb[0].mxu0 %v9513
  %v10328 = vpop.f32.mrb[0].mxu0
  %v10329 = vadd.f32 %v10281, %v10328
  %v10330 = vpop.f32.mrb[0].mxu0
  %v10331 = vpop.f32.mrb[0].mxu0
  %v10332 = vadd.f32 %v10284, %v10331
  %v10333 = vpop.f32.mrb[0].mxu0
  %10334 = vmatprep.mubr.bf16.mxu0 0
  %10335 = vmatmul.mubr.bf16.gmra.mrb[0].mxu0 %v9516
  %v10336 = vpop.f32.mrb[0].mxu0
  %v10337 = vadd.f32 %v10289, %v10336
  %v10338 = vpop.f32.mrb[0].mxu0
  %v10339 = vpop.f32.mrb[0].mxu0
  %v10340 = vpop.f32.mrb[0].mxu0
  %10341 = vdwg.mxu0
  %v10342 = vadd.f32 %v10329, %v6571
  %v10343 = vadd.f32 %v10332, %v6571
  %v10344 = vadd.f32 %v10337, %v6571
  %v10345 = vmax.f32 %v10342, 0.0
  %v10346 = vmax.f32 %v10343, 0.0
  %v10347 = vmax.f32 %v10344, 0.0
  %v10348 = vpack.c.bf16 %v10346, %v10345
  %v10349 = vpack.c.bf16 %v10347, %v10347
  %10350 = vmatprep.subr.bf16.mxu0 0
  %10351 = vmatpush1.bf16.msra.mxu0 %v6636
  %10352 = vmatprep.subr.bf16.mxu0 0
  %10353 = vmatpush1.bf16.msra.mxu0 %v6637
  %10354 = vmatprep.subr.bf16.mxu0 0
  %10355 = vmatpush1.bf16.msra.mxu0 %v6638
  %10356 = vmatprep.subr.bf16.mxu0 0
  %10357 = vmatpush1.bf16.msra.mxu0 %v6639
  %10358 = vmatprep.subr.bf16.mxu0 0
  %10359 = vmatpush1.bf16.msra.mxu0 %v6640
  %10360 = vmatprep.subr.bf16.mxu0 0
  %10361 = vmatpush1.bf16.msra.mxu0 %v6641
  %10362 = vmatprep.subr.bf16.mxu0 0
  %10363 = vmatpush1.bf16.msra.mxu0 %v6642
  %10364 = vmatprep.subr.bf16.mxu0 0
  %10365 = vmatpush1.bf16.msra.mxu0 %v6643
  %10366 = vmatprep.subr.bf16.mxu0 0
  %10367 = vmatpush1.bf16.msra.mxu0 0
  %10368 = vmatprep.subr.bf16.mxu0 0
  %10369 = vmatpush1.bf16.msra.mxu0 0
  %10370 = vmatprep.subr.bf16.mxu0 0
  %10371 = vmatpush1.bf16.msra.mxu0 0
  %10372 = vmatprep.subr.bf16.mxu0 0
  %10373 = vmatpush1.bf16.msra.mxu0 0
  %10374 = vmatprep.subr.bf16.mxu0 0
  %10375 = vmatpush1.bf16.msra.mxu0 0
  %10376 = vmatprep.subr.bf16.mxu0 0
  %10377 = vmatpush1.bf16.msra.mxu0 0
  %10378 = vmatprep.subr.bf16.mxu0 0
  %10379 = vmatpush1.bf16.msra.mxu0 0
  %10380 = vmatprep.subr.bf16.mxu0 0
  %10381 = vmatpush1.bf16.msra.mxu0 0
  %10382 = vmatprep.mubr.bf16.mxu0 0
  %10383 = vmatmul.mubr.bf16.gmra.mrb[0].mxu0 %v10348
  %v10384 = vpop.f32.mrb[0].mxu0
  %v10385 = vadd.f32 %v6602, %v10384
  %v10386 = vpop.f32.mrb[0].mxu0
  %v10387 = vpop.f32.mrb[0].mxu0
  %v10388 = vadd.f32 %v6602, %v10387
  %v10389 = vpop.f32.mrb[0].mxu0
  %10390 = vmatprep.mubr.bf16.mxu0 0
  %10391 = vmatmul.mubr.bf16.gmra.mrb[0].mxu0 %v10349
  %v10392 = vpop.f32.mrb[0].mxu0
  %v10393 = vadd.f32 %v6602, %v10392
  %v10394 = vpop.f32.mrb[0].mxu0
  %v10395 = vpop.f32.mrb[0].mxu0
  %v10396 = vpop.f32.mrb[0].mxu0
  %10397 = vdwg.mxu0
  %v10398 = vmax.f32 %v10385, 0.0
  %v10399 = vmax.f32 %v10388, 0.0
  %v10400 = vmax.f32 %v10393, 0.0
  %v10401 = vpack.c.bf16 %v10399, %v10398
  %v10402 = vpack.c.bf16 %v10400, %v10400
  %10403 = vmatprep.subr.bf16.mxu0 0
  %10404 = vmatpush1.bf16.msra.mxu0 %v6760
  %10405 = vmatprep.subr.bf16.mxu0 0
  %10406 = vmatpush1.bf16.msra.mxu0 %v6761
  %10407 = vmatprep.subr.bf16.mxu0 0
  %10408 = vmatpush1.bf16.msra.mxu0 %v6762
  %10409 = vmatprep.subr.bf16.mxu0 0
  %10410 = vmatpush1.bf16.msra.mxu0 %v6763
  %10411 = vmatprep.subr.bf16.mxu0 0
  %10412 = vmatpush1.bf16.msra.mxu0 %v6764
  %10413 = vmatprep.subr.bf16.mxu0 0
  %10414 = vmatpush1.bf16.msra.mxu0 %v6765
  %10415 = vmatprep.subr.bf16.mxu0 0
  %10416 = vmatpush1.bf16.msra.mxu0 %v6766
  %10417 = vmatprep.subr.bf16.mxu0 0
  %10418 = vmatpush1.bf16.msra.mxu0 %v6767
  %10419 = vmatprep.subr.bf16.mxu0 0
  %10420 = vmatpush1.bf16.msra.mxu0 0
  %10421 = vmatprep.subr.bf16.mxu0 0
  %10422 = vmatpush1.bf16.msra.mxu0 0
  %10423 = vmatprep.subr.bf16.mxu0 0
  %10424 = vmatpush1.bf16.msra.mxu0 0
  %10425 = vmatprep.subr.bf16.mxu0 0
  %10426 = vmatpush1.bf16.msra.mxu0 0
  %10427 = vmatprep.subr.bf16.mxu0 0
  %10428 = vmatpush1.bf16.msra.mxu0 0
  %10429 = vmatprep.subr.bf16.mxu0 0
  %10430 = vmatpush1.bf16.msra.mxu0 0
  %10431 = vmatprep.subr.bf16.mxu0 0
  %10432 = vmatpush1.bf16.msra.mxu0 0
  %10433 = vmatprep.subr.bf16.mxu0 0
  %10434 = vmatpush1.bf16.msra.mxu0 0
  %10435 = vmatprep.mubr.bf16.mxu0 0
  %10436 = vmatmul.mubr.bf16.gmra.mrb[0].mxu0 %v10401
  %v10437 = vpop.f32.mrb[0].mxu0
  %v10438 = vadd.f32 %v6726, %v10437
  %v10439 = vpop.f32.mrb[0].mxu0
  %v10440 = vpop.f32.mrb[0].mxu0
  %v10441 = vadd.f32 %v6726, %v10440
  %v10442 = vpop.f32.mrb[0].mxu0
  %10443 = vmatprep.mubr.bf16.mxu0 0
  %10444 = vmatmul.mubr.bf16.gmra.mrb[0].mxu0 %v10402
  %v10445 = vpop.f32.mrb[0].mxu0
  %v10446 = vadd.f32 %v6726, %v10445
  %v10447 = vpop.f32.mrb[0].mxu0
  %v10448 = vpop.f32.mrb[0].mxu0
  %v10449 = vpop.f32.mrb[0].mxu0
  %10450 = vdwg.mxu0
  %v10451 = vmax.f32 %v10438, 0.0
  %v10452 = vmax.f32 %v10441, 0.0
  %v10453 = vmax.f32 %v10446, 0.0
  %v10454 = vpack.c.bf16 %v10452, %v10451
  %v10455 = vpack.c.bf16 %v10453, %v10453
  %v10457 = vsel %vm1397, %v10454, 0
  %v10460 = vsel %vm1397, %v10455, 0
  %10462 = vmatprep.subr.bf16.mxu0 0
  %10463 = vmatpush1.bf16.msra.mxu0 %v6860
  %10464 = vmatprep.subr.bf16.mxu0 0
  %10465 = vmatpush1.bf16.msra.mxu0 %v6861
  %10466 = vmatprep.subr.bf16.mxu0 0
  %10467 = vmatpush1.bf16.msra.mxu0 %v6862
  %10468 = vmatprep.subr.bf16.mxu0 0
  %10469 = vmatpush1.bf16.msra.mxu0 %v6863
  %10470 = vmatprep.subr.bf16.mxu0 0
  %10471 = vmatpush1.bf16.msra.mxu0 0
  %10472 = vmatprep.subr.bf16.mxu0 0
  %10473 = vmatpush1.bf16.msra.mxu0 0
  %10474 = vmatprep.subr.bf16.mxu0 0
  %10475 = vmatpush1.bf16.msra.mxu0 0
  %10476 = vmatprep.subr.bf16.mxu0 0
  %10477 = vmatpush1.bf16.msra.mxu0 0
  %10478 = vmatprep.subr.bf16.mxu0 0
  %10479 = vmatpush1.bf16.msra.mxu0 0
  %10480 = vmatprep.subr.bf16.mxu0 0
  %10481 = vmatpush1.bf16.msra.mxu0 0
  %10482 = vmatprep.subr.bf16.mxu0 0
  %10483 = vmatpush1.bf16.msra.mxu0 0
  %10484 = vmatprep.subr.bf16.mxu0 0
  %10485 = vmatpush1.bf16.msra.mxu0 0
  %10486 = vmatprep.subr.bf16.mxu0 0
  %10487 = vmatpush1.bf16.msra.mxu0 0
  %10488 = vmatprep.subr.bf16.mxu0 0
  %10489 = vmatpush1.bf16.msra.mxu0 0
  %10490 = vmatprep.subr.bf16.mxu0 0
  %10491 = vmatpush1.bf16.msra.mxu0 0
  %10492 = vmatprep.subr.bf16.mxu0 0
  %10493 = vmatpush1.bf16.msra.mxu0 0
  %10494 = vmatprep.mubr.bf16.mxu0 0
  %10495 = vmatmul.mubr.bf16.gmra.mrb[0].mxu0 %v10457
  %v10496 = vpop.f32.mrb[0].mxu0
  %v10497 = vadd.f32 %v6842, %v10496
  %v10498 = vpop.f32.mrb[0].mxu0
  %v10499 = vpop.f32.mrb[0].mxu0
  %v10500 = vadd.f32 %v6842, %v10499
  %v10501 = vpop.f32.mrb[0].mxu0
  %10502 = vmatprep.mubr.bf16.mxu0 0
  %10503 = vmatmul.mubr.bf16.gmra.mrb[0].mxu0 %v10460
  %v10504 = vpop.f32.mrb[0].mxu0
  %v10505 = vadd.f32 %v6842, %v10504
  %v10506 = vpop.f32.mrb[0].mxu0
  %v10507 = vpop.f32.mrb[0].mxu0
  %v10508 = vpop.f32.mrb[0].mxu0
  %10509 = vdwg.mxu0
  %v10510 = vadd.f32 %v8716, %v10497
  %v10511 = vadd.f32 %v8717, %v10500
  %v10512 = vadd.f32 %v8718, %v10505
  %10516 = vrot.lane.b32.xlu0 %v6922, 10
  %v10517 = vpop.permute.xlu0 %10516
  %10518 = vrot.lane.b32.xlu0 %v6923, 10
  %v10519 = vpop.permute.xlu0 %10518
  %10520 = vrot.lane.b32.xlu0 %v6924, 10
  %v10521 = vpop.permute.xlu0 %10520
  %10528 = vrot.lane.b32.xlu0 %v8716, 20
  %v10529 = vpop.permute.xlu0 %10528
  %10530 = vrot.lane.b32.xlu0 %v8717, 20
  %v10531 = vpop.permute.xlu0 %10530
  %10532 = vrot.lane.b32.xlu0 %v8718, 20
  %v10533 = vpop.permute.xlu0 %10532
  %10540 = vrot.lane.b32.xlu0 %v10510, 30
  %v10541 = vpop.permute.xlu0 %10540
  %10542 = vrot.lane.b32.xlu0 %v10511, 30
  %v10543 = vpop.permute.xlu0 %10542
  %10544 = vrot.lane.b32.xlu0 %v10512, 30
  %v10545 = vpop.permute.xlu0 %10544
  %v10549 = vsel %vm4688, %v4648, %v10517
  %v10550 = vsel %vm4688, %v4651, %v10519
  %v10551 = vsel %vm4688, %v4656, %v10521
  %vm10552 = vcmask 162816
  %v10553 = vsel %vm10552, %v10549, %v10529
  %v10554 = vsel %vm10552, %v10550, %v10531
  %v10555 = vsel %vm10552, %v10551, %v10533
  %vm10556 = vcmask 244736
  %v10557 = vsel %vm10556, %v10553, %v10541
  %v10558 = vsel %vm10556, %v10554, %v10543
  %v10559 = vsel %vm10556, %v10555, %v10545
  %vm10560 = vcmask 326656
  %10561 = vst.msk [vmem:[%s69] sm:$0xff] %vm10560, %v10557
  %10562 = vst.msk [vmem:[%s69 + $0x8] sm:$0xff] %vm10560, %v10558
  %10563 = vst.msk [vmem:[%s69 + $0x10] sm:$0xff] %vm10560, %v10559
  %10567 = vrot.lane.b32.xlu0 %v6425, 16
  %v10568 = vpop.permute.xlu0 %10567
  %10569 = vrot.lane.b32.xlu0 %v6430, 16
  %v10570 = vpop.permute.xlu0 %10569
  %10571 = vrot.lane.b32.xlu0 %v6435, 16
  %v10572 = vpop.permute.xlu0 %10571
  %10579 = vrot.lane.b32.xlu0 %v8431, 32
  %v10580 = vpop.permute.xlu0 %10579
  %10581 = vrot.lane.b32.xlu0 %v8436, 32
  %v10582 = vpop.permute.xlu0 %10581
  %10583 = vrot.lane.b32.xlu0 %v8441, 32
  %v10584 = vpop.permute.xlu0 %10583
  %10591 = vrot.lane.b32.xlu0 %v10225, 48
  %v10592 = vpop.permute.xlu0 %10591
  %10593 = vrot.lane.b32.xlu0 %v10230, 48
  %v10594 = vpop.permute.xlu0 %10593
  %10595 = vrot.lane.b32.xlu0 %v10235, 48
  %v10596 = vpop.permute.xlu0 %10595
  %v10600 = vsel %vm256, %v2164, %v10568
  %v10601 = vsel %vm256, %v2165, %v10570
  %v10602 = vsel %vm256, %v2166, %v10572
  %v10603 = vsel %vm1603, %v10600, %v10580
  %v10604 = vsel %vm1603, %v10601, %v10582
  %v10605 = vsel %vm1603, %v10602, %v10584
  %vm10606 = vcmask 392192
  %v10607 = vsel %vm10606, %v10603, %v10592
  %v10608 = vsel %vm10606, %v10604, %v10594
  %v10609 = vsel %vm10606, %v10605, %v10596
  %10610 = vst.msk [vmem:[%s71] sm:$0xff] %vm1397, %v10607
  %10611 = vst.msk [vmem:[%s71 + $0x8] sm:$0xff] %vm1397, %v10608
  %10612 = vst.msk [vmem:[%s71 + $0x10] sm:$0xff] %vm1397, %v10609
  // Predicated region
  $region138: #{mrf_cvae_forward_noise.1} parent=0 // pred_check
    _
  $region139: #{mrf_cvae_forward_noise.1} parent=0 // pred_check_branch
    %10614 = sbr.rel (0) target = $region141
  $region140: #{mrf_cvae_forward_noise.1} parent=0 // pred_region
    _
  $region141: #{mrf_cvae_forward_noise.1} parent=0 // pred_fallthru
    _
  // Predicated region
  $region142: #{mrf_cvae_forward_noise.1} parent=0 // pred_check
    _
  $region143: #{mrf_cvae_forward_noise.1} parent=0 // pred_check_branch
    %10616 = sbr.rel (0) target = $region145
  $region144: #{mrf_cvae_forward_noise.1} parent=0 // pred_region
    _
  $region145: #{mrf_cvae_forward_noise.1} parent=0 // pred_fallthru
    _
  // Predicated region
  $region146: #{mrf_cvae_forward_noise.1} parent=0 // pred_check
    _
  $region147: #{mrf_cvae_forward_noise.1} parent=0 // pred_check_branch
    %10618 = sbr.rel (0) target = $region149
  $region148: #{mrf_cvae_forward_noise.1} parent=0 // pred_region
    _
  $region149: #{mrf_cvae_forward_noise.1} parent=0 // pred_fallthru
    _
  // Predicated region
  $region150: #{mrf_cvae_forward_noise.1} parent=0 // pred_check
    _
  $region151: #{mrf_cvae_forward_noise.1} parent=0 // pred_check_branch
    %10620 = sbr.rel (0) target = $region153
  $region152: #{mrf_cvae_forward_noise.1} parent=0 // pred_region
    _
  $region153: #{mrf_cvae_forward_noise.1} parent=0 // pred_fallthru
    _

</llo_original>
